<compile_context>
chip_gen: v7x
topology: tpu7x:2x2x1
jax: 0.10.0
libtpu: 0.0.40
codegen_flags: <defaults>
</compile_context>

<pallas_src>
import math
import numpy as np
import jax
import jax.numpy as jnp
from jax.experimental import pallas as pl
from jax.experimental.pallas import tpu as pltpu

NEG = -9000000000000000.0


def get_att_weights(frame_num, joint_num):
    """Reproduces MultiHeadedAttention.get_att_weights (values are 0/1)."""
    T = frame_num * joint_num
    t_att = np.ones((T, T), dtype=np.float32)
    for i in range(frame_num):
        rb = i * joint_num
        t_att[rb:rb + joint_num, rb:rb + joint_num] = 0.0
    s_att = 1.0 - t_att
    t_att = t_att + np.eye(T, dtype=np.float32)
    return t_att, s_att


def make_mha_kernel(h_num, h_dim, use_mask):
    HD = h_num * h_dim

    def mha_kernel(x_ref, w_ref, b_ref, mbias_ref, out_ref, attn_ref):
        Bt, T, D_in = x_ref.shape
        # Fused Q|K|V projection: one MXU matmul over Bt*T rows.
        x2 = x_ref[...].reshape(Bt * T, D_in)                       # (Bt*T, D_in)
        qkv = jnp.dot(x2, w_ref[...],
                      preferred_element_type=jnp.float32) + b_ref[...]
        qkv = qkv.reshape(Bt, T, 3 * HD)                            # (Bt, T, 3*HD)
        mbias = mbias_ref[...]                                      # (T, T) additive mask

        ctx_parts = []
        for h in range(h_num):                                      # small, fully unrolled
            lo = h * h_dim
            q = qkv[:, :, lo:lo + h_dim]                            # (Bt, T, h_dim)
            k = qkv[:, :, HD + lo:HD + lo + h_dim]
            v = jnp.maximum(qkv[:, :, 2 * HD + lo:2 * HD + lo + h_dim], 0.0)

            # Batched over Bt; contraction on the last dim of both (no .T op).
            s = jnp.einsum('bqd,bkd->bqk', q, k,
                           preferred_element_type=jnp.float32)      # (Bt, T, T)
            if use_mask:
                s = s + mbias                                       # additive-only mask
            m = jnp.max(s, axis=-1, keepdims=True)
            e = jnp.exp(s - m)
            p = e * pl.reciprocal(jnp.sum(e, axis=-1, keepdims=True),
                                  approx=False)
            attn_ref[:, h] = p                                      # (Bt, T, T)
            ctx_parts.append(
                jnp.einsum('bqk,bkd->bqd', p, v,
                           preferred_element_type=jnp.float32))     # (Bt, T, h_dim)

        # Single lane-dense context store: (Bt, T, H*h_dim).
        out_ref[...] = jnp.concatenate(ctx_parts, axis=-1)

    return mha_kernel


def multi_headed_attention(x, params, att_mask, h_num, h_dim, use_mask,
                           block_rows=128):
    """x: [B, T, D_in] f32. Returns (out [B, T, H*h_dim], attn [B, H, T, T])."""
    B, T, D_in = x.shape
    HD = h_num * h_dim
    wq, bq, wk, bk, wv, bv = params

    # Fold the 1/sqrt(h_dim) score scale into the query projection (weight+bias)
    # and fuse Q|K|V into a single projection.
    scale = 1.0 / math.sqrt(h_dim)
    wqkv = jnp.concatenate([wq * scale, wk, wv], axis=1)            # (D_in, 3*HD)
    bqkv = jnp.concatenate([bq * scale, bk, bv], axis=1)            # (1, 3*HD)

    if use_mask:
        mask_bias = ((1.0 - att_mask) * NEG).astype(jnp.float32)    # (T, T)
    else:
        mask_bias = jnp.zeros((T, T), jnp.float32)

    # Batch Bt examples per grid step so the projection matmul has ~128 rows.
    Bt = max(1, min(B, block_rows // T)) if T <= block_rows else 1
    Bpad = ((B + Bt - 1) // Bt) * Bt
    if Bpad != B:
        x = jnp.pad(x, ((0, Bpad - B), (0, 0), (0, 0)))
    n_blocks = Bpad // Bt

    kernel = make_mha_kernel(h_num, h_dim, use_mask)
    full = lambda shape: pl.BlockSpec(shape, lambda b: tuple(0 for _ in shape))

    out, attn = pl.pallas_call(
        kernel,
        out_shape=(
            jax.ShapeDtypeStruct((Bpad, T, HD), jnp.float32),
            jax.ShapeDtypeStruct((Bpad, h_num, T, T), jnp.float32),
        ),
        grid_spec=pltpu.PrefetchScalarGridSpec(
            num_scalar_prefetch=0,
            grid=(n_blocks,),
            in_specs=[
                pl.BlockSpec((Bt, T, D_in), lambda b: (b, 0, 0)),   # x block
                full((D_in, 3 * HD)),                               # fused W
                full((1, 3 * HD)),                                  # fused bias
                full((T, T)),                                       # additive mask bias
            ],
            out_specs=[
                pl.BlockSpec((Bt, T, HD), lambda b: (b, 0, 0)),
                pl.BlockSpec((Bt, h_num, T, T), lambda b: (b, 0, 0, 0)),
            ],
        ),
        compiler_params=pltpu.CompilerParams(
            dimension_semantics=("parallel",)),
    )(x, wqkv, bqkv, mask_bias)

    return out[:B], attn[:B]


def reference_jax(x, params, att_mask, h_num, h_dim, use_mask):
    """Pure-JAX reference mirroring the PyTorch forward (for verification)."""
    wq, bq, wk, bk, wv, bv = params
    B, T, _ = x.shape
    q = (x @ wq + bq).reshape(B, T, h_num, h_dim).transpose(0, 2, 1, 3)
    k = (x @ wk + bk).reshape(B, T, h_num, h_dim).transpose(0, 2, 1, 3)
    v = jnp.maximum(x @ wv + bv, 0.0).reshape(B, T, h_num, h_dim).transpose(0, 2, 1, 3)
    scores = jnp.einsum('bhqd,bhkd->bhqk', q, k) / math.sqrt(h_dim)
    if use_mask:
        scores = scores * att_mask + (1.0 - att_mask) * NEG
    p = jax.nn.softmax(scores, axis=-1)
    out = jnp.einsum('bhqk,bhkd->bhqd', p, v)
    out = out.transpose(0, 2, 1, 3).reshape(B, T, h_num * h_dim)
    return out, p


if __name__ == "__main__":
    # Module hyper-parameters (small, consistent with the PyTorch __init__).
    h_num, h_dim = 4, 8
    input_dim = 32
    frame_num, joint_num = 4, 4
    T = frame_num * joint_num          # sequence length = 16
    B = 16                             # 2 grid steps of 8 batches (128 MXU rows)
    domain = "spatial"                 # 'temporal' | 'spatial' | None

    t_att, s_att = get_att_weights(frame_num, joint_num)
    if domain == "temporal":
        mask_np, use_mask = t_att, True
    elif domain == "spatial":
        mask_np, use_mask = s_att, True
    else:
        mask_np, use_mask = np.ones((T, T), np.float32), False
    att_mask = jnp.asarray(mask_np)

    # Deterministic parameters (synthetic; no checkpoint load).
    key = jax.random.PRNGKey(0)
    ks = jax.random.split(key, 7)
    HD = h_num * h_dim
    wscale = 1.0 / math.sqrt(input_dim)
    wq = jax.random.normal(ks[0], (input_dim, HD), jnp.float32) * wscale
    bq = jax.random.normal(ks[1], (1, HD), jnp.float32) * 0.01
    wk = jax.random.normal(ks[2], (input_dim, HD), jnp.float32) * wscale
    bk = jax.random.normal(ks[3], (1, HD), jnp.float32) * 0.01
    wv = jax.random.normal(ks[4], (input_dim, HD), jnp.float32) * wscale
    bv = jax.random.normal(ks[5], (1, HD), jnp.float32) * 0.01
    params = (wq, bq, wk, bk, wv, bv)

    x = jax.random.normal(ks[6], (B, T, input_dim), jnp.float32)

    out, attn = multi_headed_attention(x, params, att_mask, h_num, h_dim, use_mask)
    out = jax.block_until_ready(out)
    attn = jax.block_until_ready(attn)

    # Verify against a pure-JAX reference of the PyTorch forward.
    out_ref, attn_ref = reference_jax(x, params, att_mask, h_num, h_dim, use_mask)
    np.testing.assert_allclose(np.asarray(out), np.asarray(out_ref),
                               rtol=1e-4, atol=1e-5)
    np.testing.assert_allclose(np.asarray(attn), np.asarray(attn_ref),
                               rtol=1e-4, atol=1e-5)

    print("KERNEL_OK")
</pallas_src>

<mosaic_0001>
module attributes {stable_mosaic.version = 11 : i64} {
  func.func @mha_kernel(%arg0: i32, %arg1: memref<8x16x32xf32, #tpu.memory_space<vmem>>, %arg2: memref<32x96xf32, #tpu.memory_space<vmem>>, %arg3: memref<1x96xf32, #tpu.memory_space<vmem>>, %arg4: memref<16x16xf32, #tpu.memory_space<vmem>>, %arg5: memref<8x16x32xf32, #tpu.memory_space<vmem>>, %arg6: memref<8x4x16x16xf32, #tpu.memory_space<vmem>>) attributes {dimension_semantics = [#tpu.dimension_semantics<parallel>], iteration_bounds = array<i64: 2>, scalar_prefetch = 0 : i64, scratch_operands = 0 : i64, tpu.core_type = #tpu.core_type<tc>, window_params = [{transform_indices = @transform_0, window_bounds = array<i64: 8, 16, 32>}, {pipeline_mode = #tpu.pipeline_mode<synchronous>, transform_indices = @transform_1, window_bounds = array<i64: 32, 96>}, {pipeline_mode = #tpu.pipeline_mode<synchronous>, transform_indices = @transform_2, window_bounds = array<i64: 1, 96>}, {pipeline_mode = #tpu.pipeline_mode<synchronous>, transform_indices = @transform_3, window_bounds = array<i64: 16, 16>}, {transform_indices = @transform_4, window_bounds = array<i64: 8, 16, 32>}, {transform_indices = @transform_5, window_bounds = array<i64: 8, 4, 16, 16>}]} {
    %c0 = arith.constant 0 : index
    %c0_0 = arith.constant 0 : index
    %c0_1 = arith.constant 0 : index
    %0 = vector.load %arg1[%c0, %c0_0, %c0_1] : memref<8x16x32xf32, #tpu.memory_space<vmem>>, vector<8x16x32xf32>
    %1 = vector.shape_cast %0 : vector<8x16x32xf32> to vector<128x32xf32>
    %c0_2 = arith.constant 0 : index
    %c0_3 = arith.constant 0 : index
    %2 = vector.load %arg2[%c0_2, %c0_3] : memref<32x96xf32, #tpu.memory_space<vmem>>, vector<32x96xf32>
    %cst = arith.constant dense<0.000000e+00> : vector<128x96xf32>
    %3 = tpu.matmul %1, %2, %cst {dimension_numbers = #tpu.dot_dimension_numbers<[1], [0], [0], [1], [0, 0, 1, 1], [], []>} : vector<128x32xf32>, vector<32x96xf32>, vector<128x96xf32> -> vector<128x96xf32>
    %c0_4 = arith.constant 0 : index
    %c0_5 = arith.constant 0 : index
    %4 = vector.load %arg3[%c0_4, %c0_5] : memref<1x96xf32, #tpu.memory_space<vmem>>, vector<1x96xf32>
    %5 = vector.broadcast %4 : vector<1x96xf32> to vector<128x96xf32>
    %6 = arith.addf %3, %5 : vector<128x96xf32>
    %7 = vector.shape_cast %6 : vector<128x96xf32> to vector<8x16x96xf32>
    %c0_6 = arith.constant 0 : index
    %c0_7 = arith.constant 0 : index
    %8 = vector.load %arg4[%c0_6, %c0_7] : memref<16x16xf32, #tpu.memory_space<vmem>>, vector<16x16xf32>
    %9 = vector.extract_strided_slice %7 {offsets = [0, 0, 0], sizes = [8, 16, 8], strides = [1, 1, 1]} : vector<8x16x96xf32> to vector<8x16x8xf32>
    %10 = vector.extract_strided_slice %7 {offsets = [0, 0, 32], sizes = [8, 16, 8], strides = [1, 1, 1]} : vector<8x16x96xf32> to vector<8x16x8xf32>
    %11 = vector.extract_strided_slice %7 {offsets = [0, 0, 64], sizes = [8, 16, 8], strides = [1, 1, 1]} : vector<8x16x96xf32> to vector<8x16x8xf32>
    %cst_8 = arith.constant 0.000000e+00 : f32
    %12 = vector.broadcast %cst_8 : f32 to vector<8x16x8xf32>
    %13 = arith.maximumf %11, %12 : vector<8x16x8xf32>
    "tpu.trace_start"() <{level = 10 : i32, message = "bqd,bkd->bqk"}> : () -> ()
    %cst_9 = arith.constant dense<0.000000e+00> : vector<8x16x16xf32>
    %14 = tpu.matmul %9, %10, %cst_9 {dimension_numbers = #tpu.dot_dimension_numbers<[2], [2], [1], [1], [0, 0, 0, 1, 1, 1], [0], [0]>} : vector<8x16x8xf32>, vector<8x16x8xf32>, vector<8x16x16xf32> -> vector<8x16x16xf32>
    "tpu.trace_stop"() : () -> ()
    %15 = vector.shape_cast %8 : vector<16x16xf32> to vector<1x16x16xf32>
    %16 = vector.broadcast %15 : vector<1x16x16xf32> to vector<8x16x16xf32>
    %17 = arith.addf %14, %16 : vector<8x16x16xf32>
    %cst_10 = arith.constant dense<0xFF800000> : vector<8x16xf32>
    %18 = vector.multi_reduction <maximumf>, %17, %cst_10 [2] : vector<8x16x16xf32> to vector<8x16xf32>
    %19 = vector.shape_cast %18 : vector<8x16xf32> to vector<8x16x1xf32>
    %20 = vector.broadcast %19 : vector<8x16x1xf32> to vector<8x16x16xf32>
    %21 = arith.subf %17, %20 : vector<8x16x16xf32>
    %22 = math.exp %21 : vector<8x16x16xf32>
    %cst_11 = arith.constant dense<0.000000e+00> : vector<8x16xf32>
    %23 = vector.multi_reduction <add>, %22, %cst_11 [2] : vector<8x16x16xf32> to vector<8x16xf32>
    %24 = vector.shape_cast %23 : vector<8x16xf32> to vector<8x16x1xf32>
    %25 = tpu.reciprocal %24 : vector<8x16x1xf32> -> vector<8x16x1xf32>
    %26 = vector.broadcast %25 : vector<8x16x1xf32> to vector<8x16x16xf32>
    %27 = arith.mulf %22, %26 : vector<8x16x16xf32>
    %c0_12 = arith.constant 0 : index
    %c0_13 = arith.constant 0 : index
    %c0_14 = arith.constant 0 : index
    %c0_15 = arith.constant 0 : index
    %28 = vector.load %arg6[%c0_12, %c0_13, %c0_14, %c0_15] : memref<8x4x16x16xf32, #tpu.memory_space<vmem>>, vector<8x1x16x16xf32>
    %29 = vector.shape_cast %28 : vector<8x1x16x16xf32> to vector<8x16x16xf32>
    %30 = vector.shape_cast %27 : vector<8x16x16xf32> to vector<8x1x16x16xf32>
    tpu.vector_store %arg6[%c0_12, %c0_13, %c0_14, %c0_15], %30 {strides = array<i32>} : memref<8x4x16x16xf32, #tpu.memory_space<vmem>>, vector<8x1x16x16xf32>,
    "tpu.trace_start"() <{level = 10 : i32, message = "bqk,bkd->bqd"}> : () -> ()
    %cst_16 = arith.constant dense<0.000000e+00> : vector<8x16x8xf32>
    %31 = tpu.matmul %27, %13, %cst_16 {dimension_numbers = #tpu.dot_dimension_numbers<[2], [1], [1], [2], [0, 0, 0, 1, 1, 2], [0], [0]>} : vector<8x16x16xf32>, vector<8x16x8xf32>, vector<8x16x8xf32> -> vector<8x16x8xf32>
    "tpu.trace_stop"() : () -> ()
    %32 = vector.extract_strided_slice %7 {offsets = [0, 0, 8], sizes = [8, 16, 8], strides = [1, 1, 1]} : vector<8x16x96xf32> to vector<8x16x8xf32>
    %33 = vector.extract_strided_slice %7 {offsets = [0, 0, 40], sizes = [8, 16, 8], strides = [1, 1, 1]} : vector<8x16x96xf32> to vector<8x16x8xf32>
    %34 = vector.extract_strided_slice %7 {offsets = [0, 0, 72], sizes = [8, 16, 8], strides = [1, 1, 1]} : vector<8x16x96xf32> to vector<8x16x8xf32>
    %cst_17 = arith.constant 0.000000e+00 : f32
    %35 = vector.broadcast %cst_17 : f32 to vector<8x16x8xf32>
    %36 = arith.maximumf %34, %35 : vector<8x16x8xf32>
    "tpu.trace_start"() <{level = 10 : i32, message = "bqd,bkd->bqk"}> : () -> ()
    %cst_18 = arith.constant dense<0.000000e+00> : vector<8x16x16xf32>
    %37 = tpu.matmul %32, %33, %cst_18 {dimension_numbers = #tpu.dot_dimension_numbers<[2], [2], [1], [1], [0, 0, 0, 1, 1, 1], [0], [0]>} : vector<8x16x8xf32>, vector<8x16x8xf32>, vector<8x16x16xf32> -> vector<8x16x16xf32>
    "tpu.trace_stop"() : () -> ()
    %38 = vector.shape_cast %8 : vector<16x16xf32> to vector<1x16x16xf32>
    %39 = vector.broadcast %38 : vector<1x16x16xf32> to vector<8x16x16xf32>
    %40 = arith.addf %37, %39 : vector<8x16x16xf32>
    %cst_19 = arith.constant dense<0xFF800000> : vector<8x16xf32>
    %41 = vector.multi_reduction <maximumf>, %40, %cst_19 [2] : vector<8x16x16xf32> to vector<8x16xf32>
    %42 = vector.shape_cast %41 : vector<8x16xf32> to vector<8x16x1xf32>
    %43 = vector.broadcast %42 : vector<8x16x1xf32> to vector<8x16x16xf32>
    %44 = arith.subf %40, %43 : vector<8x16x16xf32>
    %45 = math.exp %44 : vector<8x16x16xf32>
    %cst_20 = arith.constant dense<0.000000e+00> : vector<8x16xf32>
    %46 = vector.multi_reduction <add>, %45, %cst_20 [2] : vector<8x16x16xf32> to vector<8x16xf32>
    %47 = vector.shape_cast %46 : vector<8x16xf32> to vector<8x16x1xf32>
    %48 = tpu.reciprocal %47 : vector<8x16x1xf32> -> vector<8x16x1xf32>
    %49 = vector.broadcast %48 : vector<8x16x1xf32> to vector<8x16x16xf32>
    %50 = arith.mulf %45, %49 : vector<8x16x16xf32>
    %c0_21 = arith.constant 0 : index
    %c1 = arith.constant 1 : index
    %c0_22 = arith.constant 0 : index
    %c0_23 = arith.constant 0 : index
    %51 = vector.load %arg6[%c0_21, %c1, %c0_22, %c0_23] : memref<8x4x16x16xf32, #tpu.memory_space<vmem>>, vector<8x1x16x16xf32>
    %52 = vector.shape_cast %51 : vector<8x1x16x16xf32> to vector<8x16x16xf32>
    %53 = vector.shape_cast %50 : vector<8x16x16xf32> to vector<8x1x16x16xf32>
    tpu.vector_store %arg6[%c0_21, %c1, %c0_22, %c0_23], %53 {strides = array<i32>} : memref<8x4x16x16xf32, #tpu.memory_space<vmem>>, vector<8x1x16x16xf32>,
    "tpu.trace_start"() <{level = 10 : i32, message = "bqk,bkd->bqd"}> : () -> ()
    %cst_24 = arith.constant dense<0.000000e+00> : vector<8x16x8xf32>
    %54 = tpu.matmul %50, %36, %cst_24 {dimension_numbers = #tpu.dot_dimension_numbers<[2], [1], [1], [2], [0, 0, 0, 1, 1, 2], [0], [0]>} : vector<8x16x16xf32>, vector<8x16x8xf32>, vector<8x16x8xf32> -> vector<8x16x8xf32>
    "tpu.trace_stop"() : () -> ()
    %55 = vector.extract_strided_slice %7 {offsets = [0, 0, 16], sizes = [8, 16, 8], strides = [1, 1, 1]} : vector<8x16x96xf32> to vector<8x16x8xf32>
    %56 = vector.extract_strided_slice %7 {offsets = [0, 0, 48], sizes = [8, 16, 8], strides = [1, 1, 1]} : vector<8x16x96xf32> to vector<8x16x8xf32>
    %57 = vector.extract_strided_slice %7 {offsets = [0, 0, 80], sizes = [8, 16, 8], strides = [1, 1, 1]} : vector<8x16x96xf32> to vector<8x16x8xf32>
    %cst_25 = arith.constant 0.000000e+00 : f32
    %58 = vector.broadcast %cst_25 : f32 to vector<8x16x8xf32>
    %59 = arith.maximumf %57, %58 : vector<8x16x8xf32>
    "tpu.trace_start"() <{level = 10 : i32, message = "bqd,bkd->bqk"}> : () -> ()
    %cst_26 = arith.constant dense<0.000000e+00> : vector<8x16x16xf32>
    %60 = tpu.matmul %55, %56, %cst_26 {dimension_numbers = #tpu.dot_dimension_numbers<[2], [2], [1], [1], [0, 0, 0, 1, 1, 1], [0], [0]>} : vector<8x16x8xf32>, vector<8x16x8xf32>, vector<8x16x16xf32> -> vector<8x16x16xf32>
    "tpu.trace_stop"() : () -> ()
    %61 = vector.shape_cast %8 : vector<16x16xf32> to vector<1x16x16xf32>
    %62 = vector.broadcast %61 : vector<1x16x16xf32> to vector<8x16x16xf32>
    %63 = arith.addf %60, %62 : vector<8x16x16xf32>
    %cst_27 = arith.constant dense<0xFF800000> : vector<8x16xf32>
    %64 = vector.multi_reduction <maximumf>, %63, %cst_27 [2] : vector<8x16x16xf32> to vector<8x16xf32>
    %65 = vector.shape_cast %64 : vector<8x16xf32> to vector<8x16x1xf32>
    %66 = vector.broadcast %65 : vector<8x16x1xf32> to vector<8x16x16xf32>
    %67 = arith.subf %63, %66 : vector<8x16x16xf32>
    %68 = math.exp %67 : vector<8x16x16xf32>
    %cst_28 = arith.constant dense<0.000000e+00> : vector<8x16xf32>
    %69 = vector.multi_reduction <add>, %68, %cst_28 [2] : vector<8x16x16xf32> to vector<8x16xf32>
    %70 = vector.shape_cast %69 : vector<8x16xf32> to vector<8x16x1xf32>
    %71 = tpu.reciprocal %70 : vector<8x16x1xf32> -> vector<8x16x1xf32>
    %72 = vector.broadcast %71 : vector<8x16x1xf32> to vector<8x16x16xf32>
    %73 = arith.mulf %68, %72 : vector<8x16x16xf32>
    %c0_29 = arith.constant 0 : index
    %c2 = arith.constant 2 : index
    %c0_30 = arith.constant 0 : index
    %c0_31 = arith.constant 0 : index
    %74 = vector.load %arg6[%c0_29, %c2, %c0_30, %c0_31] : memref<8x4x16x16xf32, #tpu.memory_space<vmem>>, vector<8x1x16x16xf32>
    %75 = vector.shape_cast %74 : vector<8x1x16x16xf32> to vector<8x16x16xf32>
    %76 = vector.shape_cast %73 : vector<8x16x16xf32> to vector<8x1x16x16xf32>
    tpu.vector_store %arg6[%c0_29, %c2, %c0_30, %c0_31], %76 {strides = array<i32>} : memref<8x4x16x16xf32, #tpu.memory_space<vmem>>, vector<8x1x16x16xf32>,
    "tpu.trace_start"() <{level = 10 : i32, message = "bqk,bkd->bqd"}> : () -> ()
    %cst_32 = arith.constant dense<0.000000e+00> : vector<8x16x8xf32>
    %77 = tpu.matmul %73, %59, %cst_32 {dimension_numbers = #tpu.dot_dimension_numbers<[2], [1], [1], [2], [0, 0, 0, 1, 1, 2], [0], [0]>} : vector<8x16x16xf32>, vector<8x16x8xf32>, vector<8x16x8xf32> -> vector<8x16x8xf32>
    "tpu.trace_stop"() : () -> ()
    %78 = vector.extract_strided_slice %7 {offsets = [0, 0, 24], sizes = [8, 16, 8], strides = [1, 1, 1]} : vector<8x16x96xf32> to vector<8x16x8xf32>
    %79 = vector.extract_strided_slice %7 {offsets = [0, 0, 56], sizes = [8, 16, 8], strides = [1, 1, 1]} : vector<8x16x96xf32> to vector<8x16x8xf32>
    %80 = vector.extract_strided_slice %7 {offsets = [0, 0, 88], sizes = [8, 16, 8], strides = [1, 1, 1]} : vector<8x16x96xf32> to vector<8x16x8xf32>
    %cst_33 = arith.constant 0.000000e+00 : f32
    %81 = vector.broadcast %cst_33 : f32 to vector<8x16x8xf32>
    %82 = arith.maximumf %80, %81 : vector<8x16x8xf32>
    "tpu.trace_start"() <{level = 10 : i32, message = "bqd,bkd->bqk"}> : () -> ()
    %cst_34 = arith.constant dense<0.000000e+00> : vector<8x16x16xf32>
    %83 = tpu.matmul %78, %79, %cst_34 {dimension_numbers = #tpu.dot_dimension_numbers<[2], [2], [1], [1], [0, 0, 0, 1, 1, 1], [0], [0]>} : vector<8x16x8xf32>, vector<8x16x8xf32>, vector<8x16x16xf32> -> vector<8x16x16xf32>
    "tpu.trace_stop"() : () -> ()
    %84 = vector.shape_cast %8 : vector<16x16xf32> to vector<1x16x16xf32>
    %85 = vector.broadcast %84 : vector<1x16x16xf32> to vector<8x16x16xf32>
    %86 = arith.addf %83, %85 : vector<8x16x16xf32>
    %cst_35 = arith.constant dense<0xFF800000> : vector<8x16xf32>
    %87 = vector.multi_reduction <maximumf>, %86, %cst_35 [2] : vector<8x16x16xf32> to vector<8x16xf32>
    %88 = vector.shape_cast %87 : vector<8x16xf32> to vector<8x16x1xf32>
    %89 = vector.broadcast %88 : vector<8x16x1xf32> to vector<8x16x16xf32>
    %90 = arith.subf %86, %89 : vector<8x16x16xf32>
    %91 = math.exp %90 : vector<8x16x16xf32>
    %cst_36 = arith.constant dense<0.000000e+00> : vector<8x16xf32>
    %92 = vector.multi_reduction <add>, %91, %cst_36 [2] : vector<8x16x16xf32> to vector<8x16xf32>
    %93 = vector.shape_cast %92 : vector<8x16xf32> to vector<8x16x1xf32>
    %94 = tpu.reciprocal %93 : vector<8x16x1xf32> -> vector<8x16x1xf32>
    %95 = vector.broadcast %94 : vector<8x16x1xf32> to vector<8x16x16xf32>
    %96 = arith.mulf %91, %95 : vector<8x16x16xf32>
    %c0_37 = arith.constant 0 : index
    %c3 = arith.constant 3 : index
    %c0_38 = arith.constant 0 : index
    %c0_39 = arith.constant 0 : index
    %97 = vector.load %arg6[%c0_37, %c3, %c0_38, %c0_39] : memref<8x4x16x16xf32, #tpu.memory_space<vmem>>, vector<8x1x16x16xf32>
    %98 = vector.shape_cast %97 : vector<8x1x16x16xf32> to vector<8x16x16xf32>
    %99 = vector.shape_cast %96 : vector<8x16x16xf32> to vector<8x1x16x16xf32>
    tpu.vector_store %arg6[%c0_37, %c3, %c0_38, %c0_39], %99 {strides = array<i32>} : memref<8x4x16x16xf32, #tpu.memory_space<vmem>>, vector<8x1x16x16xf32>,
    "tpu.trace_start"() <{level = 10 : i32, message = "bqk,bkd->bqd"}> : () -> ()
    %cst_40 = arith.constant dense<0.000000e+00> : vector<8x16x8xf32>
    %100 = tpu.matmul %96, %82, %cst_40 {dimension_numbers = #tpu.dot_dimension_numbers<[2], [1], [1], [2], [0, 0, 0, 1, 1, 2], [0], [0]>} : vector<8x16x16xf32>, vector<8x16x8xf32>, vector<8x16x8xf32> -> vector<8x16x8xf32>
    "tpu.trace_stop"() : () -> ()
    %101 = tpu.concatenate %31, %54, %77, %100 in 2 : vector<8x16x8xf32>, vector<8x16x8xf32>, vector<8x16x8xf32>, vector<8x16x8xf32> -> vector<8x16x32xf32>
    %c0_41 = arith.constant 0 : index
    %c0_42 = arith.constant 0 : index
    %c0_43 = arith.constant 0 : index
    %102 = vector.load %arg5[%c0_41, %c0_42, %c0_43] : memref<8x16x32xf32, #tpu.memory_space<vmem>>, vector<8x16x32xf32>
    tpu.vector_store %arg5[%c0_41, %c0_42, %c0_43], %101 {strides = array<i32>} : memref<8x16x32xf32, #tpu.memory_space<vmem>>, vector<8x16x32xf32>,
    return
  }
  func.func @transform_0(%arg0: i32) -> (i32, i32, i32) {
    %c0_i32 = arith.constant 0 : i32
    %c0_i32_0 = arith.constant 0 : i32
    %c0_i32_1 = arith.constant 0 : i32
    return %arg0, %c0_i32, %c0_i32_0 : i32, i32, i32
  }
  func.func @transform_1(%arg0: i32) -> (i32, i32) {
    %c0_i32 = arith.constant 0 : i32
    %c0_i32_0 = arith.constant 0 : i32
    %c0_i32_1 = arith.constant 0 : i32
    return %c0_i32, %c0_i32_0 : i32, i32
  }
  func.func @transform_2(%arg0: i32) -> (i32, i32) {
    %c0_i32 = arith.constant 0 : i32
    %c0_i32_0 = arith.constant 0 : i32
    %c0_i32_1 = arith.constant 0 : i32
    return %c0_i32, %c0_i32_0 : i32, i32
  }
  func.func @transform_3(%arg0: i32) -> (i32, i32) {
    %c0_i32 = arith.constant 0 : i32
    %c0_i32_0 = arith.constant 0 : i32
    %c0_i32_1 = arith.constant 0 : i32
    return %c0_i32, %c0_i32_0 : i32, i32
  }
  func.func @transform_4(%arg0: i32) -> (i32, i32, i32) {
    %c0_i32 = arith.constant 0 : i32
    %c0_i32_0 = arith.constant 0 : i32
    %c0_i32_1 = arith.constant 0 : i32
    return %arg0, %c0_i32, %c0_i32_0 : i32, i32, i32
  }
  func.func @transform_5(%arg0: i32) -> (i32, i32, i32, i32) {
    %c0_i32 = arith.constant 0 : i32
    %c0_i32_0 = arith.constant 0 : i32
    %c0_i32_1 = arith.constant 0 : i32
    %c0_i32_2 = arith.constant 0 : i32
    return %arg0, %c0_i32, %c0_i32_0, %c0_i32_1 : i32, i32, i32, i32
  }
}

</mosaic_0001>

<llo_original>
// kernel: tpu_custom_call.1
$region0: #{tpu_custom_call.1}
  #allocation0 [shape = 'u32[]', space=smem, size = 0x4, offset = 0x4, fixed_abs, tag = 'smem constant byte address 0x4 - core index']
  #allocation1 [shape = 'u32[144,128]{1,0:T(1,128)}', space=vmem, size = 0x12000, scoped, tag = 'internal scratch']
  %s0 = inlined_call_operand.hbm [shape: f32[16,16,32], index: 0, kind: input, shape index: {}]
  %s1 = inlined_call_operand.hbm [shape: f32[32,96], index: 1, kind: input, shape index: {}]
  %s2 = inlined_call_operand.vmem [shape: f32[1,96], index: 2, kind: input, shape index: {}]
  %s3 = inlined_call_operand.hbm [shape: f32[16,16], index: 3, kind: input, shape index: {}]
  %s4 = inlined_call_operand.hbm [shape: f32[16,16,32], index: 4, kind: output, shape index: {0}]
  %s5 = inlined_call_operand.hbm [shape: f32[16,4,16,16], index: 5, kind: output, shape index: {1}]
  %6 = xla_tuple %s4, %s5
  %s7 = sld [smem:[#allocation0]]
  $region69: #{tpu_custom_call.1} parent=0
    _
  %s9 = ssub.s32 1, %s7
  %s10 = scalar_select 0, %s9, %s7
  $region1: #{tpu_custom_call.1} parent=0
    #allocation2 [shape = 'u8[131072]{0}', space=vmem, size = 0x20000, scoped, tag = 'input window, operand 0']
    #allocation3 [shape = 's32[2]{0}', space=sflag, size = 0x8, scoped, tag = 'scoped memory for tpu_custom_call.1']
    #allocation4 [shape = 's32[2]{0}', space=sflag, size = 0x8, scoped, tag = 'scoped memory for tpu_custom_call.1']
    #allocation5 [shape = 'u8[16384]{0}', space=vmem, size = 0x4000, scoped, tag = 'input window, operand 1, single buffered']
    #allocation6 [shape = 's32[1]{0}', space=sflag, size = 0x4, scoped, tag = 'scoped memory for tpu_custom_call.1']
    #allocation7 [shape = 'u8[8192]{0}', space=vmem, size = 0x2000, scoped, tag = 'input window, operand 3, single buffered']
    #allocation8 [shape = 'u8[131072]{0}', space=vmem, size = 0x20000, scoped, tag = 'output window, operand 0']
    #allocation9 [shape = 'u8[524288]{0}', space=vmem, size = 0x80000, scoped, tag = 'output window, operand 1']
    #allocation10 [shape = 's32[2]{0}', space=sflag, size = 0x8, scoped, tag = 'scoped memory for tpu_custom_call.1']
    %11 = vsyncpa [#allocation3], 0
    %s12 = scalar_lea.sflag [#allocation3], 1
    %13 = vsyncpa %s12, 0
    %14 = vsyncpa [#allocation6], 0
    %15 = vsyncpa [#allocation4], 0
    %s16 = scalar_lea.sflag [#allocation4], 1
    %17 = vsyncpa %s16, 0
    %18 = vsyncpa [#allocation10], 0
    %s19 = scalar_lea.sflag [#allocation10], 1
    %20 = vsyncpa %s19, 0
    loop: start=0, step=1, limit=4
    $region2: #{tpu_custom_call.1} parent=1 // loop_pre_header
      _
    $region3: #{tpu_custom_call.1} parent=1 // loop_header
      %s22 = sphi 0, %s26
      %p23 = scmp.ge.s32.totalorder %s22, 4
      %s32 = sphi 0, %s34
      %s35 = sphi 0, %s32
      %s36 = sphi 0, %s35
      %s52 = sphi 0, %s36
      %s56 = sphi 0, %s56
      %s58 = sphi 0, %s56
      %s59 = sphi 0, %s58
      %s73 = sphi 0, %s59
      %s77 = sphi 0, %s77
      %s79 = sphi 0, %s77
      %s80 = sphi 0, %s79
      %s94 = sphi 0, %s80
      %s98 = sphi 0, %s98
      %s100 = sphi 0, %s98
      %s101 = sphi 0, %s100
      %s115 = sphi 0, %s101
      %s121 = sphi 0, %s123
      %s124 = sphi 0, %s121
      %s125 = sphi 0, %s124
      %s141 = sphi 0, %s125
      %s147 = sphi 0, %s149
      %s150 = sphi 0, %s147
      %s151 = sphi 0, %s150
      %s167 = sphi 0, %s151
    $region4: #{tpu_custom_call.1} parent=1 // loop_header_branch
      %25 = sbr.rel (%p23) target = $region8
    $region5: #{tpu_custom_call.1} parent=1 // loop_body
      %s27 = ssub.s32 %s22, 1
      %s28 = ssub.s32 %s22, 2
      %s29 = sadd.s32 %s22, 1
      %s30 = ssub.s32 %s22, %s29
      %p31 = scmp.eq.s32.totalorder %s30, 0
      %s33 = sadd.s32 %s32, 1
      %s34 = scalar_select %p31, %s32, %s33
      %p37 = pneg %p31
      %p38 = scmp.eq.s32.totalorder %s22, 1
      %p39 = por %p37, %p38
      %p40 = scmp.ne.s32.totalorder %s32, %s35
      %p41 = scmp.eq.s32.totalorder %s22, 0
      %p42 = por %p40, %p41
      %p43 = scmp.ne.s32.totalorder %s32, %s35
      %p44 = scmp.eq.s32.totalorder %s27, 1
      %p45 = por %p43, %p44
      %p46 = scmp.ne.s32.totalorder %s35, %s36
      %p47 = scmp.eq.s32.totalorder %s27, 0
      %p48 = por %p46, %p47
      %p49 = scmp.ne.s32.totalorder %s35, %s36
      %p50 = scmp.eq.s32.totalorder %s28, 1
      %p51 = por %p49, %p50
      %p53 = scmp.ne.s32.totalorder %s36, %s52
      %p54 = scmp.eq.s32.totalorder %s28, 0
      %p55 = por %p53, %p54
      %s57 = sadd.s32 %s56, 1
      %p60 = scmp.eq.s32.totalorder %s22, 1
      %p61 = scmp.ne.s32.totalorder %s56, %s58
      %p62 = scmp.eq.s32.totalorder %s22, 0
      %p63 = por %p61, %p62
      %p64 = scmp.ne.s32.totalorder %s56, %s58
      %p65 = scmp.eq.s32.totalorder %s27, 1
      %p66 = por %p64, %p65
      %p67 = scmp.ne.s32.totalorder %s58, %s59
      %p68 = scmp.eq.s32.totalorder %s27, 0
      %p69 = por %p67, %p68
      %p70 = scmp.ne.s32.totalorder %s58, %s59
      %p71 = scmp.eq.s32.totalorder %s28, 1
      %p72 = por %p70, %p71
      %p74 = scmp.ne.s32.totalorder %s59, %s73
      %p75 = scmp.eq.s32.totalorder %s28, 0
      %p76 = por %p74, %p75
      %s78 = sadd.s32 %s77, 1
      %p81 = scmp.eq.s32.totalorder %s22, 1
      %p82 = scmp.ne.s32.totalorder %s77, %s79
      %p83 = scmp.eq.s32.totalorder %s22, 0
      %p84 = por %p82, %p83
      %p85 = scmp.ne.s32.totalorder %s77, %s79
      %p86 = scmp.eq.s32.totalorder %s27, 1
      %p87 = por %p85, %p86
      %p88 = scmp.ne.s32.totalorder %s79, %s80
      %p89 = scmp.eq.s32.totalorder %s27, 0
      %p90 = por %p88, %p89
      %p91 = scmp.ne.s32.totalorder %s79, %s80
      %p92 = scmp.eq.s32.totalorder %s28, 1
      %p93 = por %p91, %p92
      %p95 = scmp.ne.s32.totalorder %s80, %s94
      %p96 = scmp.eq.s32.totalorder %s28, 0
      %p97 = por %p95, %p96
      %s99 = sadd.s32 %s98, 1
      %p102 = scmp.eq.s32.totalorder %s22, 1
      %p103 = scmp.ne.s32.totalorder %s98, %s100
      %p104 = scmp.eq.s32.totalorder %s22, 0
      %p105 = por %p103, %p104
      %p106 = scmp.ne.s32.totalorder %s98, %s100
      %p107 = scmp.eq.s32.totalorder %s27, 1
      %p108 = por %p106, %p107
      %p109 = scmp.ne.s32.totalorder %s100, %s101
      %p110 = scmp.eq.s32.totalorder %s27, 0
      %p111 = por %p109, %p110
      %p112 = scmp.ne.s32.totalorder %s100, %s101
      %p113 = scmp.eq.s32.totalorder %s28, 1
      %p114 = por %p112, %p113
      %p116 = scmp.ne.s32.totalorder %s101, %s115
      %p117 = scmp.eq.s32.totalorder %s28, 0
      %p118 = por %p116, %p117
      %s119 = ssub.s32 %s22, %s29
      %p120 = scmp.eq.s32.totalorder %s119, 0
      %s122 = sadd.s32 %s121, 1
      %s123 = scalar_select %p120, %s121, %s122
      %p126 = pneg %p120
      %p127 = scmp.eq.s32.totalorder %s22, 1
      %p128 = por %p126, %p127
      %p129 = scmp.ne.s32.totalorder %s121, %s124
      %p130 = scmp.eq.s32.totalorder %s22, 0
      %p131 = por %p129, %p130
      %p132 = scmp.ne.s32.totalorder %s121, %s124
      %p133 = scmp.eq.s32.totalorder %s27, 1
      %p134 = por %p132, %p133
      %p135 = scmp.ne.s32.totalorder %s124, %s125
      %p136 = scmp.eq.s32.totalorder %s27, 0
      %p137 = por %p135, %p136
      %p138 = scmp.ne.s32.totalorder %s124, %s125
      %p139 = scmp.eq.s32.totalorder %s28, 1
      %p140 = por %p138, %p139
      %p142 = scmp.ne.s32.totalorder %s125, %s141
      %p143 = scmp.eq.s32.totalorder %s28, 0
      %p144 = por %p142, %p143
      %s145 = ssub.s32 %s22, %s29
      %p146 = scmp.eq.s32.totalorder %s145, 0
      %s148 = sadd.s32 %s147, 1
      %s149 = scalar_select %p146, %s147, %s148
      %p152 = pneg %p146
      %p153 = scmp.eq.s32.totalorder %s22, 1
      %p154 = por %p152, %p153
      %p155 = scmp.ne.s32.totalorder %s147, %s150
      %p156 = scmp.eq.s32.totalorder %s22, 0
      %p157 = por %p155, %p156
      %p158 = scmp.ne.s32.totalorder %s147, %s150
      %p159 = scmp.eq.s32.totalorder %s27, 1
      %p160 = por %p158, %p159
      %p161 = scmp.ne.s32.totalorder %s150, %s151
      %p162 = scmp.eq.s32.totalorder %s27, 0
      %p163 = por %p161, %p162
      %p164 = scmp.ne.s32.totalorder %s150, %s151
      %p165 = scmp.eq.s32.totalorder %s28, 1
      %p166 = por %p164, %p165
      %p168 = scmp.ne.s32.totalorder %s151, %s167
      %p169 = scmp.eq.s32.totalorder %s28, 0
      %p170 = por %p168, %p169
      %p171 = scmp.le.s32.totalorder 1, %s22
      %p172 = scmp.lt.s32.totalorder %s22, 3
      %p173 = pnand %p171, %p172
      %p174 = pneg %p173
      // Predicated region
      $region9: #{tpu_custom_call.1} parent=5 // pred_check
        _
      $region10: #{tpu_custom_call.1} parent=5 // pred_check_branch
        %176 = sbr.rel (%p173) target = $region12
      $region11: #{tpu_custom_call.1} parent=5 // pred_region
        %s177 = ssub.s32 %s22, 1
        // Predicated region
        $region13: #{tpu_custom_call.1} parent=11 // pred_check
          %p178 = pneg %p69
        $region14: #{tpu_custom_call.1} parent=11 // pred_check_branch
          %180 = sbr.rel (%p178) target = $region16
        $region15: #{tpu_custom_call.1} parent=11 // pred_region
          %s182 = ssub.s32 512, 512
          %183 = vsyncadd [#allocation6], %s182
          %s184 = sshll.u32 [#allocation5], 4
          %s185 = int_to_ptr.vmem [resolvable:$true] %s184
          %190 = dma.hbm_to_vmem [thread:$0]  %s1, 512, %s185, [#allocation6], 128, 128, 8
        $region16: #{tpu_custom_call.1} parent=11 // pred_fallthru
          _
        // Predicated region
        $region17: #{tpu_custom_call.1} parent=11 // pred_check
          %p191 = pneg %p90
        $region18: #{tpu_custom_call.1} parent=11 // pred_check_branch
          %193 = sbr.rel (%p191) target = $region20
        $region19: #{tpu_custom_call.1} parent=11 // pred_region
          _
        $region20: #{tpu_custom_call.1} parent=11 // pred_fallthru
          _
        // Predicated region
        $region21: #{tpu_custom_call.1} parent=11 // pred_check
          %p194 = pneg %p111
        $region22: #{tpu_custom_call.1} parent=11 // pred_check_branch
          %196 = sbr.rel (%p194) target = $region24
        $region23: #{tpu_custom_call.1} parent=11 // pred_region
          %s198 = ssub.s32 256, 256
          %199 = vsyncadd [#allocation6], %s198
          %s200 = sshll.u32 [#allocation7], 4
          %s201 = int_to_ptr.vmem [resolvable:$true] %s200
          %206 = dma.hbm_to_vmem [thread:$0]  %s3, 256, %s201, [#allocation6], 128, 128, 8
        $region24: #{tpu_custom_call.1} parent=11 // pred_fallthru
          _
      $region12: #{tpu_custom_call.1} parent=5 // pred_fallthru
        _
      %p207 = scmp.lt.s32.totalorder %s22, 2
      // Predicated region
      $region25: #{tpu_custom_call.1} parent=5 // pred_check
        %p208 = pneg %p207
      $region26: #{tpu_custom_call.1} parent=5 // pred_check_branch
        %210 = sbr.rel (%p208) target = $region28
      $region27: #{tpu_custom_call.1} parent=5 // pred_region
        // Predicated region
        $region29: #{tpu_custom_call.1} parent=27 // pred_check
          %p211 = pneg %p42
        $region30: #{tpu_custom_call.1} parent=27 // pred_check_branch
          %213 = sbr.rel (%p211) target = $region32
        $region31: #{tpu_custom_call.1} parent=27 // pred_region
          %s214 = sand.u32 %s32, 1
          %s215 = scalar_lea.sflag [#allocation3], %s214
          %s216 = sand.u32 %s32, 1
          %s217 = smul.addr %s216, 128
          %s218 = scalar_lea.vmem [#allocation2], %s217
          %s219 = smul.u32 8, %s22
          %s221 = ssub.s32 2048, 2048
          %222 = vsyncadd %s215, %s221
          %s223 = smul.addr %s219, 2
          %s224 = smul.addr %s223, 128
          %s225 = scalar_lea.hbm %s0, %s224
          %s226 = sshll.u32 %s218, 4
          %s227 = int_to_ptr.vmem [resolvable:$true] %s226
          %232 = dma.hbm_to_vmem [thread:$0]  %s225, 2048, %s227, %s215, 128, 128, 8
        $region32: #{tpu_custom_call.1} parent=27 // pred_fallthru
          _
      $region28: #{tpu_custom_call.1} parent=5 // pred_fallthru
        _
      %p233 = scmp.le.s32.totalorder 1, %s22
      %p234 = scmp.lt.s32.totalorder %s22, 3
      %p235 = pnand %p233, %p234
      %p236 = pneg %p235
      // Predicated region
      $region33: #{tpu_custom_call.1} parent=5 // pred_check
        _
      $region34: #{tpu_custom_call.1} parent=5 // pred_check_branch
        %238 = sbr.rel (%p235) target = $region36
      $region35: #{tpu_custom_call.1} parent=5 // pred_region
        %s239 = ssub.s32 %s22, 1
        %s240 = sand.u32 %s35, 1
        %s241 = scalar_lea.sflag [#allocation3], %s240
        %s242 = sand.u32 %s35, 1
        %s243 = smul.addr %s242, 128
        %s244 = scalar_lea.vmem [#allocation2], %s243
        // Predicated region
        $region37: #{tpu_custom_call.1} parent=35 // pred_check
          %p245 = pneg %p48
        $region38: #{tpu_custom_call.1} parent=35 // pred_check_branch
          %247 = sbr.rel (%p245) target = $region40
        $region39: #{tpu_custom_call.1} parent=35 // pred_region
          %248 = dma.done %s241, 2048
        $region40: #{tpu_custom_call.1} parent=35 // pred_fallthru
          _
        // Predicated region
        $region41: #{tpu_custom_call.1} parent=35 // pred_check
          %p249 = pneg %p69
        $region42: #{tpu_custom_call.1} parent=35 // pred_check_branch
          %251 = sbr.rel (%p249) target = $region44
        $region43: #{tpu_custom_call.1} parent=35 // pred_region
          %252 = dma.done [#allocation6], 512
        $region44: #{tpu_custom_call.1} parent=35 // pred_fallthru
          _
        // Predicated region
        $region45: #{tpu_custom_call.1} parent=35 // pred_check
          %p253 = pneg %p111
        $region46: #{tpu_custom_call.1} parent=35 // pred_check_branch
          %255 = sbr.rel (%p253) target = $region48
        $region47: #{tpu_custom_call.1} parent=35 // pred_region
          %256 = dma.done [#allocation6], 256
        $region48: #{tpu_custom_call.1} parent=35 // pred_fallthru
          _
        %s257 = sand.u32 %s35, 1
        %s258 = scalar_lea.sflag [#allocation3], %s257
        %s259 = sand.u32 %s35, 1
        %s260 = smul.addr %s259, 128
        %s261 = scalar_lea.vmem [#allocation2], %s260
        %p262 = pneg %p48
        %p263 = pneg %p45
        %p264 = pneg %p69
        %p265 = pneg %p66
        %p266 = pneg %p90
        %p267 = pneg %p87
        %p268 = pneg %p111
        %p269 = pneg %p108
        %p270 = pneg %p137
        %p271 = pneg %p134
        %s272 = sand.u32 %s124, 1
        %s273 = scalar_lea.sflag [#allocation4], %s272
        %s274 = sand.u32 %s124, 1
        %s275 = smul.addr %s274, 128
        %s276 = scalar_lea.vmem [#allocation8], %s275
        %p277 = pneg %p163
        %p278 = pneg %p160
        %s279 = sand.u32 %s150, 1
        %s280 = scalar_lea.sflag [#allocation10], %s279
        %s281 = sand.u32 %s150, 1
        %s282 = smul.addr %s281, 512
        %s283 = scalar_lea.vmem [#allocation9], %s282
        %s284 = smul.u32 8, %s27
        %s285 = smul.u32 8, %s27
        %s286 = smul.u32 8, %s27
        %v287 = vld [vmem:[%s244] sm:$0xff]
        %v288 = vld [vmem:[%s244 + $0x8] sm:$0xff]
        %v289 = vld [vmem:[%s244 + $0x10] sm:$0xff]
        %v290 = vld [vmem:[%s244 + $0x18] sm:$0xff]
        %v291 = vld [vmem:[%s244 + $0x20] sm:$0xff]
        %v292 = vld [vmem:[%s244 + $0x28] sm:$0xff]
        %v293 = vld [vmem:[%s244 + $0x30] sm:$0xff]
        %v294 = vld [vmem:[%s244 + $0x38] sm:$0xff]
        %v295 = vld [vmem:[%s244 + $0x40] sm:$0xff]
        %v296 = vld [vmem:[%s244 + $0x48] sm:$0xff]
        %v297 = vld [vmem:[%s244 + $0x50] sm:$0xff]
        %v298 = vld [vmem:[%s244 + $0x58] sm:$0xff]
        %v299 = vld [vmem:[%s244 + $0x60] sm:$0xff]
        %v300 = vld [vmem:[%s244 + $0x68] sm:$0xff]
        %v301 = vld [vmem:[%s244 + $0x70] sm:$0xff]
        %v302 = vld [vmem:[%s244 + $0x78] sm:$0xff]
        %v303 = vld [vmem:[#allocation5] sm:$0xff]
        %v304 = vld [vmem:[#allocation5 + $0x8] sm:$0xff]
        %v305 = vld [vmem:[#allocation5 + $0x10] sm:$0xff]
        %v306 = vld [vmem:[#allocation5 + $0x18] sm:$0xff]
        %v307 = vld [vmem:[%s2] sm:$0x1]
        %v309 = vlaneseq
        %v310 = vshrl.u32 %v309, 7
        %v311 = vsub.s32 0, %v310
        %v312 = vrot.slane %v307, %v311
        %vm314 = vcmask 261120
        %v316 = vsel %vm314, %v287, 0
        %v319 = vsel %vm314, %v288, 0
        %v322 = vsel %vm314, %v289, 0
        %v325 = vsel %vm314, %v290, 0
        %v328 = vsel %vm314, %v291, 0
        %v331 = vsel %vm314, %v292, 0
        %v334 = vsel %vm314, %v293, 0
        %v337 = vsel %vm314, %v294, 0
        %v340 = vsel %vm314, %v295, 0
        %v343 = vsel %vm314, %v296, 0
        %v346 = vsel %vm314, %v297, 0
        %v349 = vsel %vm314, %v298, 0
        %v352 = vsel %vm314, %v299, 0
        %v355 = vsel %vm314, %v300, 0
        %v358 = vsel %vm314, %v301, 0
        %v361 = vsel %vm314, %v302, 0
        %363 = vmatprep.subr.mxu0 0.0
        %364 = vmatpush1.msra.mxu0 %v303
        %365 = vmatprep.subr.mxu0 0.0
        %366 = vmatpush1.msra.mxu0 %v304
        %367 = vmatprep.subr.mxu0 0.0
        %368 = vmatpush1.msra.mxu0 %v305
        %369 = vmatprep.subr.mxu0 0.0
        %370 = vmatpush1.msra.mxu0 %v306
        %371 = vmatprep.subr.mxu0 0.0
        %372 = vmatpush1.msra.mxu0 0.0
        %373 = vmatprep.subr.mxu0 0.0
        %374 = vmatpush1.msra.mxu0 0.0
        %375 = vmatprep.subr.mxu0 0.0
        %376 = vmatpush1.msra.mxu0 0.0
        %377 = vmatprep.subr.mxu0 0.0
        %378 = vmatpush1.msra.mxu0 0.0
        %379 = vmatprep.subr.mxu0 0.0
        %380 = vmatpush1.msra.mxu0 0.0
        %381 = vmatprep.subr.mxu0 0.0
        %382 = vmatpush1.msra.mxu0 0.0
        %383 = vmatprep.subr.mxu0 0.0
        %384 = vmatpush1.msra.mxu0 0.0
        %385 = vmatprep.subr.mxu0 0.0
        %386 = vmatpush1.msra.mxu0 0.0
        %387 = vmatprep.subr.mxu0 0.0
        %388 = vmatpush1.msra.mxu0 0.0
        %389 = vmatprep.subr.mxu0 0.0
        %390 = vmatpush1.msra.mxu0 0.0
        %391 = vmatprep.subr.mxu0 0.0
        %392 = vmatpush1.msra.mxu0 0.0
        %393 = vmatprep.subr.mxu0 0.0
        %394 = vmatpush1.msra.mxu0 0.0
        %395 = vmatprep.subr.mxu0 0.0
        %396 = vmatpush1.msra.mxu0 0.0
        %397 = vmatprep.subr.mxu0 0.0
        %398 = vmatpush1.msra.mxu0 0.0
        %399 = vmatprep.subr.mxu0 0.0
        %400 = vmatpush1.msra.mxu0 0.0
        %401 = vmatprep.subr.mxu0 0.0
        %402 = vmatpush1.msra.mxu0 0.0
        %403 = vmatprep.subr.mxu0 0.0
        %404 = vmatpush1.msra.mxu0 0.0
        %405 = vmatprep.subr.mxu0 0.0
        %406 = vmatpush1.msra.mxu0 0.0
        %407 = vmatprep.subr.mxu0 0.0
        %408 = vmatpush1.msra.mxu0 0.0
        %409 = vmatprep.subr.mxu0 0.0
        %410 = vmatpush1.msra.mxu0 0.0
        %411 = vmatprep.subr.mxu0 0.0
        %412 = vmatpush1.msra.mxu0 0.0
        %413 = vmatprep.subr.mxu0 0.0
        %414 = vmatpush1.msra.mxu0 0.0
        %415 = vmatprep.subr.mxu0 0.0
        %416 = vmatpush1.msra.mxu0 0.0
        %417 = vmatprep.subr.mxu0 0.0
        %418 = vmatpush1.msra.mxu0 0.0
        %419 = vmatprep.subr.mxu0 0.0
        %420 = vmatpush1.msra.mxu0 0.0
        %421 = vmatprep.subr.mxu0 0.0
        %422 = vmatpush1.msra.mxu0 0.0
        %423 = vmatprep.subr.mxu0 0.0
        %424 = vmatpush1.msra.mxu0 0.0
        %425 = vmatprep.subr.mxu0 0.0
        %426 = vmatpush1.msra.mxu0 0.0
        %427 = vmatprep.mubr.f32.mxu0 0.0
        %428 = vmatmul.mubr.f32.gmra.mrb[0].mxu0 %v316
        %v429 = vpop.f32.mrb[0].mxu0
        %v430 = vadd.f32 %v312, %v429
        %v431 = vpop.f32.mrb[0].mxu0
        %432 = vmatprep.mubr.f32.mxu0 0.0
        %433 = vmatmul.mubr.f32.gmra.mrb[0].mxu0 %v319
        %v434 = vpop.f32.mrb[0].mxu0
        %v435 = vadd.f32 %v312, %v434
        %v436 = vpop.f32.mrb[0].mxu0
        %437 = vmatprep.mubr.f32.mxu0 0.0
        %438 = vmatmul.mubr.f32.gmra.mrb[0].mxu0 %v322
        %v439 = vpop.f32.mrb[0].mxu0
        %v440 = vadd.f32 %v312, %v439
        %v441 = vpop.f32.mrb[0].mxu0
        %442 = vmatprep.mubr.f32.mxu0 0.0
        %443 = vmatmul.mubr.f32.gmra.mrb[0].mxu0 %v325
        %v444 = vpop.f32.mrb[0].mxu0
        %v445 = vadd.f32 %v312, %v444
        %v446 = vpop.f32.mrb[0].mxu0
        %447 = vmatprep.mubr.f32.mxu0 0.0
        %448 = vmatmul.mubr.f32.gmra.mrb[0].mxu0 %v328
        %v449 = vpop.f32.mrb[0].mxu0
        %v450 = vadd.f32 %v312, %v449
        %v451 = vpop.f32.mrb[0].mxu0
        %452 = vmatprep.mubr.f32.mxu0 0.0
        %453 = vmatmul.mubr.f32.gmra.mrb[0].mxu0 %v331
        %v454 = vpop.f32.mrb[0].mxu0
        %v455 = vadd.f32 %v312, %v454
        %v456 = vpop.f32.mrb[0].mxu0
        %457 = vmatprep.mubr.f32.mxu0 0.0
        %458 = vmatmul.mubr.f32.gmra.mrb[0].mxu0 %v334
        %v459 = vpop.f32.mrb[0].mxu0
        %v460 = vadd.f32 %v312, %v459
        %v461 = vpop.f32.mrb[0].mxu0
        %462 = vmatprep.mubr.f32.mxu0 0.0
        %463 = vmatmul.mubr.f32.gmra.mrb[0].mxu0 %v337
        %v464 = vpop.f32.mrb[0].mxu0
        %v465 = vadd.f32 %v312, %v464
        %v466 = vpop.f32.mrb[0].mxu0
        %467 = vmatprep.mubr.f32.mxu0 0.0
        %468 = vmatmul.mubr.f32.gmra.mrb[0].mxu0 %v340
        %v469 = vpop.f32.mrb[0].mxu0
        %v470 = vadd.f32 %v312, %v469
        %v471 = vpop.f32.mrb[0].mxu0
        %472 = vmatprep.mubr.f32.mxu0 0.0
        %473 = vmatmul.mubr.f32.gmra.mrb[0].mxu0 %v343
        %v474 = vpop.f32.mrb[0].mxu0
        %v475 = vadd.f32 %v312, %v474
        %v476 = vpop.f32.mrb[0].mxu0
        %477 = vmatprep.mubr.f32.mxu0 0.0
        %478 = vmatmul.mubr.f32.gmra.mrb[0].mxu0 %v346
        %v479 = vpop.f32.mrb[0].mxu0
        %v480 = vadd.f32 %v312, %v479
        %v481 = vpop.f32.mrb[0].mxu0
        %482 = vmatprep.mubr.f32.mxu0 0.0
        %483 = vmatmul.mubr.f32.gmra.mrb[0].mxu0 %v349
        %v484 = vpop.f32.mrb[0].mxu0
        %v485 = vadd.f32 %v312, %v484
        %v486 = vpop.f32.mrb[0].mxu0
        %487 = vmatprep.mubr.f32.mxu0 0.0
        %488 = vmatmul.mubr.f32.gmra.mrb[0].mxu0 %v352
        %v489 = vpop.f32.mrb[0].mxu0
        %v490 = vadd.f32 %v312, %v489
        %v491 = vpop.f32.mrb[0].mxu0
        %492 = vmatprep.mubr.f32.mxu0 0.0
        %493 = vmatmul.mubr.f32.gmra.mrb[0].mxu0 %v355
        %v494 = vpop.f32.mrb[0].mxu0
        %v495 = vadd.f32 %v312, %v494
        %v496 = vpop.f32.mrb[0].mxu0
        %497 = vmatprep.mubr.f32.mxu0 0.0
        %498 = vmatmul.mubr.f32.gmra.mrb[0].mxu0 %v358
        %v499 = vpop.f32.mrb[0].mxu0
        %v500 = vadd.f32 %v312, %v499
        %v501 = vpop.f32.mrb[0].mxu0
        %502 = vmatprep.mubr.f32.mxu0 0.0
        %503 = vmatmul.mubr.f32.gmra.mrb[0].mxu0 %v361
        %v504 = vpop.f32.mrb[0].mxu0
        %v505 = vadd.f32 %v312, %v504
        %v506 = vpop.f32.mrb[0].mxu0
        %507 = vdwg.mxu0
        %v508 = vld [vmem:[#allocation7] sm:$0xff]
        %v509 = vld [vmem:[#allocation7 + $0x8] sm:$0xff]
        %v510 = vmax.f32 %v430, 0.0
        %v511 = vmax.f32 %v435, 0.0
        %v512 = vmax.f32 %v440, 0.0
        %v513 = vmax.f32 %v445, 0.0
        %v514 = vmax.f32 %v450, 0.0
        %v515 = vmax.f32 %v455, 0.0
        %v516 = vmax.f32 %v460, 0.0
        %v517 = vmax.f32 %v465, 0.0
        %v518 = vmax.f32 %v470, 0.0
        %v519 = vmax.f32 %v475, 0.0
        %v520 = vmax.f32 %v480, 0.0
        %v521 = vmax.f32 %v485, 0.0
        %v522 = vmax.f32 %v490, 0.0
        %v523 = vmax.f32 %v495, 0.0
        %v524 = vmax.f32 %v500, 0.0
        %v525 = vmax.f32 %v505, 0.0
        %528 = vrot.lane.b32.xlu0 %v430, 96
        %v529 = vpop.permute.xlu0 %528
        %530 = vrot.lane.b32.xlu0 %v435, 96
        %v531 = vpop.permute.xlu0 %530
        %vm532 = vcmask 64512
        %v533 = vsel %vm532, %v430, 0
        %v535 = vsel %vm532, %v435, 0
        %v537 = vsel %vm532, %v529, 0
        %v539 = vsel %vm532, %v531, 0
        %541 = vmatprep.subr.mxu0 0.0
        %542 = vmatpush1.xpose.msra.mxu0 %v537
        %543 = vmatprep.subr.mxu0 0.0
        %544 = vmatpush1.xpose.msra.mxu0 %v539
        %545 = vmatprep.subr.mxu0 0.0
        %546 = vmatpush1.xpose.msra.mxu0 0.0
        %547 = vmatprep.subr.mxu0 0.0
        %548 = vmatpush1.xpose.msra.mxu0 0.0
        %549 = vmatprep.subr.mxu0 0.0
        %550 = vmatpush1.xpose.msra.mxu0 0.0
        %551 = vmatprep.subr.mxu0 0.0
        %552 = vmatpush1.xpose.msra.mxu0 0.0
        %553 = vmatprep.subr.mxu0 0.0
        %554 = vmatpush1.xpose.msra.mxu0 0.0
        %555 = vmatprep.subr.mxu0 0.0
        %556 = vmatpush1.xpose.msra.mxu0 0.0
        %557 = vmatprep.subr.mxu0 0.0
        %558 = vmatpush1.xpose.msra.mxu0 0.0
        %559 = vmatprep.subr.mxu0 0.0
        %560 = vmatpush1.xpose.msra.mxu0 0.0
        %561 = vmatprep.subr.mxu0 0.0
        %562 = vmatpush1.xpose.msra.mxu0 0.0
        %563 = vmatprep.subr.mxu0 0.0
        %564 = vmatpush1.xpose.msra.mxu0 0.0
        %565 = vmatprep.subr.mxu0 0.0
        %566 = vmatpush1.xpose.msra.mxu0 0.0
        %567 = vmatprep.subr.mxu0 0.0
        %568 = vmatpush1.xpose.msra.mxu0 0.0
        %569 = vmatprep.subr.mxu0 0.0
        %570 = vmatpush1.xpose.msra.mxu0 0.0
        %571 = vmatprep.subr.mxu0 0.0
        %572 = vmatpush1.xpose.msra.mxu0 0.0
        %573 = vmatprep.subr.mxu0 0.0
        %574 = vmatpush1.xpose.msra.mxu0 0.0
        %575 = vmatprep.subr.mxu0 0.0
        %576 = vmatpush1.xpose.msra.mxu0 0.0
        %577 = vmatprep.subr.mxu0 0.0
        %578 = vmatpush1.xpose.msra.mxu0 0.0
        %579 = vmatprep.subr.mxu0 0.0
        %580 = vmatpush1.xpose.msra.mxu0 0.0
        %581 = vmatprep.subr.mxu0 0.0
        %582 = vmatpush1.xpose.msra.mxu0 0.0
        %583 = vmatprep.subr.mxu0 0.0
        %584 = vmatpush1.xpose.msra.mxu0 0.0
        %585 = vmatprep.subr.mxu0 0.0
        %586 = vmatpush1.xpose.msra.mxu0 0.0
        %587 = vmatprep.subr.mxu0 0.0
        %588 = vmatpush1.xpose.msra.mxu0 0.0
        %589 = vmatprep.subr.mxu0 0.0
        %590 = vmatpush1.xpose.msra.mxu0 0.0
        %591 = vmatprep.subr.mxu0 0.0
        %592 = vmatpush1.xpose.msra.mxu0 0.0
        %593 = vmatprep.subr.mxu0 0.0
        %594 = vmatpush1.xpose.msra.mxu0 0.0
        %595 = vmatprep.subr.mxu0 0.0
        %596 = vmatpush1.xpose.msra.mxu0 0.0
        %597 = vmatprep.subr.mxu0 0.0
        %598 = vmatpush1.xpose.msra.mxu0 0.0
        %599 = vmatprep.subr.mxu0 0.0
        %600 = vmatpush1.xpose.msra.mxu0 0.0
        %601 = vmatprep.subr.mxu0 0.0
        %602 = vmatpush1.xpose.msra.mxu0 0.0
        %603 = vmatprep.subr.mxu0 0.0
        %604 = vmatpush1.xpose.msra.mxu0 0.0
        %605 = vmatprep.mubr.f32.mxu0 0.0
        %606 = vmatmul.mubr.f32.gmra.mrb[0].mxu0 %v533
        %v607 = vpop.f32.mrb[0].mxu0
        %v608 = vadd.f32 %v508, %v607
        %v609 = vpop.f32.mrb[0].mxu0
        %610 = vmatprep.mubr.f32.mxu0 0.0
        %611 = vmatmul.mubr.f32.gmra.mrb[0].mxu0 %v535
        %v612 = vpop.f32.mrb[0].mxu0
        %v613 = vadd.f32 %v509, %v612
        %v614 = vpop.f32.mrb[0].mxu0
        %615 = vdwg.mxu0
        %618 = vrot.lane.b32.xlu0 %v440, 96
        %v619 = vpop.permute.xlu0 %618
        %620 = vrot.lane.b32.xlu0 %v445, 96
        %v621 = vpop.permute.xlu0 %620
        %v622 = vsel %vm532, %v440, 0
        %v624 = vsel %vm532, %v445, 0
        %v626 = vsel %vm532, %v619, 0
        %v628 = vsel %vm532, %v621, 0
        %630 = vmatprep.subr.mxu0 0.0
        %631 = vmatpush1.xpose.msra.mxu0 %v626
        %632 = vmatprep.subr.mxu0 0.0
        %633 = vmatpush1.xpose.msra.mxu0 %v628
        %634 = vmatprep.subr.mxu0 0.0
        %635 = vmatpush1.xpose.msra.mxu0 0.0
        %636 = vmatprep.subr.mxu0 0.0
        %637 = vmatpush1.xpose.msra.mxu0 0.0
        %638 = vmatprep.subr.mxu0 0.0
        %639 = vmatpush1.xpose.msra.mxu0 0.0
        %640 = vmatprep.subr.mxu0 0.0
        %641 = vmatpush1.xpose.msra.mxu0 0.0
        %642 = vmatprep.subr.mxu0 0.0
        %643 = vmatpush1.xpose.msra.mxu0 0.0
        %644 = vmatprep.subr.mxu0 0.0
        %645 = vmatpush1.xpose.msra.mxu0 0.0
        %646 = vmatprep.subr.mxu0 0.0
        %647 = vmatpush1.xpose.msra.mxu0 0.0
        %648 = vmatprep.subr.mxu0 0.0
        %649 = vmatpush1.xpose.msra.mxu0 0.0
        %650 = vmatprep.subr.mxu0 0.0
        %651 = vmatpush1.xpose.msra.mxu0 0.0
        %652 = vmatprep.subr.mxu0 0.0
        %653 = vmatpush1.xpose.msra.mxu0 0.0
        %654 = vmatprep.subr.mxu0 0.0
        %655 = vmatpush1.xpose.msra.mxu0 0.0
        %656 = vmatprep.subr.mxu0 0.0
        %657 = vmatpush1.xpose.msra.mxu0 0.0
        %658 = vmatprep.subr.mxu0 0.0
        %659 = vmatpush1.xpose.msra.mxu0 0.0
        %660 = vmatprep.subr.mxu0 0.0
        %661 = vmatpush1.xpose.msra.mxu0 0.0
        %662 = vmatprep.subr.mxu0 0.0
        %663 = vmatpush1.xpose.msra.mxu0 0.0
        %664 = vmatprep.subr.mxu0 0.0
        %665 = vmatpush1.xpose.msra.mxu0 0.0
        %666 = vmatprep.subr.mxu0 0.0
        %667 = vmatpush1.xpose.msra.mxu0 0.0
        %668 = vmatprep.subr.mxu0 0.0
        %669 = vmatpush1.xpose.msra.mxu0 0.0
        %670 = vmatprep.subr.mxu0 0.0
        %671 = vmatpush1.xpose.msra.mxu0 0.0
        %672 = vmatprep.subr.mxu0 0.0
        %673 = vmatpush1.xpose.msra.mxu0 0.0
        %674 = vmatprep.subr.mxu0 0.0
        %675 = vmatpush1.xpose.msra.mxu0 0.0
        %676 = vmatprep.subr.mxu0 0.0
        %677 = vmatpush1.xpose.msra.mxu0 0.0
        %678 = vmatprep.subr.mxu0 0.0
        %679 = vmatpush1.xpose.msra.mxu0 0.0
        %680 = vmatprep.subr.mxu0 0.0
        %681 = vmatpush1.xpose.msra.mxu0 0.0
        %682 = vmatprep.subr.mxu0 0.0
        %683 = vmatpush1.xpose.msra.mxu0 0.0
        %684 = vmatprep.subr.mxu0 0.0
        %685 = vmatpush1.xpose.msra.mxu0 0.0
        %686 = vmatprep.subr.mxu0 0.0
        %687 = vmatpush1.xpose.msra.mxu0 0.0
        %688 = vmatprep.subr.mxu0 0.0
        %689 = vmatpush1.xpose.msra.mxu0 0.0
        %690 = vmatprep.subr.mxu0 0.0
        %691 = vmatpush1.xpose.msra.mxu0 0.0
        %692 = vmatprep.subr.mxu0 0.0
        %693 = vmatpush1.xpose.msra.mxu0 0.0
        %694 = vmatprep.mubr.f32.mxu0 0.0
        %695 = vmatmul.mubr.f32.gmra.mrb[0].mxu0 %v622
        %v696 = vpop.f32.mrb[0].mxu0
        %v697 = vadd.f32 %v508, %v696
        %v698 = vpop.f32.mrb[0].mxu0
        %699 = vmatprep.mubr.f32.mxu0 0.0
        %700 = vmatmul.mubr.f32.gmra.mrb[0].mxu0 %v624
        %v701 = vpop.f32.mrb[0].mxu0
        %v702 = vadd.f32 %v509, %v701
        %v703 = vpop.f32.mrb[0].mxu0
        %704 = vdwg.mxu0
        %707 = vrot.lane.b32.xlu0 %v450, 96
        %v708 = vpop.permute.xlu0 %707
        %709 = vrot.lane.b32.xlu0 %v455, 96
        %v710 = vpop.permute.xlu0 %709
        %v711 = vsel %vm532, %v450, 0
        %v713 = vsel %vm532, %v455, 0
        %v715 = vsel %vm532, %v708, 0
        %v717 = vsel %vm532, %v710, 0
        %719 = vmatprep.subr.mxu0 0.0
        %720 = vmatpush1.xpose.msra.mxu0 %v715
        %721 = vmatprep.subr.mxu0 0.0
        %722 = vmatpush1.xpose.msra.mxu0 %v717
        %723 = vmatprep.subr.mxu0 0.0
        %724 = vmatpush1.xpose.msra.mxu0 0.0
        %725 = vmatprep.subr.mxu0 0.0
        %726 = vmatpush1.xpose.msra.mxu0 0.0
        %727 = vmatprep.subr.mxu0 0.0
        %728 = vmatpush1.xpose.msra.mxu0 0.0
        %729 = vmatprep.subr.mxu0 0.0
        %730 = vmatpush1.xpose.msra.mxu0 0.0
        %731 = vmatprep.subr.mxu0 0.0
        %732 = vmatpush1.xpose.msra.mxu0 0.0
        %733 = vmatprep.subr.mxu0 0.0
        %734 = vmatpush1.xpose.msra.mxu0 0.0
        %735 = vmatprep.subr.mxu0 0.0
        %736 = vmatpush1.xpose.msra.mxu0 0.0
        %737 = vmatprep.subr.mxu0 0.0
        %738 = vmatpush1.xpose.msra.mxu0 0.0
        %739 = vmatprep.subr.mxu0 0.0
        %740 = vmatpush1.xpose.msra.mxu0 0.0
        %741 = vmatprep.subr.mxu0 0.0
        %742 = vmatpush1.xpose.msra.mxu0 0.0
        %743 = vmatprep.subr.mxu0 0.0
        %744 = vmatpush1.xpose.msra.mxu0 0.0
        %745 = vmatprep.subr.mxu0 0.0
        %746 = vmatpush1.xpose.msra.mxu0 0.0
        %747 = vmatprep.subr.mxu0 0.0
        %748 = vmatpush1.xpose.msra.mxu0 0.0
        %749 = vmatprep.subr.mxu0 0.0
        %750 = vmatpush1.xpose.msra.mxu0 0.0
        %751 = vmatprep.subr.mxu0 0.0
        %752 = vmatpush1.xpose.msra.mxu0 0.0
        %753 = vmatprep.subr.mxu0 0.0
        %754 = vmatpush1.xpose.msra.mxu0 0.0
        %755 = vmatprep.subr.mxu0 0.0
        %756 = vmatpush1.xpose.msra.mxu0 0.0
        %757 = vmatprep.subr.mxu0 0.0
        %758 = vmatpush1.xpose.msra.mxu0 0.0
        %759 = vmatprep.subr.mxu0 0.0
        %760 = vmatpush1.xpose.msra.mxu0 0.0
        %761 = vmatprep.subr.mxu0 0.0
        %762 = vmatpush1.xpose.msra.mxu0 0.0
        %763 = vmatprep.subr.mxu0 0.0
        %764 = vmatpush1.xpose.msra.mxu0 0.0
        %765 = vmatprep.subr.mxu0 0.0
        %766 = vmatpush1.xpose.msra.mxu0 0.0
        %767 = vmatprep.subr.mxu0 0.0
        %768 = vmatpush1.xpose.msra.mxu0 0.0
        %769 = vmatprep.subr.mxu0 0.0
        %770 = vmatpush1.xpose.msra.mxu0 0.0
        %771 = vmatprep.subr.mxu0 0.0
        %772 = vmatpush1.xpose.msra.mxu0 0.0
        %773 = vmatprep.subr.mxu0 0.0
        %774 = vmatpush1.xpose.msra.mxu0 0.0
        %775 = vmatprep.subr.mxu0 0.0
        %776 = vmatpush1.xpose.msra.mxu0 0.0
        %777 = vmatprep.subr.mxu0 0.0
        %778 = vmatpush1.xpose.msra.mxu0 0.0
        %779 = vmatprep.subr.mxu0 0.0
        %780 = vmatpush1.xpose.msra.mxu0 0.0
        %781 = vmatprep.subr.mxu0 0.0
        %782 = vmatpush1.xpose.msra.mxu0 0.0
        %783 = vmatprep.mubr.f32.mxu0 0.0
        %784 = vmatmul.mubr.f32.gmra.mrb[0].mxu0 %v711
        %v785 = vpop.f32.mrb[0].mxu0
        %v786 = vadd.f32 %v508, %v785
        %v787 = vpop.f32.mrb[0].mxu0
        %788 = vmatprep.mubr.f32.mxu0 0.0
        %789 = vmatmul.mubr.f32.gmra.mrb[0].mxu0 %v713
        %v790 = vpop.f32.mrb[0].mxu0
        %v791 = vadd.f32 %v509, %v790
        %v792 = vpop.f32.mrb[0].mxu0
        %793 = vdwg.mxu0
        %796 = vrot.lane.b32.xlu0 %v460, 96
        %v797 = vpop.permute.xlu0 %796
        %798 = vrot.lane.b32.xlu0 %v465, 96
        %v799 = vpop.permute.xlu0 %798
        %v800 = vsel %vm532, %v460, 0
        %v802 = vsel %vm532, %v465, 0
        %v804 = vsel %vm532, %v797, 0
        %v806 = vsel %vm532, %v799, 0
        %808 = vmatprep.subr.mxu0 0.0
        %809 = vmatpush1.xpose.msra.mxu0 %v804
        %810 = vmatprep.subr.mxu0 0.0
        %811 = vmatpush1.xpose.msra.mxu0 %v806
        %812 = vmatprep.subr.mxu0 0.0
        %813 = vmatpush1.xpose.msra.mxu0 0.0
        %814 = vmatprep.subr.mxu0 0.0
        %815 = vmatpush1.xpose.msra.mxu0 0.0
        %816 = vmatprep.subr.mxu0 0.0
        %817 = vmatpush1.xpose.msra.mxu0 0.0
        %818 = vmatprep.subr.mxu0 0.0
        %819 = vmatpush1.xpose.msra.mxu0 0.0
        %820 = vmatprep.subr.mxu0 0.0
        %821 = vmatpush1.xpose.msra.mxu0 0.0
        %822 = vmatprep.subr.mxu0 0.0
        %823 = vmatpush1.xpose.msra.mxu0 0.0
        %824 = vmatprep.subr.mxu0 0.0
        %825 = vmatpush1.xpose.msra.mxu0 0.0
        %826 = vmatprep.subr.mxu0 0.0
        %827 = vmatpush1.xpose.msra.mxu0 0.0
        %828 = vmatprep.subr.mxu0 0.0
        %829 = vmatpush1.xpose.msra.mxu0 0.0
        %830 = vmatprep.subr.mxu0 0.0
        %831 = vmatpush1.xpose.msra.mxu0 0.0
        %832 = vmatprep.subr.mxu0 0.0
        %833 = vmatpush1.xpose.msra.mxu0 0.0
        %834 = vmatprep.subr.mxu0 0.0
        %835 = vmatpush1.xpose.msra.mxu0 0.0
        %836 = vmatprep.subr.mxu0 0.0
        %837 = vmatpush1.xpose.msra.mxu0 0.0
        %838 = vmatprep.subr.mxu0 0.0
        %839 = vmatpush1.xpose.msra.mxu0 0.0
        %840 = vmatprep.subr.mxu0 0.0
        %841 = vmatpush1.xpose.msra.mxu0 0.0
        %842 = vmatprep.subr.mxu0 0.0
        %843 = vmatpush1.xpose.msra.mxu0 0.0
        %844 = vmatprep.subr.mxu0 0.0
        %845 = vmatpush1.xpose.msra.mxu0 0.0
        %846 = vmatprep.subr.mxu0 0.0
        %847 = vmatpush1.xpose.msra.mxu0 0.0
        %848 = vmatprep.subr.mxu0 0.0
        %849 = vmatpush1.xpose.msra.mxu0 0.0
        %850 = vmatprep.subr.mxu0 0.0
        %851 = vmatpush1.xpose.msra.mxu0 0.0
        %852 = vmatprep.subr.mxu0 0.0
        %853 = vmatpush1.xpose.msra.mxu0 0.0
        %854 = vmatprep.subr.mxu0 0.0
        %855 = vmatpush1.xpose.msra.mxu0 0.0
        %856 = vmatprep.subr.mxu0 0.0
        %857 = vmatpush1.xpose.msra.mxu0 0.0
        %858 = vmatprep.subr.mxu0 0.0
        %859 = vmatpush1.xpose.msra.mxu0 0.0
        %860 = vmatprep.subr.mxu0 0.0
        %861 = vmatpush1.xpose.msra.mxu0 0.0
        %862 = vmatprep.subr.mxu0 0.0
        %863 = vmatpush1.xpose.msra.mxu0 0.0
        %864 = vmatprep.subr.mxu0 0.0
        %865 = vmatpush1.xpose.msra.mxu0 0.0
        %866 = vmatprep.subr.mxu0 0.0
        %867 = vmatpush1.xpose.msra.mxu0 0.0
        %868 = vmatprep.subr.mxu0 0.0
        %869 = vmatpush1.xpose.msra.mxu0 0.0
        %870 = vmatprep.subr.mxu0 0.0
        %871 = vmatpush1.xpose.msra.mxu0 0.0
        %872 = vmatprep.mubr.f32.mxu0 0.0
        %873 = vmatmul.mubr.f32.gmra.mrb[0].mxu0 %v800
        %v874 = vpop.f32.mrb[0].mxu0
        %v875 = vadd.f32 %v508, %v874
        %v876 = vpop.f32.mrb[0].mxu0
        %877 = vmatprep.mubr.f32.mxu0 0.0
        %878 = vmatmul.mubr.f32.gmra.mrb[0].mxu0 %v802
        %v879 = vpop.f32.mrb[0].mxu0
        %v880 = vadd.f32 %v509, %v879
        %v881 = vpop.f32.mrb[0].mxu0
        %882 = vdwg.mxu0
        %885 = vrot.lane.b32.xlu0 %v470, 96
        %v886 = vpop.permute.xlu0 %885
        %887 = vrot.lane.b32.xlu0 %v475, 96
        %v888 = vpop.permute.xlu0 %887
        %v889 = vsel %vm532, %v470, 0
        %v891 = vsel %vm532, %v475, 0
        %v893 = vsel %vm532, %v886, 0
        %v895 = vsel %vm532, %v888, 0
        %897 = vmatprep.subr.mxu0 0.0
        %898 = vmatpush1.xpose.msra.mxu0 %v893
        %899 = vmatprep.subr.mxu0 0.0
        %900 = vmatpush1.xpose.msra.mxu0 %v895
        %901 = vmatprep.subr.mxu0 0.0
        %902 = vmatpush1.xpose.msra.mxu0 0.0
        %903 = vmatprep.subr.mxu0 0.0
        %904 = vmatpush1.xpose.msra.mxu0 0.0
        %905 = vmatprep.subr.mxu0 0.0
        %906 = vmatpush1.xpose.msra.mxu0 0.0
        %907 = vmatprep.subr.mxu0 0.0
        %908 = vmatpush1.xpose.msra.mxu0 0.0
        %909 = vmatprep.subr.mxu0 0.0
        %910 = vmatpush1.xpose.msra.mxu0 0.0
        %911 = vmatprep.subr.mxu0 0.0
        %912 = vmatpush1.xpose.msra.mxu0 0.0
        %913 = vmatprep.subr.mxu0 0.0
        %914 = vmatpush1.xpose.msra.mxu0 0.0
        %915 = vmatprep.subr.mxu0 0.0
        %916 = vmatpush1.xpose.msra.mxu0 0.0
        %917 = vmatprep.subr.mxu0 0.0
        %918 = vmatpush1.xpose.msra.mxu0 0.0
        %919 = vmatprep.subr.mxu0 0.0
        %920 = vmatpush1.xpose.msra.mxu0 0.0
        %921 = vmatprep.subr.mxu0 0.0
        %922 = vmatpush1.xpose.msra.mxu0 0.0
        %923 = vmatprep.subr.mxu0 0.0
        %924 = vmatpush1.xpose.msra.mxu0 0.0
        %925 = vmatprep.subr.mxu0 0.0
        %926 = vmatpush1.xpose.msra.mxu0 0.0
        %927 = vmatprep.subr.mxu0 0.0
        %928 = vmatpush1.xpose.msra.mxu0 0.0
        %929 = vmatprep.subr.mxu0 0.0
        %930 = vmatpush1.xpose.msra.mxu0 0.0
        %931 = vmatprep.subr.mxu0 0.0
        %932 = vmatpush1.xpose.msra.mxu0 0.0
        %933 = vmatprep.subr.mxu0 0.0
        %934 = vmatpush1.xpose.msra.mxu0 0.0
        %935 = vmatprep.subr.mxu0 0.0
        %936 = vmatpush1.xpose.msra.mxu0 0.0
        %937 = vmatprep.subr.mxu0 0.0
        %938 = vmatpush1.xpose.msra.mxu0 0.0
        %939 = vmatprep.subr.mxu0 0.0
        %940 = vmatpush1.xpose.msra.mxu0 0.0
        %941 = vmatprep.subr.mxu0 0.0
        %942 = vmatpush1.xpose.msra.mxu0 0.0
        %943 = vmatprep.subr.mxu0 0.0
        %944 = vmatpush1.xpose.msra.mxu0 0.0
        %945 = vmatprep.subr.mxu0 0.0
        %946 = vmatpush1.xpose.msra.mxu0 0.0
        %947 = vmatprep.subr.mxu0 0.0
        %948 = vmatpush1.xpose.msra.mxu0 0.0
        %949 = vmatprep.subr.mxu0 0.0
        %950 = vmatpush1.xpose.msra.mxu0 0.0
        %951 = vmatprep.subr.mxu0 0.0
        %952 = vmatpush1.xpose.msra.mxu0 0.0
        %953 = vmatprep.subr.mxu0 0.0
        %954 = vmatpush1.xpose.msra.mxu0 0.0
        %955 = vmatprep.subr.mxu0 0.0
        %956 = vmatpush1.xpose.msra.mxu0 0.0
        %957 = vmatprep.subr.mxu0 0.0
        %958 = vmatpush1.xpose.msra.mxu0 0.0
        %959 = vmatprep.subr.mxu0 0.0
        %960 = vmatpush1.xpose.msra.mxu0 0.0
        %961 = vmatprep.mubr.f32.mxu0 0.0
        %962 = vmatmul.mubr.f32.gmra.mrb[0].mxu0 %v889
        %v963 = vpop.f32.mrb[0].mxu0
        %v964 = vadd.f32 %v508, %v963
        %v965 = vpop.f32.mrb[0].mxu0
        %966 = vmatprep.mubr.f32.mxu0 0.0
        %967 = vmatmul.mubr.f32.gmra.mrb[0].mxu0 %v891
        %v968 = vpop.f32.mrb[0].mxu0
        %v969 = vadd.f32 %v509, %v968
        %v970 = vpop.f32.mrb[0].mxu0
        %971 = vdwg.mxu0
        %974 = vrot.lane.b32.xlu0 %v480, 96
        %v975 = vpop.permute.xlu0 %974
        %976 = vrot.lane.b32.xlu0 %v485, 96
        %v977 = vpop.permute.xlu0 %976
        %v978 = vsel %vm532, %v480, 0
        %v980 = vsel %vm532, %v485, 0
        %v982 = vsel %vm532, %v975, 0
        %v984 = vsel %vm532, %v977, 0
        %986 = vmatprep.subr.mxu0 0.0
        %987 = vmatpush1.xpose.msra.mxu0 %v982
        %988 = vmatprep.subr.mxu0 0.0
        %989 = vmatpush1.xpose.msra.mxu0 %v984
        %990 = vmatprep.subr.mxu0 0.0
        %991 = vmatpush1.xpose.msra.mxu0 0.0
        %992 = vmatprep.subr.mxu0 0.0
        %993 = vmatpush1.xpose.msra.mxu0 0.0
        %994 = vmatprep.subr.mxu0 0.0
        %995 = vmatpush1.xpose.msra.mxu0 0.0
        %996 = vmatprep.subr.mxu0 0.0
        %997 = vmatpush1.xpose.msra.mxu0 0.0
        %998 = vmatprep.subr.mxu0 0.0
        %999 = vmatpush1.xpose.msra.mxu0 0.0
        %1000 = vmatprep.subr.mxu0 0.0
        %1001 = vmatpush1.xpose.msra.mxu0 0.0
        %1002 = vmatprep.subr.mxu0 0.0
        %1003 = vmatpush1.xpose.msra.mxu0 0.0
        %1004 = vmatprep.subr.mxu0 0.0
        %1005 = vmatpush1.xpose.msra.mxu0 0.0
        %1006 = vmatprep.subr.mxu0 0.0
        %1007 = vmatpush1.xpose.msra.mxu0 0.0
        %1008 = vmatprep.subr.mxu0 0.0
        %1009 = vmatpush1.xpose.msra.mxu0 0.0
        %1010 = vmatprep.subr.mxu0 0.0
        %1011 = vmatpush1.xpose.msra.mxu0 0.0
        %1012 = vmatprep.subr.mxu0 0.0
        %1013 = vmatpush1.xpose.msra.mxu0 0.0
        %1014 = vmatprep.subr.mxu0 0.0
        %1015 = vmatpush1.xpose.msra.mxu0 0.0
        %1016 = vmatprep.subr.mxu0 0.0
        %1017 = vmatpush1.xpose.msra.mxu0 0.0
        %1018 = vmatprep.subr.mxu0 0.0
        %1019 = vmatpush1.xpose.msra.mxu0 0.0
        %1020 = vmatprep.subr.mxu0 0.0
        %1021 = vmatpush1.xpose.msra.mxu0 0.0
        %1022 = vmatprep.subr.mxu0 0.0
        %1023 = vmatpush1.xpose.msra.mxu0 0.0
        %1024 = vmatprep.subr.mxu0 0.0
        %1025 = vmatpush1.xpose.msra.mxu0 0.0
        %1026 = vmatprep.subr.mxu0 0.0
        %1027 = vmatpush1.xpose.msra.mxu0 0.0
        %1028 = vmatprep.subr.mxu0 0.0
        %1029 = vmatpush1.xpose.msra.mxu0 0.0
        %1030 = vmatprep.subr.mxu0 0.0
        %1031 = vmatpush1.xpose.msra.mxu0 0.0
        %1032 = vmatprep.subr.mxu0 0.0
        %1033 = vmatpush1.xpose.msra.mxu0 0.0
        %1034 = vmatprep.subr.mxu0 0.0
        %1035 = vmatpush1.xpose.msra.mxu0 0.0
        %1036 = vmatprep.subr.mxu0 0.0
        %1037 = vmatpush1.xpose.msra.mxu0 0.0
        %1038 = vmatprep.subr.mxu0 0.0
        %1039 = vmatpush1.xpose.msra.mxu0 0.0
        %1040 = vmatprep.subr.mxu0 0.0
        %1041 = vmatpush1.xpose.msra.mxu0 0.0
        %1042 = vmatprep.subr.mxu0 0.0
        %1043 = vmatpush1.xpose.msra.mxu0 0.0
        %1044 = vmatprep.subr.mxu0 0.0
        %1045 = vmatpush1.xpose.msra.mxu0 0.0
        %1046 = vmatprep.subr.mxu0 0.0
        %1047 = vmatpush1.xpose.msra.mxu0 0.0
        %1048 = vmatprep.subr.mxu0 0.0
        %1049 = vmatpush1.xpose.msra.mxu0 0.0
        %1050 = vmatprep.mubr.f32.mxu0 0.0
        %1051 = vmatmul.mubr.f32.gmra.mrb[0].mxu0 %v978
        %v1052 = vpop.f32.mrb[0].mxu0
        %v1053 = vadd.f32 %v508, %v1052
        %v1054 = vpop.f32.mrb[0].mxu0
        %1055 = vmatprep.mubr.f32.mxu0 0.0
        %1056 = vmatmul.mubr.f32.gmra.mrb[0].mxu0 %v980
        %v1057 = vpop.f32.mrb[0].mxu0
        %v1058 = vadd.f32 %v509, %v1057
        %v1059 = vpop.f32.mrb[0].mxu0
        %1060 = vdwg.mxu0
        %1063 = vrot.lane.b32.xlu0 %v490, 96
        %v1064 = vpop.permute.xlu0 %1063
        %1065 = vrot.lane.b32.xlu0 %v495, 96
        %v1066 = vpop.permute.xlu0 %1065
        %v1067 = vsel %vm532, %v490, 0
        %v1069 = vsel %vm532, %v495, 0
        %v1071 = vsel %vm532, %v1064, 0
        %v1073 = vsel %vm532, %v1066, 0
        %1075 = vmatprep.subr.mxu0 0.0
        %1076 = vmatpush1.xpose.msra.mxu0 %v1071
        %1077 = vmatprep.subr.mxu0 0.0
        %1078 = vmatpush1.xpose.msra.mxu0 %v1073
        %1079 = vmatprep.subr.mxu0 0.0
        %1080 = vmatpush1.xpose.msra.mxu0 0.0
        %1081 = vmatprep.subr.mxu0 0.0
        %1082 = vmatpush1.xpose.msra.mxu0 0.0
        %1083 = vmatprep.subr.mxu0 0.0
        %1084 = vmatpush1.xpose.msra.mxu0 0.0
        %1085 = vmatprep.subr.mxu0 0.0
        %1086 = vmatpush1.xpose.msra.mxu0 0.0
        %1087 = vmatprep.subr.mxu0 0.0
        %1088 = vmatpush1.xpose.msra.mxu0 0.0
        %1089 = vmatprep.subr.mxu0 0.0
        %1090 = vmatpush1.xpose.msra.mxu0 0.0
        %1091 = vmatprep.subr.mxu0 0.0
        %1092 = vmatpush1.xpose.msra.mxu0 0.0
        %1093 = vmatprep.subr.mxu0 0.0
        %1094 = vmatpush1.xpose.msra.mxu0 0.0
        %1095 = vmatprep.subr.mxu0 0.0
        %1096 = vmatpush1.xpose.msra.mxu0 0.0
        %1097 = vmatprep.subr.mxu0 0.0
        %1098 = vmatpush1.xpose.msra.mxu0 0.0
        %1099 = vmatprep.subr.mxu0 0.0
        %1100 = vmatpush1.xpose.msra.mxu0 0.0
        %1101 = vmatprep.subr.mxu0 0.0
        %1102 = vmatpush1.xpose.msra.mxu0 0.0
        %1103 = vmatprep.subr.mxu0 0.0
        %1104 = vmatpush1.xpose.msra.mxu0 0.0
        %1105 = vmatprep.subr.mxu0 0.0
        %1106 = vmatpush1.xpose.msra.mxu0 0.0
        %1107 = vmatprep.subr.mxu0 0.0
        %1108 = vmatpush1.xpose.msra.mxu0 0.0
        %1109 = vmatprep.subr.mxu0 0.0
        %1110 = vmatpush1.xpose.msra.mxu0 0.0
        %1111 = vmatprep.subr.mxu0 0.0
        %1112 = vmatpush1.xpose.msra.mxu0 0.0
        %1113 = vmatprep.subr.mxu0 0.0
        %1114 = vmatpush1.xpose.msra.mxu0 0.0
        %1115 = vmatprep.subr.mxu0 0.0
        %1116 = vmatpush1.xpose.msra.mxu0 0.0
        %1117 = vmatprep.subr.mxu0 0.0
        %1118 = vmatpush1.xpose.msra.mxu0 0.0
        %1119 = vmatprep.subr.mxu0 0.0
        %1120 = vmatpush1.xpose.msra.mxu0 0.0
        %1121 = vmatprep.subr.mxu0 0.0
        %1122 = vmatpush1.xpose.msra.mxu0 0.0
        %1123 = vmatprep.subr.mxu0 0.0
        %1124 = vmatpush1.xpose.msra.mxu0 0.0
        %1125 = vmatprep.subr.mxu0 0.0
        %1126 = vmatpush1.xpose.msra.mxu0 0.0
        %1127 = vmatprep.subr.mxu0 0.0
        %1128 = vmatpush1.xpose.msra.mxu0 0.0
        %1129 = vmatprep.subr.mxu0 0.0
        %1130 = vmatpush1.xpose.msra.mxu0 0.0
        %1131 = vmatprep.subr.mxu0 0.0
        %1132 = vmatpush1.xpose.msra.mxu0 0.0
        %1133 = vmatprep.subr.mxu0 0.0
        %1134 = vmatpush1.xpose.msra.mxu0 0.0
        %1135 = vmatprep.subr.mxu0 0.0
        %1136 = vmatpush1.xpose.msra.mxu0 0.0
        %1137 = vmatprep.subr.mxu0 0.0
        %1138 = vmatpush1.xpose.msra.mxu0 0.0
        %1139 = vmatprep.mubr.f32.mxu0 0.0
        %1140 = vmatmul.mubr.f32.gmra.mrb[0].mxu0 %v1067
        %v1141 = vpop.f32.mrb[0].mxu0
        %v1142 = vadd.f32 %v508, %v1141
        %v1143 = vpop.f32.mrb[0].mxu0
        %1144 = vmatprep.mubr.f32.mxu0 0.0
        %1145 = vmatmul.mubr.f32.gmra.mrb[0].mxu0 %v1069
        %v1146 = vpop.f32.mrb[0].mxu0
        %v1147 = vadd.f32 %v509, %v1146
        %v1148 = vpop.f32.mrb[0].mxu0
        %1149 = vdwg.mxu0
        %1152 = vrot.lane.b32.xlu0 %v500, 96
        %v1153 = vpop.permute.xlu0 %1152
        %1154 = vrot.lane.b32.xlu0 %v505, 96
        %v1155 = vpop.permute.xlu0 %1154
        %v1156 = vsel %vm532, %v500, 0
        %v1158 = vsel %vm532, %v505, 0
        %v1160 = vsel %vm532, %v1153, 0
        %v1162 = vsel %vm532, %v1155, 0
        %1164 = vmatprep.subr.mxu0 0.0
        %1165 = vmatpush1.xpose.msra.mxu0 %v1160
        %1166 = vmatprep.subr.mxu0 0.0
        %1167 = vmatpush1.xpose.msra.mxu0 %v1162
        %1168 = vmatprep.subr.mxu0 0.0
        %1169 = vmatpush1.xpose.msra.mxu0 0.0
        %1170 = vmatprep.subr.mxu0 0.0
        %1171 = vmatpush1.xpose.msra.mxu0 0.0
        %1172 = vmatprep.subr.mxu0 0.0
        %1173 = vmatpush1.xpose.msra.mxu0 0.0
        %1174 = vmatprep.subr.mxu0 0.0
        %1175 = vmatpush1.xpose.msra.mxu0 0.0
        %1176 = vmatprep.subr.mxu0 0.0
        %1177 = vmatpush1.xpose.msra.mxu0 0.0
        %1178 = vmatprep.subr.mxu0 0.0
        %1179 = vmatpush1.xpose.msra.mxu0 0.0
        %1180 = vmatprep.subr.mxu0 0.0
        %1181 = vmatpush1.xpose.msra.mxu0 0.0
        %1182 = vmatprep.subr.mxu0 0.0
        %1183 = vmatpush1.xpose.msra.mxu0 0.0
        %1184 = vmatprep.subr.mxu0 0.0
        %1185 = vmatpush1.xpose.msra.mxu0 0.0
        %1186 = vmatprep.subr.mxu0 0.0
        %1187 = vmatpush1.xpose.msra.mxu0 0.0
        %1188 = vmatprep.subr.mxu0 0.0
        %1189 = vmatpush1.xpose.msra.mxu0 0.0
        %1190 = vmatprep.subr.mxu0 0.0
        %1191 = vmatpush1.xpose.msra.mxu0 0.0
        %1192 = vmatprep.subr.mxu0 0.0
        %1193 = vmatpush1.xpose.msra.mxu0 0.0
        %1194 = vmatprep.subr.mxu0 0.0
        %1195 = vmatpush1.xpose.msra.mxu0 0.0
        %1196 = vmatprep.subr.mxu0 0.0
        %1197 = vmatpush1.xpose.msra.mxu0 0.0
        %1198 = vmatprep.subr.mxu0 0.0
        %1199 = vmatpush1.xpose.msra.mxu0 0.0
        %1200 = vmatprep.subr.mxu0 0.0
        %1201 = vmatpush1.xpose.msra.mxu0 0.0
        %1202 = vmatprep.subr.mxu0 0.0
        %1203 = vmatpush1.xpose.msra.mxu0 0.0
        %1204 = vmatprep.subr.mxu0 0.0
        %1205 = vmatpush1.xpose.msra.mxu0 0.0
        %1206 = vmatprep.subr.mxu0 0.0
        %1207 = vmatpush1.xpose.msra.mxu0 0.0
        %1208 = vmatprep.subr.mxu0 0.0
        %1209 = vmatpush1.xpose.msra.mxu0 0.0
        %1210 = vmatprep.subr.mxu0 0.0
        %1211 = vmatpush1.xpose.msra.mxu0 0.0
        %1212 = vmatprep.subr.mxu0 0.0
        %1213 = vmatpush1.xpose.msra.mxu0 0.0
        %1214 = vmatprep.subr.mxu0 0.0
        %1215 = vmatpush1.xpose.msra.mxu0 0.0
        %1216 = vmatprep.subr.mxu0 0.0
        %1217 = vmatpush1.xpose.msra.mxu0 0.0
        %1218 = vmatprep.subr.mxu0 0.0
        %1219 = vmatpush1.xpose.msra.mxu0 0.0
        %1220 = vmatprep.subr.mxu0 0.0
        %1221 = vmatpush1.xpose.msra.mxu0 0.0
        %1222 = vmatprep.subr.mxu0 0.0
        %1223 = vmatpush1.xpose.msra.mxu0 0.0
        %1224 = vmatprep.subr.mxu0 0.0
        %1225 = vmatpush1.xpose.msra.mxu0 0.0
        %1226 = vmatprep.subr.mxu0 0.0
        %1227 = vmatpush1.xpose.msra.mxu0 0.0
        %1228 = vmatprep.mubr.f32.mxu0 0.0
        %1229 = vmatmul.mubr.f32.gmra.mrb[0].mxu0 %v1156
        %v1230 = vpop.f32.mrb[0].mxu0
        %v1231 = vadd.f32 %v508, %v1230
        %v1232 = vpop.f32.mrb[0].mxu0
        %1233 = vmatprep.mubr.f32.mxu0 0.0
        %1234 = vmatmul.mubr.f32.gmra.mrb[0].mxu0 %v1158
        %v1235 = vpop.f32.mrb[0].mxu0
        %v1236 = vadd.f32 %v509, %v1235
        %v1237 = vpop.f32.mrb[0].mxu0
        %1238 = vdwg.mxu0
        %vm1239 = vcmask 130048
        %v1240 = vsel %vm1239, %v608, -inf
        %1241 = vmax.xlane.f32.xlu0 %v1240
        %v1242 = vpop.xlane.xlu0 %1241
        %v1243 = vsel %vm1239, %v613, -inf
        %1244 = vmax.xlane.f32.xlu0 %v1243
        %v1245 = vpop.xlane.xlu0 %1244
        %v1246 = vsel %vm1239, %v697, -inf
        %1247 = vmax.xlane.f32.xlu0 %v1246
        %v1248 = vpop.xlane.xlu0 %1247
        %v1249 = vsel %vm1239, %v702, -inf
        %1250 = vmax.xlane.f32.xlu0 %v1249
        %v1251 = vpop.xlane.xlu0 %1250
        %v1252 = vsel %vm1239, %v786, -inf
        %1253 = vmax.xlane.f32.xlu0 %v1252
        %v1254 = vpop.xlane.xlu0 %1253
        %v1255 = vsel %vm1239, %v791, -inf
        %1256 = vmax.xlane.f32.xlu0 %v1255
        %v1257 = vpop.xlane.xlu0 %1256
        %v1258 = vsel %vm1239, %v875, -inf
        %1259 = vmax.xlane.f32.xlu0 %v1258
        %v1260 = vpop.xlane.xlu0 %1259
        %v1261 = vsel %vm1239, %v880, -inf
        %1262 = vmax.xlane.f32.xlu0 %v1261
        %v1263 = vpop.xlane.xlu0 %1262
        %v1264 = vsel %vm1239, %v964, -inf
        %1265 = vmax.xlane.f32.xlu0 %v1264
        %v1266 = vpop.xlane.xlu0 %1265
        %v1267 = vsel %vm1239, %v969, -inf
        %1268 = vmax.xlane.f32.xlu0 %v1267
        %v1269 = vpop.xlane.xlu0 %1268
        %v1270 = vsel %vm1239, %v1053, -inf
        %1271 = vmax.xlane.f32.xlu0 %v1270
        %v1272 = vpop.xlane.xlu0 %1271
        %v1273 = vsel %vm1239, %v1058, -inf
        %1274 = vmax.xlane.f32.xlu0 %v1273
        %v1275 = vpop.xlane.xlu0 %1274
        %v1276 = vsel %vm1239, %v1142, -inf
        %1277 = vmax.xlane.f32.xlu0 %v1276
        %v1278 = vpop.xlane.xlu0 %1277
        %v1279 = vsel %vm1239, %v1147, -inf
        %1280 = vmax.xlane.f32.xlu0 %v1279
        %v1281 = vpop.xlane.xlu0 %1280
        %v1282 = vsel %vm1239, %v1231, -inf
        %1283 = vmax.xlane.f32.xlu0 %v1282
        %v1284 = vpop.xlane.xlu0 %1283
        %v1285 = vsel %vm1239, %v1236, -inf
        %1286 = vmax.xlane.f32.xlu0 %v1285
        %v1287 = vpop.xlane.xlu0 %1286
        %v1288 = vsub.f32 %v608, %v1242
        %v1289 = vsub.f32 %v613, %v1245
        %v1290 = vsub.f32 %v697, %v1248
        %v1291 = vsub.f32 %v702, %v1251
        %v1292 = vsub.f32 %v786, %v1254
        %v1293 = vsub.f32 %v791, %v1257
        %v1294 = vsub.f32 %v875, %v1260
        %v1295 = vsub.f32 %v880, %v1263
        %v1296 = vsub.f32 %v964, %v1266
        %v1297 = vsub.f32 %v969, %v1269
        %v1298 = vsub.f32 %v1053, %v1272
        %v1299 = vsub.f32 %v1058, %v1275
        %v1300 = vsub.f32 %v1142, %v1278
        %v1301 = vsub.f32 %v1147, %v1281
        %v1302 = vsub.f32 %v1231, %v1284
        %v1303 = vsub.f32 %v1236, %v1287
        %v1304 = vmul.f32 %v1288, 1.442695
        %v1305 = vpow.pop %v1304
        %v1306 = vmul.f32 %v1289, 1.442695
        %v1307 = vpow.pop %v1306
        %v1308 = vmul.f32 %v1290, 1.442695
        %v1309 = vpow.pop %v1308
        %v1310 = vmul.f32 %v1291, 1.442695
        %v1311 = vpow.pop %v1310
        %v1312 = vmul.f32 %v1292, 1.442695
        %v1313 = vpow.pop %v1312
        %v1314 = vmul.f32 %v1293, 1.442695
        %v1315 = vpow.pop %v1314
        %v1316 = vmul.f32 %v1294, 1.442695
        %v1317 = vpow.pop %v1316
        %v1318 = vmul.f32 %v1295, 1.442695
        %v1319 = vpow.pop %v1318
        %v1320 = vmul.f32 %v1296, 1.442695
        %v1321 = vpow.pop %v1320
        %v1322 = vmul.f32 %v1297, 1.442695
        %v1323 = vpow.pop %v1322
        %v1324 = vmul.f32 %v1298, 1.442695
        %v1325 = vpow.pop %v1324
        %v1326 = vmul.f32 %v1299, 1.442695
        %v1327 = vpow.pop %v1326
        %v1328 = vmul.f32 %v1300, 1.442695
        %v1329 = vpow.pop %v1328
        %v1330 = vmul.f32 %v1301, 1.442695
        %v1331 = vpow.pop %v1330
        %v1332 = vmul.f32 %v1302, 1.442695
        %v1333 = vpow.pop %v1332
        %v1334 = vmul.f32 %v1303, 1.442695
        %v1335 = vpow.pop %v1334
        %v1336 = vsel %vm1239, %v1305, 0.0
        %1337 = vadd.xlane.f32.xlu0 %v1336
        %v1338 = vpop.xlane.xlu0 %1337
        %v1339 = vsel %vm1239, %v1307, 0.0
        %1340 = vadd.xlane.f32.xlu0 %v1339
        %v1341 = vpop.xlane.xlu0 %1340
        %v1342 = vsel %vm1239, %v1309, 0.0
        %1343 = vadd.xlane.f32.xlu0 %v1342
        %v1344 = vpop.xlane.xlu0 %1343
        %v1345 = vsel %vm1239, %v1311, 0.0
        %1346 = vadd.xlane.f32.xlu0 %v1345
        %v1347 = vpop.xlane.xlu0 %1346
        %v1348 = vsel %vm1239, %v1313, 0.0
        %1349 = vadd.xlane.f32.xlu0 %v1348
        %v1350 = vpop.xlane.xlu0 %1349
        %v1351 = vsel %vm1239, %v1315, 0.0
        %1352 = vadd.xlane.f32.xlu0 %v1351
        %v1353 = vpop.xlane.xlu0 %1352
        %v1354 = vsel %vm1239, %v1317, 0.0
        %1355 = vadd.xlane.f32.xlu0 %v1354
        %v1356 = vpop.xlane.xlu0 %1355
        %v1357 = vsel %vm1239, %v1319, 0.0
        %1358 = vadd.xlane.f32.xlu0 %v1357
        %v1359 = vpop.xlane.xlu0 %1358
        %v1360 = vsel %vm1239, %v1321, 0.0
        %1361 = vadd.xlane.f32.xlu0 %v1360
        %v1362 = vpop.xlane.xlu0 %1361
        %v1363 = vsel %vm1239, %v1323, 0.0
        %1364 = vadd.xlane.f32.xlu0 %v1363
        %v1365 = vpop.xlane.xlu0 %1364
        %v1366 = vsel %vm1239, %v1325, 0.0
        %1367 = vadd.xlane.f32.xlu0 %v1366
        %v1368 = vpop.xlane.xlu0 %1367
        %v1369 = vsel %vm1239, %v1327, 0.0
        %1370 = vadd.xlane.f32.xlu0 %v1369
        %v1371 = vpop.xlane.xlu0 %1370
        %v1372 = vsel %vm1239, %v1329, 0.0
        %1373 = vadd.xlane.f32.xlu0 %v1372
        %v1374 = vpop.xlane.xlu0 %1373
        %v1375 = vsel %vm1239, %v1331, 0.0
        %1376 = vadd.xlane.f32.xlu0 %v1375
        %v1377 = vpop.xlane.xlu0 %1376
        %v1378 = vsel %vm1239, %v1333, 0.0
        %1379 = vadd.xlane.f32.xlu0 %v1378
        %v1380 = vpop.xlane.xlu0 %1379
        %v1381 = vsel %vm1239, %v1335, 0.0
        %1382 = vadd.xlane.f32.xlu0 %v1381
        %v1383 = vpop.xlane.xlu0 %1382
        %v1384 = vrcp.pop %v1338
        %v1385 = vrcp.pop %v1341
        %v1386 = vrcp.pop %v1344
        %v1387 = vrcp.pop %v1347
        %v1388 = vrcp.pop %v1350
        %v1389 = vrcp.pop %v1353
        %v1390 = vrcp.pop %v1356
        %v1391 = vrcp.pop %v1359
        %v1392 = vrcp.pop %v1362
        %v1393 = vrcp.pop %v1365
        %v1394 = vrcp.pop %v1368
        %v1395 = vrcp.pop %v1371
        %v1396 = vrcp.pop %v1374
        %v1397 = vrcp.pop %v1377
        %v1398 = vrcp.pop %v1380
        %v1399 = vrcp.pop %v1383
        %v1400 = vmul.f32 %v1305, %v1384
        %v1401 = vmul.f32 %v1307, %v1385
        %v1402 = vmul.f32 %v1309, %v1386
        %v1403 = vmul.f32 %v1311, %v1387
        %v1404 = vmul.f32 %v1313, %v1388
        %v1405 = vmul.f32 %v1315, %v1389
        %v1406 = vmul.f32 %v1317, %v1390
        %v1407 = vmul.f32 %v1319, %v1391
        %v1408 = vmul.f32 %v1321, %v1392
        %v1409 = vmul.f32 %v1323, %v1393
        %v1410 = vmul.f32 %v1325, %v1394
        %v1411 = vmul.f32 %v1327, %v1395
        %v1412 = vmul.f32 %v1329, %v1396
        %v1413 = vmul.f32 %v1331, %v1397
        %v1414 = vmul.f32 %v1333, %v1398
        %v1415 = vmul.f32 %v1335, %v1399
        %1416 = vst.msk [vmem:[%s283] sm:$0xff] %vm1239, %v1400
        %1417 = vst.msk [vmem:[%s283 + $0x8] sm:$0xff] %vm1239, %v1401
        %1418 = vst.msk [vmem:[%s283 + $0x40] sm:$0xff] %vm1239, %v1402
        %1419 = vst.msk [vmem:[%s283 + $0x48] sm:$0xff] %vm1239, %v1403
        %1420 = vst.msk [vmem:[%s283 + $0x80] sm:$0xff] %vm1239, %v1404
        %1421 = vst.msk [vmem:[%s283 + $0x88] sm:$0xff] %vm1239, %v1405
        %1422 = vst.msk [vmem:[%s283 + $0xc0] sm:$0xff] %vm1239, %v1406
        %1423 = vst.msk [vmem:[%s283 + $0xc8] sm:$0xff] %vm1239, %v1407
        %1424 = vst.msk [vmem:[%s283 + $0x100] sm:$0xff] %vm1239, %v1408
        %1425 = vst.msk [vmem:[%s283 + $0x108] sm:$0xff] %vm1239, %v1409
        %1426 = vst.msk [vmem:[%s283 + $0x140] sm:$0xff] %vm1239, %v1410
        %1427 = vst.msk [vmem:[%s283 + $0x148] sm:$0xff] %vm1239, %v1411
        %1428 = vst.msk [vmem:[%s283 + $0x180] sm:$0xff] %vm1239, %v1412
        %1429 = vst.msk [vmem:[%s283 + $0x188] sm:$0xff] %vm1239, %v1413
        %1430 = vst.msk [vmem:[%s283 + $0x1c0] sm:$0xff] %vm1239, %v1414
        %1431 = vst.msk [vmem:[%s283 + $0x1c8] sm:$0xff] %vm1239, %v1415
        %1434 = vrot.lane.b32.xlu0 %v510, 64
        %v1435 = vpop.permute.xlu0 %1434
        %1436 = vrot.lane.b32.xlu0 %v511, 64
        %v1437 = vpop.permute.xlu0 %1436
        %v1441 = vsel %vm1239, %v1400, 0
        %v1444 = vsel %vm1239, %v1401, 0
        %1446 = vmatprep.subr.mxu0 0.0
        %1447 = vmatpush1.msra.mxu0 %v1435
        %1448 = vmatprep.subr.mxu0 0.0
        %1449 = vmatpush1.msra.mxu0 %v1437
        %1450 = vmatprep.subr.mxu0 0.0
        %1451 = vmatpush1.msra.mxu0 0.0
        %1452 = vmatprep.subr.mxu0 0.0
        %1453 = vmatpush1.msra.mxu0 0.0
        %1454 = vmatprep.subr.mxu0 0.0
        %1455 = vmatpush1.msra.mxu0 0.0
        %1456 = vmatprep.subr.mxu0 0.0
        %1457 = vmatpush1.msra.mxu0 0.0
        %1458 = vmatprep.subr.mxu0 0.0
        %1459 = vmatpush1.msra.mxu0 0.0
        %1460 = vmatprep.subr.mxu0 0.0
        %1461 = vmatpush1.msra.mxu0 0.0
        %1462 = vmatprep.subr.mxu0 0.0
        %1463 = vmatpush1.msra.mxu0 0.0
        %1464 = vmatprep.subr.mxu0 0.0
        %1465 = vmatpush1.msra.mxu0 0.0
        %1466 = vmatprep.subr.mxu0 0.0
        %1467 = vmatpush1.msra.mxu0 0.0
        %1468 = vmatprep.subr.mxu0 0.0
        %1469 = vmatpush1.msra.mxu0 0.0
        %1470 = vmatprep.subr.mxu0 0.0
        %1471 = vmatpush1.msra.mxu0 0.0
        %1472 = vmatprep.subr.mxu0 0.0
        %1473 = vmatpush1.msra.mxu0 0.0
        %1474 = vmatprep.subr.mxu0 0.0
        %1475 = vmatpush1.msra.mxu0 0.0
        %1476 = vmatprep.subr.mxu0 0.0
        %1477 = vmatpush1.msra.mxu0 0.0
        %1478 = vmatprep.subr.mxu0 0.0
        %1479 = vmatpush1.msra.mxu0 0.0
        %1480 = vmatprep.subr.mxu0 0.0
        %1481 = vmatpush1.msra.mxu0 0.0
        %1482 = vmatprep.subr.mxu0 0.0
        %1483 = vmatpush1.msra.mxu0 0.0
        %1484 = vmatprep.subr.mxu0 0.0
        %1485 = vmatpush1.msra.mxu0 0.0
        %1486 = vmatprep.subr.mxu0 0.0
        %1487 = vmatpush1.msra.mxu0 0.0
        %1488 = vmatprep.subr.mxu0 0.0
        %1489 = vmatpush1.msra.mxu0 0.0
        %1490 = vmatprep.subr.mxu0 0.0
        %1491 = vmatpush1.msra.mxu0 0.0
        %1492 = vmatprep.subr.mxu0 0.0
        %1493 = vmatpush1.msra.mxu0 0.0
        %1494 = vmatprep.subr.mxu0 0.0
        %1495 = vmatpush1.msra.mxu0 0.0
        %1496 = vmatprep.subr.mxu0 0.0
        %1497 = vmatpush1.msra.mxu0 0.0
        %1498 = vmatprep.subr.mxu0 0.0
        %1499 = vmatpush1.msra.mxu0 0.0
        %1500 = vmatprep.subr.mxu0 0.0
        %1501 = vmatpush1.msra.mxu0 0.0
        %1502 = vmatprep.subr.mxu0 0.0
        %1503 = vmatpush1.msra.mxu0 0.0
        %1504 = vmatprep.subr.mxu0 0.0
        %1505 = vmatpush1.msra.mxu0 0.0
        %1506 = vmatprep.subr.mxu0 0.0
        %1507 = vmatpush1.msra.mxu0 0.0
        %1508 = vmatprep.subr.mxu0 0.0
        %1509 = vmatpush1.msra.mxu0 0.0
        %1510 = vmatprep.mubr.f32.mxu0 0.0
        %1511 = vmatmul.mubr.f32.gmra.mrb[0].mxu0 %v1441
        %v1512 = vpop.f32.mrb[0].mxu0
        %v1513 = vadd.f32 0.0, %v1512
        %v1514 = vpop.f32.mrb[0].mxu0
        %1515 = vmatprep.mubr.f32.mxu0 0.0
        %1516 = vmatmul.mubr.f32.gmra.mrb[0].mxu0 %v1444
        %v1517 = vpop.f32.mrb[0].mxu0
        %v1518 = vadd.f32 0.0, %v1517
        %v1519 = vpop.f32.mrb[0].mxu0
        %1520 = vdwg.mxu0
        %1523 = vrot.lane.b32.xlu0 %v512, 64
        %v1524 = vpop.permute.xlu0 %1523
        %1525 = vrot.lane.b32.xlu0 %v513, 64
        %v1526 = vpop.permute.xlu0 %1525
        %v1530 = vsel %vm1239, %v1402, 0
        %v1533 = vsel %vm1239, %v1403, 0
        %1535 = vmatprep.subr.mxu0 0.0
        %1536 = vmatpush1.msra.mxu0 %v1524
        %1537 = vmatprep.subr.mxu0 0.0
        %1538 = vmatpush1.msra.mxu0 %v1526
        %1539 = vmatprep.subr.mxu0 0.0
        %1540 = vmatpush1.msra.mxu0 0.0
        %1541 = vmatprep.subr.mxu0 0.0
        %1542 = vmatpush1.msra.mxu0 0.0
        %1543 = vmatprep.subr.mxu0 0.0
        %1544 = vmatpush1.msra.mxu0 0.0
        %1545 = vmatprep.subr.mxu0 0.0
        %1546 = vmatpush1.msra.mxu0 0.0
        %1547 = vmatprep.subr.mxu0 0.0
        %1548 = vmatpush1.msra.mxu0 0.0
        %1549 = vmatprep.subr.mxu0 0.0
        %1550 = vmatpush1.msra.mxu0 0.0
        %1551 = vmatprep.subr.mxu0 0.0
        %1552 = vmatpush1.msra.mxu0 0.0
        %1553 = vmatprep.subr.mxu0 0.0
        %1554 = vmatpush1.msra.mxu0 0.0
        %1555 = vmatprep.subr.mxu0 0.0
        %1556 = vmatpush1.msra.mxu0 0.0
        %1557 = vmatprep.subr.mxu0 0.0
        %1558 = vmatpush1.msra.mxu0 0.0
        %1559 = vmatprep.subr.mxu0 0.0
        %1560 = vmatpush1.msra.mxu0 0.0
        %1561 = vmatprep.subr.mxu0 0.0
        %1562 = vmatpush1.msra.mxu0 0.0
        %1563 = vmatprep.subr.mxu0 0.0
        %1564 = vmatpush1.msra.mxu0 0.0
        %1565 = vmatprep.subr.mxu0 0.0
        %1566 = vmatpush1.msra.mxu0 0.0
        %1567 = vmatprep.subr.mxu0 0.0
        %1568 = vmatpush1.msra.mxu0 0.0
        %1569 = vmatprep.subr.mxu0 0.0
        %1570 = vmatpush1.msra.mxu0 0.0
        %1571 = vmatprep.subr.mxu0 0.0
        %1572 = vmatpush1.msra.mxu0 0.0
        %1573 = vmatprep.subr.mxu0 0.0
        %1574 = vmatpush1.msra.mxu0 0.0
        %1575 = vmatprep.subr.mxu0 0.0
        %1576 = vmatpush1.msra.mxu0 0.0
        %1577 = vmatprep.subr.mxu0 0.0
        %1578 = vmatpush1.msra.mxu0 0.0
        %1579 = vmatprep.subr.mxu0 0.0
        %1580 = vmatpush1.msra.mxu0 0.0
        %1581 = vmatprep.subr.mxu0 0.0
        %1582 = vmatpush1.msra.mxu0 0.0
        %1583 = vmatprep.subr.mxu0 0.0
        %1584 = vmatpush1.msra.mxu0 0.0
        %1585 = vmatprep.subr.mxu0 0.0
        %1586 = vmatpush1.msra.mxu0 0.0
        %1587 = vmatprep.subr.mxu0 0.0
        %1588 = vmatpush1.msra.mxu0 0.0
        %1589 = vmatprep.subr.mxu0 0.0
        %1590 = vmatpush1.msra.mxu0 0.0
        %1591 = vmatprep.subr.mxu0 0.0
        %1592 = vmatpush1.msra.mxu0 0.0
        %1593 = vmatprep.subr.mxu0 0.0
        %1594 = vmatpush1.msra.mxu0 0.0
        %1595 = vmatprep.subr.mxu0 0.0
        %1596 = vmatpush1.msra.mxu0 0.0
        %1597 = vmatprep.subr.mxu0 0.0
        %1598 = vmatpush1.msra.mxu0 0.0
        %1599 = vmatprep.mubr.f32.mxu0 0.0
        %1600 = vmatmul.mubr.f32.gmra.mrb[0].mxu0 %v1530
        %v1601 = vpop.f32.mrb[0].mxu0
        %v1602 = vadd.f32 0.0, %v1601
        %v1603 = vpop.f32.mrb[0].mxu0
        %1604 = vmatprep.mubr.f32.mxu0 0.0
        %1605 = vmatmul.mubr.f32.gmra.mrb[0].mxu0 %v1533
        %v1606 = vpop.f32.mrb[0].mxu0
        %v1607 = vadd.f32 0.0, %v1606
        %v1608 = vpop.f32.mrb[0].mxu0
        %1609 = vdwg.mxu0
        %1612 = vrot.lane.b32.xlu0 %v514, 64
        %v1613 = vpop.permute.xlu0 %1612
        %1614 = vrot.lane.b32.xlu0 %v515, 64
        %v1615 = vpop.permute.xlu0 %1614
        %v1619 = vsel %vm1239, %v1404, 0
        %v1622 = vsel %vm1239, %v1405, 0
        %1624 = vmatprep.subr.mxu0 0.0
        %1625 = vmatpush1.msra.mxu0 %v1613
        %1626 = vmatprep.subr.mxu0 0.0
        %1627 = vmatpush1.msra.mxu0 %v1615
        %1628 = vmatprep.subr.mxu0 0.0
        %1629 = vmatpush1.msra.mxu0 0.0
        %1630 = vmatprep.subr.mxu0 0.0
        %1631 = vmatpush1.msra.mxu0 0.0
        %1632 = vmatprep.subr.mxu0 0.0
        %1633 = vmatpush1.msra.mxu0 0.0
        %1634 = vmatprep.subr.mxu0 0.0
        %1635 = vmatpush1.msra.mxu0 0.0
        %1636 = vmatprep.subr.mxu0 0.0
        %1637 = vmatpush1.msra.mxu0 0.0
        %1638 = vmatprep.subr.mxu0 0.0
        %1639 = vmatpush1.msra.mxu0 0.0
        %1640 = vmatprep.subr.mxu0 0.0
        %1641 = vmatpush1.msra.mxu0 0.0
        %1642 = vmatprep.subr.mxu0 0.0
        %1643 = vmatpush1.msra.mxu0 0.0
        %1644 = vmatprep.subr.mxu0 0.0
        %1645 = vmatpush1.msra.mxu0 0.0
        %1646 = vmatprep.subr.mxu0 0.0
        %1647 = vmatpush1.msra.mxu0 0.0
        %1648 = vmatprep.subr.mxu0 0.0
        %1649 = vmatpush1.msra.mxu0 0.0
        %1650 = vmatprep.subr.mxu0 0.0
        %1651 = vmatpush1.msra.mxu0 0.0
        %1652 = vmatprep.subr.mxu0 0.0
        %1653 = vmatpush1.msra.mxu0 0.0
        %1654 = vmatprep.subr.mxu0 0.0
        %1655 = vmatpush1.msra.mxu0 0.0
        %1656 = vmatprep.subr.mxu0 0.0
        %1657 = vmatpush1.msra.mxu0 0.0
        %1658 = vmatprep.subr.mxu0 0.0
        %1659 = vmatpush1.msra.mxu0 0.0
        %1660 = vmatprep.subr.mxu0 0.0
        %1661 = vmatpush1.msra.mxu0 0.0
        %1662 = vmatprep.subr.mxu0 0.0
        %1663 = vmatpush1.msra.mxu0 0.0
        %1664 = vmatprep.subr.mxu0 0.0
        %1665 = vmatpush1.msra.mxu0 0.0
        %1666 = vmatprep.subr.mxu0 0.0
        %1667 = vmatpush1.msra.mxu0 0.0
        %1668 = vmatprep.subr.mxu0 0.0
        %1669 = vmatpush1.msra.mxu0 0.0
        %1670 = vmatprep.subr.mxu0 0.0
        %1671 = vmatpush1.msra.mxu0 0.0
        %1672 = vmatprep.subr.mxu0 0.0
        %1673 = vmatpush1.msra.mxu0 0.0
        %1674 = vmatprep.subr.mxu0 0.0
        %1675 = vmatpush1.msra.mxu0 0.0
        %1676 = vmatprep.subr.mxu0 0.0
        %1677 = vmatpush1.msra.mxu0 0.0
        %1678 = vmatprep.subr.mxu0 0.0
        %1679 = vmatpush1.msra.mxu0 0.0
        %1680 = vmatprep.subr.mxu0 0.0
        %1681 = vmatpush1.msra.mxu0 0.0
        %1682 = vmatprep.subr.mxu0 0.0
        %1683 = vmatpush1.msra.mxu0 0.0
        %1684 = vmatprep.subr.mxu0 0.0
        %1685 = vmatpush1.msra.mxu0 0.0
        %1686 = vmatprep.subr.mxu0 0.0
        %1687 = vmatpush1.msra.mxu0 0.0
        %1688 = vmatprep.mubr.f32.mxu0 0.0
        %1689 = vmatmul.mubr.f32.gmra.mrb[0].mxu0 %v1619
        %v1690 = vpop.f32.mrb[0].mxu0
        %v1691 = vadd.f32 0.0, %v1690
        %v1692 = vpop.f32.mrb[0].mxu0
        %1693 = vmatprep.mubr.f32.mxu0 0.0
        %1694 = vmatmul.mubr.f32.gmra.mrb[0].mxu0 %v1622
        %v1695 = vpop.f32.mrb[0].mxu0
        %v1696 = vadd.f32 0.0, %v1695
        %v1697 = vpop.f32.mrb[0].mxu0
        %1698 = vdwg.mxu0
        %1701 = vrot.lane.b32.xlu0 %v516, 64
        %v1702 = vpop.permute.xlu0 %1701
        %1703 = vrot.lane.b32.xlu0 %v517, 64
        %v1704 = vpop.permute.xlu0 %1703
        %v1708 = vsel %vm1239, %v1406, 0
        %v1711 = vsel %vm1239, %v1407, 0
        %1713 = vmatprep.subr.mxu0 0.0
        %1714 = vmatpush1.msra.mxu0 %v1702
        %1715 = vmatprep.subr.mxu0 0.0
        %1716 = vmatpush1.msra.mxu0 %v1704
        %1717 = vmatprep.subr.mxu0 0.0
        %1718 = vmatpush1.msra.mxu0 0.0
        %1719 = vmatprep.subr.mxu0 0.0
        %1720 = vmatpush1.msra.mxu0 0.0
        %1721 = vmatprep.subr.mxu0 0.0
        %1722 = vmatpush1.msra.mxu0 0.0
        %1723 = vmatprep.subr.mxu0 0.0
        %1724 = vmatpush1.msra.mxu0 0.0
        %1725 = vmatprep.subr.mxu0 0.0
        %1726 = vmatpush1.msra.mxu0 0.0
        %1727 = vmatprep.subr.mxu0 0.0
        %1728 = vmatpush1.msra.mxu0 0.0
        %1729 = vmatprep.subr.mxu0 0.0
        %1730 = vmatpush1.msra.mxu0 0.0
        %1731 = vmatprep.subr.mxu0 0.0
        %1732 = vmatpush1.msra.mxu0 0.0
        %1733 = vmatprep.subr.mxu0 0.0
        %1734 = vmatpush1.msra.mxu0 0.0
        %1735 = vmatprep.subr.mxu0 0.0
        %1736 = vmatpush1.msra.mxu0 0.0
        %1737 = vmatprep.subr.mxu0 0.0
        %1738 = vmatpush1.msra.mxu0 0.0
        %1739 = vmatprep.subr.mxu0 0.0
        %1740 = vmatpush1.msra.mxu0 0.0
        %1741 = vmatprep.subr.mxu0 0.0
        %1742 = vmatpush1.msra.mxu0 0.0
        %1743 = vmatprep.subr.mxu0 0.0
        %1744 = vmatpush1.msra.mxu0 0.0
        %1745 = vmatprep.subr.mxu0 0.0
        %1746 = vmatpush1.msra.mxu0 0.0
        %1747 = vmatprep.subr.mxu0 0.0
        %1748 = vmatpush1.msra.mxu0 0.0
        %1749 = vmatprep.subr.mxu0 0.0
        %1750 = vmatpush1.msra.mxu0 0.0
        %1751 = vmatprep.subr.mxu0 0.0
        %1752 = vmatpush1.msra.mxu0 0.0
        %1753 = vmatprep.subr.mxu0 0.0
        %1754 = vmatpush1.msra.mxu0 0.0
        %1755 = vmatprep.subr.mxu0 0.0
        %1756 = vmatpush1.msra.mxu0 0.0
        %1757 = vmatprep.subr.mxu0 0.0
        %1758 = vmatpush1.msra.mxu0 0.0
        %1759 = vmatprep.subr.mxu0 0.0
        %1760 = vmatpush1.msra.mxu0 0.0
        %1761 = vmatprep.subr.mxu0 0.0
        %1762 = vmatpush1.msra.mxu0 0.0
        %1763 = vmatprep.subr.mxu0 0.0
        %1764 = vmatpush1.msra.mxu0 0.0
        %1765 = vmatprep.subr.mxu0 0.0
        %1766 = vmatpush1.msra.mxu0 0.0
        %1767 = vmatprep.subr.mxu0 0.0
        %1768 = vmatpush1.msra.mxu0 0.0
        %1769 = vmatprep.subr.mxu0 0.0
        %1770 = vmatpush1.msra.mxu0 0.0
        %1771 = vmatprep.subr.mxu0 0.0
        %1772 = vmatpush1.msra.mxu0 0.0
        %1773 = vmatprep.subr.mxu0 0.0
        %1774 = vmatpush1.msra.mxu0 0.0
        %1775 = vmatprep.subr.mxu0 0.0
        %1776 = vmatpush1.msra.mxu0 0.0
        %1777 = vmatprep.mubr.f32.mxu0 0.0
        %1778 = vmatmul.mubr.f32.gmra.mrb[0].mxu0 %v1708
        %v1779 = vpop.f32.mrb[0].mxu0
        %v1780 = vadd.f32 0.0, %v1779
        %v1781 = vpop.f32.mrb[0].mxu0
        %1782 = vmatprep.mubr.f32.mxu0 0.0
        %1783 = vmatmul.mubr.f32.gmra.mrb[0].mxu0 %v1711
        %v1784 = vpop.f32.mrb[0].mxu0
        %v1785 = vadd.f32 0.0, %v1784
        %v1786 = vpop.f32.mrb[0].mxu0
        %1787 = vdwg.mxu0
        %1790 = vrot.lane.b32.xlu0 %v518, 64
        %v1791 = vpop.permute.xlu0 %1790
        %1792 = vrot.lane.b32.xlu0 %v519, 64
        %v1793 = vpop.permute.xlu0 %1792
        %v1797 = vsel %vm1239, %v1408, 0
        %v1800 = vsel %vm1239, %v1409, 0
        %1802 = vmatprep.subr.mxu0 0.0
        %1803 = vmatpush1.msra.mxu0 %v1791
        %1804 = vmatprep.subr.mxu0 0.0
        %1805 = vmatpush1.msra.mxu0 %v1793
        %1806 = vmatprep.subr.mxu0 0.0
        %1807 = vmatpush1.msra.mxu0 0.0
        %1808 = vmatprep.subr.mxu0 0.0
        %1809 = vmatpush1.msra.mxu0 0.0
        %1810 = vmatprep.subr.mxu0 0.0
        %1811 = vmatpush1.msra.mxu0 0.0
        %1812 = vmatprep.subr.mxu0 0.0
        %1813 = vmatpush1.msra.mxu0 0.0
        %1814 = vmatprep.subr.mxu0 0.0
        %1815 = vmatpush1.msra.mxu0 0.0
        %1816 = vmatprep.subr.mxu0 0.0
        %1817 = vmatpush1.msra.mxu0 0.0
        %1818 = vmatprep.subr.mxu0 0.0
        %1819 = vmatpush1.msra.mxu0 0.0
        %1820 = vmatprep.subr.mxu0 0.0
        %1821 = vmatpush1.msra.mxu0 0.0
        %1822 = vmatprep.subr.mxu0 0.0
        %1823 = vmatpush1.msra.mxu0 0.0
        %1824 = vmatprep.subr.mxu0 0.0
        %1825 = vmatpush1.msra.mxu0 0.0
        %1826 = vmatprep.subr.mxu0 0.0
        %1827 = vmatpush1.msra.mxu0 0.0
        %1828 = vmatprep.subr.mxu0 0.0
        %1829 = vmatpush1.msra.mxu0 0.0
        %1830 = vmatprep.subr.mxu0 0.0
        %1831 = vmatpush1.msra.mxu0 0.0
        %1832 = vmatprep.subr.mxu0 0.0
        %1833 = vmatpush1.msra.mxu0 0.0
        %1834 = vmatprep.subr.mxu0 0.0
        %1835 = vmatpush1.msra.mxu0 0.0
        %1836 = vmatprep.subr.mxu0 0.0
        %1837 = vmatpush1.msra.mxu0 0.0
        %1838 = vmatprep.subr.mxu0 0.0
        %1839 = vmatpush1.msra.mxu0 0.0
        %1840 = vmatprep.subr.mxu0 0.0
        %1841 = vmatpush1.msra.mxu0 0.0
        %1842 = vmatprep.subr.mxu0 0.0
        %1843 = vmatpush1.msra.mxu0 0.0
        %1844 = vmatprep.subr.mxu0 0.0
        %1845 = vmatpush1.msra.mxu0 0.0
        %1846 = vmatprep.subr.mxu0 0.0
        %1847 = vmatpush1.msra.mxu0 0.0
        %1848 = vmatprep.subr.mxu0 0.0
        %1849 = vmatpush1.msra.mxu0 0.0
        %1850 = vmatprep.subr.mxu0 0.0
        %1851 = vmatpush1.msra.mxu0 0.0
        %1852 = vmatprep.subr.mxu0 0.0
        %1853 = vmatpush1.msra.mxu0 0.0
        %1854 = vmatprep.subr.mxu0 0.0
        %1855 = vmatpush1.msra.mxu0 0.0
        %1856 = vmatprep.subr.mxu0 0.0
        %1857 = vmatpush1.msra.mxu0 0.0
        %1858 = vmatprep.subr.mxu0 0.0
        %1859 = vmatpush1.msra.mxu0 0.0
        %1860 = vmatprep.subr.mxu0 0.0
        %1861 = vmatpush1.msra.mxu0 0.0
        %1862 = vmatprep.subr.mxu0 0.0
        %1863 = vmatpush1.msra.mxu0 0.0
        %1864 = vmatprep.subr.mxu0 0.0
        %1865 = vmatpush1.msra.mxu0 0.0
        %1866 = vmatprep.mubr.f32.mxu0 0.0
        %1867 = vmatmul.mubr.f32.gmra.mrb[0].mxu0 %v1797
        %v1868 = vpop.f32.mrb[0].mxu0
        %v1869 = vadd.f32 0.0, %v1868
        %v1870 = vpop.f32.mrb[0].mxu0
        %1871 = vmatprep.mubr.f32.mxu0 0.0
        %1872 = vmatmul.mubr.f32.gmra.mrb[0].mxu0 %v1800
        %v1873 = vpop.f32.mrb[0].mxu0
        %v1874 = vadd.f32 0.0, %v1873
        %v1875 = vpop.f32.mrb[0].mxu0
        %1876 = vdwg.mxu0
        %1879 = vrot.lane.b32.xlu0 %v520, 64
        %v1880 = vpop.permute.xlu0 %1879
        %1881 = vrot.lane.b32.xlu0 %v521, 64
        %v1882 = vpop.permute.xlu0 %1881
        %v1886 = vsel %vm1239, %v1410, 0
        %v1889 = vsel %vm1239, %v1411, 0
        %1891 = vmatprep.subr.mxu0 0.0
        %1892 = vmatpush1.msra.mxu0 %v1880
        %1893 = vmatprep.subr.mxu0 0.0
        %1894 = vmatpush1.msra.mxu0 %v1882
        %1895 = vmatprep.subr.mxu0 0.0
        %1896 = vmatpush1.msra.mxu0 0.0
        %1897 = vmatprep.subr.mxu0 0.0
        %1898 = vmatpush1.msra.mxu0 0.0
        %1899 = vmatprep.subr.mxu0 0.0
        %1900 = vmatpush1.msra.mxu0 0.0
        %1901 = vmatprep.subr.mxu0 0.0
        %1902 = vmatpush1.msra.mxu0 0.0
        %1903 = vmatprep.subr.mxu0 0.0
        %1904 = vmatpush1.msra.mxu0 0.0
        %1905 = vmatprep.subr.mxu0 0.0
        %1906 = vmatpush1.msra.mxu0 0.0
        %1907 = vmatprep.subr.mxu0 0.0
        %1908 = vmatpush1.msra.mxu0 0.0
        %1909 = vmatprep.subr.mxu0 0.0
        %1910 = vmatpush1.msra.mxu0 0.0
        %1911 = vmatprep.subr.mxu0 0.0
        %1912 = vmatpush1.msra.mxu0 0.0
        %1913 = vmatprep.subr.mxu0 0.0
        %1914 = vmatpush1.msra.mxu0 0.0
        %1915 = vmatprep.subr.mxu0 0.0
        %1916 = vmatpush1.msra.mxu0 0.0
        %1917 = vmatprep.subr.mxu0 0.0
        %1918 = vmatpush1.msra.mxu0 0.0
        %1919 = vmatprep.subr.mxu0 0.0
        %1920 = vmatpush1.msra.mxu0 0.0
        %1921 = vmatprep.subr.mxu0 0.0
        %1922 = vmatpush1.msra.mxu0 0.0
        %1923 = vmatprep.subr.mxu0 0.0
        %1924 = vmatpush1.msra.mxu0 0.0
        %1925 = vmatprep.subr.mxu0 0.0
        %1926 = vmatpush1.msra.mxu0 0.0
        %1927 = vmatprep.subr.mxu0 0.0
        %1928 = vmatpush1.msra.mxu0 0.0
        %1929 = vmatprep.subr.mxu0 0.0
        %1930 = vmatpush1.msra.mxu0 0.0
        %1931 = vmatprep.subr.mxu0 0.0
        %1932 = vmatpush1.msra.mxu0 0.0
        %1933 = vmatprep.subr.mxu0 0.0
        %1934 = vmatpush1.msra.mxu0 0.0
        %1935 = vmatprep.subr.mxu0 0.0
        %1936 = vmatpush1.msra.mxu0 0.0
        %1937 = vmatprep.subr.mxu0 0.0
        %1938 = vmatpush1.msra.mxu0 0.0
        %1939 = vmatprep.subr.mxu0 0.0
        %1940 = vmatpush1.msra.mxu0 0.0
        %1941 = vmatprep.subr.mxu0 0.0
        %1942 = vmatpush1.msra.mxu0 0.0
        %1943 = vmatprep.subr.mxu0 0.0
        %1944 = vmatpush1.msra.mxu0 0.0
        %1945 = vmatprep.subr.mxu0 0.0
        %1946 = vmatpush1.msra.mxu0 0.0
        %1947 = vmatprep.subr.mxu0 0.0
        %1948 = vmatpush1.msra.mxu0 0.0
        %1949 = vmatprep.subr.mxu0 0.0
        %1950 = vmatpush1.msra.mxu0 0.0
        %1951 = vmatprep.subr.mxu0 0.0
        %1952 = vmatpush1.msra.mxu0 0.0
        %1953 = vmatprep.subr.mxu0 0.0
        %1954 = vmatpush1.msra.mxu0 0.0
        %1955 = vmatprep.mubr.f32.mxu0 0.0
        %1956 = vmatmul.mubr.f32.gmra.mrb[0].mxu0 %v1886
        %v1957 = vpop.f32.mrb[0].mxu0
        %v1958 = vadd.f32 0.0, %v1957
        %v1959 = vpop.f32.mrb[0].mxu0
        %1960 = vmatprep.mubr.f32.mxu0 0.0
        %1961 = vmatmul.mubr.f32.gmra.mrb[0].mxu0 %v1889
        %v1962 = vpop.f32.mrb[0].mxu0
        %v1963 = vadd.f32 0.0, %v1962
        %v1964 = vpop.f32.mrb[0].mxu0
        %1965 = vdwg.mxu0
        %1968 = vrot.lane.b32.xlu0 %v522, 64
        %v1969 = vpop.permute.xlu0 %1968
        %1970 = vrot.lane.b32.xlu0 %v523, 64
        %v1971 = vpop.permute.xlu0 %1970
        %v1975 = vsel %vm1239, %v1412, 0
        %v1978 = vsel %vm1239, %v1413, 0
        %1980 = vmatprep.subr.mxu0 0.0
        %1981 = vmatpush1.msra.mxu0 %v1969
        %1982 = vmatprep.subr.mxu0 0.0
        %1983 = vmatpush1.msra.mxu0 %v1971
        %1984 = vmatprep.subr.mxu0 0.0
        %1985 = vmatpush1.msra.mxu0 0.0
        %1986 = vmatprep.subr.mxu0 0.0
        %1987 = vmatpush1.msra.mxu0 0.0
        %1988 = vmatprep.subr.mxu0 0.0
        %1989 = vmatpush1.msra.mxu0 0.0
        %1990 = vmatprep.subr.mxu0 0.0
        %1991 = vmatpush1.msra.mxu0 0.0
        %1992 = vmatprep.subr.mxu0 0.0
        %1993 = vmatpush1.msra.mxu0 0.0
        %1994 = vmatprep.subr.mxu0 0.0
        %1995 = vmatpush1.msra.mxu0 0.0
        %1996 = vmatprep.subr.mxu0 0.0
        %1997 = vmatpush1.msra.mxu0 0.0
        %1998 = vmatprep.subr.mxu0 0.0
        %1999 = vmatpush1.msra.mxu0 0.0
        %2000 = vmatprep.subr.mxu0 0.0
        %2001 = vmatpush1.msra.mxu0 0.0
        %2002 = vmatprep.subr.mxu0 0.0
        %2003 = vmatpush1.msra.mxu0 0.0
        %2004 = vmatprep.subr.mxu0 0.0
        %2005 = vmatpush1.msra.mxu0 0.0
        %2006 = vmatprep.subr.mxu0 0.0
        %2007 = vmatpush1.msra.mxu0 0.0
        %2008 = vmatprep.subr.mxu0 0.0
        %2009 = vmatpush1.msra.mxu0 0.0
        %2010 = vmatprep.subr.mxu0 0.0
        %2011 = vmatpush1.msra.mxu0 0.0
        %2012 = vmatprep.subr.mxu0 0.0
        %2013 = vmatpush1.msra.mxu0 0.0
        %2014 = vmatprep.subr.mxu0 0.0
        %2015 = vmatpush1.msra.mxu0 0.0
        %2016 = vmatprep.subr.mxu0 0.0
        %2017 = vmatpush1.msra.mxu0 0.0
        %2018 = vmatprep.subr.mxu0 0.0
        %2019 = vmatpush1.msra.mxu0 0.0
        %2020 = vmatprep.subr.mxu0 0.0
        %2021 = vmatpush1.msra.mxu0 0.0
        %2022 = vmatprep.subr.mxu0 0.0
        %2023 = vmatpush1.msra.mxu0 0.0
        %2024 = vmatprep.subr.mxu0 0.0
        %2025 = vmatpush1.msra.mxu0 0.0
        %2026 = vmatprep.subr.mxu0 0.0
        %2027 = vmatpush1.msra.mxu0 0.0
        %2028 = vmatprep.subr.mxu0 0.0
        %2029 = vmatpush1.msra.mxu0 0.0
        %2030 = vmatprep.subr.mxu0 0.0
        %2031 = vmatpush1.msra.mxu0 0.0
        %2032 = vmatprep.subr.mxu0 0.0
        %2033 = vmatpush1.msra.mxu0 0.0
        %2034 = vmatprep.subr.mxu0 0.0
        %2035 = vmatpush1.msra.mxu0 0.0
        %2036 = vmatprep.subr.mxu0 0.0
        %2037 = vmatpush1.msra.mxu0 0.0
        %2038 = vmatprep.subr.mxu0 0.0
        %2039 = vmatpush1.msra.mxu0 0.0
        %2040 = vmatprep.subr.mxu0 0.0
        %2041 = vmatpush1.msra.mxu0 0.0
        %2042 = vmatprep.subr.mxu0 0.0
        %2043 = vmatpush1.msra.mxu0 0.0
        %2044 = vmatprep.mubr.f32.mxu0 0.0
        %2045 = vmatmul.mubr.f32.gmra.mrb[0].mxu0 %v1975
        %v2046 = vpop.f32.mrb[0].mxu0
        %v2047 = vadd.f32 0.0, %v2046
        %v2048 = vpop.f32.mrb[0].mxu0
        %2049 = vmatprep.mubr.f32.mxu0 0.0
        %2050 = vmatmul.mubr.f32.gmra.mrb[0].mxu0 %v1978
        %v2051 = vpop.f32.mrb[0].mxu0
        %v2052 = vadd.f32 0.0, %v2051
        %v2053 = vpop.f32.mrb[0].mxu0
        %2054 = vdwg.mxu0
        %2057 = vrot.lane.b32.xlu0 %v524, 64
        %v2058 = vpop.permute.xlu0 %2057
        %2059 = vrot.lane.b32.xlu0 %v525, 64
        %v2060 = vpop.permute.xlu0 %2059
        %v2064 = vsel %vm1239, %v1414, 0
        %v2067 = vsel %vm1239, %v1415, 0
        %2069 = vmatprep.subr.mxu0 0.0
        %2070 = vmatpush1.msra.mxu0 %v2058
        %2071 = vmatprep.subr.mxu0 0.0
        %2072 = vmatpush1.msra.mxu0 %v2060
        %2073 = vmatprep.subr.mxu0 0.0
        %2074 = vmatpush1.msra.mxu0 0.0
        %2075 = vmatprep.subr.mxu0 0.0
        %2076 = vmatpush1.msra.mxu0 0.0
        %2077 = vmatprep.subr.mxu0 0.0
        %2078 = vmatpush1.msra.mxu0 0.0
        %2079 = vmatprep.subr.mxu0 0.0
        %2080 = vmatpush1.msra.mxu0 0.0
        %2081 = vmatprep.subr.mxu0 0.0
        %2082 = vmatpush1.msra.mxu0 0.0
        %2083 = vmatprep.subr.mxu0 0.0
        %2084 = vmatpush1.msra.mxu0 0.0
        %2085 = vmatprep.subr.mxu0 0.0
        %2086 = vmatpush1.msra.mxu0 0.0
        %2087 = vmatprep.subr.mxu0 0.0
        %2088 = vmatpush1.msra.mxu0 0.0
        %2089 = vmatprep.subr.mxu0 0.0
        %2090 = vmatpush1.msra.mxu0 0.0
        %2091 = vmatprep.subr.mxu0 0.0
        %2092 = vmatpush1.msra.mxu0 0.0
        %2093 = vmatprep.subr.mxu0 0.0
        %2094 = vmatpush1.msra.mxu0 0.0
        %2095 = vmatprep.subr.mxu0 0.0
        %2096 = vmatpush1.msra.mxu0 0.0
        %2097 = vmatprep.subr.mxu0 0.0
        %2098 = vmatpush1.msra.mxu0 0.0
        %2099 = vmatprep.subr.mxu0 0.0
        %2100 = vmatpush1.msra.mxu0 0.0
        %2101 = vmatprep.subr.mxu0 0.0
        %2102 = vmatpush1.msra.mxu0 0.0
        %2103 = vmatprep.subr.mxu0 0.0
        %2104 = vmatpush1.msra.mxu0 0.0
        %2105 = vmatprep.subr.mxu0 0.0
        %2106 = vmatpush1.msra.mxu0 0.0
        %2107 = vmatprep.subr.mxu0 0.0
        %2108 = vmatpush1.msra.mxu0 0.0
        %2109 = vmatprep.subr.mxu0 0.0
        %2110 = vmatpush1.msra.mxu0 0.0
        %2111 = vmatprep.subr.mxu0 0.0
        %2112 = vmatpush1.msra.mxu0 0.0
        %2113 = vmatprep.subr.mxu0 0.0
        %2114 = vmatpush1.msra.mxu0 0.0
        %2115 = vmatprep.subr.mxu0 0.0
        %2116 = vmatpush1.msra.mxu0 0.0
        %2117 = vmatprep.subr.mxu0 0.0
        %2118 = vmatpush1.msra.mxu0 0.0
        %2119 = vmatprep.subr.mxu0 0.0
        %2120 = vmatpush1.msra.mxu0 0.0
        %2121 = vmatprep.subr.mxu0 0.0
        %2122 = vmatpush1.msra.mxu0 0.0
        %2123 = vmatprep.subr.mxu0 0.0
        %2124 = vmatpush1.msra.mxu0 0.0
        %2125 = vmatprep.subr.mxu0 0.0
        %2126 = vmatpush1.msra.mxu0 0.0
        %2127 = vmatprep.subr.mxu0 0.0
        %2128 = vmatpush1.msra.mxu0 0.0
        %2129 = vmatprep.subr.mxu0 0.0
        %2130 = vmatpush1.msra.mxu0 0.0
        %2131 = vmatprep.subr.mxu0 0.0
        %2132 = vmatpush1.msra.mxu0 0.0
        %2133 = vmatprep.mubr.f32.mxu0 0.0
        %2134 = vmatmul.mubr.f32.gmra.mrb[0].mxu0 %v2064
        %v2135 = vpop.f32.mrb[0].mxu0
        %v2136 = vadd.f32 0.0, %v2135
        %v2137 = vpop.f32.mrb[0].mxu0
        %2138 = vmatprep.mubr.f32.mxu0 0.0
        %2139 = vmatmul.mubr.f32.gmra.mrb[0].mxu0 %v2067
        %v2140 = vpop.f32.mrb[0].mxu0
        %v2141 = vadd.f32 0.0, %v2140
        %v2142 = vpop.f32.mrb[0].mxu0
        %2143 = vdwg.mxu0
        %2144 = vrot.lane.b32.xlu0 %v430, 120
        %v2145 = vpop.permute.xlu0 %2144
        %2146 = vrot.lane.b32.xlu0 %v435, 120
        %v2147 = vpop.permute.xlu0 %2146
        %2148 = vrot.lane.b32.xlu0 %v430, 88
        %v2149 = vpop.permute.xlu0 %2148
        %2150 = vrot.lane.b32.xlu0 %v435, 88
        %v2151 = vpop.permute.xlu0 %2150
        %v2152 = vsel %vm532, %v2145, 0
        %v2154 = vsel %vm532, %v2147, 0
        %v2156 = vsel %vm532, %v2149, 0
        %v2158 = vsel %vm532, %v2151, 0
        %2160 = vmatprep.subr.mxu0 0.0
        %2161 = vmatpush1.xpose.msra.mxu0 %v2156
        %2162 = vmatprep.subr.mxu0 0.0
        %2163 = vmatpush1.xpose.msra.mxu0 %v2158
        %2164 = vmatprep.subr.mxu0 0.0
        %2165 = vmatpush1.xpose.msra.mxu0 0.0
        %2166 = vmatprep.subr.mxu0 0.0
        %2167 = vmatpush1.xpose.msra.mxu0 0.0
        %2168 = vmatprep.subr.mxu0 0.0
        %2169 = vmatpush1.xpose.msra.mxu0 0.0
        %2170 = vmatprep.subr.mxu0 0.0
        %2171 = vmatpush1.xpose.msra.mxu0 0.0
        %2172 = vmatprep.subr.mxu0 0.0
        %2173 = vmatpush1.xpose.msra.mxu0 0.0
        %2174 = vmatprep.subr.mxu0 0.0
        %2175 = vmatpush1.xpose.msra.mxu0 0.0
        %2176 = vmatprep.subr.mxu0 0.0
        %2177 = vmatpush1.xpose.msra.mxu0 0.0
        %2178 = vmatprep.subr.mxu0 0.0
        %2179 = vmatpush1.xpose.msra.mxu0 0.0
        %2180 = vmatprep.subr.mxu0 0.0
        %2181 = vmatpush1.xpose.msra.mxu0 0.0
        %2182 = vmatprep.subr.mxu0 0.0
        %2183 = vmatpush1.xpose.msra.mxu0 0.0
        %2184 = vmatprep.subr.mxu0 0.0
        %2185 = vmatpush1.xpose.msra.mxu0 0.0
        %2186 = vmatprep.subr.mxu0 0.0
        %2187 = vmatpush1.xpose.msra.mxu0 0.0
        %2188 = vmatprep.subr.mxu0 0.0
        %2189 = vmatpush1.xpose.msra.mxu0 0.0
        %2190 = vmatprep.subr.mxu0 0.0
        %2191 = vmatpush1.xpose.msra.mxu0 0.0
        %2192 = vmatprep.subr.mxu0 0.0
        %2193 = vmatpush1.xpose.msra.mxu0 0.0
        %2194 = vmatprep.subr.mxu0 0.0
        %2195 = vmatpush1.xpose.msra.mxu0 0.0
        %2196 = vmatprep.subr.mxu0 0.0
        %2197 = vmatpush1.xpose.msra.mxu0 0.0
        %2198 = vmatprep.subr.mxu0 0.0
        %2199 = vmatpush1.xpose.msra.mxu0 0.0
        %2200 = vmatprep.subr.mxu0 0.0
        %2201 = vmatpush1.xpose.msra.mxu0 0.0
        %2202 = vmatprep.subr.mxu0 0.0
        %2203 = vmatpush1.xpose.msra.mxu0 0.0
        %2204 = vmatprep.subr.mxu0 0.0
        %2205 = vmatpush1.xpose.msra.mxu0 0.0
        %2206 = vmatprep.subr.mxu0 0.0
        %2207 = vmatpush1.xpose.msra.mxu0 0.0
        %2208 = vmatprep.subr.mxu0 0.0
        %2209 = vmatpush1.xpose.msra.mxu0 0.0
        %2210 = vmatprep.subr.mxu0 0.0
        %2211 = vmatpush1.xpose.msra.mxu0 0.0
        %2212 = vmatprep.subr.mxu0 0.0
        %2213 = vmatpush1.xpose.msra.mxu0 0.0
        %2214 = vmatprep.subr.mxu0 0.0
        %2215 = vmatpush1.xpose.msra.mxu0 0.0
        %2216 = vmatprep.subr.mxu0 0.0
        %2217 = vmatpush1.xpose.msra.mxu0 0.0
        %2218 = vmatprep.subr.mxu0 0.0
        %2219 = vmatpush1.xpose.msra.mxu0 0.0
        %2220 = vmatprep.subr.mxu0 0.0
        %2221 = vmatpush1.xpose.msra.mxu0 0.0
        %2222 = vmatprep.subr.mxu0 0.0
        %2223 = vmatpush1.xpose.msra.mxu0 0.0
        %2224 = vmatprep.mubr.f32.mxu0 0.0
        %2225 = vmatmul.mubr.f32.gmra.mrb[0].mxu0 %v2152
        %v2226 = vpop.f32.mrb[0].mxu0
        %v2227 = vadd.f32 %v508, %v2226
        %v2228 = vpop.f32.mrb[0].mxu0
        %2229 = vmatprep.mubr.f32.mxu0 0.0
        %2230 = vmatmul.mubr.f32.gmra.mrb[0].mxu0 %v2154
        %v2231 = vpop.f32.mrb[0].mxu0
        %v2232 = vadd.f32 %v509, %v2231
        %v2233 = vpop.f32.mrb[0].mxu0
        %2234 = vdwg.mxu0
        %2235 = vrot.lane.b32.xlu0 %v440, 120
        %v2236 = vpop.permute.xlu0 %2235
        %2237 = vrot.lane.b32.xlu0 %v445, 120
        %v2238 = vpop.permute.xlu0 %2237
        %2239 = vrot.lane.b32.xlu0 %v440, 88
        %v2240 = vpop.permute.xlu0 %2239
        %2241 = vrot.lane.b32.xlu0 %v445, 88
        %v2242 = vpop.permute.xlu0 %2241
        %v2243 = vsel %vm532, %v2236, 0
        %v2245 = vsel %vm532, %v2238, 0
        %v2247 = vsel %vm532, %v2240, 0
        %v2249 = vsel %vm532, %v2242, 0
        %2251 = vmatprep.subr.mxu0 0.0
        %2252 = vmatpush1.xpose.msra.mxu0 %v2247
        %2253 = vmatprep.subr.mxu0 0.0
        %2254 = vmatpush1.xpose.msra.mxu0 %v2249
        %2255 = vmatprep.subr.mxu0 0.0
        %2256 = vmatpush1.xpose.msra.mxu0 0.0
        %2257 = vmatprep.subr.mxu0 0.0
        %2258 = vmatpush1.xpose.msra.mxu0 0.0
        %2259 = vmatprep.subr.mxu0 0.0
        %2260 = vmatpush1.xpose.msra.mxu0 0.0
        %2261 = vmatprep.subr.mxu0 0.0
        %2262 = vmatpush1.xpose.msra.mxu0 0.0
        %2263 = vmatprep.subr.mxu0 0.0
        %2264 = vmatpush1.xpose.msra.mxu0 0.0
        %2265 = vmatprep.subr.mxu0 0.0
        %2266 = vmatpush1.xpose.msra.mxu0 0.0
        %2267 = vmatprep.subr.mxu0 0.0
        %2268 = vmatpush1.xpose.msra.mxu0 0.0
        %2269 = vmatprep.subr.mxu0 0.0
        %2270 = vmatpush1.xpose.msra.mxu0 0.0
        %2271 = vmatprep.subr.mxu0 0.0
        %2272 = vmatpush1.xpose.msra.mxu0 0.0
        %2273 = vmatprep.subr.mxu0 0.0
        %2274 = vmatpush1.xpose.msra.mxu0 0.0
        %2275 = vmatprep.subr.mxu0 0.0
        %2276 = vmatpush1.xpose.msra.mxu0 0.0
        %2277 = vmatprep.subr.mxu0 0.0
        %2278 = vmatpush1.xpose.msra.mxu0 0.0
        %2279 = vmatprep.subr.mxu0 0.0
        %2280 = vmatpush1.xpose.msra.mxu0 0.0
        %2281 = vmatprep.subr.mxu0 0.0
        %2282 = vmatpush1.xpose.msra.mxu0 0.0
        %2283 = vmatprep.subr.mxu0 0.0
        %2284 = vmatpush1.xpose.msra.mxu0 0.0
        %2285 = vmatprep.subr.mxu0 0.0
        %2286 = vmatpush1.xpose.msra.mxu0 0.0
        %2287 = vmatprep.subr.mxu0 0.0
        %2288 = vmatpush1.xpose.msra.mxu0 0.0
        %2289 = vmatprep.subr.mxu0 0.0
        %2290 = vmatpush1.xpose.msra.mxu0 0.0
        %2291 = vmatprep.subr.mxu0 0.0
        %2292 = vmatpush1.xpose.msra.mxu0 0.0
        %2293 = vmatprep.subr.mxu0 0.0
        %2294 = vmatpush1.xpose.msra.mxu0 0.0
        %2295 = vmatprep.subr.mxu0 0.0
        %2296 = vmatpush1.xpose.msra.mxu0 0.0
        %2297 = vmatprep.subr.mxu0 0.0
        %2298 = vmatpush1.xpose.msra.mxu0 0.0
        %2299 = vmatprep.subr.mxu0 0.0
        %2300 = vmatpush1.xpose.msra.mxu0 0.0
        %2301 = vmatprep.subr.mxu0 0.0
        %2302 = vmatpush1.xpose.msra.mxu0 0.0
        %2303 = vmatprep.subr.mxu0 0.0
        %2304 = vmatpush1.xpose.msra.mxu0 0.0
        %2305 = vmatprep.subr.mxu0 0.0
        %2306 = vmatpush1.xpose.msra.mxu0 0.0
        %2307 = vmatprep.subr.mxu0 0.0
        %2308 = vmatpush1.xpose.msra.mxu0 0.0
        %2309 = vmatprep.subr.mxu0 0.0
        %2310 = vmatpush1.xpose.msra.mxu0 0.0
        %2311 = vmatprep.subr.mxu0 0.0
        %2312 = vmatpush1.xpose.msra.mxu0 0.0
        %2313 = vmatprep.subr.mxu0 0.0
        %2314 = vmatpush1.xpose.msra.mxu0 0.0
        %2315 = vmatprep.mubr.f32.mxu0 0.0
        %2316 = vmatmul.mubr.f32.gmra.mrb[0].mxu0 %v2243
        %v2317 = vpop.f32.mrb[0].mxu0
        %v2318 = vadd.f32 %v508, %v2317
        %v2319 = vpop.f32.mrb[0].mxu0
        %2320 = vmatprep.mubr.f32.mxu0 0.0
        %2321 = vmatmul.mubr.f32.gmra.mrb[0].mxu0 %v2245
        %v2322 = vpop.f32.mrb[0].mxu0
        %v2323 = vadd.f32 %v509, %v2322
        %v2324 = vpop.f32.mrb[0].mxu0
        %2325 = vdwg.mxu0
        %2326 = vrot.lane.b32.xlu0 %v450, 120
        %v2327 = vpop.permute.xlu0 %2326
        %2328 = vrot.lane.b32.xlu0 %v455, 120
        %v2329 = vpop.permute.xlu0 %2328
        %2330 = vrot.lane.b32.xlu0 %v450, 88
        %v2331 = vpop.permute.xlu0 %2330
        %2332 = vrot.lane.b32.xlu0 %v455, 88
        %v2333 = vpop.permute.xlu0 %2332
        %v2334 = vsel %vm532, %v2327, 0
        %v2336 = vsel %vm532, %v2329, 0
        %v2338 = vsel %vm532, %v2331, 0
        %v2340 = vsel %vm532, %v2333, 0
        %2342 = vmatprep.subr.mxu0 0.0
        %2343 = vmatpush1.xpose.msra.mxu0 %v2338
        %2344 = vmatprep.subr.mxu0 0.0
        %2345 = vmatpush1.xpose.msra.mxu0 %v2340
        %2346 = vmatprep.subr.mxu0 0.0
        %2347 = vmatpush1.xpose.msra.mxu0 0.0
        %2348 = vmatprep.subr.mxu0 0.0
        %2349 = vmatpush1.xpose.msra.mxu0 0.0
        %2350 = vmatprep.subr.mxu0 0.0
        %2351 = vmatpush1.xpose.msra.mxu0 0.0
        %2352 = vmatprep.subr.mxu0 0.0
        %2353 = vmatpush1.xpose.msra.mxu0 0.0
        %2354 = vmatprep.subr.mxu0 0.0
        %2355 = vmatpush1.xpose.msra.mxu0 0.0
        %2356 = vmatprep.subr.mxu0 0.0
        %2357 = vmatpush1.xpose.msra.mxu0 0.0
        %2358 = vmatprep.subr.mxu0 0.0
        %2359 = vmatpush1.xpose.msra.mxu0 0.0
        %2360 = vmatprep.subr.mxu0 0.0
        %2361 = vmatpush1.xpose.msra.mxu0 0.0
        %2362 = vmatprep.subr.mxu0 0.0
        %2363 = vmatpush1.xpose.msra.mxu0 0.0
        %2364 = vmatprep.subr.mxu0 0.0
        %2365 = vmatpush1.xpose.msra.mxu0 0.0
        %2366 = vmatprep.subr.mxu0 0.0
        %2367 = vmatpush1.xpose.msra.mxu0 0.0
        %2368 = vmatprep.subr.mxu0 0.0
        %2369 = vmatpush1.xpose.msra.mxu0 0.0
        %2370 = vmatprep.subr.mxu0 0.0
        %2371 = vmatpush1.xpose.msra.mxu0 0.0
        %2372 = vmatprep.subr.mxu0 0.0
        %2373 = vmatpush1.xpose.msra.mxu0 0.0
        %2374 = vmatprep.subr.mxu0 0.0
        %2375 = vmatpush1.xpose.msra.mxu0 0.0
        %2376 = vmatprep.subr.mxu0 0.0
        %2377 = vmatpush1.xpose.msra.mxu0 0.0
        %2378 = vmatprep.subr.mxu0 0.0
        %2379 = vmatpush1.xpose.msra.mxu0 0.0
        %2380 = vmatprep.subr.mxu0 0.0
        %2381 = vmatpush1.xpose.msra.mxu0 0.0
        %2382 = vmatprep.subr.mxu0 0.0
        %2383 = vmatpush1.xpose.msra.mxu0 0.0
        %2384 = vmatprep.subr.mxu0 0.0
        %2385 = vmatpush1.xpose.msra.mxu0 0.0
        %2386 = vmatprep.subr.mxu0 0.0
        %2387 = vmatpush1.xpose.msra.mxu0 0.0
        %2388 = vmatprep.subr.mxu0 0.0
        %2389 = vmatpush1.xpose.msra.mxu0 0.0
        %2390 = vmatprep.subr.mxu0 0.0
        %2391 = vmatpush1.xpose.msra.mxu0 0.0
        %2392 = vmatprep.subr.mxu0 0.0
        %2393 = vmatpush1.xpose.msra.mxu0 0.0
        %2394 = vmatprep.subr.mxu0 0.0
        %2395 = vmatpush1.xpose.msra.mxu0 0.0
        %2396 = vmatprep.subr.mxu0 0.0
        %2397 = vmatpush1.xpose.msra.mxu0 0.0
        %2398 = vmatprep.subr.mxu0 0.0
        %2399 = vmatpush1.xpose.msra.mxu0 0.0
        %2400 = vmatprep.subr.mxu0 0.0
        %2401 = vmatpush1.xpose.msra.mxu0 0.0
        %2402 = vmatprep.subr.mxu0 0.0
        %2403 = vmatpush1.xpose.msra.mxu0 0.0
        %2404 = vmatprep.subr.mxu0 0.0
        %2405 = vmatpush1.xpose.msra.mxu0 0.0
        %2406 = vmatprep.mubr.f32.mxu0 0.0
        %2407 = vmatmul.mubr.f32.gmra.mrb[0].mxu0 %v2334
        %v2408 = vpop.f32.mrb[0].mxu0
        %v2409 = vadd.f32 %v508, %v2408
        %v2410 = vpop.f32.mrb[0].mxu0
        %2411 = vmatprep.mubr.f32.mxu0 0.0
        %2412 = vmatmul.mubr.f32.gmra.mrb[0].mxu0 %v2336
        %v2413 = vpop.f32.mrb[0].mxu0
        %v2414 = vadd.f32 %v509, %v2413
        %v2415 = vpop.f32.mrb[0].mxu0
        %2416 = vdwg.mxu0
        %2417 = vrot.lane.b32.xlu0 %v460, 120
        %v2418 = vpop.permute.xlu0 %2417
        %2419 = vrot.lane.b32.xlu0 %v465, 120
        %v2420 = vpop.permute.xlu0 %2419
        %2421 = vrot.lane.b32.xlu0 %v460, 88
        %v2422 = vpop.permute.xlu0 %2421
        %2423 = vrot.lane.b32.xlu0 %v465, 88
        %v2424 = vpop.permute.xlu0 %2423
        %v2425 = vsel %vm532, %v2418, 0
        %v2427 = vsel %vm532, %v2420, 0
        %v2429 = vsel %vm532, %v2422, 0
        %v2431 = vsel %vm532, %v2424, 0
        %2433 = vmatprep.subr.mxu0 0.0
        %2434 = vmatpush1.xpose.msra.mxu0 %v2429
        %2435 = vmatprep.subr.mxu0 0.0
        %2436 = vmatpush1.xpose.msra.mxu0 %v2431
        %2437 = vmatprep.subr.mxu0 0.0
        %2438 = vmatpush1.xpose.msra.mxu0 0.0
        %2439 = vmatprep.subr.mxu0 0.0
        %2440 = vmatpush1.xpose.msra.mxu0 0.0
        %2441 = vmatprep.subr.mxu0 0.0
        %2442 = vmatpush1.xpose.msra.mxu0 0.0
        %2443 = vmatprep.subr.mxu0 0.0
        %2444 = vmatpush1.xpose.msra.mxu0 0.0
        %2445 = vmatprep.subr.mxu0 0.0
        %2446 = vmatpush1.xpose.msra.mxu0 0.0
        %2447 = vmatprep.subr.mxu0 0.0
        %2448 = vmatpush1.xpose.msra.mxu0 0.0
        %2449 = vmatprep.subr.mxu0 0.0
        %2450 = vmatpush1.xpose.msra.mxu0 0.0
        %2451 = vmatprep.subr.mxu0 0.0
        %2452 = vmatpush1.xpose.msra.mxu0 0.0
        %2453 = vmatprep.subr.mxu0 0.0
        %2454 = vmatpush1.xpose.msra.mxu0 0.0
        %2455 = vmatprep.subr.mxu0 0.0
        %2456 = vmatpush1.xpose.msra.mxu0 0.0
        %2457 = vmatprep.subr.mxu0 0.0
        %2458 = vmatpush1.xpose.msra.mxu0 0.0
        %2459 = vmatprep.subr.mxu0 0.0
        %2460 = vmatpush1.xpose.msra.mxu0 0.0
        %2461 = vmatprep.subr.mxu0 0.0
        %2462 = vmatpush1.xpose.msra.mxu0 0.0
        %2463 = vmatprep.subr.mxu0 0.0
        %2464 = vmatpush1.xpose.msra.mxu0 0.0
        %2465 = vmatprep.subr.mxu0 0.0
        %2466 = vmatpush1.xpose.msra.mxu0 0.0
        %2467 = vmatprep.subr.mxu0 0.0
        %2468 = vmatpush1.xpose.msra.mxu0 0.0
        %2469 = vmatprep.subr.mxu0 0.0
        %2470 = vmatpush1.xpose.msra.mxu0 0.0
        %2471 = vmatprep.subr.mxu0 0.0
        %2472 = vmatpush1.xpose.msra.mxu0 0.0
        %2473 = vmatprep.subr.mxu0 0.0
        %2474 = vmatpush1.xpose.msra.mxu0 0.0
        %2475 = vmatprep.subr.mxu0 0.0
        %2476 = vmatpush1.xpose.msra.mxu0 0.0
        %2477 = vmatprep.subr.mxu0 0.0
        %2478 = vmatpush1.xpose.msra.mxu0 0.0
        %2479 = vmatprep.subr.mxu0 0.0
        %2480 = vmatpush1.xpose.msra.mxu0 0.0
        %2481 = vmatprep.subr.mxu0 0.0
        %2482 = vmatpush1.xpose.msra.mxu0 0.0
        %2483 = vmatprep.subr.mxu0 0.0
        %2484 = vmatpush1.xpose.msra.mxu0 0.0
        %2485 = vmatprep.subr.mxu0 0.0
        %2486 = vmatpush1.xpose.msra.mxu0 0.0
        %2487 = vmatprep.subr.mxu0 0.0
        %2488 = vmatpush1.xpose.msra.mxu0 0.0
        %2489 = vmatprep.subr.mxu0 0.0
        %2490 = vmatpush1.xpose.msra.mxu0 0.0
        %2491 = vmatprep.subr.mxu0 0.0
        %2492 = vmatpush1.xpose.msra.mxu0 0.0
        %2493 = vmatprep.subr.mxu0 0.0
        %2494 = vmatpush1.xpose.msra.mxu0 0.0
        %2495 = vmatprep.subr.mxu0 0.0
        %2496 = vmatpush1.xpose.msra.mxu0 0.0
        %2497 = vmatprep.mubr.f32.mxu0 0.0
        %2498 = vmatmul.mubr.f32.gmra.mrb[0].mxu0 %v2425
        %v2499 = vpop.f32.mrb[0].mxu0
        %v2500 = vadd.f32 %v508, %v2499
        %v2501 = vpop.f32.mrb[0].mxu0
        %2502 = vmatprep.mubr.f32.mxu0 0.0
        %2503 = vmatmul.mubr.f32.gmra.mrb[0].mxu0 %v2427
        %v2504 = vpop.f32.mrb[0].mxu0
        %v2505 = vadd.f32 %v509, %v2504
        %v2506 = vpop.f32.mrb[0].mxu0
        %2507 = vdwg.mxu0
        %2508 = vrot.lane.b32.xlu0 %v470, 120
        %v2509 = vpop.permute.xlu0 %2508
        %2510 = vrot.lane.b32.xlu0 %v475, 120
        %v2511 = vpop.permute.xlu0 %2510
        %2512 = vrot.lane.b32.xlu0 %v470, 88
        %v2513 = vpop.permute.xlu0 %2512
        %2514 = vrot.lane.b32.xlu0 %v475, 88
        %v2515 = vpop.permute.xlu0 %2514
        %v2516 = vsel %vm532, %v2509, 0
        %v2518 = vsel %vm532, %v2511, 0
        %v2520 = vsel %vm532, %v2513, 0
        %v2522 = vsel %vm532, %v2515, 0
        %2524 = vmatprep.subr.mxu0 0.0
        %2525 = vmatpush1.xpose.msra.mxu0 %v2520
        %2526 = vmatprep.subr.mxu0 0.0
        %2527 = vmatpush1.xpose.msra.mxu0 %v2522
        %2528 = vmatprep.subr.mxu0 0.0
        %2529 = vmatpush1.xpose.msra.mxu0 0.0
        %2530 = vmatprep.subr.mxu0 0.0
        %2531 = vmatpush1.xpose.msra.mxu0 0.0
        %2532 = vmatprep.subr.mxu0 0.0
        %2533 = vmatpush1.xpose.msra.mxu0 0.0
        %2534 = vmatprep.subr.mxu0 0.0
        %2535 = vmatpush1.xpose.msra.mxu0 0.0
        %2536 = vmatprep.subr.mxu0 0.0
        %2537 = vmatpush1.xpose.msra.mxu0 0.0
        %2538 = vmatprep.subr.mxu0 0.0
        %2539 = vmatpush1.xpose.msra.mxu0 0.0
        %2540 = vmatprep.subr.mxu0 0.0
        %2541 = vmatpush1.xpose.msra.mxu0 0.0
        %2542 = vmatprep.subr.mxu0 0.0
        %2543 = vmatpush1.xpose.msra.mxu0 0.0
        %2544 = vmatprep.subr.mxu0 0.0
        %2545 = vmatpush1.xpose.msra.mxu0 0.0
        %2546 = vmatprep.subr.mxu0 0.0
        %2547 = vmatpush1.xpose.msra.mxu0 0.0
        %2548 = vmatprep.subr.mxu0 0.0
        %2549 = vmatpush1.xpose.msra.mxu0 0.0
        %2550 = vmatprep.subr.mxu0 0.0
        %2551 = vmatpush1.xpose.msra.mxu0 0.0
        %2552 = vmatprep.subr.mxu0 0.0
        %2553 = vmatpush1.xpose.msra.mxu0 0.0
        %2554 = vmatprep.subr.mxu0 0.0
        %2555 = vmatpush1.xpose.msra.mxu0 0.0
        %2556 = vmatprep.subr.mxu0 0.0
        %2557 = vmatpush1.xpose.msra.mxu0 0.0
        %2558 = vmatprep.subr.mxu0 0.0
        %2559 = vmatpush1.xpose.msra.mxu0 0.0
        %2560 = vmatprep.subr.mxu0 0.0
        %2561 = vmatpush1.xpose.msra.mxu0 0.0
        %2562 = vmatprep.subr.mxu0 0.0
        %2563 = vmatpush1.xpose.msra.mxu0 0.0
        %2564 = vmatprep.subr.mxu0 0.0
        %2565 = vmatpush1.xpose.msra.mxu0 0.0
        %2566 = vmatprep.subr.mxu0 0.0
        %2567 = vmatpush1.xpose.msra.mxu0 0.0
        %2568 = vmatprep.subr.mxu0 0.0
        %2569 = vmatpush1.xpose.msra.mxu0 0.0
        %2570 = vmatprep.subr.mxu0 0.0
        %2571 = vmatpush1.xpose.msra.mxu0 0.0
        %2572 = vmatprep.subr.mxu0 0.0
        %2573 = vmatpush1.xpose.msra.mxu0 0.0
        %2574 = vmatprep.subr.mxu0 0.0
        %2575 = vmatpush1.xpose.msra.mxu0 0.0
        %2576 = vmatprep.subr.mxu0 0.0
        %2577 = vmatpush1.xpose.msra.mxu0 0.0
        %2578 = vmatprep.subr.mxu0 0.0
        %2579 = vmatpush1.xpose.msra.mxu0 0.0
        %2580 = vmatprep.subr.mxu0 0.0
        %2581 = vmatpush1.xpose.msra.mxu0 0.0
        %2582 = vmatprep.subr.mxu0 0.0
        %2583 = vmatpush1.xpose.msra.mxu0 0.0
        %2584 = vmatprep.subr.mxu0 0.0
        %2585 = vmatpush1.xpose.msra.mxu0 0.0
        %2586 = vmatprep.subr.mxu0 0.0
        %2587 = vmatpush1.xpose.msra.mxu0 0.0
        %2588 = vmatprep.mubr.f32.mxu0 0.0
        %2589 = vmatmul.mubr.f32.gmra.mrb[0].mxu0 %v2516
        %v2590 = vpop.f32.mrb[0].mxu0
        %v2591 = vadd.f32 %v508, %v2590
        %v2592 = vpop.f32.mrb[0].mxu0
        %2593 = vmatprep.mubr.f32.mxu0 0.0
        %2594 = vmatmul.mubr.f32.gmra.mrb[0].mxu0 %v2518
        %v2595 = vpop.f32.mrb[0].mxu0
        %v2596 = vadd.f32 %v509, %v2595
        %v2597 = vpop.f32.mrb[0].mxu0
        %2598 = vdwg.mxu0
        %2599 = vrot.lane.b32.xlu0 %v480, 120
        %v2600 = vpop.permute.xlu0 %2599
        %2601 = vrot.lane.b32.xlu0 %v485, 120
        %v2602 = vpop.permute.xlu0 %2601
        %2603 = vrot.lane.b32.xlu0 %v480, 88
        %v2604 = vpop.permute.xlu0 %2603
        %2605 = vrot.lane.b32.xlu0 %v485, 88
        %v2606 = vpop.permute.xlu0 %2605
        %v2607 = vsel %vm532, %v2600, 0
        %v2609 = vsel %vm532, %v2602, 0
        %v2611 = vsel %vm532, %v2604, 0
        %v2613 = vsel %vm532, %v2606, 0
        %2615 = vmatprep.subr.mxu0 0.0
        %2616 = vmatpush1.xpose.msra.mxu0 %v2611
        %2617 = vmatprep.subr.mxu0 0.0
        %2618 = vmatpush1.xpose.msra.mxu0 %v2613
        %2619 = vmatprep.subr.mxu0 0.0
        %2620 = vmatpush1.xpose.msra.mxu0 0.0
        %2621 = vmatprep.subr.mxu0 0.0
        %2622 = vmatpush1.xpose.msra.mxu0 0.0
        %2623 = vmatprep.subr.mxu0 0.0
        %2624 = vmatpush1.xpose.msra.mxu0 0.0
        %2625 = vmatprep.subr.mxu0 0.0
        %2626 = vmatpush1.xpose.msra.mxu0 0.0
        %2627 = vmatprep.subr.mxu0 0.0
        %2628 = vmatpush1.xpose.msra.mxu0 0.0
        %2629 = vmatprep.subr.mxu0 0.0
        %2630 = vmatpush1.xpose.msra.mxu0 0.0
        %2631 = vmatprep.subr.mxu0 0.0
        %2632 = vmatpush1.xpose.msra.mxu0 0.0
        %2633 = vmatprep.subr.mxu0 0.0
        %2634 = vmatpush1.xpose.msra.mxu0 0.0
        %2635 = vmatprep.subr.mxu0 0.0
        %2636 = vmatpush1.xpose.msra.mxu0 0.0
        %2637 = vmatprep.subr.mxu0 0.0
        %2638 = vmatpush1.xpose.msra.mxu0 0.0
        %2639 = vmatprep.subr.mxu0 0.0
        %2640 = vmatpush1.xpose.msra.mxu0 0.0
        %2641 = vmatprep.subr.mxu0 0.0
        %2642 = vmatpush1.xpose.msra.mxu0 0.0
        %2643 = vmatprep.subr.mxu0 0.0
        %2644 = vmatpush1.xpose.msra.mxu0 0.0
        %2645 = vmatprep.subr.mxu0 0.0
        %2646 = vmatpush1.xpose.msra.mxu0 0.0
        %2647 = vmatprep.subr.mxu0 0.0
        %2648 = vmatpush1.xpose.msra.mxu0 0.0
        %2649 = vmatprep.subr.mxu0 0.0
        %2650 = vmatpush1.xpose.msra.mxu0 0.0
        %2651 = vmatprep.subr.mxu0 0.0
        %2652 = vmatpush1.xpose.msra.mxu0 0.0
        %2653 = vmatprep.subr.mxu0 0.0
        %2654 = vmatpush1.xpose.msra.mxu0 0.0
        %2655 = vmatprep.subr.mxu0 0.0
        %2656 = vmatpush1.xpose.msra.mxu0 0.0
        %2657 = vmatprep.subr.mxu0 0.0
        %2658 = vmatpush1.xpose.msra.mxu0 0.0
        %2659 = vmatprep.subr.mxu0 0.0
        %2660 = vmatpush1.xpose.msra.mxu0 0.0
        %2661 = vmatprep.subr.mxu0 0.0
        %2662 = vmatpush1.xpose.msra.mxu0 0.0
        %2663 = vmatprep.subr.mxu0 0.0
        %2664 = vmatpush1.xpose.msra.mxu0 0.0
        %2665 = vmatprep.subr.mxu0 0.0
        %2666 = vmatpush1.xpose.msra.mxu0 0.0
        %2667 = vmatprep.subr.mxu0 0.0
        %2668 = vmatpush1.xpose.msra.mxu0 0.0
        %2669 = vmatprep.subr.mxu0 0.0
        %2670 = vmatpush1.xpose.msra.mxu0 0.0
        %2671 = vmatprep.subr.mxu0 0.0
        %2672 = vmatpush1.xpose.msra.mxu0 0.0
        %2673 = vmatprep.subr.mxu0 0.0
        %2674 = vmatpush1.xpose.msra.mxu0 0.0
        %2675 = vmatprep.subr.mxu0 0.0
        %2676 = vmatpush1.xpose.msra.mxu0 0.0
        %2677 = vmatprep.subr.mxu0 0.0
        %2678 = vmatpush1.xpose.msra.mxu0 0.0
        %2679 = vmatprep.mubr.f32.mxu0 0.0
        %2680 = vmatmul.mubr.f32.gmra.mrb[0].mxu0 %v2607
        %v2681 = vpop.f32.mrb[0].mxu0
        %v2682 = vadd.f32 %v508, %v2681
        %v2683 = vpop.f32.mrb[0].mxu0
        %2684 = vmatprep.mubr.f32.mxu0 0.0
        %2685 = vmatmul.mubr.f32.gmra.mrb[0].mxu0 %v2609
        %v2686 = vpop.f32.mrb[0].mxu0
        %v2687 = vadd.f32 %v509, %v2686
        %v2688 = vpop.f32.mrb[0].mxu0
        %2689 = vdwg.mxu0
        %2690 = vrot.lane.b32.xlu0 %v490, 120
        %v2691 = vpop.permute.xlu0 %2690
        %2692 = vrot.lane.b32.xlu0 %v495, 120
        %v2693 = vpop.permute.xlu0 %2692
        %2694 = vrot.lane.b32.xlu0 %v490, 88
        %v2695 = vpop.permute.xlu0 %2694
        %2696 = vrot.lane.b32.xlu0 %v495, 88
        %v2697 = vpop.permute.xlu0 %2696
        %v2698 = vsel %vm532, %v2691, 0
        %v2700 = vsel %vm532, %v2693, 0
        %v2702 = vsel %vm532, %v2695, 0
        %v2704 = vsel %vm532, %v2697, 0
        %2706 = vmatprep.subr.mxu0 0.0
        %2707 = vmatpush1.xpose.msra.mxu0 %v2702
        %2708 = vmatprep.subr.mxu0 0.0
        %2709 = vmatpush1.xpose.msra.mxu0 %v2704
        %2710 = vmatprep.subr.mxu0 0.0
        %2711 = vmatpush1.xpose.msra.mxu0 0.0
        %2712 = vmatprep.subr.mxu0 0.0
        %2713 = vmatpush1.xpose.msra.mxu0 0.0
        %2714 = vmatprep.subr.mxu0 0.0
        %2715 = vmatpush1.xpose.msra.mxu0 0.0
        %2716 = vmatprep.subr.mxu0 0.0
        %2717 = vmatpush1.xpose.msra.mxu0 0.0
        %2718 = vmatprep.subr.mxu0 0.0
        %2719 = vmatpush1.xpose.msra.mxu0 0.0
        %2720 = vmatprep.subr.mxu0 0.0
        %2721 = vmatpush1.xpose.msra.mxu0 0.0
        %2722 = vmatprep.subr.mxu0 0.0
        %2723 = vmatpush1.xpose.msra.mxu0 0.0
        %2724 = vmatprep.subr.mxu0 0.0
        %2725 = vmatpush1.xpose.msra.mxu0 0.0
        %2726 = vmatprep.subr.mxu0 0.0
        %2727 = vmatpush1.xpose.msra.mxu0 0.0
        %2728 = vmatprep.subr.mxu0 0.0
        %2729 = vmatpush1.xpose.msra.mxu0 0.0
        %2730 = vmatprep.subr.mxu0 0.0
        %2731 = vmatpush1.xpose.msra.mxu0 0.0
        %2732 = vmatprep.subr.mxu0 0.0
        %2733 = vmatpush1.xpose.msra.mxu0 0.0
        %2734 = vmatprep.subr.mxu0 0.0
        %2735 = vmatpush1.xpose.msra.mxu0 0.0
        %2736 = vmatprep.subr.mxu0 0.0
        %2737 = vmatpush1.xpose.msra.mxu0 0.0
        %2738 = vmatprep.subr.mxu0 0.0
        %2739 = vmatpush1.xpose.msra.mxu0 0.0
        %2740 = vmatprep.subr.mxu0 0.0
        %2741 = vmatpush1.xpose.msra.mxu0 0.0
        %2742 = vmatprep.subr.mxu0 0.0
        %2743 = vmatpush1.xpose.msra.mxu0 0.0
        %2744 = vmatprep.subr.mxu0 0.0
        %2745 = vmatpush1.xpose.msra.mxu0 0.0
        %2746 = vmatprep.subr.mxu0 0.0
        %2747 = vmatpush1.xpose.msra.mxu0 0.0
        %2748 = vmatprep.subr.mxu0 0.0
        %2749 = vmatpush1.xpose.msra.mxu0 0.0
        %2750 = vmatprep.subr.mxu0 0.0
        %2751 = vmatpush1.xpose.msra.mxu0 0.0
        %2752 = vmatprep.subr.mxu0 0.0
        %2753 = vmatpush1.xpose.msra.mxu0 0.0
        %2754 = vmatprep.subr.mxu0 0.0
        %2755 = vmatpush1.xpose.msra.mxu0 0.0
        %2756 = vmatprep.subr.mxu0 0.0
        %2757 = vmatpush1.xpose.msra.mxu0 0.0
        %2758 = vmatprep.subr.mxu0 0.0
        %2759 = vmatpush1.xpose.msra.mxu0 0.0
        %2760 = vmatprep.subr.mxu0 0.0
        %2761 = vmatpush1.xpose.msra.mxu0 0.0
        %2762 = vmatprep.subr.mxu0 0.0
        %2763 = vmatpush1.xpose.msra.mxu0 0.0
        %2764 = vmatprep.subr.mxu0 0.0
        %2765 = vmatpush1.xpose.msra.mxu0 0.0
        %2766 = vmatprep.subr.mxu0 0.0
        %2767 = vmatpush1.xpose.msra.mxu0 0.0
        %2768 = vmatprep.subr.mxu0 0.0
        %2769 = vmatpush1.xpose.msra.mxu0 0.0
        %2770 = vmatprep.mubr.f32.mxu0 0.0
        %2771 = vmatmul.mubr.f32.gmra.mrb[0].mxu0 %v2698
        %v2772 = vpop.f32.mrb[0].mxu0
        %v2773 = vadd.f32 %v508, %v2772
        %v2774 = vpop.f32.mrb[0].mxu0
        %2775 = vmatprep.mubr.f32.mxu0 0.0
        %2776 = vmatmul.mubr.f32.gmra.mrb[0].mxu0 %v2700
        %v2777 = vpop.f32.mrb[0].mxu0
        %v2778 = vadd.f32 %v509, %v2777
        %v2779 = vpop.f32.mrb[0].mxu0
        %2780 = vdwg.mxu0
        %2781 = vrot.lane.b32.xlu0 %v500, 120
        %v2782 = vpop.permute.xlu0 %2781
        %2783 = vrot.lane.b32.xlu0 %v505, 120
        %v2784 = vpop.permute.xlu0 %2783
        %2785 = vrot.lane.b32.xlu0 %v500, 88
        %v2786 = vpop.permute.xlu0 %2785
        %2787 = vrot.lane.b32.xlu0 %v505, 88
        %v2788 = vpop.permute.xlu0 %2787
        %v2789 = vsel %vm532, %v2782, 0
        %v2791 = vsel %vm532, %v2784, 0
        %v2793 = vsel %vm532, %v2786, 0
        %v2795 = vsel %vm532, %v2788, 0
        %2797 = vmatprep.subr.mxu0 0.0
        %2798 = vmatpush1.xpose.msra.mxu0 %v2793
        %2799 = vmatprep.subr.mxu0 0.0
        %2800 = vmatpush1.xpose.msra.mxu0 %v2795
        %2801 = vmatprep.subr.mxu0 0.0
        %2802 = vmatpush1.xpose.msra.mxu0 0.0
        %2803 = vmatprep.subr.mxu0 0.0
        %2804 = vmatpush1.xpose.msra.mxu0 0.0
        %2805 = vmatprep.subr.mxu0 0.0
        %2806 = vmatpush1.xpose.msra.mxu0 0.0
        %2807 = vmatprep.subr.mxu0 0.0
        %2808 = vmatpush1.xpose.msra.mxu0 0.0
        %2809 = vmatprep.subr.mxu0 0.0
        %2810 = vmatpush1.xpose.msra.mxu0 0.0
        %2811 = vmatprep.subr.mxu0 0.0
        %2812 = vmatpush1.xpose.msra.mxu0 0.0
        %2813 = vmatprep.subr.mxu0 0.0
        %2814 = vmatpush1.xpose.msra.mxu0 0.0
        %2815 = vmatprep.subr.mxu0 0.0
        %2816 = vmatpush1.xpose.msra.mxu0 0.0
        %2817 = vmatprep.subr.mxu0 0.0
        %2818 = vmatpush1.xpose.msra.mxu0 0.0
        %2819 = vmatprep.subr.mxu0 0.0
        %2820 = vmatpush1.xpose.msra.mxu0 0.0
        %2821 = vmatprep.subr.mxu0 0.0
        %2822 = vmatpush1.xpose.msra.mxu0 0.0
        %2823 = vmatprep.subr.mxu0 0.0
        %2824 = vmatpush1.xpose.msra.mxu0 0.0
        %2825 = vmatprep.subr.mxu0 0.0
        %2826 = vmatpush1.xpose.msra.mxu0 0.0
        %2827 = vmatprep.subr.mxu0 0.0
        %2828 = vmatpush1.xpose.msra.mxu0 0.0
        %2829 = vmatprep.subr.mxu0 0.0
        %2830 = vmatpush1.xpose.msra.mxu0 0.0
        %2831 = vmatprep.subr.mxu0 0.0
        %2832 = vmatpush1.xpose.msra.mxu0 0.0
        %2833 = vmatprep.subr.mxu0 0.0
        %2834 = vmatpush1.xpose.msra.mxu0 0.0
        %2835 = vmatprep.subr.mxu0 0.0
        %2836 = vmatpush1.xpose.msra.mxu0 0.0
        %2837 = vmatprep.subr.mxu0 0.0
        %2838 = vmatpush1.xpose.msra.mxu0 0.0
        %2839 = vmatprep.subr.mxu0 0.0
        %2840 = vmatpush1.xpose.msra.mxu0 0.0
        %2841 = vmatprep.subr.mxu0 0.0
        %2842 = vmatpush1.xpose.msra.mxu0 0.0
        %2843 = vmatprep.subr.mxu0 0.0
        %2844 = vmatpush1.xpose.msra.mxu0 0.0
        %2845 = vmatprep.subr.mxu0 0.0
        %2846 = vmatpush1.xpose.msra.mxu0 0.0
        %2847 = vmatprep.subr.mxu0 0.0
        %2848 = vmatpush1.xpose.msra.mxu0 0.0
        %2849 = vmatprep.subr.mxu0 0.0
        %2850 = vmatpush1.xpose.msra.mxu0 0.0
        %2851 = vmatprep.subr.mxu0 0.0
        %2852 = vmatpush1.xpose.msra.mxu0 0.0
        %2853 = vmatprep.subr.mxu0 0.0
        %2854 = vmatpush1.xpose.msra.mxu0 0.0
        %2855 = vmatprep.subr.mxu0 0.0
        %2856 = vmatpush1.xpose.msra.mxu0 0.0
        %2857 = vmatprep.subr.mxu0 0.0
        %2858 = vmatpush1.xpose.msra.mxu0 0.0
        %2859 = vmatprep.subr.mxu0 0.0
        %2860 = vmatpush1.xpose.msra.mxu0 0.0
        %2861 = vmatprep.mubr.f32.mxu0 0.0
        %2862 = vmatmul.mubr.f32.gmra.mrb[0].mxu0 %v2789
        %v2863 = vpop.f32.mrb[0].mxu0
        %v2864 = vadd.f32 %v508, %v2863
        %v2865 = vpop.f32.mrb[0].mxu0
        %2866 = vmatprep.mubr.f32.mxu0 0.0
        %2867 = vmatmul.mubr.f32.gmra.mrb[0].mxu0 %v2791
        %v2868 = vpop.f32.mrb[0].mxu0
        %v2869 = vadd.f32 %v509, %v2868
        %v2870 = vpop.f32.mrb[0].mxu0
        %2871 = vdwg.mxu0
        %v2872 = vsel %vm1239, %v2227, -inf
        %2873 = vmax.xlane.f32.xlu0 %v2872
        %v2874 = vpop.xlane.xlu0 %2873
        %v2875 = vsel %vm1239, %v2232, -inf
        %2876 = vmax.xlane.f32.xlu0 %v2875
        %v2877 = vpop.xlane.xlu0 %2876
        %v2878 = vsel %vm1239, %v2318, -inf
        %2879 = vmax.xlane.f32.xlu0 %v2878
        %v2880 = vpop.xlane.xlu0 %2879
        %v2881 = vsel %vm1239, %v2323, -inf
        %2882 = vmax.xlane.f32.xlu0 %v2881
        %v2883 = vpop.xlane.xlu0 %2882
        %v2884 = vsel %vm1239, %v2409, -inf
        %2885 = vmax.xlane.f32.xlu0 %v2884
        %v2886 = vpop.xlane.xlu0 %2885
        %v2887 = vsel %vm1239, %v2414, -inf
        %2888 = vmax.xlane.f32.xlu0 %v2887
        %v2889 = vpop.xlane.xlu0 %2888
        %v2890 = vsel %vm1239, %v2500, -inf
        %2891 = vmax.xlane.f32.xlu0 %v2890
        %v2892 = vpop.xlane.xlu0 %2891
        %v2893 = vsel %vm1239, %v2505, -inf
        %2894 = vmax.xlane.f32.xlu0 %v2893
        %v2895 = vpop.xlane.xlu0 %2894
        %v2896 = vsel %vm1239, %v2591, -inf
        %2897 = vmax.xlane.f32.xlu0 %v2896
        %v2898 = vpop.xlane.xlu0 %2897
        %v2899 = vsel %vm1239, %v2596, -inf
        %2900 = vmax.xlane.f32.xlu0 %v2899
        %v2901 = vpop.xlane.xlu0 %2900
        %v2902 = vsel %vm1239, %v2682, -inf
        %2903 = vmax.xlane.f32.xlu0 %v2902
        %v2904 = vpop.xlane.xlu0 %2903
        %v2905 = vsel %vm1239, %v2687, -inf
        %2906 = vmax.xlane.f32.xlu0 %v2905
        %v2907 = vpop.xlane.xlu0 %2906
        %v2908 = vsel %vm1239, %v2773, -inf
        %2909 = vmax.xlane.f32.xlu0 %v2908
        %v2910 = vpop.xlane.xlu0 %2909
        %v2911 = vsel %vm1239, %v2778, -inf
        %2912 = vmax.xlane.f32.xlu0 %v2911
        %v2913 = vpop.xlane.xlu0 %2912
        %v2914 = vsel %vm1239, %v2864, -inf
        %2915 = vmax.xlane.f32.xlu0 %v2914
        %v2916 = vpop.xlane.xlu0 %2915
        %v2917 = vsel %vm1239, %v2869, -inf
        %2918 = vmax.xlane.f32.xlu0 %v2917
        %v2919 = vpop.xlane.xlu0 %2918
        %v2920 = vsub.f32 %v2227, %v2874
        %v2921 = vsub.f32 %v2232, %v2877
        %v2922 = vsub.f32 %v2318, %v2880
        %v2923 = vsub.f32 %v2323, %v2883
        %v2924 = vsub.f32 %v2409, %v2886
        %v2925 = vsub.f32 %v2414, %v2889
        %v2926 = vsub.f32 %v2500, %v2892
        %v2927 = vsub.f32 %v2505, %v2895
        %v2928 = vsub.f32 %v2591, %v2898
        %v2929 = vsub.f32 %v2596, %v2901
        %v2930 = vsub.f32 %v2682, %v2904
        %v2931 = vsub.f32 %v2687, %v2907
        %v2932 = vsub.f32 %v2773, %v2910
        %v2933 = vsub.f32 %v2778, %v2913
        %v2934 = vsub.f32 %v2864, %v2916
        %v2935 = vsub.f32 %v2869, %v2919
        %v2936 = vmul.f32 %v2920, 1.442695
        %v2937 = vpow.pop %v2936
        %v2938 = vmul.f32 %v2921, 1.442695
        %v2939 = vpow.pop %v2938
        %v2940 = vmul.f32 %v2922, 1.442695
        %v2941 = vpow.pop %v2940
        %v2942 = vmul.f32 %v2923, 1.442695
        %v2943 = vpow.pop %v2942
        %v2944 = vmul.f32 %v2924, 1.442695
        %v2945 = vpow.pop %v2944
        %v2946 = vmul.f32 %v2925, 1.442695
        %v2947 = vpow.pop %v2946
        %v2948 = vmul.f32 %v2926, 1.442695
        %v2949 = vpow.pop %v2948
        %v2950 = vmul.f32 %v2927, 1.442695
        %v2951 = vpow.pop %v2950
        %v2952 = vmul.f32 %v2928, 1.442695
        %v2953 = vpow.pop %v2952
        %v2954 = vmul.f32 %v2929, 1.442695
        %v2955 = vpow.pop %v2954
        %v2956 = vmul.f32 %v2930, 1.442695
        %v2957 = vpow.pop %v2956
        %v2958 = vmul.f32 %v2931, 1.442695
        %v2959 = vpow.pop %v2958
        %v2960 = vmul.f32 %v2932, 1.442695
        %v2961 = vpow.pop %v2960
        %v2962 = vmul.f32 %v2933, 1.442695
        %v2963 = vpow.pop %v2962
        %v2964 = vmul.f32 %v2934, 1.442695
        %v2965 = vpow.pop %v2964
        %v2966 = vmul.f32 %v2935, 1.442695
        %v2967 = vpow.pop %v2966
        %v2968 = vsel %vm1239, %v2937, 0.0
        %2969 = vadd.xlane.f32.xlu0 %v2968
        %v2970 = vpop.xlane.xlu0 %2969
        %v2971 = vsel %vm1239, %v2939, 0.0
        %2972 = vadd.xlane.f32.xlu0 %v2971
        %v2973 = vpop.xlane.xlu0 %2972
        %v2974 = vsel %vm1239, %v2941, 0.0
        %2975 = vadd.xlane.f32.xlu0 %v2974
        %v2976 = vpop.xlane.xlu0 %2975
        %v2977 = vsel %vm1239, %v2943, 0.0
        %2978 = vadd.xlane.f32.xlu0 %v2977
        %v2979 = vpop.xlane.xlu0 %2978
        %v2980 = vsel %vm1239, %v2945, 0.0
        %2981 = vadd.xlane.f32.xlu0 %v2980
        %v2982 = vpop.xlane.xlu0 %2981
        %v2983 = vsel %vm1239, %v2947, 0.0
        %2984 = vadd.xlane.f32.xlu0 %v2983
        %v2985 = vpop.xlane.xlu0 %2984
        %v2986 = vsel %vm1239, %v2949, 0.0
        %2987 = vadd.xlane.f32.xlu0 %v2986
        %v2988 = vpop.xlane.xlu0 %2987
        %v2989 = vsel %vm1239, %v2951, 0.0
        %2990 = vadd.xlane.f32.xlu0 %v2989
        %v2991 = vpop.xlane.xlu0 %2990
        %v2992 = vsel %vm1239, %v2953, 0.0
        %2993 = vadd.xlane.f32.xlu0 %v2992
        %v2994 = vpop.xlane.xlu0 %2993
        %v2995 = vsel %vm1239, %v2955, 0.0
        %2996 = vadd.xlane.f32.xlu0 %v2995
        %v2997 = vpop.xlane.xlu0 %2996
        %v2998 = vsel %vm1239, %v2957, 0.0
        %2999 = vadd.xlane.f32.xlu0 %v2998
        %v3000 = vpop.xlane.xlu0 %2999
        %v3001 = vsel %vm1239, %v2959, 0.0
        %3002 = vadd.xlane.f32.xlu0 %v3001
        %v3003 = vpop.xlane.xlu0 %3002
        %v3004 = vsel %vm1239, %v2961, 0.0
        %3005 = vadd.xlane.f32.xlu0 %v3004
        %v3006 = vpop.xlane.xlu0 %3005
        %v3007 = vsel %vm1239, %v2963, 0.0
        %3008 = vadd.xlane.f32.xlu0 %v3007
        %v3009 = vpop.xlane.xlu0 %3008
        %v3010 = vsel %vm1239, %v2965, 0.0
        %3011 = vadd.xlane.f32.xlu0 %v3010
        %v3012 = vpop.xlane.xlu0 %3011
        %v3013 = vsel %vm1239, %v2967, 0.0
        %3014 = vadd.xlane.f32.xlu0 %v3013
        %v3015 = vpop.xlane.xlu0 %3014
        %v3016 = vrcp.pop %v2970
        %v3017 = vrcp.pop %v2973
        %v3018 = vrcp.pop %v2976
        %v3019 = vrcp.pop %v2979
        %v3020 = vrcp.pop %v2982
        %v3021 = vrcp.pop %v2985
        %v3022 = vrcp.pop %v2988
        %v3023 = vrcp.pop %v2991
        %v3024 = vrcp.pop %v2994
        %v3025 = vrcp.pop %v2997
        %v3026 = vrcp.pop %v3000
        %v3027 = vrcp.pop %v3003
        %v3028 = vrcp.pop %v3006
        %v3029 = vrcp.pop %v3009
        %v3030 = vrcp.pop %v3012
        %v3031 = vrcp.pop %v3015
        %v3032 = vmul.f32 %v2937, %v3016
        %v3033 = vmul.f32 %v2939, %v3017
        %v3034 = vmul.f32 %v2941, %v3018
        %v3035 = vmul.f32 %v2943, %v3019
        %v3036 = vmul.f32 %v2945, %v3020
        %v3037 = vmul.f32 %v2947, %v3021
        %v3038 = vmul.f32 %v2949, %v3022
        %v3039 = vmul.f32 %v2951, %v3023
        %v3040 = vmul.f32 %v2953, %v3024
        %v3041 = vmul.f32 %v2955, %v3025
        %v3042 = vmul.f32 %v2957, %v3026
        %v3043 = vmul.f32 %v2959, %v3027
        %v3044 = vmul.f32 %v2961, %v3028
        %v3045 = vmul.f32 %v2963, %v3029
        %v3046 = vmul.f32 %v2965, %v3030
        %v3047 = vmul.f32 %v2967, %v3031
        %s3048 = scalar_lea.vmem %s283, 16 [#allocation9]
        %3049 = vst.msk [vmem:[%s3048] sm:$0xff] %vm1239, %v3032
        %3050 = vst.msk [vmem:[%s3048 + $0x8] sm:$0xff] %vm1239, %v3033
        %3051 = vst.msk [vmem:[%s3048 + $0x40] sm:$0xff] %vm1239, %v3034
        %3052 = vst.msk [vmem:[%s3048 + $0x48] sm:$0xff] %vm1239, %v3035
        %3053 = vst.msk [vmem:[%s3048 + $0x80] sm:$0xff] %vm1239, %v3036
        %3054 = vst.msk [vmem:[%s3048 + $0x88] sm:$0xff] %vm1239, %v3037
        %3055 = vst.msk [vmem:[%s3048 + $0xc0] sm:$0xff] %vm1239, %v3038
        %3056 = vst.msk [vmem:[%s3048 + $0xc8] sm:$0xff] %vm1239, %v3039
        %3057 = vst.msk [vmem:[%s3048 + $0x100] sm:$0xff] %vm1239, %v3040
        %3058 = vst.msk [vmem:[%s3048 + $0x108] sm:$0xff] %vm1239, %v3041
        %3059 = vst.msk [vmem:[%s3048 + $0x140] sm:$0xff] %vm1239, %v3042
        %3060 = vst.msk [vmem:[%s3048 + $0x148] sm:$0xff] %vm1239, %v3043
        %3061 = vst.msk [vmem:[%s3048 + $0x180] sm:$0xff] %vm1239, %v3044
        %3062 = vst.msk [vmem:[%s3048 + $0x188] sm:$0xff] %vm1239, %v3045
        %3063 = vst.msk [vmem:[%s3048 + $0x1c0] sm:$0xff] %vm1239, %v3046
        %3064 = vst.msk [vmem:[%s3048 + $0x1c8] sm:$0xff] %vm1239, %v3047
        %3065 = vrot.lane.b32.xlu0 %v510, 56
        %v3066 = vpop.permute.xlu0 %3065
        %3067 = vrot.lane.b32.xlu0 %v511, 56
        %v3068 = vpop.permute.xlu0 %3067
        %v3072 = vsel %vm1239, %v3032, 0
        %v3075 = vsel %vm1239, %v3033, 0
        %3077 = vmatprep.subr.mxu0 0.0
        %3078 = vmatpush1.msra.mxu0 %v3066
        %3079 = vmatprep.subr.mxu0 0.0
        %3080 = vmatpush1.msra.mxu0 %v3068
        %3081 = vmatprep.subr.mxu0 0.0
        %3082 = vmatpush1.msra.mxu0 0.0
        %3083 = vmatprep.subr.mxu0 0.0
        %3084 = vmatpush1.msra.mxu0 0.0
        %3085 = vmatprep.subr.mxu0 0.0
        %3086 = vmatpush1.msra.mxu0 0.0
        %3087 = vmatprep.subr.mxu0 0.0
        %3088 = vmatpush1.msra.mxu0 0.0
        %3089 = vmatprep.subr.mxu0 0.0
        %3090 = vmatpush1.msra.mxu0 0.0
        %3091 = vmatprep.subr.mxu0 0.0
        %3092 = vmatpush1.msra.mxu0 0.0
        %3093 = vmatprep.subr.mxu0 0.0
        %3094 = vmatpush1.msra.mxu0 0.0
        %3095 = vmatprep.subr.mxu0 0.0
        %3096 = vmatpush1.msra.mxu0 0.0
        %3097 = vmatprep.subr.mxu0 0.0
        %3098 = vmatpush1.msra.mxu0 0.0
        %3099 = vmatprep.subr.mxu0 0.0
        %3100 = vmatpush1.msra.mxu0 0.0
        %3101 = vmatprep.subr.mxu0 0.0
        %3102 = vmatpush1.msra.mxu0 0.0
        %3103 = vmatprep.subr.mxu0 0.0
        %3104 = vmatpush1.msra.mxu0 0.0
        %3105 = vmatprep.subr.mxu0 0.0
        %3106 = vmatpush1.msra.mxu0 0.0
        %3107 = vmatprep.subr.mxu0 0.0
        %3108 = vmatpush1.msra.mxu0 0.0
        %3109 = vmatprep.subr.mxu0 0.0
        %3110 = vmatpush1.msra.mxu0 0.0
        %3111 = vmatprep.subr.mxu0 0.0
        %3112 = vmatpush1.msra.mxu0 0.0
        %3113 = vmatprep.subr.mxu0 0.0
        %3114 = vmatpush1.msra.mxu0 0.0
        %3115 = vmatprep.subr.mxu0 0.0
        %3116 = vmatpush1.msra.mxu0 0.0
        %3117 = vmatprep.subr.mxu0 0.0
        %3118 = vmatpush1.msra.mxu0 0.0
        %3119 = vmatprep.subr.mxu0 0.0
        %3120 = vmatpush1.msra.mxu0 0.0
        %3121 = vmatprep.subr.mxu0 0.0
        %3122 = vmatpush1.msra.mxu0 0.0
        %3123 = vmatprep.subr.mxu0 0.0
        %3124 = vmatpush1.msra.mxu0 0.0
        %3125 = vmatprep.subr.mxu0 0.0
        %3126 = vmatpush1.msra.mxu0 0.0
        %3127 = vmatprep.subr.mxu0 0.0
        %3128 = vmatpush1.msra.mxu0 0.0
        %3129 = vmatprep.subr.mxu0 0.0
        %3130 = vmatpush1.msra.mxu0 0.0
        %3131 = vmatprep.subr.mxu0 0.0
        %3132 = vmatpush1.msra.mxu0 0.0
        %3133 = vmatprep.subr.mxu0 0.0
        %3134 = vmatpush1.msra.mxu0 0.0
        %3135 = vmatprep.subr.mxu0 0.0
        %3136 = vmatpush1.msra.mxu0 0.0
        %3137 = vmatprep.subr.mxu0 0.0
        %3138 = vmatpush1.msra.mxu0 0.0
        %3139 = vmatprep.subr.mxu0 0.0
        %3140 = vmatpush1.msra.mxu0 0.0
        %3141 = vmatprep.mubr.f32.mxu0 0.0
        %3142 = vmatmul.mubr.f32.gmra.mrb[0].mxu0 %v3072
        %v3143 = vpop.f32.mrb[0].mxu0
        %v3144 = vadd.f32 0.0, %v3143
        %v3145 = vpop.f32.mrb[0].mxu0
        %3146 = vmatprep.mubr.f32.mxu0 0.0
        %3147 = vmatmul.mubr.f32.gmra.mrb[0].mxu0 %v3075
        %v3148 = vpop.f32.mrb[0].mxu0
        %v3149 = vadd.f32 0.0, %v3148
        %v3150 = vpop.f32.mrb[0].mxu0
        %3151 = vdwg.mxu0
        %3152 = vrot.lane.b32.xlu0 %v512, 56
        %v3153 = vpop.permute.xlu0 %3152
        %3154 = vrot.lane.b32.xlu0 %v513, 56
        %v3155 = vpop.permute.xlu0 %3154
        %v3159 = vsel %vm1239, %v3034, 0
        %v3162 = vsel %vm1239, %v3035, 0
        %3164 = vmatprep.subr.mxu0 0.0
        %3165 = vmatpush1.msra.mxu0 %v3153
        %3166 = vmatprep.subr.mxu0 0.0
        %3167 = vmatpush1.msra.mxu0 %v3155
        %3168 = vmatprep.subr.mxu0 0.0
        %3169 = vmatpush1.msra.mxu0 0.0
        %3170 = vmatprep.subr.mxu0 0.0
        %3171 = vmatpush1.msra.mxu0 0.0
        %3172 = vmatprep.subr.mxu0 0.0
        %3173 = vmatpush1.msra.mxu0 0.0
        %3174 = vmatprep.subr.mxu0 0.0
        %3175 = vmatpush1.msra.mxu0 0.0
        %3176 = vmatprep.subr.mxu0 0.0
        %3177 = vmatpush1.msra.mxu0 0.0
        %3178 = vmatprep.subr.mxu0 0.0
        %3179 = vmatpush1.msra.mxu0 0.0
        %3180 = vmatprep.subr.mxu0 0.0
        %3181 = vmatpush1.msra.mxu0 0.0
        %3182 = vmatprep.subr.mxu0 0.0
        %3183 = vmatpush1.msra.mxu0 0.0
        %3184 = vmatprep.subr.mxu0 0.0
        %3185 = vmatpush1.msra.mxu0 0.0
        %3186 = vmatprep.subr.mxu0 0.0
        %3187 = vmatpush1.msra.mxu0 0.0
        %3188 = vmatprep.subr.mxu0 0.0
        %3189 = vmatpush1.msra.mxu0 0.0
        %3190 = vmatprep.subr.mxu0 0.0
        %3191 = vmatpush1.msra.mxu0 0.0
        %3192 = vmatprep.subr.mxu0 0.0
        %3193 = vmatpush1.msra.mxu0 0.0
        %3194 = vmatprep.subr.mxu0 0.0
        %3195 = vmatpush1.msra.mxu0 0.0
        %3196 = vmatprep.subr.mxu0 0.0
        %3197 = vmatpush1.msra.mxu0 0.0
        %3198 = vmatprep.subr.mxu0 0.0
        %3199 = vmatpush1.msra.mxu0 0.0
        %3200 = vmatprep.subr.mxu0 0.0
        %3201 = vmatpush1.msra.mxu0 0.0
        %3202 = vmatprep.subr.mxu0 0.0
        %3203 = vmatpush1.msra.mxu0 0.0
        %3204 = vmatprep.subr.mxu0 0.0
        %3205 = vmatpush1.msra.mxu0 0.0
        %3206 = vmatprep.subr.mxu0 0.0
        %3207 = vmatpush1.msra.mxu0 0.0
        %3208 = vmatprep.subr.mxu0 0.0
        %3209 = vmatpush1.msra.mxu0 0.0
        %3210 = vmatprep.subr.mxu0 0.0
        %3211 = vmatpush1.msra.mxu0 0.0
        %3212 = vmatprep.subr.mxu0 0.0
        %3213 = vmatpush1.msra.mxu0 0.0
        %3214 = vmatprep.subr.mxu0 0.0
        %3215 = vmatpush1.msra.mxu0 0.0
        %3216 = vmatprep.subr.mxu0 0.0
        %3217 = vmatpush1.msra.mxu0 0.0
        %3218 = vmatprep.subr.mxu0 0.0
        %3219 = vmatpush1.msra.mxu0 0.0
        %3220 = vmatprep.subr.mxu0 0.0
        %3221 = vmatpush1.msra.mxu0 0.0
        %3222 = vmatprep.subr.mxu0 0.0
        %3223 = vmatpush1.msra.mxu0 0.0
        %3224 = vmatprep.subr.mxu0 0.0
        %3225 = vmatpush1.msra.mxu0 0.0
        %3226 = vmatprep.subr.mxu0 0.0
        %3227 = vmatpush1.msra.mxu0 0.0
        %3228 = vmatprep.mubr.f32.mxu0 0.0
        %3229 = vmatmul.mubr.f32.gmra.mrb[0].mxu0 %v3159
        %v3230 = vpop.f32.mrb[0].mxu0
        %v3231 = vadd.f32 0.0, %v3230
        %v3232 = vpop.f32.mrb[0].mxu0
        %3233 = vmatprep.mubr.f32.mxu0 0.0
        %3234 = vmatmul.mubr.f32.gmra.mrb[0].mxu0 %v3162
        %v3235 = vpop.f32.mrb[0].mxu0
        %v3236 = vadd.f32 0.0, %v3235
        %v3237 = vpop.f32.mrb[0].mxu0
        %3238 = vdwg.mxu0
        %3239 = vrot.lane.b32.xlu0 %v514, 56
        %v3240 = vpop.permute.xlu0 %3239
        %3241 = vrot.lane.b32.xlu0 %v515, 56
        %v3242 = vpop.permute.xlu0 %3241
        %v3246 = vsel %vm1239, %v3036, 0
        %v3249 = vsel %vm1239, %v3037, 0
        %3251 = vmatprep.subr.mxu0 0.0
        %3252 = vmatpush1.msra.mxu0 %v3240
        %3253 = vmatprep.subr.mxu0 0.0
        %3254 = vmatpush1.msra.mxu0 %v3242
        %3255 = vmatprep.subr.mxu0 0.0
        %3256 = vmatpush1.msra.mxu0 0.0
        %3257 = vmatprep.subr.mxu0 0.0
        %3258 = vmatpush1.msra.mxu0 0.0
        %3259 = vmatprep.subr.mxu0 0.0
        %3260 = vmatpush1.msra.mxu0 0.0
        %3261 = vmatprep.subr.mxu0 0.0
        %3262 = vmatpush1.msra.mxu0 0.0
        %3263 = vmatprep.subr.mxu0 0.0
        %3264 = vmatpush1.msra.mxu0 0.0
        %3265 = vmatprep.subr.mxu0 0.0
        %3266 = vmatpush1.msra.mxu0 0.0
        %3267 = vmatprep.subr.mxu0 0.0
        %3268 = vmatpush1.msra.mxu0 0.0
        %3269 = vmatprep.subr.mxu0 0.0
        %3270 = vmatpush1.msra.mxu0 0.0
        %3271 = vmatprep.subr.mxu0 0.0
        %3272 = vmatpush1.msra.mxu0 0.0
        %3273 = vmatprep.subr.mxu0 0.0
        %3274 = vmatpush1.msra.mxu0 0.0
        %3275 = vmatprep.subr.mxu0 0.0
        %3276 = vmatpush1.msra.mxu0 0.0
        %3277 = vmatprep.subr.mxu0 0.0
        %3278 = vmatpush1.msra.mxu0 0.0
        %3279 = vmatprep.subr.mxu0 0.0
        %3280 = vmatpush1.msra.mxu0 0.0
        %3281 = vmatprep.subr.mxu0 0.0
        %3282 = vmatpush1.msra.mxu0 0.0
        %3283 = vmatprep.subr.mxu0 0.0
        %3284 = vmatpush1.msra.mxu0 0.0
        %3285 = vmatprep.subr.mxu0 0.0
        %3286 = vmatpush1.msra.mxu0 0.0
        %3287 = vmatprep.subr.mxu0 0.0
        %3288 = vmatpush1.msra.mxu0 0.0
        %3289 = vmatprep.subr.mxu0 0.0
        %3290 = vmatpush1.msra.mxu0 0.0
        %3291 = vmatprep.subr.mxu0 0.0
        %3292 = vmatpush1.msra.mxu0 0.0
        %3293 = vmatprep.subr.mxu0 0.0
        %3294 = vmatpush1.msra.mxu0 0.0
        %3295 = vmatprep.subr.mxu0 0.0
        %3296 = vmatpush1.msra.mxu0 0.0
        %3297 = vmatprep.subr.mxu0 0.0
        %3298 = vmatpush1.msra.mxu0 0.0
        %3299 = vmatprep.subr.mxu0 0.0
        %3300 = vmatpush1.msra.mxu0 0.0
        %3301 = vmatprep.subr.mxu0 0.0
        %3302 = vmatpush1.msra.mxu0 0.0
        %3303 = vmatprep.subr.mxu0 0.0
        %3304 = vmatpush1.msra.mxu0 0.0
        %3305 = vmatprep.subr.mxu0 0.0
        %3306 = vmatpush1.msra.mxu0 0.0
        %3307 = vmatprep.subr.mxu0 0.0
        %3308 = vmatpush1.msra.mxu0 0.0
        %3309 = vmatprep.subr.mxu0 0.0
        %3310 = vmatpush1.msra.mxu0 0.0
        %3311 = vmatprep.subr.mxu0 0.0
        %3312 = vmatpush1.msra.mxu0 0.0
        %3313 = vmatprep.subr.mxu0 0.0
        %3314 = vmatpush1.msra.mxu0 0.0
        %3315 = vmatprep.mubr.f32.mxu0 0.0
        %3316 = vmatmul.mubr.f32.gmra.mrb[0].mxu0 %v3246
        %v3317 = vpop.f32.mrb[0].mxu0
        %v3318 = vadd.f32 0.0, %v3317
        %v3319 = vpop.f32.mrb[0].mxu0
        %3320 = vmatprep.mubr.f32.mxu0 0.0
        %3321 = vmatmul.mubr.f32.gmra.mrb[0].mxu0 %v3249
        %v3322 = vpop.f32.mrb[0].mxu0
        %v3323 = vadd.f32 0.0, %v3322
        %v3324 = vpop.f32.mrb[0].mxu0
        %3325 = vdwg.mxu0
        %3326 = vrot.lane.b32.xlu0 %v516, 56
        %v3327 = vpop.permute.xlu0 %3326
        %3328 = vrot.lane.b32.xlu0 %v517, 56
        %v3329 = vpop.permute.xlu0 %3328
        %v3333 = vsel %vm1239, %v3038, 0
        %v3336 = vsel %vm1239, %v3039, 0
        %3338 = vmatprep.subr.mxu0 0.0
        %3339 = vmatpush1.msra.mxu0 %v3327
        %3340 = vmatprep.subr.mxu0 0.0
        %3341 = vmatpush1.msra.mxu0 %v3329
        %3342 = vmatprep.subr.mxu0 0.0
        %3343 = vmatpush1.msra.mxu0 0.0
        %3344 = vmatprep.subr.mxu0 0.0
        %3345 = vmatpush1.msra.mxu0 0.0
        %3346 = vmatprep.subr.mxu0 0.0
        %3347 = vmatpush1.msra.mxu0 0.0
        %3348 = vmatprep.subr.mxu0 0.0
        %3349 = vmatpush1.msra.mxu0 0.0
        %3350 = vmatprep.subr.mxu0 0.0
        %3351 = vmatpush1.msra.mxu0 0.0
        %3352 = vmatprep.subr.mxu0 0.0
        %3353 = vmatpush1.msra.mxu0 0.0
        %3354 = vmatprep.subr.mxu0 0.0
        %3355 = vmatpush1.msra.mxu0 0.0
        %3356 = vmatprep.subr.mxu0 0.0
        %3357 = vmatpush1.msra.mxu0 0.0
        %3358 = vmatprep.subr.mxu0 0.0
        %3359 = vmatpush1.msra.mxu0 0.0
        %3360 = vmatprep.subr.mxu0 0.0
        %3361 = vmatpush1.msra.mxu0 0.0
        %3362 = vmatprep.subr.mxu0 0.0
        %3363 = vmatpush1.msra.mxu0 0.0
        %3364 = vmatprep.subr.mxu0 0.0
        %3365 = vmatpush1.msra.mxu0 0.0
        %3366 = vmatprep.subr.mxu0 0.0
        %3367 = vmatpush1.msra.mxu0 0.0
        %3368 = vmatprep.subr.mxu0 0.0
        %3369 = vmatpush1.msra.mxu0 0.0
        %3370 = vmatprep.subr.mxu0 0.0
        %3371 = vmatpush1.msra.mxu0 0.0
        %3372 = vmatprep.subr.mxu0 0.0
        %3373 = vmatpush1.msra.mxu0 0.0
        %3374 = vmatprep.subr.mxu0 0.0
        %3375 = vmatpush1.msra.mxu0 0.0
        %3376 = vmatprep.subr.mxu0 0.0
        %3377 = vmatpush1.msra.mxu0 0.0
        %3378 = vmatprep.subr.mxu0 0.0
        %3379 = vmatpush1.msra.mxu0 0.0
        %3380 = vmatprep.subr.mxu0 0.0
        %3381 = vmatpush1.msra.mxu0 0.0
        %3382 = vmatprep.subr.mxu0 0.0
        %3383 = vmatpush1.msra.mxu0 0.0
        %3384 = vmatprep.subr.mxu0 0.0
        %3385 = vmatpush1.msra.mxu0 0.0
        %3386 = vmatprep.subr.mxu0 0.0
        %3387 = vmatpush1.msra.mxu0 0.0
        %3388 = vmatprep.subr.mxu0 0.0
        %3389 = vmatpush1.msra.mxu0 0.0
        %3390 = vmatprep.subr.mxu0 0.0
        %3391 = vmatpush1.msra.mxu0 0.0
        %3392 = vmatprep.subr.mxu0 0.0
        %3393 = vmatpush1.msra.mxu0 0.0
        %3394 = vmatprep.subr.mxu0 0.0
        %3395 = vmatpush1.msra.mxu0 0.0
        %3396 = vmatprep.subr.mxu0 0.0
        %3397 = vmatpush1.msra.mxu0 0.0
        %3398 = vmatprep.subr.mxu0 0.0
        %3399 = vmatpush1.msra.mxu0 0.0
        %3400 = vmatprep.subr.mxu0 0.0
        %3401 = vmatpush1.msra.mxu0 0.0
        %3402 = vmatprep.mubr.f32.mxu0 0.0
        %3403 = vmatmul.mubr.f32.gmra.mrb[0].mxu0 %v3333
        %v3404 = vpop.f32.mrb[0].mxu0
        %v3405 = vadd.f32 0.0, %v3404
        %v3406 = vpop.f32.mrb[0].mxu0
        %3407 = vmatprep.mubr.f32.mxu0 0.0
        %3408 = vmatmul.mubr.f32.gmra.mrb[0].mxu0 %v3336
        %v3409 = vpop.f32.mrb[0].mxu0
        %v3410 = vadd.f32 0.0, %v3409
        %v3411 = vpop.f32.mrb[0].mxu0
        %3412 = vdwg.mxu0
        %3413 = vrot.lane.b32.xlu0 %v518, 56
        %v3414 = vpop.permute.xlu0 %3413
        %3415 = vrot.lane.b32.xlu0 %v519, 56
        %v3416 = vpop.permute.xlu0 %3415
        %v3420 = vsel %vm1239, %v3040, 0
        %v3423 = vsel %vm1239, %v3041, 0
        %3425 = vmatprep.subr.mxu0 0.0
        %3426 = vmatpush1.msra.mxu0 %v3414
        %3427 = vmatprep.subr.mxu0 0.0
        %3428 = vmatpush1.msra.mxu0 %v3416
        %3429 = vmatprep.subr.mxu0 0.0
        %3430 = vmatpush1.msra.mxu0 0.0
        %3431 = vmatprep.subr.mxu0 0.0
        %3432 = vmatpush1.msra.mxu0 0.0
        %3433 = vmatprep.subr.mxu0 0.0
        %3434 = vmatpush1.msra.mxu0 0.0
        %3435 = vmatprep.subr.mxu0 0.0
        %3436 = vmatpush1.msra.mxu0 0.0
        %3437 = vmatprep.subr.mxu0 0.0
        %3438 = vmatpush1.msra.mxu0 0.0
        %3439 = vmatprep.subr.mxu0 0.0
        %3440 = vmatpush1.msra.mxu0 0.0
        %3441 = vmatprep.subr.mxu0 0.0
        %3442 = vmatpush1.msra.mxu0 0.0
        %3443 = vmatprep.subr.mxu0 0.0
        %3444 = vmatpush1.msra.mxu0 0.0
        %3445 = vmatprep.subr.mxu0 0.0
        %3446 = vmatpush1.msra.mxu0 0.0
        %3447 = vmatprep.subr.mxu0 0.0
        %3448 = vmatpush1.msra.mxu0 0.0
        %3449 = vmatprep.subr.mxu0 0.0
        %3450 = vmatpush1.msra.mxu0 0.0
        %3451 = vmatprep.subr.mxu0 0.0
        %3452 = vmatpush1.msra.mxu0 0.0
        %3453 = vmatprep.subr.mxu0 0.0
        %3454 = vmatpush1.msra.mxu0 0.0
        %3455 = vmatprep.subr.mxu0 0.0
        %3456 = vmatpush1.msra.mxu0 0.0
        %3457 = vmatprep.subr.mxu0 0.0
        %3458 = vmatpush1.msra.mxu0 0.0
        %3459 = vmatprep.subr.mxu0 0.0
        %3460 = vmatpush1.msra.mxu0 0.0
        %3461 = vmatprep.subr.mxu0 0.0
        %3462 = vmatpush1.msra.mxu0 0.0
        %3463 = vmatprep.subr.mxu0 0.0
        %3464 = vmatpush1.msra.mxu0 0.0
        %3465 = vmatprep.subr.mxu0 0.0
        %3466 = vmatpush1.msra.mxu0 0.0
        %3467 = vmatprep.subr.mxu0 0.0
        %3468 = vmatpush1.msra.mxu0 0.0
        %3469 = vmatprep.subr.mxu0 0.0
        %3470 = vmatpush1.msra.mxu0 0.0
        %3471 = vmatprep.subr.mxu0 0.0
        %3472 = vmatpush1.msra.mxu0 0.0
        %3473 = vmatprep.subr.mxu0 0.0
        %3474 = vmatpush1.msra.mxu0 0.0
        %3475 = vmatprep.subr.mxu0 0.0
        %3476 = vmatpush1.msra.mxu0 0.0
        %3477 = vmatprep.subr.mxu0 0.0
        %3478 = vmatpush1.msra.mxu0 0.0
        %3479 = vmatprep.subr.mxu0 0.0
        %3480 = vmatpush1.msra.mxu0 0.0
        %3481 = vmatprep.subr.mxu0 0.0
        %3482 = vmatpush1.msra.mxu0 0.0
        %3483 = vmatprep.subr.mxu0 0.0
        %3484 = vmatpush1.msra.mxu0 0.0
        %3485 = vmatprep.subr.mxu0 0.0
        %3486 = vmatpush1.msra.mxu0 0.0
        %3487 = vmatprep.subr.mxu0 0.0
        %3488 = vmatpush1.msra.mxu0 0.0
        %3489 = vmatprep.mubr.f32.mxu0 0.0
        %3490 = vmatmul.mubr.f32.gmra.mrb[0].mxu0 %v3420
        %v3491 = vpop.f32.mrb[0].mxu0
        %v3492 = vadd.f32 0.0, %v3491
        %v3493 = vpop.f32.mrb[0].mxu0
        %3494 = vmatprep.mubr.f32.mxu0 0.0
        %3495 = vmatmul.mubr.f32.gmra.mrb[0].mxu0 %v3423
        %v3496 = vpop.f32.mrb[0].mxu0
        %v3497 = vadd.f32 0.0, %v3496
        %v3498 = vpop.f32.mrb[0].mxu0
        %3499 = vdwg.mxu0
        %3500 = vrot.lane.b32.xlu0 %v520, 56
        %v3501 = vpop.permute.xlu0 %3500
        %3502 = vrot.lane.b32.xlu0 %v521, 56
        %v3503 = vpop.permute.xlu0 %3502
        %v3507 = vsel %vm1239, %v3042, 0
        %v3510 = vsel %vm1239, %v3043, 0
        %3512 = vmatprep.subr.mxu0 0.0
        %3513 = vmatpush1.msra.mxu0 %v3501
        %3514 = vmatprep.subr.mxu0 0.0
        %3515 = vmatpush1.msra.mxu0 %v3503
        %3516 = vmatprep.subr.mxu0 0.0
        %3517 = vmatpush1.msra.mxu0 0.0
        %3518 = vmatprep.subr.mxu0 0.0
        %3519 = vmatpush1.msra.mxu0 0.0
        %3520 = vmatprep.subr.mxu0 0.0
        %3521 = vmatpush1.msra.mxu0 0.0
        %3522 = vmatprep.subr.mxu0 0.0
        %3523 = vmatpush1.msra.mxu0 0.0
        %3524 = vmatprep.subr.mxu0 0.0
        %3525 = vmatpush1.msra.mxu0 0.0
        %3526 = vmatprep.subr.mxu0 0.0
        %3527 = vmatpush1.msra.mxu0 0.0
        %3528 = vmatprep.subr.mxu0 0.0
        %3529 = vmatpush1.msra.mxu0 0.0
        %3530 = vmatprep.subr.mxu0 0.0
        %3531 = vmatpush1.msra.mxu0 0.0
        %3532 = vmatprep.subr.mxu0 0.0
        %3533 = vmatpush1.msra.mxu0 0.0
        %3534 = vmatprep.subr.mxu0 0.0
        %3535 = vmatpush1.msra.mxu0 0.0
        %3536 = vmatprep.subr.mxu0 0.0
        %3537 = vmatpush1.msra.mxu0 0.0
        %3538 = vmatprep.subr.mxu0 0.0
        %3539 = vmatpush1.msra.mxu0 0.0
        %3540 = vmatprep.subr.mxu0 0.0
        %3541 = vmatpush1.msra.mxu0 0.0
        %3542 = vmatprep.subr.mxu0 0.0
        %3543 = vmatpush1.msra.mxu0 0.0
        %3544 = vmatprep.subr.mxu0 0.0
        %3545 = vmatpush1.msra.mxu0 0.0
        %3546 = vmatprep.subr.mxu0 0.0
        %3547 = vmatpush1.msra.mxu0 0.0
        %3548 = vmatprep.subr.mxu0 0.0
        %3549 = vmatpush1.msra.mxu0 0.0
        %3550 = vmatprep.subr.mxu0 0.0
        %3551 = vmatpush1.msra.mxu0 0.0
        %3552 = vmatprep.subr.mxu0 0.0
        %3553 = vmatpush1.msra.mxu0 0.0
        %3554 = vmatprep.subr.mxu0 0.0
        %3555 = vmatpush1.msra.mxu0 0.0
        %3556 = vmatprep.subr.mxu0 0.0
        %3557 = vmatpush1.msra.mxu0 0.0
        %3558 = vmatprep.subr.mxu0 0.0
        %3559 = vmatpush1.msra.mxu0 0.0
        %3560 = vmatprep.subr.mxu0 0.0
        %3561 = vmatpush1.msra.mxu0 0.0
        %3562 = vmatprep.subr.mxu0 0.0
        %3563 = vmatpush1.msra.mxu0 0.0
        %3564 = vmatprep.subr.mxu0 0.0
        %3565 = vmatpush1.msra.mxu0 0.0
        %3566 = vmatprep.subr.mxu0 0.0
        %3567 = vmatpush1.msra.mxu0 0.0
        %3568 = vmatprep.subr.mxu0 0.0
        %3569 = vmatpush1.msra.mxu0 0.0
        %3570 = vmatprep.subr.mxu0 0.0
        %3571 = vmatpush1.msra.mxu0 0.0
        %3572 = vmatprep.subr.mxu0 0.0
        %3573 = vmatpush1.msra.mxu0 0.0
        %3574 = vmatprep.subr.mxu0 0.0
        %3575 = vmatpush1.msra.mxu0 0.0
        %3576 = vmatprep.mubr.f32.mxu0 0.0
        %3577 = vmatmul.mubr.f32.gmra.mrb[0].mxu0 %v3507
        %v3578 = vpop.f32.mrb[0].mxu0
        %v3579 = vadd.f32 0.0, %v3578
        %v3580 = vpop.f32.mrb[0].mxu0
        %3581 = vmatprep.mubr.f32.mxu0 0.0
        %3582 = vmatmul.mubr.f32.gmra.mrb[0].mxu0 %v3510
        %v3583 = vpop.f32.mrb[0].mxu0
        %v3584 = vadd.f32 0.0, %v3583
        %v3585 = vpop.f32.mrb[0].mxu0
        %3586 = vdwg.mxu0
        %3587 = vrot.lane.b32.xlu0 %v522, 56
        %v3588 = vpop.permute.xlu0 %3587
        %3589 = vrot.lane.b32.xlu0 %v523, 56
        %v3590 = vpop.permute.xlu0 %3589
        %v3594 = vsel %vm1239, %v3044, 0
        %v3597 = vsel %vm1239, %v3045, 0
        %3599 = vmatprep.subr.mxu0 0.0
        %3600 = vmatpush1.msra.mxu0 %v3588
        %3601 = vmatprep.subr.mxu0 0.0
        %3602 = vmatpush1.msra.mxu0 %v3590
        %3603 = vmatprep.subr.mxu0 0.0
        %3604 = vmatpush1.msra.mxu0 0.0
        %3605 = vmatprep.subr.mxu0 0.0
        %3606 = vmatpush1.msra.mxu0 0.0
        %3607 = vmatprep.subr.mxu0 0.0
        %3608 = vmatpush1.msra.mxu0 0.0
        %3609 = vmatprep.subr.mxu0 0.0
        %3610 = vmatpush1.msra.mxu0 0.0
        %3611 = vmatprep.subr.mxu0 0.0
        %3612 = vmatpush1.msra.mxu0 0.0
        %3613 = vmatprep.subr.mxu0 0.0
        %3614 = vmatpush1.msra.mxu0 0.0
        %3615 = vmatprep.subr.mxu0 0.0
        %3616 = vmatpush1.msra.mxu0 0.0
        %3617 = vmatprep.subr.mxu0 0.0
        %3618 = vmatpush1.msra.mxu0 0.0
        %3619 = vmatprep.subr.mxu0 0.0
        %3620 = vmatpush1.msra.mxu0 0.0
        %3621 = vmatprep.subr.mxu0 0.0
        %3622 = vmatpush1.msra.mxu0 0.0
        %3623 = vmatprep.subr.mxu0 0.0
        %3624 = vmatpush1.msra.mxu0 0.0
        %3625 = vmatprep.subr.mxu0 0.0
        %3626 = vmatpush1.msra.mxu0 0.0
        %3627 = vmatprep.subr.mxu0 0.0
        %3628 = vmatpush1.msra.mxu0 0.0
        %3629 = vmatprep.subr.mxu0 0.0
        %3630 = vmatpush1.msra.mxu0 0.0
        %3631 = vmatprep.subr.mxu0 0.0
        %3632 = vmatpush1.msra.mxu0 0.0
        %3633 = vmatprep.subr.mxu0 0.0
        %3634 = vmatpush1.msra.mxu0 0.0
        %3635 = vmatprep.subr.mxu0 0.0
        %3636 = vmatpush1.msra.mxu0 0.0
        %3637 = vmatprep.subr.mxu0 0.0
        %3638 = vmatpush1.msra.mxu0 0.0
        %3639 = vmatprep.subr.mxu0 0.0
        %3640 = vmatpush1.msra.mxu0 0.0
        %3641 = vmatprep.subr.mxu0 0.0
        %3642 = vmatpush1.msra.mxu0 0.0
        %3643 = vmatprep.subr.mxu0 0.0
        %3644 = vmatpush1.msra.mxu0 0.0
        %3645 = vmatprep.subr.mxu0 0.0
        %3646 = vmatpush1.msra.mxu0 0.0
        %3647 = vmatprep.subr.mxu0 0.0
        %3648 = vmatpush1.msra.mxu0 0.0
        %3649 = vmatprep.subr.mxu0 0.0
        %3650 = vmatpush1.msra.mxu0 0.0
        %3651 = vmatprep.subr.mxu0 0.0
        %3652 = vmatpush1.msra.mxu0 0.0
        %3653 = vmatprep.subr.mxu0 0.0
        %3654 = vmatpush1.msra.mxu0 0.0
        %3655 = vmatprep.subr.mxu0 0.0
        %3656 = vmatpush1.msra.mxu0 0.0
        %3657 = vmatprep.subr.mxu0 0.0
        %3658 = vmatpush1.msra.mxu0 0.0
        %3659 = vmatprep.subr.mxu0 0.0
        %3660 = vmatpush1.msra.mxu0 0.0
        %3661 = vmatprep.subr.mxu0 0.0
        %3662 = vmatpush1.msra.mxu0 0.0
        %3663 = vmatprep.mubr.f32.mxu0 0.0
        %3664 = vmatmul.mubr.f32.gmra.mrb[0].mxu0 %v3594
        %v3665 = vpop.f32.mrb[0].mxu0
        %v3666 = vadd.f32 0.0, %v3665
        %v3667 = vpop.f32.mrb[0].mxu0
        %3668 = vmatprep.mubr.f32.mxu0 0.0
        %3669 = vmatmul.mubr.f32.gmra.mrb[0].mxu0 %v3597
        %v3670 = vpop.f32.mrb[0].mxu0
        %v3671 = vadd.f32 0.0, %v3670
        %v3672 = vpop.f32.mrb[0].mxu0
        %3673 = vdwg.mxu0
        %3674 = vrot.lane.b32.xlu0 %v524, 56
        %v3675 = vpop.permute.xlu0 %3674
        %3676 = vrot.lane.b32.xlu0 %v525, 56
        %v3677 = vpop.permute.xlu0 %3676
        %v3681 = vsel %vm1239, %v3046, 0
        %v3684 = vsel %vm1239, %v3047, 0
        %3686 = vmatprep.subr.mxu0 0.0
        %3687 = vmatpush1.msra.mxu0 %v3675
        %3688 = vmatprep.subr.mxu0 0.0
        %3689 = vmatpush1.msra.mxu0 %v3677
        %3690 = vmatprep.subr.mxu0 0.0
        %3691 = vmatpush1.msra.mxu0 0.0
        %3692 = vmatprep.subr.mxu0 0.0
        %3693 = vmatpush1.msra.mxu0 0.0
        %3694 = vmatprep.subr.mxu0 0.0
        %3695 = vmatpush1.msra.mxu0 0.0
        %3696 = vmatprep.subr.mxu0 0.0
        %3697 = vmatpush1.msra.mxu0 0.0
        %3698 = vmatprep.subr.mxu0 0.0
        %3699 = vmatpush1.msra.mxu0 0.0
        %3700 = vmatprep.subr.mxu0 0.0
        %3701 = vmatpush1.msra.mxu0 0.0
        %3702 = vmatprep.subr.mxu0 0.0
        %3703 = vmatpush1.msra.mxu0 0.0
        %3704 = vmatprep.subr.mxu0 0.0
        %3705 = vmatpush1.msra.mxu0 0.0
        %3706 = vmatprep.subr.mxu0 0.0
        %3707 = vmatpush1.msra.mxu0 0.0
        %3708 = vmatprep.subr.mxu0 0.0
        %3709 = vmatpush1.msra.mxu0 0.0
        %3710 = vmatprep.subr.mxu0 0.0
        %3711 = vmatpush1.msra.mxu0 0.0
        %3712 = vmatprep.subr.mxu0 0.0
        %3713 = vmatpush1.msra.mxu0 0.0
        %3714 = vmatprep.subr.mxu0 0.0
        %3715 = vmatpush1.msra.mxu0 0.0
        %3716 = vmatprep.subr.mxu0 0.0
        %3717 = vmatpush1.msra.mxu0 0.0
        %3718 = vmatprep.subr.mxu0 0.0
        %3719 = vmatpush1.msra.mxu0 0.0
        %3720 = vmatprep.subr.mxu0 0.0
        %3721 = vmatpush1.msra.mxu0 0.0
        %3722 = vmatprep.subr.mxu0 0.0
        %3723 = vmatpush1.msra.mxu0 0.0
        %3724 = vmatprep.subr.mxu0 0.0
        %3725 = vmatpush1.msra.mxu0 0.0
        %3726 = vmatprep.subr.mxu0 0.0
        %3727 = vmatpush1.msra.mxu0 0.0
        %3728 = vmatprep.subr.mxu0 0.0
        %3729 = vmatpush1.msra.mxu0 0.0
        %3730 = vmatprep.subr.mxu0 0.0
        %3731 = vmatpush1.msra.mxu0 0.0
        %3732 = vmatprep.subr.mxu0 0.0
        %3733 = vmatpush1.msra.mxu0 0.0
        %3734 = vmatprep.subr.mxu0 0.0
        %3735 = vmatpush1.msra.mxu0 0.0
        %3736 = vmatprep.subr.mxu0 0.0
        %3737 = vmatpush1.msra.mxu0 0.0
        %3738 = vmatprep.subr.mxu0 0.0
        %3739 = vmatpush1.msra.mxu0 0.0
        %3740 = vmatprep.subr.mxu0 0.0
        %3741 = vmatpush1.msra.mxu0 0.0
        %3742 = vmatprep.subr.mxu0 0.0
        %3743 = vmatpush1.msra.mxu0 0.0
        %3744 = vmatprep.subr.mxu0 0.0
        %3745 = vmatpush1.msra.mxu0 0.0
        %3746 = vmatprep.subr.mxu0 0.0
        %3747 = vmatpush1.msra.mxu0 0.0
        %3748 = vmatprep.subr.mxu0 0.0
        %3749 = vmatpush1.msra.mxu0 0.0
        %3750 = vmatprep.mubr.f32.mxu0 0.0
        %3751 = vmatmul.mubr.f32.gmra.mrb[0].mxu0 %v3681
        %v3752 = vpop.f32.mrb[0].mxu0
        %v3753 = vadd.f32 0.0, %v3752
        %v3754 = vpop.f32.mrb[0].mxu0
        %3755 = vmatprep.mubr.f32.mxu0 0.0
        %3756 = vmatmul.mubr.f32.gmra.mrb[0].mxu0 %v3684
        %v3757 = vpop.f32.mrb[0].mxu0
        %v3758 = vadd.f32 0.0, %v3757
        %v3759 = vpop.f32.mrb[0].mxu0
        %3760 = vdwg.mxu0
        %3761 = vrot.lane.b32.xlu0 %v430, 112
        %v3762 = vpop.permute.xlu0 %3761
        %3763 = vrot.lane.b32.xlu0 %v435, 112
        %v3764 = vpop.permute.xlu0 %3763
        %3765 = vrot.lane.b32.xlu0 %v430, 80
        %v3766 = vpop.permute.xlu0 %3765
        %3767 = vrot.lane.b32.xlu0 %v435, 80
        %v3768 = vpop.permute.xlu0 %3767
        %v3769 = vsel %vm532, %v3762, 0
        %v3771 = vsel %vm532, %v3764, 0
        %v3773 = vsel %vm532, %v3766, 0
        %v3775 = vsel %vm532, %v3768, 0
        %3777 = vmatprep.subr.mxu0 0.0
        %3778 = vmatpush1.xpose.msra.mxu0 %v3773
        %3779 = vmatprep.subr.mxu0 0.0
        %3780 = vmatpush1.xpose.msra.mxu0 %v3775
        %3781 = vmatprep.subr.mxu0 0.0
        %3782 = vmatpush1.xpose.msra.mxu0 0.0
        %3783 = vmatprep.subr.mxu0 0.0
        %3784 = vmatpush1.xpose.msra.mxu0 0.0
        %3785 = vmatprep.subr.mxu0 0.0
        %3786 = vmatpush1.xpose.msra.mxu0 0.0
        %3787 = vmatprep.subr.mxu0 0.0
        %3788 = vmatpush1.xpose.msra.mxu0 0.0
        %3789 = vmatprep.subr.mxu0 0.0
        %3790 = vmatpush1.xpose.msra.mxu0 0.0
        %3791 = vmatprep.subr.mxu0 0.0
        %3792 = vmatpush1.xpose.msra.mxu0 0.0
        %3793 = vmatprep.subr.mxu0 0.0
        %3794 = vmatpush1.xpose.msra.mxu0 0.0
        %3795 = vmatprep.subr.mxu0 0.0
        %3796 = vmatpush1.xpose.msra.mxu0 0.0
        %3797 = vmatprep.subr.mxu0 0.0
        %3798 = vmatpush1.xpose.msra.mxu0 0.0
        %3799 = vmatprep.subr.mxu0 0.0
        %3800 = vmatpush1.xpose.msra.mxu0 0.0
        %3801 = vmatprep.subr.mxu0 0.0
        %3802 = vmatpush1.xpose.msra.mxu0 0.0
        %3803 = vmatprep.subr.mxu0 0.0
        %3804 = vmatpush1.xpose.msra.mxu0 0.0
        %3805 = vmatprep.subr.mxu0 0.0
        %3806 = vmatpush1.xpose.msra.mxu0 0.0
        %3807 = vmatprep.subr.mxu0 0.0
        %3808 = vmatpush1.xpose.msra.mxu0 0.0
        %3809 = vmatprep.subr.mxu0 0.0
        %3810 = vmatpush1.xpose.msra.mxu0 0.0
        %3811 = vmatprep.subr.mxu0 0.0
        %3812 = vmatpush1.xpose.msra.mxu0 0.0
        %3813 = vmatprep.subr.mxu0 0.0
        %3814 = vmatpush1.xpose.msra.mxu0 0.0
        %3815 = vmatprep.subr.mxu0 0.0
        %3816 = vmatpush1.xpose.msra.mxu0 0.0
        %3817 = vmatprep.subr.mxu0 0.0
        %3818 = vmatpush1.xpose.msra.mxu0 0.0
        %3819 = vmatprep.subr.mxu0 0.0
        %3820 = vmatpush1.xpose.msra.mxu0 0.0
        %3821 = vmatprep.subr.mxu0 0.0
        %3822 = vmatpush1.xpose.msra.mxu0 0.0
        %3823 = vmatprep.subr.mxu0 0.0
        %3824 = vmatpush1.xpose.msra.mxu0 0.0
        %3825 = vmatprep.subr.mxu0 0.0
        %3826 = vmatpush1.xpose.msra.mxu0 0.0
        %3827 = vmatprep.subr.mxu0 0.0
        %3828 = vmatpush1.xpose.msra.mxu0 0.0
        %3829 = vmatprep.subr.mxu0 0.0
        %3830 = vmatpush1.xpose.msra.mxu0 0.0
        %3831 = vmatprep.subr.mxu0 0.0
        %3832 = vmatpush1.xpose.msra.mxu0 0.0
        %3833 = vmatprep.subr.mxu0 0.0
        %3834 = vmatpush1.xpose.msra.mxu0 0.0
        %3835 = vmatprep.subr.mxu0 0.0
        %3836 = vmatpush1.xpose.msra.mxu0 0.0
        %3837 = vmatprep.subr.mxu0 0.0
        %3838 = vmatpush1.xpose.msra.mxu0 0.0
        %3839 = vmatprep.subr.mxu0 0.0
        %3840 = vmatpush1.xpose.msra.mxu0 0.0
        %3841 = vmatprep.mubr.f32.mxu0 0.0
        %3842 = vmatmul.mubr.f32.gmra.mrb[0].mxu0 %v3769
        %v3843 = vpop.f32.mrb[0].mxu0
        %v3844 = vadd.f32 %v508, %v3843
        %v3845 = vpop.f32.mrb[0].mxu0
        %3846 = vmatprep.mubr.f32.mxu0 0.0
        %3847 = vmatmul.mubr.f32.gmra.mrb[0].mxu0 %v3771
        %v3848 = vpop.f32.mrb[0].mxu0
        %v3849 = vadd.f32 %v509, %v3848
        %v3850 = vpop.f32.mrb[0].mxu0
        %3851 = vdwg.mxu0
        %3852 = vrot.lane.b32.xlu0 %v440, 112
        %v3853 = vpop.permute.xlu0 %3852
        %3854 = vrot.lane.b32.xlu0 %v445, 112
        %v3855 = vpop.permute.xlu0 %3854
        %3856 = vrot.lane.b32.xlu0 %v440, 80
        %v3857 = vpop.permute.xlu0 %3856
        %3858 = vrot.lane.b32.xlu0 %v445, 80
        %v3859 = vpop.permute.xlu0 %3858
        %v3860 = vsel %vm532, %v3853, 0
        %v3862 = vsel %vm532, %v3855, 0
        %v3864 = vsel %vm532, %v3857, 0
        %v3866 = vsel %vm532, %v3859, 0
        %3868 = vmatprep.subr.mxu0 0.0
        %3869 = vmatpush1.xpose.msra.mxu0 %v3864
        %3870 = vmatprep.subr.mxu0 0.0
        %3871 = vmatpush1.xpose.msra.mxu0 %v3866
        %3872 = vmatprep.subr.mxu0 0.0
        %3873 = vmatpush1.xpose.msra.mxu0 0.0
        %3874 = vmatprep.subr.mxu0 0.0
        %3875 = vmatpush1.xpose.msra.mxu0 0.0
        %3876 = vmatprep.subr.mxu0 0.0
        %3877 = vmatpush1.xpose.msra.mxu0 0.0
        %3878 = vmatprep.subr.mxu0 0.0
        %3879 = vmatpush1.xpose.msra.mxu0 0.0
        %3880 = vmatprep.subr.mxu0 0.0
        %3881 = vmatpush1.xpose.msra.mxu0 0.0
        %3882 = vmatprep.subr.mxu0 0.0
        %3883 = vmatpush1.xpose.msra.mxu0 0.0
        %3884 = vmatprep.subr.mxu0 0.0
        %3885 = vmatpush1.xpose.msra.mxu0 0.0
        %3886 = vmatprep.subr.mxu0 0.0
        %3887 = vmatpush1.xpose.msra.mxu0 0.0
        %3888 = vmatprep.subr.mxu0 0.0
        %3889 = vmatpush1.xpose.msra.mxu0 0.0
        %3890 = vmatprep.subr.mxu0 0.0
        %3891 = vmatpush1.xpose.msra.mxu0 0.0
        %3892 = vmatprep.subr.mxu0 0.0
        %3893 = vmatpush1.xpose.msra.mxu0 0.0
        %3894 = vmatprep.subr.mxu0 0.0
        %3895 = vmatpush1.xpose.msra.mxu0 0.0
        %3896 = vmatprep.subr.mxu0 0.0
        %3897 = vmatpush1.xpose.msra.mxu0 0.0
        %3898 = vmatprep.subr.mxu0 0.0
        %3899 = vmatpush1.xpose.msra.mxu0 0.0
        %3900 = vmatprep.subr.mxu0 0.0
        %3901 = vmatpush1.xpose.msra.mxu0 0.0
        %3902 = vmatprep.subr.mxu0 0.0
        %3903 = vmatpush1.xpose.msra.mxu0 0.0
        %3904 = vmatprep.subr.mxu0 0.0
        %3905 = vmatpush1.xpose.msra.mxu0 0.0
        %3906 = vmatprep.subr.mxu0 0.0
        %3907 = vmatpush1.xpose.msra.mxu0 0.0
        %3908 = vmatprep.subr.mxu0 0.0
        %3909 = vmatpush1.xpose.msra.mxu0 0.0
        %3910 = vmatprep.subr.mxu0 0.0
        %3911 = vmatpush1.xpose.msra.mxu0 0.0
        %3912 = vmatprep.subr.mxu0 0.0
        %3913 = vmatpush1.xpose.msra.mxu0 0.0
        %3914 = vmatprep.subr.mxu0 0.0
        %3915 = vmatpush1.xpose.msra.mxu0 0.0
        %3916 = vmatprep.subr.mxu0 0.0
        %3917 = vmatpush1.xpose.msra.mxu0 0.0
        %3918 = vmatprep.subr.mxu0 0.0
        %3919 = vmatpush1.xpose.msra.mxu0 0.0
        %3920 = vmatprep.subr.mxu0 0.0
        %3921 = vmatpush1.xpose.msra.mxu0 0.0
        %3922 = vmatprep.subr.mxu0 0.0
        %3923 = vmatpush1.xpose.msra.mxu0 0.0
        %3924 = vmatprep.subr.mxu0 0.0
        %3925 = vmatpush1.xpose.msra.mxu0 0.0
        %3926 = vmatprep.subr.mxu0 0.0
        %3927 = vmatpush1.xpose.msra.mxu0 0.0
        %3928 = vmatprep.subr.mxu0 0.0
        %3929 = vmatpush1.xpose.msra.mxu0 0.0
        %3930 = vmatprep.subr.mxu0 0.0
        %3931 = vmatpush1.xpose.msra.mxu0 0.0
        %3932 = vmatprep.mubr.f32.mxu0 0.0
        %3933 = vmatmul.mubr.f32.gmra.mrb[0].mxu0 %v3860
        %v3934 = vpop.f32.mrb[0].mxu0
        %v3935 = vadd.f32 %v508, %v3934
        %v3936 = vpop.f32.mrb[0].mxu0
        %3937 = vmatprep.mubr.f32.mxu0 0.0
        %3938 = vmatmul.mubr.f32.gmra.mrb[0].mxu0 %v3862
        %v3939 = vpop.f32.mrb[0].mxu0
        %v3940 = vadd.f32 %v509, %v3939
        %v3941 = vpop.f32.mrb[0].mxu0
        %3942 = vdwg.mxu0
        %3943 = vrot.lane.b32.xlu0 %v450, 112
        %v3944 = vpop.permute.xlu0 %3943
        %3945 = vrot.lane.b32.xlu0 %v455, 112
        %v3946 = vpop.permute.xlu0 %3945
        %3947 = vrot.lane.b32.xlu0 %v450, 80
        %v3948 = vpop.permute.xlu0 %3947
        %3949 = vrot.lane.b32.xlu0 %v455, 80
        %v3950 = vpop.permute.xlu0 %3949
        %v3951 = vsel %vm532, %v3944, 0
        %v3953 = vsel %vm532, %v3946, 0
        %v3955 = vsel %vm532, %v3948, 0
        %v3957 = vsel %vm532, %v3950, 0
        %3959 = vmatprep.subr.mxu0 0.0
        %3960 = vmatpush1.xpose.msra.mxu0 %v3955
        %3961 = vmatprep.subr.mxu0 0.0
        %3962 = vmatpush1.xpose.msra.mxu0 %v3957
        %3963 = vmatprep.subr.mxu0 0.0
        %3964 = vmatpush1.xpose.msra.mxu0 0.0
        %3965 = vmatprep.subr.mxu0 0.0
        %3966 = vmatpush1.xpose.msra.mxu0 0.0
        %3967 = vmatprep.subr.mxu0 0.0
        %3968 = vmatpush1.xpose.msra.mxu0 0.0
        %3969 = vmatprep.subr.mxu0 0.0
        %3970 = vmatpush1.xpose.msra.mxu0 0.0
        %3971 = vmatprep.subr.mxu0 0.0
        %3972 = vmatpush1.xpose.msra.mxu0 0.0
        %3973 = vmatprep.subr.mxu0 0.0
        %3974 = vmatpush1.xpose.msra.mxu0 0.0
        %3975 = vmatprep.subr.mxu0 0.0
        %3976 = vmatpush1.xpose.msra.mxu0 0.0
        %3977 = vmatprep.subr.mxu0 0.0
        %3978 = vmatpush1.xpose.msra.mxu0 0.0
        %3979 = vmatprep.subr.mxu0 0.0
        %3980 = vmatpush1.xpose.msra.mxu0 0.0
        %3981 = vmatprep.subr.mxu0 0.0
        %3982 = vmatpush1.xpose.msra.mxu0 0.0
        %3983 = vmatprep.subr.mxu0 0.0
        %3984 = vmatpush1.xpose.msra.mxu0 0.0
        %3985 = vmatprep.subr.mxu0 0.0
        %3986 = vmatpush1.xpose.msra.mxu0 0.0
        %3987 = vmatprep.subr.mxu0 0.0
        %3988 = vmatpush1.xpose.msra.mxu0 0.0
        %3989 = vmatprep.subr.mxu0 0.0
        %3990 = vmatpush1.xpose.msra.mxu0 0.0
        %3991 = vmatprep.subr.mxu0 0.0
        %3992 = vmatpush1.xpose.msra.mxu0 0.0
        %3993 = vmatprep.subr.mxu0 0.0
        %3994 = vmatpush1.xpose.msra.mxu0 0.0
        %3995 = vmatprep.subr.mxu0 0.0
        %3996 = vmatpush1.xpose.msra.mxu0 0.0
        %3997 = vmatprep.subr.mxu0 0.0
        %3998 = vmatpush1.xpose.msra.mxu0 0.0
        %3999 = vmatprep.subr.mxu0 0.0
        %4000 = vmatpush1.xpose.msra.mxu0 0.0
        %4001 = vmatprep.subr.mxu0 0.0
        %4002 = vmatpush1.xpose.msra.mxu0 0.0
        %4003 = vmatprep.subr.mxu0 0.0
        %4004 = vmatpush1.xpose.msra.mxu0 0.0
        %4005 = vmatprep.subr.mxu0 0.0
        %4006 = vmatpush1.xpose.msra.mxu0 0.0
        %4007 = vmatprep.subr.mxu0 0.0
        %4008 = vmatpush1.xpose.msra.mxu0 0.0
        %4009 = vmatprep.subr.mxu0 0.0
        %4010 = vmatpush1.xpose.msra.mxu0 0.0
        %4011 = vmatprep.subr.mxu0 0.0
        %4012 = vmatpush1.xpose.msra.mxu0 0.0
        %4013 = vmatprep.subr.mxu0 0.0
        %4014 = vmatpush1.xpose.msra.mxu0 0.0
        %4015 = vmatprep.subr.mxu0 0.0
        %4016 = vmatpush1.xpose.msra.mxu0 0.0
        %4017 = vmatprep.subr.mxu0 0.0
        %4018 = vmatpush1.xpose.msra.mxu0 0.0
        %4019 = vmatprep.subr.mxu0 0.0
        %4020 = vmatpush1.xpose.msra.mxu0 0.0
        %4021 = vmatprep.subr.mxu0 0.0
        %4022 = vmatpush1.xpose.msra.mxu0 0.0
        %4023 = vmatprep.mubr.f32.mxu0 0.0
        %4024 = vmatmul.mubr.f32.gmra.mrb[0].mxu0 %v3951
        %v4025 = vpop.f32.mrb[0].mxu0
        %v4026 = vadd.f32 %v508, %v4025
        %v4027 = vpop.f32.mrb[0].mxu0
        %4028 = vmatprep.mubr.f32.mxu0 0.0
        %4029 = vmatmul.mubr.f32.gmra.mrb[0].mxu0 %v3953
        %v4030 = vpop.f32.mrb[0].mxu0
        %v4031 = vadd.f32 %v509, %v4030
        %v4032 = vpop.f32.mrb[0].mxu0
        %4033 = vdwg.mxu0
        %4034 = vrot.lane.b32.xlu0 %v460, 112
        %v4035 = vpop.permute.xlu0 %4034
        %4036 = vrot.lane.b32.xlu0 %v465, 112
        %v4037 = vpop.permute.xlu0 %4036
        %4038 = vrot.lane.b32.xlu0 %v460, 80
        %v4039 = vpop.permute.xlu0 %4038
        %4040 = vrot.lane.b32.xlu0 %v465, 80
        %v4041 = vpop.permute.xlu0 %4040
        %v4042 = vsel %vm532, %v4035, 0
        %v4044 = vsel %vm532, %v4037, 0
        %v4046 = vsel %vm532, %v4039, 0
        %v4048 = vsel %vm532, %v4041, 0
        %4050 = vmatprep.subr.mxu0 0.0
        %4051 = vmatpush1.xpose.msra.mxu0 %v4046
        %4052 = vmatprep.subr.mxu0 0.0
        %4053 = vmatpush1.xpose.msra.mxu0 %v4048
        %4054 = vmatprep.subr.mxu0 0.0
        %4055 = vmatpush1.xpose.msra.mxu0 0.0
        %4056 = vmatprep.subr.mxu0 0.0
        %4057 = vmatpush1.xpose.msra.mxu0 0.0
        %4058 = vmatprep.subr.mxu0 0.0
        %4059 = vmatpush1.xpose.msra.mxu0 0.0
        %4060 = vmatprep.subr.mxu0 0.0
        %4061 = vmatpush1.xpose.msra.mxu0 0.0
        %4062 = vmatprep.subr.mxu0 0.0
        %4063 = vmatpush1.xpose.msra.mxu0 0.0
        %4064 = vmatprep.subr.mxu0 0.0
        %4065 = vmatpush1.xpose.msra.mxu0 0.0
        %4066 = vmatprep.subr.mxu0 0.0
        %4067 = vmatpush1.xpose.msra.mxu0 0.0
        %4068 = vmatprep.subr.mxu0 0.0
        %4069 = vmatpush1.xpose.msra.mxu0 0.0
        %4070 = vmatprep.subr.mxu0 0.0
        %4071 = vmatpush1.xpose.msra.mxu0 0.0
        %4072 = vmatprep.subr.mxu0 0.0
        %4073 = vmatpush1.xpose.msra.mxu0 0.0
        %4074 = vmatprep.subr.mxu0 0.0
        %4075 = vmatpush1.xpose.msra.mxu0 0.0
        %4076 = vmatprep.subr.mxu0 0.0
        %4077 = vmatpush1.xpose.msra.mxu0 0.0
        %4078 = vmatprep.subr.mxu0 0.0
        %4079 = vmatpush1.xpose.msra.mxu0 0.0
        %4080 = vmatprep.subr.mxu0 0.0
        %4081 = vmatpush1.xpose.msra.mxu0 0.0
        %4082 = vmatprep.subr.mxu0 0.0
        %4083 = vmatpush1.xpose.msra.mxu0 0.0
        %4084 = vmatprep.subr.mxu0 0.0
        %4085 = vmatpush1.xpose.msra.mxu0 0.0
        %4086 = vmatprep.subr.mxu0 0.0
        %4087 = vmatpush1.xpose.msra.mxu0 0.0
        %4088 = vmatprep.subr.mxu0 0.0
        %4089 = vmatpush1.xpose.msra.mxu0 0.0
        %4090 = vmatprep.subr.mxu0 0.0
        %4091 = vmatpush1.xpose.msra.mxu0 0.0
        %4092 = vmatprep.subr.mxu0 0.0
        %4093 = vmatpush1.xpose.msra.mxu0 0.0
        %4094 = vmatprep.subr.mxu0 0.0
        %4095 = vmatpush1.xpose.msra.mxu0 0.0
        %4096 = vmatprep.subr.mxu0 0.0
        %4097 = vmatpush1.xpose.msra.mxu0 0.0
        %4098 = vmatprep.subr.mxu0 0.0
        %4099 = vmatpush1.xpose.msra.mxu0 0.0
        %4100 = vmatprep.subr.mxu0 0.0
        %4101 = vmatpush1.xpose.msra.mxu0 0.0
        %4102 = vmatprep.subr.mxu0 0.0
        %4103 = vmatpush1.xpose.msra.mxu0 0.0
        %4104 = vmatprep.subr.mxu0 0.0
        %4105 = vmatpush1.xpose.msra.mxu0 0.0
        %4106 = vmatprep.subr.mxu0 0.0
        %4107 = vmatpush1.xpose.msra.mxu0 0.0
        %4108 = vmatprep.subr.mxu0 0.0
        %4109 = vmatpush1.xpose.msra.mxu0 0.0
        %4110 = vmatprep.subr.mxu0 0.0
        %4111 = vmatpush1.xpose.msra.mxu0 0.0
        %4112 = vmatprep.subr.mxu0 0.0
        %4113 = vmatpush1.xpose.msra.mxu0 0.0
        %4114 = vmatprep.mubr.f32.mxu0 0.0
        %4115 = vmatmul.mubr.f32.gmra.mrb[0].mxu0 %v4042
        %v4116 = vpop.f32.mrb[0].mxu0
        %v4117 = vadd.f32 %v508, %v4116
        %v4118 = vpop.f32.mrb[0].mxu0
        %4119 = vmatprep.mubr.f32.mxu0 0.0
        %4120 = vmatmul.mubr.f32.gmra.mrb[0].mxu0 %v4044
        %v4121 = vpop.f32.mrb[0].mxu0
        %v4122 = vadd.f32 %v509, %v4121
        %v4123 = vpop.f32.mrb[0].mxu0
        %4124 = vdwg.mxu0
        %4125 = vrot.lane.b32.xlu0 %v470, 112
        %v4126 = vpop.permute.xlu0 %4125
        %4127 = vrot.lane.b32.xlu0 %v475, 112
        %v4128 = vpop.permute.xlu0 %4127
        %4129 = vrot.lane.b32.xlu0 %v470, 80
        %v4130 = vpop.permute.xlu0 %4129
        %4131 = vrot.lane.b32.xlu0 %v475, 80
        %v4132 = vpop.permute.xlu0 %4131
        %v4133 = vsel %vm532, %v4126, 0
        %v4135 = vsel %vm532, %v4128, 0
        %v4137 = vsel %vm532, %v4130, 0
        %v4139 = vsel %vm532, %v4132, 0
        %4141 = vmatprep.subr.mxu0 0.0
        %4142 = vmatpush1.xpose.msra.mxu0 %v4137
        %4143 = vmatprep.subr.mxu0 0.0
        %4144 = vmatpush1.xpose.msra.mxu0 %v4139
        %4145 = vmatprep.subr.mxu0 0.0
        %4146 = vmatpush1.xpose.msra.mxu0 0.0
        %4147 = vmatprep.subr.mxu0 0.0
        %4148 = vmatpush1.xpose.msra.mxu0 0.0
        %4149 = vmatprep.subr.mxu0 0.0
        %4150 = vmatpush1.xpose.msra.mxu0 0.0
        %4151 = vmatprep.subr.mxu0 0.0
        %4152 = vmatpush1.xpose.msra.mxu0 0.0
        %4153 = vmatprep.subr.mxu0 0.0
        %4154 = vmatpush1.xpose.msra.mxu0 0.0
        %4155 = vmatprep.subr.mxu0 0.0
        %4156 = vmatpush1.xpose.msra.mxu0 0.0
        %4157 = vmatprep.subr.mxu0 0.0
        %4158 = vmatpush1.xpose.msra.mxu0 0.0
        %4159 = vmatprep.subr.mxu0 0.0
        %4160 = vmatpush1.xpose.msra.mxu0 0.0
        %4161 = vmatprep.subr.mxu0 0.0
        %4162 = vmatpush1.xpose.msra.mxu0 0.0
        %4163 = vmatprep.subr.mxu0 0.0
        %4164 = vmatpush1.xpose.msra.mxu0 0.0
        %4165 = vmatprep.subr.mxu0 0.0
        %4166 = vmatpush1.xpose.msra.mxu0 0.0
        %4167 = vmatprep.subr.mxu0 0.0
        %4168 = vmatpush1.xpose.msra.mxu0 0.0
        %4169 = vmatprep.subr.mxu0 0.0
        %4170 = vmatpush1.xpose.msra.mxu0 0.0
        %4171 = vmatprep.subr.mxu0 0.0
        %4172 = vmatpush1.xpose.msra.mxu0 0.0
        %4173 = vmatprep.subr.mxu0 0.0
        %4174 = vmatpush1.xpose.msra.mxu0 0.0
        %4175 = vmatprep.subr.mxu0 0.0
        %4176 = vmatpush1.xpose.msra.mxu0 0.0
        %4177 = vmatprep.subr.mxu0 0.0
        %4178 = vmatpush1.xpose.msra.mxu0 0.0
        %4179 = vmatprep.subr.mxu0 0.0
        %4180 = vmatpush1.xpose.msra.mxu0 0.0
        %4181 = vmatprep.subr.mxu0 0.0
        %4182 = vmatpush1.xpose.msra.mxu0 0.0
        %4183 = vmatprep.subr.mxu0 0.0
        %4184 = vmatpush1.xpose.msra.mxu0 0.0
        %4185 = vmatprep.subr.mxu0 0.0
        %4186 = vmatpush1.xpose.msra.mxu0 0.0
        %4187 = vmatprep.subr.mxu0 0.0
        %4188 = vmatpush1.xpose.msra.mxu0 0.0
        %4189 = vmatprep.subr.mxu0 0.0
        %4190 = vmatpush1.xpose.msra.mxu0 0.0
        %4191 = vmatprep.subr.mxu0 0.0
        %4192 = vmatpush1.xpose.msra.mxu0 0.0
        %4193 = vmatprep.subr.mxu0 0.0
        %4194 = vmatpush1.xpose.msra.mxu0 0.0
        %4195 = vmatprep.subr.mxu0 0.0
        %4196 = vmatpush1.xpose.msra.mxu0 0.0
        %4197 = vmatprep.subr.mxu0 0.0
        %4198 = vmatpush1.xpose.msra.mxu0 0.0
        %4199 = vmatprep.subr.mxu0 0.0
        %4200 = vmatpush1.xpose.msra.mxu0 0.0
        %4201 = vmatprep.subr.mxu0 0.0
        %4202 = vmatpush1.xpose.msra.mxu0 0.0
        %4203 = vmatprep.subr.mxu0 0.0
        %4204 = vmatpush1.xpose.msra.mxu0 0.0
        %4205 = vmatprep.mubr.f32.mxu0 0.0
        %4206 = vmatmul.mubr.f32.gmra.mrb[0].mxu0 %v4133
        %v4207 = vpop.f32.mrb[0].mxu0
        %v4208 = vadd.f32 %v508, %v4207
        %v4209 = vpop.f32.mrb[0].mxu0
        %4210 = vmatprep.mubr.f32.mxu0 0.0
        %4211 = vmatmul.mubr.f32.gmra.mrb[0].mxu0 %v4135
        %v4212 = vpop.f32.mrb[0].mxu0
        %v4213 = vadd.f32 %v509, %v4212
        %v4214 = vpop.f32.mrb[0].mxu0
        %4215 = vdwg.mxu0
        %4216 = vrot.lane.b32.xlu0 %v480, 112
        %v4217 = vpop.permute.xlu0 %4216
        %4218 = vrot.lane.b32.xlu0 %v485, 112
        %v4219 = vpop.permute.xlu0 %4218
        %4220 = vrot.lane.b32.xlu0 %v480, 80
        %v4221 = vpop.permute.xlu0 %4220
        %4222 = vrot.lane.b32.xlu0 %v485, 80
        %v4223 = vpop.permute.xlu0 %4222
        %v4224 = vsel %vm532, %v4217, 0
        %v4226 = vsel %vm532, %v4219, 0
        %v4228 = vsel %vm532, %v4221, 0
        %v4230 = vsel %vm532, %v4223, 0
        %4232 = vmatprep.subr.mxu0 0.0
        %4233 = vmatpush1.xpose.msra.mxu0 %v4228
        %4234 = vmatprep.subr.mxu0 0.0
        %4235 = vmatpush1.xpose.msra.mxu0 %v4230
        %4236 = vmatprep.subr.mxu0 0.0
        %4237 = vmatpush1.xpose.msra.mxu0 0.0
        %4238 = vmatprep.subr.mxu0 0.0
        %4239 = vmatpush1.xpose.msra.mxu0 0.0
        %4240 = vmatprep.subr.mxu0 0.0
        %4241 = vmatpush1.xpose.msra.mxu0 0.0
        %4242 = vmatprep.subr.mxu0 0.0
        %4243 = vmatpush1.xpose.msra.mxu0 0.0
        %4244 = vmatprep.subr.mxu0 0.0
        %4245 = vmatpush1.xpose.msra.mxu0 0.0
        %4246 = vmatprep.subr.mxu0 0.0
        %4247 = vmatpush1.xpose.msra.mxu0 0.0
        %4248 = vmatprep.subr.mxu0 0.0
        %4249 = vmatpush1.xpose.msra.mxu0 0.0
        %4250 = vmatprep.subr.mxu0 0.0
        %4251 = vmatpush1.xpose.msra.mxu0 0.0
        %4252 = vmatprep.subr.mxu0 0.0
        %4253 = vmatpush1.xpose.msra.mxu0 0.0
        %4254 = vmatprep.subr.mxu0 0.0
        %4255 = vmatpush1.xpose.msra.mxu0 0.0
        %4256 = vmatprep.subr.mxu0 0.0
        %4257 = vmatpush1.xpose.msra.mxu0 0.0
        %4258 = vmatprep.subr.mxu0 0.0
        %4259 = vmatpush1.xpose.msra.mxu0 0.0
        %4260 = vmatprep.subr.mxu0 0.0
        %4261 = vmatpush1.xpose.msra.mxu0 0.0
        %4262 = vmatprep.subr.mxu0 0.0
        %4263 = vmatpush1.xpose.msra.mxu0 0.0
        %4264 = vmatprep.subr.mxu0 0.0
        %4265 = vmatpush1.xpose.msra.mxu0 0.0
        %4266 = vmatprep.subr.mxu0 0.0
        %4267 = vmatpush1.xpose.msra.mxu0 0.0
        %4268 = vmatprep.subr.mxu0 0.0
        %4269 = vmatpush1.xpose.msra.mxu0 0.0
        %4270 = vmatprep.subr.mxu0 0.0
        %4271 = vmatpush1.xpose.msra.mxu0 0.0
        %4272 = vmatprep.subr.mxu0 0.0
        %4273 = vmatpush1.xpose.msra.mxu0 0.0
        %4274 = vmatprep.subr.mxu0 0.0
        %4275 = vmatpush1.xpose.msra.mxu0 0.0
        %4276 = vmatprep.subr.mxu0 0.0
        %4277 = vmatpush1.xpose.msra.mxu0 0.0
        %4278 = vmatprep.subr.mxu0 0.0
        %4279 = vmatpush1.xpose.msra.mxu0 0.0
        %4280 = vmatprep.subr.mxu0 0.0
        %4281 = vmatpush1.xpose.msra.mxu0 0.0
        %4282 = vmatprep.subr.mxu0 0.0
        %4283 = vmatpush1.xpose.msra.mxu0 0.0
        %4284 = vmatprep.subr.mxu0 0.0
        %4285 = vmatpush1.xpose.msra.mxu0 0.0
        %4286 = vmatprep.subr.mxu0 0.0
        %4287 = vmatpush1.xpose.msra.mxu0 0.0
        %4288 = vmatprep.subr.mxu0 0.0
        %4289 = vmatpush1.xpose.msra.mxu0 0.0
        %4290 = vmatprep.subr.mxu0 0.0
        %4291 = vmatpush1.xpose.msra.mxu0 0.0
        %4292 = vmatprep.subr.mxu0 0.0
        %4293 = vmatpush1.xpose.msra.mxu0 0.0
        %4294 = vmatprep.subr.mxu0 0.0
        %4295 = vmatpush1.xpose.msra.mxu0 0.0
        %4296 = vmatprep.mubr.f32.mxu0 0.0
        %4297 = vmatmul.mubr.f32.gmra.mrb[0].mxu0 %v4224
        %v4298 = vpop.f32.mrb[0].mxu0
        %v4299 = vadd.f32 %v508, %v4298
        %v4300 = vpop.f32.mrb[0].mxu0
        %4301 = vmatprep.mubr.f32.mxu0 0.0
        %4302 = vmatmul.mubr.f32.gmra.mrb[0].mxu0 %v4226
        %v4303 = vpop.f32.mrb[0].mxu0
        %v4304 = vadd.f32 %v509, %v4303
        %v4305 = vpop.f32.mrb[0].mxu0
        %4306 = vdwg.mxu0
        %4307 = vrot.lane.b32.xlu0 %v490, 112
        %v4308 = vpop.permute.xlu0 %4307
        %4309 = vrot.lane.b32.xlu0 %v495, 112
        %v4310 = vpop.permute.xlu0 %4309
        %4311 = vrot.lane.b32.xlu0 %v490, 80
        %v4312 = vpop.permute.xlu0 %4311
        %4313 = vrot.lane.b32.xlu0 %v495, 80
        %v4314 = vpop.permute.xlu0 %4313
        %v4315 = vsel %vm532, %v4308, 0
        %v4317 = vsel %vm532, %v4310, 0
        %v4319 = vsel %vm532, %v4312, 0
        %v4321 = vsel %vm532, %v4314, 0
        %4323 = vmatprep.subr.mxu0 0.0
        %4324 = vmatpush1.xpose.msra.mxu0 %v4319
        %4325 = vmatprep.subr.mxu0 0.0
        %4326 = vmatpush1.xpose.msra.mxu0 %v4321
        %4327 = vmatprep.subr.mxu0 0.0
        %4328 = vmatpush1.xpose.msra.mxu0 0.0
        %4329 = vmatprep.subr.mxu0 0.0
        %4330 = vmatpush1.xpose.msra.mxu0 0.0
        %4331 = vmatprep.subr.mxu0 0.0
        %4332 = vmatpush1.xpose.msra.mxu0 0.0
        %4333 = vmatprep.subr.mxu0 0.0
        %4334 = vmatpush1.xpose.msra.mxu0 0.0
        %4335 = vmatprep.subr.mxu0 0.0
        %4336 = vmatpush1.xpose.msra.mxu0 0.0
        %4337 = vmatprep.subr.mxu0 0.0
        %4338 = vmatpush1.xpose.msra.mxu0 0.0
        %4339 = vmatprep.subr.mxu0 0.0
        %4340 = vmatpush1.xpose.msra.mxu0 0.0
        %4341 = vmatprep.subr.mxu0 0.0
        %4342 = vmatpush1.xpose.msra.mxu0 0.0
        %4343 = vmatprep.subr.mxu0 0.0
        %4344 = vmatpush1.xpose.msra.mxu0 0.0
        %4345 = vmatprep.subr.mxu0 0.0
        %4346 = vmatpush1.xpose.msra.mxu0 0.0
        %4347 = vmatprep.subr.mxu0 0.0
        %4348 = vmatpush1.xpose.msra.mxu0 0.0
        %4349 = vmatprep.subr.mxu0 0.0
        %4350 = vmatpush1.xpose.msra.mxu0 0.0
        %4351 = vmatprep.subr.mxu0 0.0
        %4352 = vmatpush1.xpose.msra.mxu0 0.0
        %4353 = vmatprep.subr.mxu0 0.0
        %4354 = vmatpush1.xpose.msra.mxu0 0.0
        %4355 = vmatprep.subr.mxu0 0.0
        %4356 = vmatpush1.xpose.msra.mxu0 0.0
        %4357 = vmatprep.subr.mxu0 0.0
        %4358 = vmatpush1.xpose.msra.mxu0 0.0
        %4359 = vmatprep.subr.mxu0 0.0
        %4360 = vmatpush1.xpose.msra.mxu0 0.0
        %4361 = vmatprep.subr.mxu0 0.0
        %4362 = vmatpush1.xpose.msra.mxu0 0.0
        %4363 = vmatprep.subr.mxu0 0.0
        %4364 = vmatpush1.xpose.msra.mxu0 0.0
        %4365 = vmatprep.subr.mxu0 0.0
        %4366 = vmatpush1.xpose.msra.mxu0 0.0
        %4367 = vmatprep.subr.mxu0 0.0
        %4368 = vmatpush1.xpose.msra.mxu0 0.0
        %4369 = vmatprep.subr.mxu0 0.0
        %4370 = vmatpush1.xpose.msra.mxu0 0.0
        %4371 = vmatprep.subr.mxu0 0.0
        %4372 = vmatpush1.xpose.msra.mxu0 0.0
        %4373 = vmatprep.subr.mxu0 0.0
        %4374 = vmatpush1.xpose.msra.mxu0 0.0
        %4375 = vmatprep.subr.mxu0 0.0
        %4376 = vmatpush1.xpose.msra.mxu0 0.0
        %4377 = vmatprep.subr.mxu0 0.0
        %4378 = vmatpush1.xpose.msra.mxu0 0.0
        %4379 = vmatprep.subr.mxu0 0.0
        %4380 = vmatpush1.xpose.msra.mxu0 0.0
        %4381 = vmatprep.subr.mxu0 0.0
        %4382 = vmatpush1.xpose.msra.mxu0 0.0
        %4383 = vmatprep.subr.mxu0 0.0
        %4384 = vmatpush1.xpose.msra.mxu0 0.0
        %4385 = vmatprep.subr.mxu0 0.0
        %4386 = vmatpush1.xpose.msra.mxu0 0.0
        %4387 = vmatprep.mubr.f32.mxu0 0.0
        %4388 = vmatmul.mubr.f32.gmra.mrb[0].mxu0 %v4315
        %v4389 = vpop.f32.mrb[0].mxu0
        %v4390 = vadd.f32 %v508, %v4389
        %v4391 = vpop.f32.mrb[0].mxu0
        %4392 = vmatprep.mubr.f32.mxu0 0.0
        %4393 = vmatmul.mubr.f32.gmra.mrb[0].mxu0 %v4317
        %v4394 = vpop.f32.mrb[0].mxu0
        %v4395 = vadd.f32 %v509, %v4394
        %v4396 = vpop.f32.mrb[0].mxu0
        %4397 = vdwg.mxu0
        %4398 = vrot.lane.b32.xlu0 %v500, 112
        %v4399 = vpop.permute.xlu0 %4398
        %4400 = vrot.lane.b32.xlu0 %v505, 112
        %v4401 = vpop.permute.xlu0 %4400
        %4402 = vrot.lane.b32.xlu0 %v500, 80
        %v4403 = vpop.permute.xlu0 %4402
        %4404 = vrot.lane.b32.xlu0 %v505, 80
        %v4405 = vpop.permute.xlu0 %4404
        %v4406 = vsel %vm532, %v4399, 0
        %v4408 = vsel %vm532, %v4401, 0
        %v4410 = vsel %vm532, %v4403, 0
        %v4412 = vsel %vm532, %v4405, 0
        %4414 = vmatprep.subr.mxu0 0.0
        %4415 = vmatpush1.xpose.msra.mxu0 %v4410
        %4416 = vmatprep.subr.mxu0 0.0
        %4417 = vmatpush1.xpose.msra.mxu0 %v4412
        %4418 = vmatprep.subr.mxu0 0.0
        %4419 = vmatpush1.xpose.msra.mxu0 0.0
        %4420 = vmatprep.subr.mxu0 0.0
        %4421 = vmatpush1.xpose.msra.mxu0 0.0
        %4422 = vmatprep.subr.mxu0 0.0
        %4423 = vmatpush1.xpose.msra.mxu0 0.0
        %4424 = vmatprep.subr.mxu0 0.0
        %4425 = vmatpush1.xpose.msra.mxu0 0.0
        %4426 = vmatprep.subr.mxu0 0.0
        %4427 = vmatpush1.xpose.msra.mxu0 0.0
        %4428 = vmatprep.subr.mxu0 0.0
        %4429 = vmatpush1.xpose.msra.mxu0 0.0
        %4430 = vmatprep.subr.mxu0 0.0
        %4431 = vmatpush1.xpose.msra.mxu0 0.0
        %4432 = vmatprep.subr.mxu0 0.0
        %4433 = vmatpush1.xpose.msra.mxu0 0.0
        %4434 = vmatprep.subr.mxu0 0.0
        %4435 = vmatpush1.xpose.msra.mxu0 0.0
        %4436 = vmatprep.subr.mxu0 0.0
        %4437 = vmatpush1.xpose.msra.mxu0 0.0
        %4438 = vmatprep.subr.mxu0 0.0
        %4439 = vmatpush1.xpose.msra.mxu0 0.0
        %4440 = vmatprep.subr.mxu0 0.0
        %4441 = vmatpush1.xpose.msra.mxu0 0.0
        %4442 = vmatprep.subr.mxu0 0.0
        %4443 = vmatpush1.xpose.msra.mxu0 0.0
        %4444 = vmatprep.subr.mxu0 0.0
        %4445 = vmatpush1.xpose.msra.mxu0 0.0
        %4446 = vmatprep.subr.mxu0 0.0
        %4447 = vmatpush1.xpose.msra.mxu0 0.0
        %4448 = vmatprep.subr.mxu0 0.0
        %4449 = vmatpush1.xpose.msra.mxu0 0.0
        %4450 = vmatprep.subr.mxu0 0.0
        %4451 = vmatpush1.xpose.msra.mxu0 0.0
        %4452 = vmatprep.subr.mxu0 0.0
        %4453 = vmatpush1.xpose.msra.mxu0 0.0
        %4454 = vmatprep.subr.mxu0 0.0
        %4455 = vmatpush1.xpose.msra.mxu0 0.0
        %4456 = vmatprep.subr.mxu0 0.0
        %4457 = vmatpush1.xpose.msra.mxu0 0.0
        %4458 = vmatprep.subr.mxu0 0.0
        %4459 = vmatpush1.xpose.msra.mxu0 0.0
        %4460 = vmatprep.subr.mxu0 0.0
        %4461 = vmatpush1.xpose.msra.mxu0 0.0
        %4462 = vmatprep.subr.mxu0 0.0
        %4463 = vmatpush1.xpose.msra.mxu0 0.0
        %4464 = vmatprep.subr.mxu0 0.0
        %4465 = vmatpush1.xpose.msra.mxu0 0.0
        %4466 = vmatprep.subr.mxu0 0.0
        %4467 = vmatpush1.xpose.msra.mxu0 0.0
        %4468 = vmatprep.subr.mxu0 0.0
        %4469 = vmatpush1.xpose.msra.mxu0 0.0
        %4470 = vmatprep.subr.mxu0 0.0
        %4471 = vmatpush1.xpose.msra.mxu0 0.0
        %4472 = vmatprep.subr.mxu0 0.0
        %4473 = vmatpush1.xpose.msra.mxu0 0.0
        %4474 = vmatprep.subr.mxu0 0.0
        %4475 = vmatpush1.xpose.msra.mxu0 0.0
        %4476 = vmatprep.subr.mxu0 0.0
        %4477 = vmatpush1.xpose.msra.mxu0 0.0
        %4478 = vmatprep.mubr.f32.mxu0 0.0
        %4479 = vmatmul.mubr.f32.gmra.mrb[0].mxu0 %v4406
        %v4480 = vpop.f32.mrb[0].mxu0
        %v4481 = vadd.f32 %v508, %v4480
        %v4482 = vpop.f32.mrb[0].mxu0
        %4483 = vmatprep.mubr.f32.mxu0 0.0
        %4484 = vmatmul.mubr.f32.gmra.mrb[0].mxu0 %v4408
        %v4485 = vpop.f32.mrb[0].mxu0
        %v4486 = vadd.f32 %v509, %v4485
        %v4487 = vpop.f32.mrb[0].mxu0
        %4488 = vdwg.mxu0
        %v4489 = vsel %vm1239, %v3844, -inf
        %4490 = vmax.xlane.f32.xlu0 %v4489
        %v4491 = vpop.xlane.xlu0 %4490
        %v4492 = vsel %vm1239, %v3849, -inf
        %4493 = vmax.xlane.f32.xlu0 %v4492
        %v4494 = vpop.xlane.xlu0 %4493
        %v4495 = vsel %vm1239, %v3935, -inf
        %4496 = vmax.xlane.f32.xlu0 %v4495
        %v4497 = vpop.xlane.xlu0 %4496
        %v4498 = vsel %vm1239, %v3940, -inf
        %4499 = vmax.xlane.f32.xlu0 %v4498
        %v4500 = vpop.xlane.xlu0 %4499
        %v4501 = vsel %vm1239, %v4026, -inf
        %4502 = vmax.xlane.f32.xlu0 %v4501
        %v4503 = vpop.xlane.xlu0 %4502
        %v4504 = vsel %vm1239, %v4031, -inf
        %4505 = vmax.xlane.f32.xlu0 %v4504
        %v4506 = vpop.xlane.xlu0 %4505
        %v4507 = vsel %vm1239, %v4117, -inf
        %4508 = vmax.xlane.f32.xlu0 %v4507
        %v4509 = vpop.xlane.xlu0 %4508
        %v4510 = vsel %vm1239, %v4122, -inf
        %4511 = vmax.xlane.f32.xlu0 %v4510
        %v4512 = vpop.xlane.xlu0 %4511
        %v4513 = vsel %vm1239, %v4208, -inf
        %4514 = vmax.xlane.f32.xlu0 %v4513
        %v4515 = vpop.xlane.xlu0 %4514
        %v4516 = vsel %vm1239, %v4213, -inf
        %4517 = vmax.xlane.f32.xlu0 %v4516
        %v4518 = vpop.xlane.xlu0 %4517
        %v4519 = vsel %vm1239, %v4299, -inf
        %4520 = vmax.xlane.f32.xlu0 %v4519
        %v4521 = vpop.xlane.xlu0 %4520
        %v4522 = vsel %vm1239, %v4304, -inf
        %4523 = vmax.xlane.f32.xlu0 %v4522
        %v4524 = vpop.xlane.xlu0 %4523
        %v4525 = vsel %vm1239, %v4390, -inf
        %4526 = vmax.xlane.f32.xlu0 %v4525
        %v4527 = vpop.xlane.xlu0 %4526
        %v4528 = vsel %vm1239, %v4395, -inf
        %4529 = vmax.xlane.f32.xlu0 %v4528
        %v4530 = vpop.xlane.xlu0 %4529
        %v4531 = vsel %vm1239, %v4481, -inf
        %4532 = vmax.xlane.f32.xlu0 %v4531
        %v4533 = vpop.xlane.xlu0 %4532
        %v4534 = vsel %vm1239, %v4486, -inf
        %4535 = vmax.xlane.f32.xlu0 %v4534
        %v4536 = vpop.xlane.xlu0 %4535
        %v4537 = vsub.f32 %v3844, %v4491
        %v4538 = vsub.f32 %v3849, %v4494
        %v4539 = vsub.f32 %v3935, %v4497
        %v4540 = vsub.f32 %v3940, %v4500
        %v4541 = vsub.f32 %v4026, %v4503
        %v4542 = vsub.f32 %v4031, %v4506
        %v4543 = vsub.f32 %v4117, %v4509
        %v4544 = vsub.f32 %v4122, %v4512
        %v4545 = vsub.f32 %v4208, %v4515
        %v4546 = vsub.f32 %v4213, %v4518
        %v4547 = vsub.f32 %v4299, %v4521
        %v4548 = vsub.f32 %v4304, %v4524
        %v4549 = vsub.f32 %v4390, %v4527
        %v4550 = vsub.f32 %v4395, %v4530
        %v4551 = vsub.f32 %v4481, %v4533
        %v4552 = vsub.f32 %v4486, %v4536
        %v4553 = vmul.f32 %v4537, 1.442695
        %v4554 = vpow.pop %v4553
        %v4555 = vmul.f32 %v4538, 1.442695
        %v4556 = vpow.pop %v4555
        %v4557 = vmul.f32 %v4539, 1.442695
        %v4558 = vpow.pop %v4557
        %v4559 = vmul.f32 %v4540, 1.442695
        %v4560 = vpow.pop %v4559
        %v4561 = vmul.f32 %v4541, 1.442695
        %v4562 = vpow.pop %v4561
        %v4563 = vmul.f32 %v4542, 1.442695
        %v4564 = vpow.pop %v4563
        %v4565 = vmul.f32 %v4543, 1.442695
        %v4566 = vpow.pop %v4565
        %v4567 = vmul.f32 %v4544, 1.442695
        %v4568 = vpow.pop %v4567
        %v4569 = vmul.f32 %v4545, 1.442695
        %v4570 = vpow.pop %v4569
        %v4571 = vmul.f32 %v4546, 1.442695
        %v4572 = vpow.pop %v4571
        %v4573 = vmul.f32 %v4547, 1.442695
        %v4574 = vpow.pop %v4573
        %v4575 = vmul.f32 %v4548, 1.442695
        %v4576 = vpow.pop %v4575
        %v4577 = vmul.f32 %v4549, 1.442695
        %v4578 = vpow.pop %v4577
        %v4579 = vmul.f32 %v4550, 1.442695
        %v4580 = vpow.pop %v4579
        %v4581 = vmul.f32 %v4551, 1.442695
        %v4582 = vpow.pop %v4581
        %v4583 = vmul.f32 %v4552, 1.442695
        %v4584 = vpow.pop %v4583
        %v4585 = vsel %vm1239, %v4554, 0.0
        %4586 = vadd.xlane.f32.xlu0 %v4585
        %v4587 = vpop.xlane.xlu0 %4586
        %v4588 = vsel %vm1239, %v4556, 0.0
        %4589 = vadd.xlane.f32.xlu0 %v4588
        %v4590 = vpop.xlane.xlu0 %4589
        %v4591 = vsel %vm1239, %v4558, 0.0
        %4592 = vadd.xlane.f32.xlu0 %v4591
        %v4593 = vpop.xlane.xlu0 %4592
        %v4594 = vsel %vm1239, %v4560, 0.0
        %4595 = vadd.xlane.f32.xlu0 %v4594
        %v4596 = vpop.xlane.xlu0 %4595
        %v4597 = vsel %vm1239, %v4562, 0.0
        %4598 = vadd.xlane.f32.xlu0 %v4597
        %v4599 = vpop.xlane.xlu0 %4598
        %v4600 = vsel %vm1239, %v4564, 0.0
        %4601 = vadd.xlane.f32.xlu0 %v4600
        %v4602 = vpop.xlane.xlu0 %4601
        %v4603 = vsel %vm1239, %v4566, 0.0
        %4604 = vadd.xlane.f32.xlu0 %v4603
        %v4605 = vpop.xlane.xlu0 %4604
        %v4606 = vsel %vm1239, %v4568, 0.0
        %4607 = vadd.xlane.f32.xlu0 %v4606
        %v4608 = vpop.xlane.xlu0 %4607
        %v4609 = vsel %vm1239, %v4570, 0.0
        %4610 = vadd.xlane.f32.xlu0 %v4609
        %v4611 = vpop.xlane.xlu0 %4610
        %v4612 = vsel %vm1239, %v4572, 0.0
        %4613 = vadd.xlane.f32.xlu0 %v4612
        %v4614 = vpop.xlane.xlu0 %4613
        %v4615 = vsel %vm1239, %v4574, 0.0
        %4616 = vadd.xlane.f32.xlu0 %v4615
        %v4617 = vpop.xlane.xlu0 %4616
        %v4618 = vsel %vm1239, %v4576, 0.0
        %4619 = vadd.xlane.f32.xlu0 %v4618
        %v4620 = vpop.xlane.xlu0 %4619
        %v4621 = vsel %vm1239, %v4578, 0.0
        %4622 = vadd.xlane.f32.xlu0 %v4621
        %v4623 = vpop.xlane.xlu0 %4622
        %v4624 = vsel %vm1239, %v4580, 0.0
        %4625 = vadd.xlane.f32.xlu0 %v4624
        %v4626 = vpop.xlane.xlu0 %4625
        %v4627 = vsel %vm1239, %v4582, 0.0
        %4628 = vadd.xlane.f32.xlu0 %v4627
        %v4629 = vpop.xlane.xlu0 %4628
        %v4630 = vsel %vm1239, %v4584, 0.0
        %4631 = vadd.xlane.f32.xlu0 %v4630
        %v4632 = vpop.xlane.xlu0 %4631
        %v4633 = vrcp.pop %v4587
        %v4634 = vrcp.pop %v4590
        %v4635 = vrcp.pop %v4593
        %v4636 = vrcp.pop %v4596
        %v4637 = vrcp.pop %v4599
        %v4638 = vrcp.pop %v4602
        %v4639 = vrcp.pop %v4605
        %v4640 = vrcp.pop %v4608
        %v4641 = vrcp.pop %v4611
        %v4642 = vrcp.pop %v4614
        %v4643 = vrcp.pop %v4617
        %v4644 = vrcp.pop %v4620
        %v4645 = vrcp.pop %v4623
        %v4646 = vrcp.pop %v4626
        %v4647 = vrcp.pop %v4629
        %v4648 = vrcp.pop %v4632
        %v4649 = vmul.f32 %v4554, %v4633
        %v4650 = vmul.f32 %v4556, %v4634
        %v4651 = vmul.f32 %v4558, %v4635
        %v4652 = vmul.f32 %v4560, %v4636
        %v4653 = vmul.f32 %v4562, %v4637
        %v4654 = vmul.f32 %v4564, %v4638
        %v4655 = vmul.f32 %v4566, %v4639
        %v4656 = vmul.f32 %v4568, %v4640
        %v4657 = vmul.f32 %v4570, %v4641
        %v4658 = vmul.f32 %v4572, %v4642
        %v4659 = vmul.f32 %v4574, %v4643
        %v4660 = vmul.f32 %v4576, %v4644
        %v4661 = vmul.f32 %v4578, %v4645
        %v4662 = vmul.f32 %v4580, %v4646
        %v4663 = vmul.f32 %v4582, %v4647
        %v4664 = vmul.f32 %v4584, %v4648
        %s4665 = scalar_lea.vmem %s283, 32 [#allocation9]
        %4666 = vst.msk [vmem:[%s4665] sm:$0xff] %vm1239, %v4649
        %4667 = vst.msk [vmem:[%s4665 + $0x8] sm:$0xff] %vm1239, %v4650
        %4668 = vst.msk [vmem:[%s4665 + $0x40] sm:$0xff] %vm1239, %v4651
        %4669 = vst.msk [vmem:[%s4665 + $0x48] sm:$0xff] %vm1239, %v4652
        %4670 = vst.msk [vmem:[%s4665 + $0x80] sm:$0xff] %vm1239, %v4653
        %4671 = vst.msk [vmem:[%s4665 + $0x88] sm:$0xff] %vm1239, %v4654
        %4672 = vst.msk [vmem:[%s4665 + $0xc0] sm:$0xff] %vm1239, %v4655
        %4673 = vst.msk [vmem:[%s4665 + $0xc8] sm:$0xff] %vm1239, %v4656
        %4674 = vst.msk [vmem:[%s4665 + $0x100] sm:$0xff] %vm1239, %v4657
        %4675 = vst.msk [vmem:[%s4665 + $0x108] sm:$0xff] %vm1239, %v4658
        %4676 = vst.msk [vmem:[%s4665 + $0x140] sm:$0xff] %vm1239, %v4659
        %4677 = vst.msk [vmem:[%s4665 + $0x148] sm:$0xff] %vm1239, %v4660
        %4678 = vst.msk [vmem:[%s4665 + $0x180] sm:$0xff] %vm1239, %v4661
        %4679 = vst.msk [vmem:[%s4665 + $0x188] sm:$0xff] %vm1239, %v4662
        %4680 = vst.msk [vmem:[%s4665 + $0x1c0] sm:$0xff] %vm1239, %v4663
        %4681 = vst.msk [vmem:[%s4665 + $0x1c8] sm:$0xff] %vm1239, %v4664
        %4682 = vrot.lane.b32.xlu0 %v510, 48
        %v4683 = vpop.permute.xlu0 %4682
        %4684 = vrot.lane.b32.xlu0 %v511, 48
        %v4685 = vpop.permute.xlu0 %4684
        %v4689 = vsel %vm1239, %v4649, 0
        %v4692 = vsel %vm1239, %v4650, 0
        %4694 = vmatprep.subr.mxu0 0.0
        %4695 = vmatpush1.msra.mxu0 %v4683
        %4696 = vmatprep.subr.mxu0 0.0
        %4697 = vmatpush1.msra.mxu0 %v4685
        %4698 = vmatprep.subr.mxu0 0.0
        %4699 = vmatpush1.msra.mxu0 0.0
        %4700 = vmatprep.subr.mxu0 0.0
        %4701 = vmatpush1.msra.mxu0 0.0
        %4702 = vmatprep.subr.mxu0 0.0
        %4703 = vmatpush1.msra.mxu0 0.0
        %4704 = vmatprep.subr.mxu0 0.0
        %4705 = vmatpush1.msra.mxu0 0.0
        %4706 = vmatprep.subr.mxu0 0.0
        %4707 = vmatpush1.msra.mxu0 0.0
        %4708 = vmatprep.subr.mxu0 0.0
        %4709 = vmatpush1.msra.mxu0 0.0
        %4710 = vmatprep.subr.mxu0 0.0
        %4711 = vmatpush1.msra.mxu0 0.0
        %4712 = vmatprep.subr.mxu0 0.0
        %4713 = vmatpush1.msra.mxu0 0.0
        %4714 = vmatprep.subr.mxu0 0.0
        %4715 = vmatpush1.msra.mxu0 0.0
        %4716 = vmatprep.subr.mxu0 0.0
        %4717 = vmatpush1.msra.mxu0 0.0
        %4718 = vmatprep.subr.mxu0 0.0
        %4719 = vmatpush1.msra.mxu0 0.0
        %4720 = vmatprep.subr.mxu0 0.0
        %4721 = vmatpush1.msra.mxu0 0.0
        %4722 = vmatprep.subr.mxu0 0.0
        %4723 = vmatpush1.msra.mxu0 0.0
        %4724 = vmatprep.subr.mxu0 0.0
        %4725 = vmatpush1.msra.mxu0 0.0
        %4726 = vmatprep.subr.mxu0 0.0
        %4727 = vmatpush1.msra.mxu0 0.0
        %4728 = vmatprep.subr.mxu0 0.0
        %4729 = vmatpush1.msra.mxu0 0.0
        %4730 = vmatprep.subr.mxu0 0.0
        %4731 = vmatpush1.msra.mxu0 0.0
        %4732 = vmatprep.subr.mxu0 0.0
        %4733 = vmatpush1.msra.mxu0 0.0
        %4734 = vmatprep.subr.mxu0 0.0
        %4735 = vmatpush1.msra.mxu0 0.0
        %4736 = vmatprep.subr.mxu0 0.0
        %4737 = vmatpush1.msra.mxu0 0.0
        %4738 = vmatprep.subr.mxu0 0.0
        %4739 = vmatpush1.msra.mxu0 0.0
        %4740 = vmatprep.subr.mxu0 0.0
        %4741 = vmatpush1.msra.mxu0 0.0
        %4742 = vmatprep.subr.mxu0 0.0
        %4743 = vmatpush1.msra.mxu0 0.0
        %4744 = vmatprep.subr.mxu0 0.0
        %4745 = vmatpush1.msra.mxu0 0.0
        %4746 = vmatprep.subr.mxu0 0.0
        %4747 = vmatpush1.msra.mxu0 0.0
        %4748 = vmatprep.subr.mxu0 0.0
        %4749 = vmatpush1.msra.mxu0 0.0
        %4750 = vmatprep.subr.mxu0 0.0
        %4751 = vmatpush1.msra.mxu0 0.0
        %4752 = vmatprep.subr.mxu0 0.0
        %4753 = vmatpush1.msra.mxu0 0.0
        %4754 = vmatprep.subr.mxu0 0.0
        %4755 = vmatpush1.msra.mxu0 0.0
        %4756 = vmatprep.subr.mxu0 0.0
        %4757 = vmatpush1.msra.mxu0 0.0
        %4758 = vmatprep.mubr.f32.mxu0 0.0
        %4759 = vmatmul.mubr.f32.gmra.mrb[0].mxu0 %v4689
        %v4760 = vpop.f32.mrb[0].mxu0
        %v4761 = vadd.f32 0.0, %v4760
        %v4762 = vpop.f32.mrb[0].mxu0
        %4763 = vmatprep.mubr.f32.mxu0 0.0
        %4764 = vmatmul.mubr.f32.gmra.mrb[0].mxu0 %v4692
        %v4765 = vpop.f32.mrb[0].mxu0
        %v4766 = vadd.f32 0.0, %v4765
        %v4767 = vpop.f32.mrb[0].mxu0
        %4768 = vdwg.mxu0
        %4769 = vrot.lane.b32.xlu0 %v512, 48
        %v4770 = vpop.permute.xlu0 %4769
        %4771 = vrot.lane.b32.xlu0 %v513, 48
        %v4772 = vpop.permute.xlu0 %4771
        %v4776 = vsel %vm1239, %v4651, 0
        %v4779 = vsel %vm1239, %v4652, 0
        %4781 = vmatprep.subr.mxu0 0.0
        %4782 = vmatpush1.msra.mxu0 %v4770
        %4783 = vmatprep.subr.mxu0 0.0
        %4784 = vmatpush1.msra.mxu0 %v4772
        %4785 = vmatprep.subr.mxu0 0.0
        %4786 = vmatpush1.msra.mxu0 0.0
        %4787 = vmatprep.subr.mxu0 0.0
        %4788 = vmatpush1.msra.mxu0 0.0
        %4789 = vmatprep.subr.mxu0 0.0
        %4790 = vmatpush1.msra.mxu0 0.0
        %4791 = vmatprep.subr.mxu0 0.0
        %4792 = vmatpush1.msra.mxu0 0.0
        %4793 = vmatprep.subr.mxu0 0.0
        %4794 = vmatpush1.msra.mxu0 0.0
        %4795 = vmatprep.subr.mxu0 0.0
        %4796 = vmatpush1.msra.mxu0 0.0
        %4797 = vmatprep.subr.mxu0 0.0
        %4798 = vmatpush1.msra.mxu0 0.0
        %4799 = vmatprep.subr.mxu0 0.0
        %4800 = vmatpush1.msra.mxu0 0.0
        %4801 = vmatprep.subr.mxu0 0.0
        %4802 = vmatpush1.msra.mxu0 0.0
        %4803 = vmatprep.subr.mxu0 0.0
        %4804 = vmatpush1.msra.mxu0 0.0
        %4805 = vmatprep.subr.mxu0 0.0
        %4806 = vmatpush1.msra.mxu0 0.0
        %4807 = vmatprep.subr.mxu0 0.0
        %4808 = vmatpush1.msra.mxu0 0.0
        %4809 = vmatprep.subr.mxu0 0.0
        %4810 = vmatpush1.msra.mxu0 0.0
        %4811 = vmatprep.subr.mxu0 0.0
        %4812 = vmatpush1.msra.mxu0 0.0
        %4813 = vmatprep.subr.mxu0 0.0
        %4814 = vmatpush1.msra.mxu0 0.0
        %4815 = vmatprep.subr.mxu0 0.0
        %4816 = vmatpush1.msra.mxu0 0.0
        %4817 = vmatprep.subr.mxu0 0.0
        %4818 = vmatpush1.msra.mxu0 0.0
        %4819 = vmatprep.subr.mxu0 0.0
        %4820 = vmatpush1.msra.mxu0 0.0
        %4821 = vmatprep.subr.mxu0 0.0
        %4822 = vmatpush1.msra.mxu0 0.0
        %4823 = vmatprep.subr.mxu0 0.0
        %4824 = vmatpush1.msra.mxu0 0.0
        %4825 = vmatprep.subr.mxu0 0.0
        %4826 = vmatpush1.msra.mxu0 0.0
        %4827 = vmatprep.subr.mxu0 0.0
        %4828 = vmatpush1.msra.mxu0 0.0
        %4829 = vmatprep.subr.mxu0 0.0
        %4830 = vmatpush1.msra.mxu0 0.0
        %4831 = vmatprep.subr.mxu0 0.0
        %4832 = vmatpush1.msra.mxu0 0.0
        %4833 = vmatprep.subr.mxu0 0.0
        %4834 = vmatpush1.msra.mxu0 0.0
        %4835 = vmatprep.subr.mxu0 0.0
        %4836 = vmatpush1.msra.mxu0 0.0
        %4837 = vmatprep.subr.mxu0 0.0
        %4838 = vmatpush1.msra.mxu0 0.0
        %4839 = vmatprep.subr.mxu0 0.0
        %4840 = vmatpush1.msra.mxu0 0.0
        %4841 = vmatprep.subr.mxu0 0.0
        %4842 = vmatpush1.msra.mxu0 0.0
        %4843 = vmatprep.subr.mxu0 0.0
        %4844 = vmatpush1.msra.mxu0 0.0
        %4845 = vmatprep.mubr.f32.mxu0 0.0
        %4846 = vmatmul.mubr.f32.gmra.mrb[0].mxu0 %v4776
        %v4847 = vpop.f32.mrb[0].mxu0
        %v4848 = vadd.f32 0.0, %v4847
        %v4849 = vpop.f32.mrb[0].mxu0
        %4850 = vmatprep.mubr.f32.mxu0 0.0
        %4851 = vmatmul.mubr.f32.gmra.mrb[0].mxu0 %v4779
        %v4852 = vpop.f32.mrb[0].mxu0
        %v4853 = vadd.f32 0.0, %v4852
        %v4854 = vpop.f32.mrb[0].mxu0
        %4855 = vdwg.mxu0
        %4856 = vrot.lane.b32.xlu0 %v514, 48
        %v4857 = vpop.permute.xlu0 %4856
        %4858 = vrot.lane.b32.xlu0 %v515, 48
        %v4859 = vpop.permute.xlu0 %4858
        %v4863 = vsel %vm1239, %v4653, 0
        %v4866 = vsel %vm1239, %v4654, 0
        %4868 = vmatprep.subr.mxu0 0.0
        %4869 = vmatpush1.msra.mxu0 %v4857
        %4870 = vmatprep.subr.mxu0 0.0
        %4871 = vmatpush1.msra.mxu0 %v4859
        %4872 = vmatprep.subr.mxu0 0.0
        %4873 = vmatpush1.msra.mxu0 0.0
        %4874 = vmatprep.subr.mxu0 0.0
        %4875 = vmatpush1.msra.mxu0 0.0
        %4876 = vmatprep.subr.mxu0 0.0
        %4877 = vmatpush1.msra.mxu0 0.0
        %4878 = vmatprep.subr.mxu0 0.0
        %4879 = vmatpush1.msra.mxu0 0.0
        %4880 = vmatprep.subr.mxu0 0.0
        %4881 = vmatpush1.msra.mxu0 0.0
        %4882 = vmatprep.subr.mxu0 0.0
        %4883 = vmatpush1.msra.mxu0 0.0
        %4884 = vmatprep.subr.mxu0 0.0
        %4885 = vmatpush1.msra.mxu0 0.0
        %4886 = vmatprep.subr.mxu0 0.0
        %4887 = vmatpush1.msra.mxu0 0.0
        %4888 = vmatprep.subr.mxu0 0.0
        %4889 = vmatpush1.msra.mxu0 0.0
        %4890 = vmatprep.subr.mxu0 0.0
        %4891 = vmatpush1.msra.mxu0 0.0
        %4892 = vmatprep.subr.mxu0 0.0
        %4893 = vmatpush1.msra.mxu0 0.0
        %4894 = vmatprep.subr.mxu0 0.0
        %4895 = vmatpush1.msra.mxu0 0.0
        %4896 = vmatprep.subr.mxu0 0.0
        %4897 = vmatpush1.msra.mxu0 0.0
        %4898 = vmatprep.subr.mxu0 0.0
        %4899 = vmatpush1.msra.mxu0 0.0
        %4900 = vmatprep.subr.mxu0 0.0
        %4901 = vmatpush1.msra.mxu0 0.0
        %4902 = vmatprep.subr.mxu0 0.0
        %4903 = vmatpush1.msra.mxu0 0.0
        %4904 = vmatprep.subr.mxu0 0.0
        %4905 = vmatpush1.msra.mxu0 0.0
        %4906 = vmatprep.subr.mxu0 0.0
        %4907 = vmatpush1.msra.mxu0 0.0
        %4908 = vmatprep.subr.mxu0 0.0
        %4909 = vmatpush1.msra.mxu0 0.0
        %4910 = vmatprep.subr.mxu0 0.0
        %4911 = vmatpush1.msra.mxu0 0.0
        %4912 = vmatprep.subr.mxu0 0.0
        %4913 = vmatpush1.msra.mxu0 0.0
        %4914 = vmatprep.subr.mxu0 0.0
        %4915 = vmatpush1.msra.mxu0 0.0
        %4916 = vmatprep.subr.mxu0 0.0
        %4917 = vmatpush1.msra.mxu0 0.0
        %4918 = vmatprep.subr.mxu0 0.0
        %4919 = vmatpush1.msra.mxu0 0.0
        %4920 = vmatprep.subr.mxu0 0.0
        %4921 = vmatpush1.msra.mxu0 0.0
        %4922 = vmatprep.subr.mxu0 0.0
        %4923 = vmatpush1.msra.mxu0 0.0
        %4924 = vmatprep.subr.mxu0 0.0
        %4925 = vmatpush1.msra.mxu0 0.0
        %4926 = vmatprep.subr.mxu0 0.0
        %4927 = vmatpush1.msra.mxu0 0.0
        %4928 = vmatprep.subr.mxu0 0.0
        %4929 = vmatpush1.msra.mxu0 0.0
        %4930 = vmatprep.subr.mxu0 0.0
        %4931 = vmatpush1.msra.mxu0 0.0
        %4932 = vmatprep.mubr.f32.mxu0 0.0
        %4933 = vmatmul.mubr.f32.gmra.mrb[0].mxu0 %v4863
        %v4934 = vpop.f32.mrb[0].mxu0
        %v4935 = vadd.f32 0.0, %v4934
        %v4936 = vpop.f32.mrb[0].mxu0
        %4937 = vmatprep.mubr.f32.mxu0 0.0
        %4938 = vmatmul.mubr.f32.gmra.mrb[0].mxu0 %v4866
        %v4939 = vpop.f32.mrb[0].mxu0
        %v4940 = vadd.f32 0.0, %v4939
        %v4941 = vpop.f32.mrb[0].mxu0
        %4942 = vdwg.mxu0
        %4943 = vrot.lane.b32.xlu0 %v516, 48
        %v4944 = vpop.permute.xlu0 %4943
        %4945 = vrot.lane.b32.xlu0 %v517, 48
        %v4946 = vpop.permute.xlu0 %4945
        %v4950 = vsel %vm1239, %v4655, 0
        %v4953 = vsel %vm1239, %v4656, 0
        %4955 = vmatprep.subr.mxu0 0.0
        %4956 = vmatpush1.msra.mxu0 %v4944
        %4957 = vmatprep.subr.mxu0 0.0
        %4958 = vmatpush1.msra.mxu0 %v4946
        %4959 = vmatprep.subr.mxu0 0.0
        %4960 = vmatpush1.msra.mxu0 0.0
        %4961 = vmatprep.subr.mxu0 0.0
        %4962 = vmatpush1.msra.mxu0 0.0
        %4963 = vmatprep.subr.mxu0 0.0
        %4964 = vmatpush1.msra.mxu0 0.0
        %4965 = vmatprep.subr.mxu0 0.0
        %4966 = vmatpush1.msra.mxu0 0.0
        %4967 = vmatprep.subr.mxu0 0.0
        %4968 = vmatpush1.msra.mxu0 0.0
        %4969 = vmatprep.subr.mxu0 0.0
        %4970 = vmatpush1.msra.mxu0 0.0
        %4971 = vmatprep.subr.mxu0 0.0
        %4972 = vmatpush1.msra.mxu0 0.0
        %4973 = vmatprep.subr.mxu0 0.0
        %4974 = vmatpush1.msra.mxu0 0.0
        %4975 = vmatprep.subr.mxu0 0.0
        %4976 = vmatpush1.msra.mxu0 0.0
        %4977 = vmatprep.subr.mxu0 0.0
        %4978 = vmatpush1.msra.mxu0 0.0
        %4979 = vmatprep.subr.mxu0 0.0
        %4980 = vmatpush1.msra.mxu0 0.0
        %4981 = vmatprep.subr.mxu0 0.0
        %4982 = vmatpush1.msra.mxu0 0.0
        %4983 = vmatprep.subr.mxu0 0.0
        %4984 = vmatpush1.msra.mxu0 0.0
        %4985 = vmatprep.subr.mxu0 0.0
        %4986 = vmatpush1.msra.mxu0 0.0
        %4987 = vmatprep.subr.mxu0 0.0
        %4988 = vmatpush1.msra.mxu0 0.0
        %4989 = vmatprep.subr.mxu0 0.0
        %4990 = vmatpush1.msra.mxu0 0.0
        %4991 = vmatprep.subr.mxu0 0.0
        %4992 = vmatpush1.msra.mxu0 0.0
        %4993 = vmatprep.subr.mxu0 0.0
        %4994 = vmatpush1.msra.mxu0 0.0
        %4995 = vmatprep.subr.mxu0 0.0
        %4996 = vmatpush1.msra.mxu0 0.0
        %4997 = vmatprep.subr.mxu0 0.0
        %4998 = vmatpush1.msra.mxu0 0.0
        %4999 = vmatprep.subr.mxu0 0.0
        %5000 = vmatpush1.msra.mxu0 0.0
        %5001 = vmatprep.subr.mxu0 0.0
        %5002 = vmatpush1.msra.mxu0 0.0
        %5003 = vmatprep.subr.mxu0 0.0
        %5004 = vmatpush1.msra.mxu0 0.0
        %5005 = vmatprep.subr.mxu0 0.0
        %5006 = vmatpush1.msra.mxu0 0.0
        %5007 = vmatprep.subr.mxu0 0.0
        %5008 = vmatpush1.msra.mxu0 0.0
        %5009 = vmatprep.subr.mxu0 0.0
        %5010 = vmatpush1.msra.mxu0 0.0
        %5011 = vmatprep.subr.mxu0 0.0
        %5012 = vmatpush1.msra.mxu0 0.0
        %5013 = vmatprep.subr.mxu0 0.0
        %5014 = vmatpush1.msra.mxu0 0.0
        %5015 = vmatprep.subr.mxu0 0.0
        %5016 = vmatpush1.msra.mxu0 0.0
        %5017 = vmatprep.subr.mxu0 0.0
        %5018 = vmatpush1.msra.mxu0 0.0
        %5019 = vmatprep.mubr.f32.mxu0 0.0
        %5020 = vmatmul.mubr.f32.gmra.mrb[0].mxu0 %v4950
        %v5021 = vpop.f32.mrb[0].mxu0
        %v5022 = vadd.f32 0.0, %v5021
        %v5023 = vpop.f32.mrb[0].mxu0
        %5024 = vmatprep.mubr.f32.mxu0 0.0
        %5025 = vmatmul.mubr.f32.gmra.mrb[0].mxu0 %v4953
        %v5026 = vpop.f32.mrb[0].mxu0
        %v5027 = vadd.f32 0.0, %v5026
        %v5028 = vpop.f32.mrb[0].mxu0
        %5029 = vdwg.mxu0
        %5030 = vrot.lane.b32.xlu0 %v518, 48
        %v5031 = vpop.permute.xlu0 %5030
        %5032 = vrot.lane.b32.xlu0 %v519, 48
        %v5033 = vpop.permute.xlu0 %5032
        %v5037 = vsel %vm1239, %v4657, 0
        %v5040 = vsel %vm1239, %v4658, 0
        %5042 = vmatprep.subr.mxu0 0.0
        %5043 = vmatpush1.msra.mxu0 %v5031
        %5044 = vmatprep.subr.mxu0 0.0
        %5045 = vmatpush1.msra.mxu0 %v5033
        %5046 = vmatprep.subr.mxu0 0.0
        %5047 = vmatpush1.msra.mxu0 0.0
        %5048 = vmatprep.subr.mxu0 0.0
        %5049 = vmatpush1.msra.mxu0 0.0
        %5050 = vmatprep.subr.mxu0 0.0
        %5051 = vmatpush1.msra.mxu0 0.0
        %5052 = vmatprep.subr.mxu0 0.0
        %5053 = vmatpush1.msra.mxu0 0.0
        %5054 = vmatprep.subr.mxu0 0.0
        %5055 = vmatpush1.msra.mxu0 0.0
        %5056 = vmatprep.subr.mxu0 0.0
        %5057 = vmatpush1.msra.mxu0 0.0
        %5058 = vmatprep.subr.mxu0 0.0
        %5059 = vmatpush1.msra.mxu0 0.0
        %5060 = vmatprep.subr.mxu0 0.0
        %5061 = vmatpush1.msra.mxu0 0.0
        %5062 = vmatprep.subr.mxu0 0.0
        %5063 = vmatpush1.msra.mxu0 0.0
        %5064 = vmatprep.subr.mxu0 0.0
        %5065 = vmatpush1.msra.mxu0 0.0
        %5066 = vmatprep.subr.mxu0 0.0
        %5067 = vmatpush1.msra.mxu0 0.0
        %5068 = vmatprep.subr.mxu0 0.0
        %5069 = vmatpush1.msra.mxu0 0.0
        %5070 = vmatprep.subr.mxu0 0.0
        %5071 = vmatpush1.msra.mxu0 0.0
        %5072 = vmatprep.subr.mxu0 0.0
        %5073 = vmatpush1.msra.mxu0 0.0
        %5074 = vmatprep.subr.mxu0 0.0
        %5075 = vmatpush1.msra.mxu0 0.0
        %5076 = vmatprep.subr.mxu0 0.0
        %5077 = vmatpush1.msra.mxu0 0.0
        %5078 = vmatprep.subr.mxu0 0.0
        %5079 = vmatpush1.msra.mxu0 0.0
        %5080 = vmatprep.subr.mxu0 0.0
        %5081 = vmatpush1.msra.mxu0 0.0
        %5082 = vmatprep.subr.mxu0 0.0
        %5083 = vmatpush1.msra.mxu0 0.0
        %5084 = vmatprep.subr.mxu0 0.0
        %5085 = vmatpush1.msra.mxu0 0.0
        %5086 = vmatprep.subr.mxu0 0.0
        %5087 = vmatpush1.msra.mxu0 0.0
        %5088 = vmatprep.subr.mxu0 0.0
        %5089 = vmatpush1.msra.mxu0 0.0
        %5090 = vmatprep.subr.mxu0 0.0
        %5091 = vmatpush1.msra.mxu0 0.0
        %5092 = vmatprep.subr.mxu0 0.0
        %5093 = vmatpush1.msra.mxu0 0.0
        %5094 = vmatprep.subr.mxu0 0.0
        %5095 = vmatpush1.msra.mxu0 0.0
        %5096 = vmatprep.subr.mxu0 0.0
        %5097 = vmatpush1.msra.mxu0 0.0
        %5098 = vmatprep.subr.mxu0 0.0
        %5099 = vmatpush1.msra.mxu0 0.0
        %5100 = vmatprep.subr.mxu0 0.0
        %5101 = vmatpush1.msra.mxu0 0.0
        %5102 = vmatprep.subr.mxu0 0.0
        %5103 = vmatpush1.msra.mxu0 0.0
        %5104 = vmatprep.subr.mxu0 0.0
        %5105 = vmatpush1.msra.mxu0 0.0
        %5106 = vmatprep.mubr.f32.mxu0 0.0
        %5107 = vmatmul.mubr.f32.gmra.mrb[0].mxu0 %v5037
        %v5108 = vpop.f32.mrb[0].mxu0
        %v5109 = vadd.f32 0.0, %v5108
        %v5110 = vpop.f32.mrb[0].mxu0
        %5111 = vmatprep.mubr.f32.mxu0 0.0
        %5112 = vmatmul.mubr.f32.gmra.mrb[0].mxu0 %v5040
        %v5113 = vpop.f32.mrb[0].mxu0
        %v5114 = vadd.f32 0.0, %v5113
        %v5115 = vpop.f32.mrb[0].mxu0
        %5116 = vdwg.mxu0
        %5117 = vrot.lane.b32.xlu0 %v520, 48
        %v5118 = vpop.permute.xlu0 %5117
        %5119 = vrot.lane.b32.xlu0 %v521, 48
        %v5120 = vpop.permute.xlu0 %5119
        %v5124 = vsel %vm1239, %v4659, 0
        %v5127 = vsel %vm1239, %v4660, 0
        %5129 = vmatprep.subr.mxu0 0.0
        %5130 = vmatpush1.msra.mxu0 %v5118
        %5131 = vmatprep.subr.mxu0 0.0
        %5132 = vmatpush1.msra.mxu0 %v5120
        %5133 = vmatprep.subr.mxu0 0.0
        %5134 = vmatpush1.msra.mxu0 0.0
        %5135 = vmatprep.subr.mxu0 0.0
        %5136 = vmatpush1.msra.mxu0 0.0
        %5137 = vmatprep.subr.mxu0 0.0
        %5138 = vmatpush1.msra.mxu0 0.0
        %5139 = vmatprep.subr.mxu0 0.0
        %5140 = vmatpush1.msra.mxu0 0.0
        %5141 = vmatprep.subr.mxu0 0.0
        %5142 = vmatpush1.msra.mxu0 0.0
        %5143 = vmatprep.subr.mxu0 0.0
        %5144 = vmatpush1.msra.mxu0 0.0
        %5145 = vmatprep.subr.mxu0 0.0
        %5146 = vmatpush1.msra.mxu0 0.0
        %5147 = vmatprep.subr.mxu0 0.0
        %5148 = vmatpush1.msra.mxu0 0.0
        %5149 = vmatprep.subr.mxu0 0.0
        %5150 = vmatpush1.msra.mxu0 0.0
        %5151 = vmatprep.subr.mxu0 0.0
        %5152 = vmatpush1.msra.mxu0 0.0
        %5153 = vmatprep.subr.mxu0 0.0
        %5154 = vmatpush1.msra.mxu0 0.0
        %5155 = vmatprep.subr.mxu0 0.0
        %5156 = vmatpush1.msra.mxu0 0.0
        %5157 = vmatprep.subr.mxu0 0.0
        %5158 = vmatpush1.msra.mxu0 0.0
        %5159 = vmatprep.subr.mxu0 0.0
        %5160 = vmatpush1.msra.mxu0 0.0
        %5161 = vmatprep.subr.mxu0 0.0
        %5162 = vmatpush1.msra.mxu0 0.0
        %5163 = vmatprep.subr.mxu0 0.0
        %5164 = vmatpush1.msra.mxu0 0.0
        %5165 = vmatprep.subr.mxu0 0.0
        %5166 = vmatpush1.msra.mxu0 0.0
        %5167 = vmatprep.subr.mxu0 0.0
        %5168 = vmatpush1.msra.mxu0 0.0
        %5169 = vmatprep.subr.mxu0 0.0
        %5170 = vmatpush1.msra.mxu0 0.0
        %5171 = vmatprep.subr.mxu0 0.0
        %5172 = vmatpush1.msra.mxu0 0.0
        %5173 = vmatprep.subr.mxu0 0.0
        %5174 = vmatpush1.msra.mxu0 0.0
        %5175 = vmatprep.subr.mxu0 0.0
        %5176 = vmatpush1.msra.mxu0 0.0
        %5177 = vmatprep.subr.mxu0 0.0
        %5178 = vmatpush1.msra.mxu0 0.0
        %5179 = vmatprep.subr.mxu0 0.0
        %5180 = vmatpush1.msra.mxu0 0.0
        %5181 = vmatprep.subr.mxu0 0.0
        %5182 = vmatpush1.msra.mxu0 0.0
        %5183 = vmatprep.subr.mxu0 0.0
        %5184 = vmatpush1.msra.mxu0 0.0
        %5185 = vmatprep.subr.mxu0 0.0
        %5186 = vmatpush1.msra.mxu0 0.0
        %5187 = vmatprep.subr.mxu0 0.0
        %5188 = vmatpush1.msra.mxu0 0.0
        %5189 = vmatprep.subr.mxu0 0.0
        %5190 = vmatpush1.msra.mxu0 0.0
        %5191 = vmatprep.subr.mxu0 0.0
        %5192 = vmatpush1.msra.mxu0 0.0
        %5193 = vmatprep.mubr.f32.mxu0 0.0
        %5194 = vmatmul.mubr.f32.gmra.mrb[0].mxu0 %v5124
        %v5195 = vpop.f32.mrb[0].mxu0
        %v5196 = vadd.f32 0.0, %v5195
        %v5197 = vpop.f32.mrb[0].mxu0
        %5198 = vmatprep.mubr.f32.mxu0 0.0
        %5199 = vmatmul.mubr.f32.gmra.mrb[0].mxu0 %v5127
        %v5200 = vpop.f32.mrb[0].mxu0
        %v5201 = vadd.f32 0.0, %v5200
        %v5202 = vpop.f32.mrb[0].mxu0
        %5203 = vdwg.mxu0
        %5204 = vrot.lane.b32.xlu0 %v522, 48
        %v5205 = vpop.permute.xlu0 %5204
        %5206 = vrot.lane.b32.xlu0 %v523, 48
        %v5207 = vpop.permute.xlu0 %5206
        %v5211 = vsel %vm1239, %v4661, 0
        %v5214 = vsel %vm1239, %v4662, 0
        %5216 = vmatprep.subr.mxu0 0.0
        %5217 = vmatpush1.msra.mxu0 %v5205
        %5218 = vmatprep.subr.mxu0 0.0
        %5219 = vmatpush1.msra.mxu0 %v5207
        %5220 = vmatprep.subr.mxu0 0.0
        %5221 = vmatpush1.msra.mxu0 0.0
        %5222 = vmatprep.subr.mxu0 0.0
        %5223 = vmatpush1.msra.mxu0 0.0
        %5224 = vmatprep.subr.mxu0 0.0
        %5225 = vmatpush1.msra.mxu0 0.0
        %5226 = vmatprep.subr.mxu0 0.0
        %5227 = vmatpush1.msra.mxu0 0.0
        %5228 = vmatprep.subr.mxu0 0.0
        %5229 = vmatpush1.msra.mxu0 0.0
        %5230 = vmatprep.subr.mxu0 0.0
        %5231 = vmatpush1.msra.mxu0 0.0
        %5232 = vmatprep.subr.mxu0 0.0
        %5233 = vmatpush1.msra.mxu0 0.0
        %5234 = vmatprep.subr.mxu0 0.0
        %5235 = vmatpush1.msra.mxu0 0.0
        %5236 = vmatprep.subr.mxu0 0.0
        %5237 = vmatpush1.msra.mxu0 0.0
        %5238 = vmatprep.subr.mxu0 0.0
        %5239 = vmatpush1.msra.mxu0 0.0
        %5240 = vmatprep.subr.mxu0 0.0
        %5241 = vmatpush1.msra.mxu0 0.0
        %5242 = vmatprep.subr.mxu0 0.0
        %5243 = vmatpush1.msra.mxu0 0.0
        %5244 = vmatprep.subr.mxu0 0.0
        %5245 = vmatpush1.msra.mxu0 0.0
        %5246 = vmatprep.subr.mxu0 0.0
        %5247 = vmatpush1.msra.mxu0 0.0
        %5248 = vmatprep.subr.mxu0 0.0
        %5249 = vmatpush1.msra.mxu0 0.0
        %5250 = vmatprep.subr.mxu0 0.0
        %5251 = vmatpush1.msra.mxu0 0.0
        %5252 = vmatprep.subr.mxu0 0.0
        %5253 = vmatpush1.msra.mxu0 0.0
        %5254 = vmatprep.subr.mxu0 0.0
        %5255 = vmatpush1.msra.mxu0 0.0
        %5256 = vmatprep.subr.mxu0 0.0
        %5257 = vmatpush1.msra.mxu0 0.0
        %5258 = vmatprep.subr.mxu0 0.0
        %5259 = vmatpush1.msra.mxu0 0.0
        %5260 = vmatprep.subr.mxu0 0.0
        %5261 = vmatpush1.msra.mxu0 0.0
        %5262 = vmatprep.subr.mxu0 0.0
        %5263 = vmatpush1.msra.mxu0 0.0
        %5264 = vmatprep.subr.mxu0 0.0
        %5265 = vmatpush1.msra.mxu0 0.0
        %5266 = vmatprep.subr.mxu0 0.0
        %5267 = vmatpush1.msra.mxu0 0.0
        %5268 = vmatprep.subr.mxu0 0.0
        %5269 = vmatpush1.msra.mxu0 0.0
        %5270 = vmatprep.subr.mxu0 0.0
        %5271 = vmatpush1.msra.mxu0 0.0
        %5272 = vmatprep.subr.mxu0 0.0
        %5273 = vmatpush1.msra.mxu0 0.0
        %5274 = vmatprep.subr.mxu0 0.0
        %5275 = vmatpush1.msra.mxu0 0.0
        %5276 = vmatprep.subr.mxu0 0.0
        %5277 = vmatpush1.msra.mxu0 0.0
        %5278 = vmatprep.subr.mxu0 0.0
        %5279 = vmatpush1.msra.mxu0 0.0
        %5280 = vmatprep.mubr.f32.mxu0 0.0
        %5281 = vmatmul.mubr.f32.gmra.mrb[0].mxu0 %v5211
        %v5282 = vpop.f32.mrb[0].mxu0
        %v5283 = vadd.f32 0.0, %v5282
        %v5284 = vpop.f32.mrb[0].mxu0
        %5285 = vmatprep.mubr.f32.mxu0 0.0
        %5286 = vmatmul.mubr.f32.gmra.mrb[0].mxu0 %v5214
        %v5287 = vpop.f32.mrb[0].mxu0
        %v5288 = vadd.f32 0.0, %v5287
        %v5289 = vpop.f32.mrb[0].mxu0
        %5290 = vdwg.mxu0
        %5291 = vrot.lane.b32.xlu0 %v524, 48
        %v5292 = vpop.permute.xlu0 %5291
        %5293 = vrot.lane.b32.xlu0 %v525, 48
        %v5294 = vpop.permute.xlu0 %5293
        %v5298 = vsel %vm1239, %v4663, 0
        %v5301 = vsel %vm1239, %v4664, 0
        %5303 = vmatprep.subr.mxu0 0.0
        %5304 = vmatpush1.msra.mxu0 %v5292
        %5305 = vmatprep.subr.mxu0 0.0
        %5306 = vmatpush1.msra.mxu0 %v5294
        %5307 = vmatprep.subr.mxu0 0.0
        %5308 = vmatpush1.msra.mxu0 0.0
        %5309 = vmatprep.subr.mxu0 0.0
        %5310 = vmatpush1.msra.mxu0 0.0
        %5311 = vmatprep.subr.mxu0 0.0
        %5312 = vmatpush1.msra.mxu0 0.0
        %5313 = vmatprep.subr.mxu0 0.0
        %5314 = vmatpush1.msra.mxu0 0.0
        %5315 = vmatprep.subr.mxu0 0.0
        %5316 = vmatpush1.msra.mxu0 0.0
        %5317 = vmatprep.subr.mxu0 0.0
        %5318 = vmatpush1.msra.mxu0 0.0
        %5319 = vmatprep.subr.mxu0 0.0
        %5320 = vmatpush1.msra.mxu0 0.0
        %5321 = vmatprep.subr.mxu0 0.0
        %5322 = vmatpush1.msra.mxu0 0.0
        %5323 = vmatprep.subr.mxu0 0.0
        %5324 = vmatpush1.msra.mxu0 0.0
        %5325 = vmatprep.subr.mxu0 0.0
        %5326 = vmatpush1.msra.mxu0 0.0
        %5327 = vmatprep.subr.mxu0 0.0
        %5328 = vmatpush1.msra.mxu0 0.0
        %5329 = vmatprep.subr.mxu0 0.0
        %5330 = vmatpush1.msra.mxu0 0.0
        %5331 = vmatprep.subr.mxu0 0.0
        %5332 = vmatpush1.msra.mxu0 0.0
        %5333 = vmatprep.subr.mxu0 0.0
        %5334 = vmatpush1.msra.mxu0 0.0
        %5335 = vmatprep.subr.mxu0 0.0
        %5336 = vmatpush1.msra.mxu0 0.0
        %5337 = vmatprep.subr.mxu0 0.0
        %5338 = vmatpush1.msra.mxu0 0.0
        %5339 = vmatprep.subr.mxu0 0.0
        %5340 = vmatpush1.msra.mxu0 0.0
        %5341 = vmatprep.subr.mxu0 0.0
        %5342 = vmatpush1.msra.mxu0 0.0
        %5343 = vmatprep.subr.mxu0 0.0
        %5344 = vmatpush1.msra.mxu0 0.0
        %5345 = vmatprep.subr.mxu0 0.0
        %5346 = vmatpush1.msra.mxu0 0.0
        %5347 = vmatprep.subr.mxu0 0.0
        %5348 = vmatpush1.msra.mxu0 0.0
        %5349 = vmatprep.subr.mxu0 0.0
        %5350 = vmatpush1.msra.mxu0 0.0
        %5351 = vmatprep.subr.mxu0 0.0
        %5352 = vmatpush1.msra.mxu0 0.0
        %5353 = vmatprep.subr.mxu0 0.0
        %5354 = vmatpush1.msra.mxu0 0.0
        %5355 = vmatprep.subr.mxu0 0.0
        %5356 = vmatpush1.msra.mxu0 0.0
        %5357 = vmatprep.subr.mxu0 0.0
        %5358 = vmatpush1.msra.mxu0 0.0
        %5359 = vmatprep.subr.mxu0 0.0
        %5360 = vmatpush1.msra.mxu0 0.0
        %5361 = vmatprep.subr.mxu0 0.0
        %5362 = vmatpush1.msra.mxu0 0.0
        %5363 = vmatprep.subr.mxu0 0.0
        %5364 = vmatpush1.msra.mxu0 0.0
        %5365 = vmatprep.subr.mxu0 0.0
        %5366 = vmatpush1.msra.mxu0 0.0
        %5367 = vmatprep.mubr.f32.mxu0 0.0
        %5368 = vmatmul.mubr.f32.gmra.mrb[0].mxu0 %v5298
        %v5369 = vpop.f32.mrb[0].mxu0
        %v5370 = vadd.f32 0.0, %v5369
        %v5371 = vpop.f32.mrb[0].mxu0
        %5372 = vmatprep.mubr.f32.mxu0 0.0
        %5373 = vmatmul.mubr.f32.gmra.mrb[0].mxu0 %v5301
        %v5374 = vpop.f32.mrb[0].mxu0
        %v5375 = vadd.f32 0.0, %v5374
        %v5376 = vpop.f32.mrb[0].mxu0
        %5377 = vdwg.mxu0
        %5378 = vrot.lane.b32.xlu0 %v430, 104
        %v5379 = vpop.permute.xlu0 %5378
        %5380 = vrot.lane.b32.xlu0 %v435, 104
        %v5381 = vpop.permute.xlu0 %5380
        %5382 = vrot.lane.b32.xlu0 %v430, 72
        %v5383 = vpop.permute.xlu0 %5382
        %5384 = vrot.lane.b32.xlu0 %v435, 72
        %v5385 = vpop.permute.xlu0 %5384
        %v5386 = vsel %vm532, %v5379, 0
        %v5388 = vsel %vm532, %v5381, 0
        %v5390 = vsel %vm532, %v5383, 0
        %v5392 = vsel %vm532, %v5385, 0
        %5394 = vmatprep.subr.mxu0 0.0
        %5395 = vmatpush1.xpose.msra.mxu0 %v5390
        %5396 = vmatprep.subr.mxu0 0.0
        %5397 = vmatpush1.xpose.msra.mxu0 %v5392
        %5398 = vmatprep.subr.mxu0 0.0
        %5399 = vmatpush1.xpose.msra.mxu0 0.0
        %5400 = vmatprep.subr.mxu0 0.0
        %5401 = vmatpush1.xpose.msra.mxu0 0.0
        %5402 = vmatprep.subr.mxu0 0.0
        %5403 = vmatpush1.xpose.msra.mxu0 0.0
        %5404 = vmatprep.subr.mxu0 0.0
        %5405 = vmatpush1.xpose.msra.mxu0 0.0
        %5406 = vmatprep.subr.mxu0 0.0
        %5407 = vmatpush1.xpose.msra.mxu0 0.0
        %5408 = vmatprep.subr.mxu0 0.0
        %5409 = vmatpush1.xpose.msra.mxu0 0.0
        %5410 = vmatprep.subr.mxu0 0.0
        %5411 = vmatpush1.xpose.msra.mxu0 0.0
        %5412 = vmatprep.subr.mxu0 0.0
        %5413 = vmatpush1.xpose.msra.mxu0 0.0
        %5414 = vmatprep.subr.mxu0 0.0
        %5415 = vmatpush1.xpose.msra.mxu0 0.0
        %5416 = vmatprep.subr.mxu0 0.0
        %5417 = vmatpush1.xpose.msra.mxu0 0.0
        %5418 = vmatprep.subr.mxu0 0.0
        %5419 = vmatpush1.xpose.msra.mxu0 0.0
        %5420 = vmatprep.subr.mxu0 0.0
        %5421 = vmatpush1.xpose.msra.mxu0 0.0
        %5422 = vmatprep.subr.mxu0 0.0
        %5423 = vmatpush1.xpose.msra.mxu0 0.0
        %5424 = vmatprep.subr.mxu0 0.0
        %5425 = vmatpush1.xpose.msra.mxu0 0.0
        %5426 = vmatprep.subr.mxu0 0.0
        %5427 = vmatpush1.xpose.msra.mxu0 0.0
        %5428 = vmatprep.subr.mxu0 0.0
        %5429 = vmatpush1.xpose.msra.mxu0 0.0
        %5430 = vmatprep.subr.mxu0 0.0
        %5431 = vmatpush1.xpose.msra.mxu0 0.0
        %5432 = vmatprep.subr.mxu0 0.0
        %5433 = vmatpush1.xpose.msra.mxu0 0.0
        %5434 = vmatprep.subr.mxu0 0.0
        %5435 = vmatpush1.xpose.msra.mxu0 0.0
        %5436 = vmatprep.subr.mxu0 0.0
        %5437 = vmatpush1.xpose.msra.mxu0 0.0
        %5438 = vmatprep.subr.mxu0 0.0
        %5439 = vmatpush1.xpose.msra.mxu0 0.0
        %5440 = vmatprep.subr.mxu0 0.0
        %5441 = vmatpush1.xpose.msra.mxu0 0.0
        %5442 = vmatprep.subr.mxu0 0.0
        %5443 = vmatpush1.xpose.msra.mxu0 0.0
        %5444 = vmatprep.subr.mxu0 0.0
        %5445 = vmatpush1.xpose.msra.mxu0 0.0
        %5446 = vmatprep.subr.mxu0 0.0
        %5447 = vmatpush1.xpose.msra.mxu0 0.0
        %5448 = vmatprep.subr.mxu0 0.0
        %5449 = vmatpush1.xpose.msra.mxu0 0.0
        %5450 = vmatprep.subr.mxu0 0.0
        %5451 = vmatpush1.xpose.msra.mxu0 0.0
        %5452 = vmatprep.subr.mxu0 0.0
        %5453 = vmatpush1.xpose.msra.mxu0 0.0
        %5454 = vmatprep.subr.mxu0 0.0
        %5455 = vmatpush1.xpose.msra.mxu0 0.0
        %5456 = vmatprep.subr.mxu0 0.0
        %5457 = vmatpush1.xpose.msra.mxu0 0.0
        %5458 = vmatprep.mubr.f32.mxu0 0.0
        %5459 = vmatmul.mubr.f32.gmra.mrb[0].mxu0 %v5386
        %v5460 = vpop.f32.mrb[0].mxu0
        %v5461 = vadd.f32 %v508, %v5460
        %v5462 = vpop.f32.mrb[0].mxu0
        %5463 = vmatprep.mubr.f32.mxu0 0.0
        %5464 = vmatmul.mubr.f32.gmra.mrb[0].mxu0 %v5388
        %v5465 = vpop.f32.mrb[0].mxu0
        %v5466 = vadd.f32 %v509, %v5465
        %v5467 = vpop.f32.mrb[0].mxu0
        %5468 = vdwg.mxu0
        %5469 = vrot.lane.b32.xlu0 %v440, 104
        %v5470 = vpop.permute.xlu0 %5469
        %5471 = vrot.lane.b32.xlu0 %v445, 104
        %v5472 = vpop.permute.xlu0 %5471
        %5473 = vrot.lane.b32.xlu0 %v440, 72
        %v5474 = vpop.permute.xlu0 %5473
        %5475 = vrot.lane.b32.xlu0 %v445, 72
        %v5476 = vpop.permute.xlu0 %5475
        %v5477 = vsel %vm532, %v5470, 0
        %v5479 = vsel %vm532, %v5472, 0
        %v5481 = vsel %vm532, %v5474, 0
        %v5483 = vsel %vm532, %v5476, 0
        %5485 = vmatprep.subr.mxu0 0.0
        %5486 = vmatpush1.xpose.msra.mxu0 %v5481
        %5487 = vmatprep.subr.mxu0 0.0
        %5488 = vmatpush1.xpose.msra.mxu0 %v5483
        %5489 = vmatprep.subr.mxu0 0.0
        %5490 = vmatpush1.xpose.msra.mxu0 0.0
        %5491 = vmatprep.subr.mxu0 0.0
        %5492 = vmatpush1.xpose.msra.mxu0 0.0
        %5493 = vmatprep.subr.mxu0 0.0
        %5494 = vmatpush1.xpose.msra.mxu0 0.0
        %5495 = vmatprep.subr.mxu0 0.0
        %5496 = vmatpush1.xpose.msra.mxu0 0.0
        %5497 = vmatprep.subr.mxu0 0.0
        %5498 = vmatpush1.xpose.msra.mxu0 0.0
        %5499 = vmatprep.subr.mxu0 0.0
        %5500 = vmatpush1.xpose.msra.mxu0 0.0
        %5501 = vmatprep.subr.mxu0 0.0
        %5502 = vmatpush1.xpose.msra.mxu0 0.0
        %5503 = vmatprep.subr.mxu0 0.0
        %5504 = vmatpush1.xpose.msra.mxu0 0.0
        %5505 = vmatprep.subr.mxu0 0.0
        %5506 = vmatpush1.xpose.msra.mxu0 0.0
        %5507 = vmatprep.subr.mxu0 0.0
        %5508 = vmatpush1.xpose.msra.mxu0 0.0
        %5509 = vmatprep.subr.mxu0 0.0
        %5510 = vmatpush1.xpose.msra.mxu0 0.0
        %5511 = vmatprep.subr.mxu0 0.0
        %5512 = vmatpush1.xpose.msra.mxu0 0.0
        %5513 = vmatprep.subr.mxu0 0.0
        %5514 = vmatpush1.xpose.msra.mxu0 0.0
        %5515 = vmatprep.subr.mxu0 0.0
        %5516 = vmatpush1.xpose.msra.mxu0 0.0
        %5517 = vmatprep.subr.mxu0 0.0
        %5518 = vmatpush1.xpose.msra.mxu0 0.0
        %5519 = vmatprep.subr.mxu0 0.0
        %5520 = vmatpush1.xpose.msra.mxu0 0.0
        %5521 = vmatprep.subr.mxu0 0.0
        %5522 = vmatpush1.xpose.msra.mxu0 0.0
        %5523 = vmatprep.subr.mxu0 0.0
        %5524 = vmatpush1.xpose.msra.mxu0 0.0
        %5525 = vmatprep.subr.mxu0 0.0
        %5526 = vmatpush1.xpose.msra.mxu0 0.0
        %5527 = vmatprep.subr.mxu0 0.0
        %5528 = vmatpush1.xpose.msra.mxu0 0.0
        %5529 = vmatprep.subr.mxu0 0.0
        %5530 = vmatpush1.xpose.msra.mxu0 0.0
        %5531 = vmatprep.subr.mxu0 0.0
        %5532 = vmatpush1.xpose.msra.mxu0 0.0
        %5533 = vmatprep.subr.mxu0 0.0
        %5534 = vmatpush1.xpose.msra.mxu0 0.0
        %5535 = vmatprep.subr.mxu0 0.0
        %5536 = vmatpush1.xpose.msra.mxu0 0.0
        %5537 = vmatprep.subr.mxu0 0.0
        %5538 = vmatpush1.xpose.msra.mxu0 0.0
        %5539 = vmatprep.subr.mxu0 0.0
        %5540 = vmatpush1.xpose.msra.mxu0 0.0
        %5541 = vmatprep.subr.mxu0 0.0
        %5542 = vmatpush1.xpose.msra.mxu0 0.0
        %5543 = vmatprep.subr.mxu0 0.0
        %5544 = vmatpush1.xpose.msra.mxu0 0.0
        %5545 = vmatprep.subr.mxu0 0.0
        %5546 = vmatpush1.xpose.msra.mxu0 0.0
        %5547 = vmatprep.subr.mxu0 0.0
        %5548 = vmatpush1.xpose.msra.mxu0 0.0
        %5549 = vmatprep.mubr.f32.mxu0 0.0
        %5550 = vmatmul.mubr.f32.gmra.mrb[0].mxu0 %v5477
        %v5551 = vpop.f32.mrb[0].mxu0
        %v5552 = vadd.f32 %v508, %v5551
        %v5553 = vpop.f32.mrb[0].mxu0
        %5554 = vmatprep.mubr.f32.mxu0 0.0
        %5555 = vmatmul.mubr.f32.gmra.mrb[0].mxu0 %v5479
        %v5556 = vpop.f32.mrb[0].mxu0
        %v5557 = vadd.f32 %v509, %v5556
        %v5558 = vpop.f32.mrb[0].mxu0
        %5559 = vdwg.mxu0
        %5560 = vrot.lane.b32.xlu0 %v450, 104
        %v5561 = vpop.permute.xlu0 %5560
        %5562 = vrot.lane.b32.xlu0 %v455, 104
        %v5563 = vpop.permute.xlu0 %5562
        %5564 = vrot.lane.b32.xlu0 %v450, 72
        %v5565 = vpop.permute.xlu0 %5564
        %5566 = vrot.lane.b32.xlu0 %v455, 72
        %v5567 = vpop.permute.xlu0 %5566
        %v5568 = vsel %vm532, %v5561, 0
        %v5570 = vsel %vm532, %v5563, 0
        %v5572 = vsel %vm532, %v5565, 0
        %v5574 = vsel %vm532, %v5567, 0
        %5576 = vmatprep.subr.mxu0 0.0
        %5577 = vmatpush1.xpose.msra.mxu0 %v5572
        %5578 = vmatprep.subr.mxu0 0.0
        %5579 = vmatpush1.xpose.msra.mxu0 %v5574
        %5580 = vmatprep.subr.mxu0 0.0
        %5581 = vmatpush1.xpose.msra.mxu0 0.0
        %5582 = vmatprep.subr.mxu0 0.0
        %5583 = vmatpush1.xpose.msra.mxu0 0.0
        %5584 = vmatprep.subr.mxu0 0.0
        %5585 = vmatpush1.xpose.msra.mxu0 0.0
        %5586 = vmatprep.subr.mxu0 0.0
        %5587 = vmatpush1.xpose.msra.mxu0 0.0
        %5588 = vmatprep.subr.mxu0 0.0
        %5589 = vmatpush1.xpose.msra.mxu0 0.0
        %5590 = vmatprep.subr.mxu0 0.0
        %5591 = vmatpush1.xpose.msra.mxu0 0.0
        %5592 = vmatprep.subr.mxu0 0.0
        %5593 = vmatpush1.xpose.msra.mxu0 0.0
        %5594 = vmatprep.subr.mxu0 0.0
        %5595 = vmatpush1.xpose.msra.mxu0 0.0
        %5596 = vmatprep.subr.mxu0 0.0
        %5597 = vmatpush1.xpose.msra.mxu0 0.0
        %5598 = vmatprep.subr.mxu0 0.0
        %5599 = vmatpush1.xpose.msra.mxu0 0.0
        %5600 = vmatprep.subr.mxu0 0.0
        %5601 = vmatpush1.xpose.msra.mxu0 0.0
        %5602 = vmatprep.subr.mxu0 0.0
        %5603 = vmatpush1.xpose.msra.mxu0 0.0
        %5604 = vmatprep.subr.mxu0 0.0
        %5605 = vmatpush1.xpose.msra.mxu0 0.0
        %5606 = vmatprep.subr.mxu0 0.0
        %5607 = vmatpush1.xpose.msra.mxu0 0.0
        %5608 = vmatprep.subr.mxu0 0.0
        %5609 = vmatpush1.xpose.msra.mxu0 0.0
        %5610 = vmatprep.subr.mxu0 0.0
        %5611 = vmatpush1.xpose.msra.mxu0 0.0
        %5612 = vmatprep.subr.mxu0 0.0
        %5613 = vmatpush1.xpose.msra.mxu0 0.0
        %5614 = vmatprep.subr.mxu0 0.0
        %5615 = vmatpush1.xpose.msra.mxu0 0.0
        %5616 = vmatprep.subr.mxu0 0.0
        %5617 = vmatpush1.xpose.msra.mxu0 0.0
        %5618 = vmatprep.subr.mxu0 0.0
        %5619 = vmatpush1.xpose.msra.mxu0 0.0
        %5620 = vmatprep.subr.mxu0 0.0
        %5621 = vmatpush1.xpose.msra.mxu0 0.0
        %5622 = vmatprep.subr.mxu0 0.0
        %5623 = vmatpush1.xpose.msra.mxu0 0.0
        %5624 = vmatprep.subr.mxu0 0.0
        %5625 = vmatpush1.xpose.msra.mxu0 0.0
        %5626 = vmatprep.subr.mxu0 0.0
        %5627 = vmatpush1.xpose.msra.mxu0 0.0
        %5628 = vmatprep.subr.mxu0 0.0
        %5629 = vmatpush1.xpose.msra.mxu0 0.0
        %5630 = vmatprep.subr.mxu0 0.0
        %5631 = vmatpush1.xpose.msra.mxu0 0.0
        %5632 = vmatprep.subr.mxu0 0.0
        %5633 = vmatpush1.xpose.msra.mxu0 0.0
        %5634 = vmatprep.subr.mxu0 0.0
        %5635 = vmatpush1.xpose.msra.mxu0 0.0
        %5636 = vmatprep.subr.mxu0 0.0
        %5637 = vmatpush1.xpose.msra.mxu0 0.0
        %5638 = vmatprep.subr.mxu0 0.0
        %5639 = vmatpush1.xpose.msra.mxu0 0.0
        %5640 = vmatprep.mubr.f32.mxu0 0.0
        %5641 = vmatmul.mubr.f32.gmra.mrb[0].mxu0 %v5568
        %v5642 = vpop.f32.mrb[0].mxu0
        %v5643 = vadd.f32 %v508, %v5642
        %v5644 = vpop.f32.mrb[0].mxu0
        %5645 = vmatprep.mubr.f32.mxu0 0.0
        %5646 = vmatmul.mubr.f32.gmra.mrb[0].mxu0 %v5570
        %v5647 = vpop.f32.mrb[0].mxu0
        %v5648 = vadd.f32 %v509, %v5647
        %v5649 = vpop.f32.mrb[0].mxu0
        %5650 = vdwg.mxu0
        %5651 = vrot.lane.b32.xlu0 %v460, 104
        %v5652 = vpop.permute.xlu0 %5651
        %5653 = vrot.lane.b32.xlu0 %v465, 104
        %v5654 = vpop.permute.xlu0 %5653
        %5655 = vrot.lane.b32.xlu0 %v460, 72
        %v5656 = vpop.permute.xlu0 %5655
        %5657 = vrot.lane.b32.xlu0 %v465, 72
        %v5658 = vpop.permute.xlu0 %5657
        %v5659 = vsel %vm532, %v5652, 0
        %v5661 = vsel %vm532, %v5654, 0
        %v5663 = vsel %vm532, %v5656, 0
        %v5665 = vsel %vm532, %v5658, 0
        %5667 = vmatprep.subr.mxu0 0.0
        %5668 = vmatpush1.xpose.msra.mxu0 %v5663
        %5669 = vmatprep.subr.mxu0 0.0
        %5670 = vmatpush1.xpose.msra.mxu0 %v5665
        %5671 = vmatprep.subr.mxu0 0.0
        %5672 = vmatpush1.xpose.msra.mxu0 0.0
        %5673 = vmatprep.subr.mxu0 0.0
        %5674 = vmatpush1.xpose.msra.mxu0 0.0
        %5675 = vmatprep.subr.mxu0 0.0
        %5676 = vmatpush1.xpose.msra.mxu0 0.0
        %5677 = vmatprep.subr.mxu0 0.0
        %5678 = vmatpush1.xpose.msra.mxu0 0.0
        %5679 = vmatprep.subr.mxu0 0.0
        %5680 = vmatpush1.xpose.msra.mxu0 0.0
        %5681 = vmatprep.subr.mxu0 0.0
        %5682 = vmatpush1.xpose.msra.mxu0 0.0
        %5683 = vmatprep.subr.mxu0 0.0
        %5684 = vmatpush1.xpose.msra.mxu0 0.0
        %5685 = vmatprep.subr.mxu0 0.0
        %5686 = vmatpush1.xpose.msra.mxu0 0.0
        %5687 = vmatprep.subr.mxu0 0.0
        %5688 = vmatpush1.xpose.msra.mxu0 0.0
        %5689 = vmatprep.subr.mxu0 0.0
        %5690 = vmatpush1.xpose.msra.mxu0 0.0
        %5691 = vmatprep.subr.mxu0 0.0
        %5692 = vmatpush1.xpose.msra.mxu0 0.0
        %5693 = vmatprep.subr.mxu0 0.0
        %5694 = vmatpush1.xpose.msra.mxu0 0.0
        %5695 = vmatprep.subr.mxu0 0.0
        %5696 = vmatpush1.xpose.msra.mxu0 0.0
        %5697 = vmatprep.subr.mxu0 0.0
        %5698 = vmatpush1.xpose.msra.mxu0 0.0
        %5699 = vmatprep.subr.mxu0 0.0
        %5700 = vmatpush1.xpose.msra.mxu0 0.0
        %5701 = vmatprep.subr.mxu0 0.0
        %5702 = vmatpush1.xpose.msra.mxu0 0.0
        %5703 = vmatprep.subr.mxu0 0.0
        %5704 = vmatpush1.xpose.msra.mxu0 0.0
        %5705 = vmatprep.subr.mxu0 0.0
        %5706 = vmatpush1.xpose.msra.mxu0 0.0
        %5707 = vmatprep.subr.mxu0 0.0
        %5708 = vmatpush1.xpose.msra.mxu0 0.0
        %5709 = vmatprep.subr.mxu0 0.0
        %5710 = vmatpush1.xpose.msra.mxu0 0.0
        %5711 = vmatprep.subr.mxu0 0.0
        %5712 = vmatpush1.xpose.msra.mxu0 0.0
        %5713 = vmatprep.subr.mxu0 0.0
        %5714 = vmatpush1.xpose.msra.mxu0 0.0
        %5715 = vmatprep.subr.mxu0 0.0
        %5716 = vmatpush1.xpose.msra.mxu0 0.0
        %5717 = vmatprep.subr.mxu0 0.0
        %5718 = vmatpush1.xpose.msra.mxu0 0.0
        %5719 = vmatprep.subr.mxu0 0.0
        %5720 = vmatpush1.xpose.msra.mxu0 0.0
        %5721 = vmatprep.subr.mxu0 0.0
        %5722 = vmatpush1.xpose.msra.mxu0 0.0
        %5723 = vmatprep.subr.mxu0 0.0
        %5724 = vmatpush1.xpose.msra.mxu0 0.0
        %5725 = vmatprep.subr.mxu0 0.0
        %5726 = vmatpush1.xpose.msra.mxu0 0.0
        %5727 = vmatprep.subr.mxu0 0.0
        %5728 = vmatpush1.xpose.msra.mxu0 0.0
        %5729 = vmatprep.subr.mxu0 0.0
        %5730 = vmatpush1.xpose.msra.mxu0 0.0
        %5731 = vmatprep.mubr.f32.mxu0 0.0
        %5732 = vmatmul.mubr.f32.gmra.mrb[0].mxu0 %v5659
        %v5733 = vpop.f32.mrb[0].mxu0
        %v5734 = vadd.f32 %v508, %v5733
        %v5735 = vpop.f32.mrb[0].mxu0
        %5736 = vmatprep.mubr.f32.mxu0 0.0
        %5737 = vmatmul.mubr.f32.gmra.mrb[0].mxu0 %v5661
        %v5738 = vpop.f32.mrb[0].mxu0
        %v5739 = vadd.f32 %v509, %v5738
        %v5740 = vpop.f32.mrb[0].mxu0
        %5741 = vdwg.mxu0
        %5742 = vrot.lane.b32.xlu0 %v470, 104
        %v5743 = vpop.permute.xlu0 %5742
        %5744 = vrot.lane.b32.xlu0 %v475, 104
        %v5745 = vpop.permute.xlu0 %5744
        %5746 = vrot.lane.b32.xlu0 %v470, 72
        %v5747 = vpop.permute.xlu0 %5746
        %5748 = vrot.lane.b32.xlu0 %v475, 72
        %v5749 = vpop.permute.xlu0 %5748
        %v5750 = vsel %vm532, %v5743, 0
        %v5752 = vsel %vm532, %v5745, 0
        %v5754 = vsel %vm532, %v5747, 0
        %v5756 = vsel %vm532, %v5749, 0
        %5758 = vmatprep.subr.mxu0 0.0
        %5759 = vmatpush1.xpose.msra.mxu0 %v5754
        %5760 = vmatprep.subr.mxu0 0.0
        %5761 = vmatpush1.xpose.msra.mxu0 %v5756
        %5762 = vmatprep.subr.mxu0 0.0
        %5763 = vmatpush1.xpose.msra.mxu0 0.0
        %5764 = vmatprep.subr.mxu0 0.0
        %5765 = vmatpush1.xpose.msra.mxu0 0.0
        %5766 = vmatprep.subr.mxu0 0.0
        %5767 = vmatpush1.xpose.msra.mxu0 0.0
        %5768 = vmatprep.subr.mxu0 0.0
        %5769 = vmatpush1.xpose.msra.mxu0 0.0
        %5770 = vmatprep.subr.mxu0 0.0
        %5771 = vmatpush1.xpose.msra.mxu0 0.0
        %5772 = vmatprep.subr.mxu0 0.0
        %5773 = vmatpush1.xpose.msra.mxu0 0.0
        %5774 = vmatprep.subr.mxu0 0.0
        %5775 = vmatpush1.xpose.msra.mxu0 0.0
        %5776 = vmatprep.subr.mxu0 0.0
        %5777 = vmatpush1.xpose.msra.mxu0 0.0
        %5778 = vmatprep.subr.mxu0 0.0
        %5779 = vmatpush1.xpose.msra.mxu0 0.0
        %5780 = vmatprep.subr.mxu0 0.0
        %5781 = vmatpush1.xpose.msra.mxu0 0.0
        %5782 = vmatprep.subr.mxu0 0.0
        %5783 = vmatpush1.xpose.msra.mxu0 0.0
        %5784 = vmatprep.subr.mxu0 0.0
        %5785 = vmatpush1.xpose.msra.mxu0 0.0
        %5786 = vmatprep.subr.mxu0 0.0
        %5787 = vmatpush1.xpose.msra.mxu0 0.0
        %5788 = vmatprep.subr.mxu0 0.0
        %5789 = vmatpush1.xpose.msra.mxu0 0.0
        %5790 = vmatprep.subr.mxu0 0.0
        %5791 = vmatpush1.xpose.msra.mxu0 0.0
        %5792 = vmatprep.subr.mxu0 0.0
        %5793 = vmatpush1.xpose.msra.mxu0 0.0
        %5794 = vmatprep.subr.mxu0 0.0
        %5795 = vmatpush1.xpose.msra.mxu0 0.0
        %5796 = vmatprep.subr.mxu0 0.0
        %5797 = vmatpush1.xpose.msra.mxu0 0.0
        %5798 = vmatprep.subr.mxu0 0.0
        %5799 = vmatpush1.xpose.msra.mxu0 0.0
        %5800 = vmatprep.subr.mxu0 0.0
        %5801 = vmatpush1.xpose.msra.mxu0 0.0
        %5802 = vmatprep.subr.mxu0 0.0
        %5803 = vmatpush1.xpose.msra.mxu0 0.0
        %5804 = vmatprep.subr.mxu0 0.0
        %5805 = vmatpush1.xpose.msra.mxu0 0.0
        %5806 = vmatprep.subr.mxu0 0.0
        %5807 = vmatpush1.xpose.msra.mxu0 0.0
        %5808 = vmatprep.subr.mxu0 0.0
        %5809 = vmatpush1.xpose.msra.mxu0 0.0
        %5810 = vmatprep.subr.mxu0 0.0
        %5811 = vmatpush1.xpose.msra.mxu0 0.0
        %5812 = vmatprep.subr.mxu0 0.0
        %5813 = vmatpush1.xpose.msra.mxu0 0.0
        %5814 = vmatprep.subr.mxu0 0.0
        %5815 = vmatpush1.xpose.msra.mxu0 0.0
        %5816 = vmatprep.subr.mxu0 0.0
        %5817 = vmatpush1.xpose.msra.mxu0 0.0
        %5818 = vmatprep.subr.mxu0 0.0
        %5819 = vmatpush1.xpose.msra.mxu0 0.0
        %5820 = vmatprep.subr.mxu0 0.0
        %5821 = vmatpush1.xpose.msra.mxu0 0.0
        %5822 = vmatprep.mubr.f32.mxu0 0.0
        %5823 = vmatmul.mubr.f32.gmra.mrb[0].mxu0 %v5750
        %v5824 = vpop.f32.mrb[0].mxu0
        %v5825 = vadd.f32 %v508, %v5824
        %v5826 = vpop.f32.mrb[0].mxu0
        %5827 = vmatprep.mubr.f32.mxu0 0.0
        %5828 = vmatmul.mubr.f32.gmra.mrb[0].mxu0 %v5752
        %v5829 = vpop.f32.mrb[0].mxu0
        %v5830 = vadd.f32 %v509, %v5829
        %v5831 = vpop.f32.mrb[0].mxu0
        %5832 = vdwg.mxu0
        %5833 = vrot.lane.b32.xlu0 %v480, 104
        %v5834 = vpop.permute.xlu0 %5833
        %5835 = vrot.lane.b32.xlu0 %v485, 104
        %v5836 = vpop.permute.xlu0 %5835
        %5837 = vrot.lane.b32.xlu0 %v480, 72
        %v5838 = vpop.permute.xlu0 %5837
        %5839 = vrot.lane.b32.xlu0 %v485, 72
        %v5840 = vpop.permute.xlu0 %5839
        %v5841 = vsel %vm532, %v5834, 0
        %v5843 = vsel %vm532, %v5836, 0
        %v5845 = vsel %vm532, %v5838, 0
        %v5847 = vsel %vm532, %v5840, 0
        %5849 = vmatprep.subr.mxu0 0.0
        %5850 = vmatpush1.xpose.msra.mxu0 %v5845
        %5851 = vmatprep.subr.mxu0 0.0
        %5852 = vmatpush1.xpose.msra.mxu0 %v5847
        %5853 = vmatprep.subr.mxu0 0.0
        %5854 = vmatpush1.xpose.msra.mxu0 0.0
        %5855 = vmatprep.subr.mxu0 0.0
        %5856 = vmatpush1.xpose.msra.mxu0 0.0
        %5857 = vmatprep.subr.mxu0 0.0
        %5858 = vmatpush1.xpose.msra.mxu0 0.0
        %5859 = vmatprep.subr.mxu0 0.0
        %5860 = vmatpush1.xpose.msra.mxu0 0.0
        %5861 = vmatprep.subr.mxu0 0.0
        %5862 = vmatpush1.xpose.msra.mxu0 0.0
        %5863 = vmatprep.subr.mxu0 0.0
        %5864 = vmatpush1.xpose.msra.mxu0 0.0
        %5865 = vmatprep.subr.mxu0 0.0
        %5866 = vmatpush1.xpose.msra.mxu0 0.0
        %5867 = vmatprep.subr.mxu0 0.0
        %5868 = vmatpush1.xpose.msra.mxu0 0.0
        %5869 = vmatprep.subr.mxu0 0.0
        %5870 = vmatpush1.xpose.msra.mxu0 0.0
        %5871 = vmatprep.subr.mxu0 0.0
        %5872 = vmatpush1.xpose.msra.mxu0 0.0
        %5873 = vmatprep.subr.mxu0 0.0
        %5874 = vmatpush1.xpose.msra.mxu0 0.0
        %5875 = vmatprep.subr.mxu0 0.0
        %5876 = vmatpush1.xpose.msra.mxu0 0.0
        %5877 = vmatprep.subr.mxu0 0.0
        %5878 = vmatpush1.xpose.msra.mxu0 0.0
        %5879 = vmatprep.subr.mxu0 0.0
        %5880 = vmatpush1.xpose.msra.mxu0 0.0
        %5881 = vmatprep.subr.mxu0 0.0
        %5882 = vmatpush1.xpose.msra.mxu0 0.0
        %5883 = vmatprep.subr.mxu0 0.0
        %5884 = vmatpush1.xpose.msra.mxu0 0.0
        %5885 = vmatprep.subr.mxu0 0.0
        %5886 = vmatpush1.xpose.msra.mxu0 0.0
        %5887 = vmatprep.subr.mxu0 0.0
        %5888 = vmatpush1.xpose.msra.mxu0 0.0
        %5889 = vmatprep.subr.mxu0 0.0
        %5890 = vmatpush1.xpose.msra.mxu0 0.0
        %5891 = vmatprep.subr.mxu0 0.0
        %5892 = vmatpush1.xpose.msra.mxu0 0.0
        %5893 = vmatprep.subr.mxu0 0.0
        %5894 = vmatpush1.xpose.msra.mxu0 0.0
        %5895 = vmatprep.subr.mxu0 0.0
        %5896 = vmatpush1.xpose.msra.mxu0 0.0
        %5897 = vmatprep.subr.mxu0 0.0
        %5898 = vmatpush1.xpose.msra.mxu0 0.0
        %5899 = vmatprep.subr.mxu0 0.0
        %5900 = vmatpush1.xpose.msra.mxu0 0.0
        %5901 = vmatprep.subr.mxu0 0.0
        %5902 = vmatpush1.xpose.msra.mxu0 0.0
        %5903 = vmatprep.subr.mxu0 0.0
        %5904 = vmatpush1.xpose.msra.mxu0 0.0
        %5905 = vmatprep.subr.mxu0 0.0
        %5906 = vmatpush1.xpose.msra.mxu0 0.0
        %5907 = vmatprep.subr.mxu0 0.0
        %5908 = vmatpush1.xpose.msra.mxu0 0.0
        %5909 = vmatprep.subr.mxu0 0.0
        %5910 = vmatpush1.xpose.msra.mxu0 0.0
        %5911 = vmatprep.subr.mxu0 0.0
        %5912 = vmatpush1.xpose.msra.mxu0 0.0
        %5913 = vmatprep.mubr.f32.mxu0 0.0
        %5914 = vmatmul.mubr.f32.gmra.mrb[0].mxu0 %v5841
        %v5915 = vpop.f32.mrb[0].mxu0
        %v5916 = vadd.f32 %v508, %v5915
        %v5917 = vpop.f32.mrb[0].mxu0
        %5918 = vmatprep.mubr.f32.mxu0 0.0
        %5919 = vmatmul.mubr.f32.gmra.mrb[0].mxu0 %v5843
        %v5920 = vpop.f32.mrb[0].mxu0
        %v5921 = vadd.f32 %v509, %v5920
        %v5922 = vpop.f32.mrb[0].mxu0
        %5923 = vdwg.mxu0
        %5924 = vrot.lane.b32.xlu0 %v490, 104
        %v5925 = vpop.permute.xlu0 %5924
        %5926 = vrot.lane.b32.xlu0 %v495, 104
        %v5927 = vpop.permute.xlu0 %5926
        %5928 = vrot.lane.b32.xlu0 %v490, 72
        %v5929 = vpop.permute.xlu0 %5928
        %5930 = vrot.lane.b32.xlu0 %v495, 72
        %v5931 = vpop.permute.xlu0 %5930
        %v5932 = vsel %vm532, %v5925, 0
        %v5934 = vsel %vm532, %v5927, 0
        %v5936 = vsel %vm532, %v5929, 0
        %v5938 = vsel %vm532, %v5931, 0
        %5940 = vmatprep.subr.mxu0 0.0
        %5941 = vmatpush1.xpose.msra.mxu0 %v5936
        %5942 = vmatprep.subr.mxu0 0.0
        %5943 = vmatpush1.xpose.msra.mxu0 %v5938
        %5944 = vmatprep.subr.mxu0 0.0
        %5945 = vmatpush1.xpose.msra.mxu0 0.0
        %5946 = vmatprep.subr.mxu0 0.0
        %5947 = vmatpush1.xpose.msra.mxu0 0.0
        %5948 = vmatprep.subr.mxu0 0.0
        %5949 = vmatpush1.xpose.msra.mxu0 0.0
        %5950 = vmatprep.subr.mxu0 0.0
        %5951 = vmatpush1.xpose.msra.mxu0 0.0
        %5952 = vmatprep.subr.mxu0 0.0
        %5953 = vmatpush1.xpose.msra.mxu0 0.0
        %5954 = vmatprep.subr.mxu0 0.0
        %5955 = vmatpush1.xpose.msra.mxu0 0.0
        %5956 = vmatprep.subr.mxu0 0.0
        %5957 = vmatpush1.xpose.msra.mxu0 0.0
        %5958 = vmatprep.subr.mxu0 0.0
        %5959 = vmatpush1.xpose.msra.mxu0 0.0
        %5960 = vmatprep.subr.mxu0 0.0
        %5961 = vmatpush1.xpose.msra.mxu0 0.0
        %5962 = vmatprep.subr.mxu0 0.0
        %5963 = vmatpush1.xpose.msra.mxu0 0.0
        %5964 = vmatprep.subr.mxu0 0.0
        %5965 = vmatpush1.xpose.msra.mxu0 0.0
        %5966 = vmatprep.subr.mxu0 0.0
        %5967 = vmatpush1.xpose.msra.mxu0 0.0
        %5968 = vmatprep.subr.mxu0 0.0
        %5969 = vmatpush1.xpose.msra.mxu0 0.0
        %5970 = vmatprep.subr.mxu0 0.0
        %5971 = vmatpush1.xpose.msra.mxu0 0.0
        %5972 = vmatprep.subr.mxu0 0.0
        %5973 = vmatpush1.xpose.msra.mxu0 0.0
        %5974 = vmatprep.subr.mxu0 0.0
        %5975 = vmatpush1.xpose.msra.mxu0 0.0
        %5976 = vmatprep.subr.mxu0 0.0
        %5977 = vmatpush1.xpose.msra.mxu0 0.0
        %5978 = vmatprep.subr.mxu0 0.0
        %5979 = vmatpush1.xpose.msra.mxu0 0.0
        %5980 = vmatprep.subr.mxu0 0.0
        %5981 = vmatpush1.xpose.msra.mxu0 0.0
        %5982 = vmatprep.subr.mxu0 0.0
        %5983 = vmatpush1.xpose.msra.mxu0 0.0
        %5984 = vmatprep.subr.mxu0 0.0
        %5985 = vmatpush1.xpose.msra.mxu0 0.0
        %5986 = vmatprep.subr.mxu0 0.0
        %5987 = vmatpush1.xpose.msra.mxu0 0.0
        %5988 = vmatprep.subr.mxu0 0.0
        %5989 = vmatpush1.xpose.msra.mxu0 0.0
        %5990 = vmatprep.subr.mxu0 0.0
        %5991 = vmatpush1.xpose.msra.mxu0 0.0
        %5992 = vmatprep.subr.mxu0 0.0
        %5993 = vmatpush1.xpose.msra.mxu0 0.0
        %5994 = vmatprep.subr.mxu0 0.0
        %5995 = vmatpush1.xpose.msra.mxu0 0.0
        %5996 = vmatprep.subr.mxu0 0.0
        %5997 = vmatpush1.xpose.msra.mxu0 0.0
        %5998 = vmatprep.subr.mxu0 0.0
        %5999 = vmatpush1.xpose.msra.mxu0 0.0
        %6000 = vmatprep.subr.mxu0 0.0
        %6001 = vmatpush1.xpose.msra.mxu0 0.0
        %6002 = vmatprep.subr.mxu0 0.0
        %6003 = vmatpush1.xpose.msra.mxu0 0.0
        %6004 = vmatprep.mubr.f32.mxu0 0.0
        %6005 = vmatmul.mubr.f32.gmra.mrb[0].mxu0 %v5932
        %v6006 = vpop.f32.mrb[0].mxu0
        %v6007 = vadd.f32 %v508, %v6006
        %v6008 = vpop.f32.mrb[0].mxu0
        %6009 = vmatprep.mubr.f32.mxu0 0.0
        %6010 = vmatmul.mubr.f32.gmra.mrb[0].mxu0 %v5934
        %v6011 = vpop.f32.mrb[0].mxu0
        %v6012 = vadd.f32 %v509, %v6011
        %v6013 = vpop.f32.mrb[0].mxu0
        %6014 = vdwg.mxu0
        %6015 = vrot.lane.b32.xlu0 %v500, 104
        %v6016 = vpop.permute.xlu0 %6015
        %6017 = vrot.lane.b32.xlu0 %v505, 104
        %v6018 = vpop.permute.xlu0 %6017
        %6019 = vrot.lane.b32.xlu0 %v500, 72
        %v6020 = vpop.permute.xlu0 %6019
        %6021 = vrot.lane.b32.xlu0 %v505, 72
        %v6022 = vpop.permute.xlu0 %6021
        %v6023 = vsel %vm532, %v6016, 0
        %v6025 = vsel %vm532, %v6018, 0
        %v6027 = vsel %vm532, %v6020, 0
        %v6029 = vsel %vm532, %v6022, 0
        %6031 = vmatprep.subr.mxu0 0.0
        %6032 = vmatpush1.xpose.msra.mxu0 %v6027
        %6033 = vmatprep.subr.mxu0 0.0
        %6034 = vmatpush1.xpose.msra.mxu0 %v6029
        %6035 = vmatprep.subr.mxu0 0.0
        %6036 = vmatpush1.xpose.msra.mxu0 0.0
        %6037 = vmatprep.subr.mxu0 0.0
        %6038 = vmatpush1.xpose.msra.mxu0 0.0
        %6039 = vmatprep.subr.mxu0 0.0
        %6040 = vmatpush1.xpose.msra.mxu0 0.0
        %6041 = vmatprep.subr.mxu0 0.0
        %6042 = vmatpush1.xpose.msra.mxu0 0.0
        %6043 = vmatprep.subr.mxu0 0.0
        %6044 = vmatpush1.xpose.msra.mxu0 0.0
        %6045 = vmatprep.subr.mxu0 0.0
        %6046 = vmatpush1.xpose.msra.mxu0 0.0
        %6047 = vmatprep.subr.mxu0 0.0
        %6048 = vmatpush1.xpose.msra.mxu0 0.0
        %6049 = vmatprep.subr.mxu0 0.0
        %6050 = vmatpush1.xpose.msra.mxu0 0.0
        %6051 = vmatprep.subr.mxu0 0.0
        %6052 = vmatpush1.xpose.msra.mxu0 0.0
        %6053 = vmatprep.subr.mxu0 0.0
        %6054 = vmatpush1.xpose.msra.mxu0 0.0
        %6055 = vmatprep.subr.mxu0 0.0
        %6056 = vmatpush1.xpose.msra.mxu0 0.0
        %6057 = vmatprep.subr.mxu0 0.0
        %6058 = vmatpush1.xpose.msra.mxu0 0.0
        %6059 = vmatprep.subr.mxu0 0.0
        %6060 = vmatpush1.xpose.msra.mxu0 0.0
        %6061 = vmatprep.subr.mxu0 0.0
        %6062 = vmatpush1.xpose.msra.mxu0 0.0
        %6063 = vmatprep.subr.mxu0 0.0
        %6064 = vmatpush1.xpose.msra.mxu0 0.0
        %6065 = vmatprep.subr.mxu0 0.0
        %6066 = vmatpush1.xpose.msra.mxu0 0.0
        %6067 = vmatprep.subr.mxu0 0.0
        %6068 = vmatpush1.xpose.msra.mxu0 0.0
        %6069 = vmatprep.subr.mxu0 0.0
        %6070 = vmatpush1.xpose.msra.mxu0 0.0
        %6071 = vmatprep.subr.mxu0 0.0
        %6072 = vmatpush1.xpose.msra.mxu0 0.0
        %6073 = vmatprep.subr.mxu0 0.0
        %6074 = vmatpush1.xpose.msra.mxu0 0.0
        %6075 = vmatprep.subr.mxu0 0.0
        %6076 = vmatpush1.xpose.msra.mxu0 0.0
        %6077 = vmatprep.subr.mxu0 0.0
        %6078 = vmatpush1.xpose.msra.mxu0 0.0
        %6079 = vmatprep.subr.mxu0 0.0
        %6080 = vmatpush1.xpose.msra.mxu0 0.0
        %6081 = vmatprep.subr.mxu0 0.0
        %6082 = vmatpush1.xpose.msra.mxu0 0.0
        %6083 = vmatprep.subr.mxu0 0.0
        %6084 = vmatpush1.xpose.msra.mxu0 0.0
        %6085 = vmatprep.subr.mxu0 0.0
        %6086 = vmatpush1.xpose.msra.mxu0 0.0
        %6087 = vmatprep.subr.mxu0 0.0
        %6088 = vmatpush1.xpose.msra.mxu0 0.0
        %6089 = vmatprep.subr.mxu0 0.0
        %6090 = vmatpush1.xpose.msra.mxu0 0.0
        %6091 = vmatprep.subr.mxu0 0.0
        %6092 = vmatpush1.xpose.msra.mxu0 0.0
        %6093 = vmatprep.subr.mxu0 0.0
        %6094 = vmatpush1.xpose.msra.mxu0 0.0
        %6095 = vmatprep.mubr.f32.mxu0 0.0
        %6096 = vmatmul.mubr.f32.gmra.mrb[0].mxu0 %v6023
        %v6097 = vpop.f32.mrb[0].mxu0
        %v6098 = vadd.f32 %v508, %v6097
        %v6099 = vpop.f32.mrb[0].mxu0
        %6100 = vmatprep.mubr.f32.mxu0 0.0
        %6101 = vmatmul.mubr.f32.gmra.mrb[0].mxu0 %v6025
        %v6102 = vpop.f32.mrb[0].mxu0
        %v6103 = vadd.f32 %v509, %v6102
        %v6104 = vpop.f32.mrb[0].mxu0
        %6105 = vdwg.mxu0
        %v6106 = vsel %vm1239, %v5461, -inf
        %6107 = vmax.xlane.f32.xlu0 %v6106
        %v6108 = vpop.xlane.xlu0 %6107
        %v6109 = vsel %vm1239, %v5466, -inf
        %6110 = vmax.xlane.f32.xlu0 %v6109
        %v6111 = vpop.xlane.xlu0 %6110
        %v6112 = vsel %vm1239, %v5552, -inf
        %6113 = vmax.xlane.f32.xlu0 %v6112
        %v6114 = vpop.xlane.xlu0 %6113
        %v6115 = vsel %vm1239, %v5557, -inf
        %6116 = vmax.xlane.f32.xlu0 %v6115
        %v6117 = vpop.xlane.xlu0 %6116
        %v6118 = vsel %vm1239, %v5643, -inf
        %6119 = vmax.xlane.f32.xlu0 %v6118
        %v6120 = vpop.xlane.xlu0 %6119
        %v6121 = vsel %vm1239, %v5648, -inf
        %6122 = vmax.xlane.f32.xlu0 %v6121
        %v6123 = vpop.xlane.xlu0 %6122
        %v6124 = vsel %vm1239, %v5734, -inf
        %6125 = vmax.xlane.f32.xlu0 %v6124
        %v6126 = vpop.xlane.xlu0 %6125
        %v6127 = vsel %vm1239, %v5739, -inf
        %6128 = vmax.xlane.f32.xlu0 %v6127
        %v6129 = vpop.xlane.xlu0 %6128
        %v6130 = vsel %vm1239, %v5825, -inf
        %6131 = vmax.xlane.f32.xlu0 %v6130
        %v6132 = vpop.xlane.xlu0 %6131
        %v6133 = vsel %vm1239, %v5830, -inf
        %6134 = vmax.xlane.f32.xlu0 %v6133
        %v6135 = vpop.xlane.xlu0 %6134
        %v6136 = vsel %vm1239, %v5916, -inf
        %6137 = vmax.xlane.f32.xlu0 %v6136
        %v6138 = vpop.xlane.xlu0 %6137
        %v6139 = vsel %vm1239, %v5921, -inf
        %6140 = vmax.xlane.f32.xlu0 %v6139
        %v6141 = vpop.xlane.xlu0 %6140
        %v6142 = vsel %vm1239, %v6007, -inf
        %6143 = vmax.xlane.f32.xlu0 %v6142
        %v6144 = vpop.xlane.xlu0 %6143
        %v6145 = vsel %vm1239, %v6012, -inf
        %6146 = vmax.xlane.f32.xlu0 %v6145
        %v6147 = vpop.xlane.xlu0 %6146
        %v6148 = vsel %vm1239, %v6098, -inf
        %6149 = vmax.xlane.f32.xlu0 %v6148
        %v6150 = vpop.xlane.xlu0 %6149
        %v6151 = vsel %vm1239, %v6103, -inf
        %6152 = vmax.xlane.f32.xlu0 %v6151
        %v6153 = vpop.xlane.xlu0 %6152
        %v6154 = vsub.f32 %v5461, %v6108
        %v6155 = vsub.f32 %v5466, %v6111
        %v6156 = vsub.f32 %v5552, %v6114
        %v6157 = vsub.f32 %v5557, %v6117
        %v6158 = vsub.f32 %v5643, %v6120
        %v6159 = vsub.f32 %v5648, %v6123
        %v6160 = vsub.f32 %v5734, %v6126
        %v6161 = vsub.f32 %v5739, %v6129
        %v6162 = vsub.f32 %v5825, %v6132
        %v6163 = vsub.f32 %v5830, %v6135
        %v6164 = vsub.f32 %v5916, %v6138
        %v6165 = vsub.f32 %v5921, %v6141
        %v6166 = vsub.f32 %v6007, %v6144
        %v6167 = vsub.f32 %v6012, %v6147
        %v6168 = vsub.f32 %v6098, %v6150
        %v6169 = vsub.f32 %v6103, %v6153
        %v6170 = vmul.f32 %v6154, 1.442695
        %v6171 = vpow.pop %v6170
        %v6172 = vmul.f32 %v6155, 1.442695
        %v6173 = vpow.pop %v6172
        %v6174 = vmul.f32 %v6156, 1.442695
        %v6175 = vpow.pop %v6174
        %v6176 = vmul.f32 %v6157, 1.442695
        %v6177 = vpow.pop %v6176
        %v6178 = vmul.f32 %v6158, 1.442695
        %v6179 = vpow.pop %v6178
        %v6180 = vmul.f32 %v6159, 1.442695
        %v6181 = vpow.pop %v6180
        %v6182 = vmul.f32 %v6160, 1.442695
        %v6183 = vpow.pop %v6182
        %v6184 = vmul.f32 %v6161, 1.442695
        %v6185 = vpow.pop %v6184
        %v6186 = vmul.f32 %v6162, 1.442695
        %v6187 = vpow.pop %v6186
        %v6188 = vmul.f32 %v6163, 1.442695
        %v6189 = vpow.pop %v6188
        %v6190 = vmul.f32 %v6164, 1.442695
        %v6191 = vpow.pop %v6190
        %v6192 = vmul.f32 %v6165, 1.442695
        %v6193 = vpow.pop %v6192
        %v6194 = vmul.f32 %v6166, 1.442695
        %v6195 = vpow.pop %v6194
        %v6196 = vmul.f32 %v6167, 1.442695
        %v6197 = vpow.pop %v6196
        %v6198 = vmul.f32 %v6168, 1.442695
        %v6199 = vpow.pop %v6198
        %v6200 = vmul.f32 %v6169, 1.442695
        %v6201 = vpow.pop %v6200
        %v6202 = vsel %vm1239, %v6171, 0.0
        %6203 = vadd.xlane.f32.xlu0 %v6202
        %v6204 = vpop.xlane.xlu0 %6203
        %v6205 = vsel %vm1239, %v6173, 0.0
        %6206 = vadd.xlane.f32.xlu0 %v6205
        %v6207 = vpop.xlane.xlu0 %6206
        %v6208 = vsel %vm1239, %v6175, 0.0
        %6209 = vadd.xlane.f32.xlu0 %v6208
        %v6210 = vpop.xlane.xlu0 %6209
        %v6211 = vsel %vm1239, %v6177, 0.0
        %6212 = vadd.xlane.f32.xlu0 %v6211
        %v6213 = vpop.xlane.xlu0 %6212
        %v6214 = vsel %vm1239, %v6179, 0.0
        %6215 = vadd.xlane.f32.xlu0 %v6214
        %v6216 = vpop.xlane.xlu0 %6215
        %v6217 = vsel %vm1239, %v6181, 0.0
        %6218 = vadd.xlane.f32.xlu0 %v6217
        %v6219 = vpop.xlane.xlu0 %6218
        %v6220 = vsel %vm1239, %v6183, 0.0
        %6221 = vadd.xlane.f32.xlu0 %v6220
        %v6222 = vpop.xlane.xlu0 %6221
        %v6223 = vsel %vm1239, %v6185, 0.0
        %6224 = vadd.xlane.f32.xlu0 %v6223
        %v6225 = vpop.xlane.xlu0 %6224
        %v6226 = vsel %vm1239, %v6187, 0.0
        %6227 = vadd.xlane.f32.xlu0 %v6226
        %v6228 = vpop.xlane.xlu0 %6227
        %v6229 = vsel %vm1239, %v6189, 0.0
        %6230 = vadd.xlane.f32.xlu0 %v6229
        %v6231 = vpop.xlane.xlu0 %6230
        %v6232 = vsel %vm1239, %v6191, 0.0
        %6233 = vadd.xlane.f32.xlu0 %v6232
        %v6234 = vpop.xlane.xlu0 %6233
        %v6235 = vsel %vm1239, %v6193, 0.0
        %6236 = vadd.xlane.f32.xlu0 %v6235
        %v6237 = vpop.xlane.xlu0 %6236
        %v6238 = vsel %vm1239, %v6195, 0.0
        %6239 = vadd.xlane.f32.xlu0 %v6238
        %v6240 = vpop.xlane.xlu0 %6239
        %v6241 = vsel %vm1239, %v6197, 0.0
        %6242 = vadd.xlane.f32.xlu0 %v6241
        %v6243 = vpop.xlane.xlu0 %6242
        %v6244 = vsel %vm1239, %v6199, 0.0
        %6245 = vadd.xlane.f32.xlu0 %v6244
        %v6246 = vpop.xlane.xlu0 %6245
        %v6247 = vsel %vm1239, %v6201, 0.0
        %6248 = vadd.xlane.f32.xlu0 %v6247
        %v6249 = vpop.xlane.xlu0 %6248
        %v6250 = vrcp.pop %v6204
        %v6251 = vrcp.pop %v6207
        %v6252 = vrcp.pop %v6210
        %v6253 = vrcp.pop %v6213
        %v6254 = vrcp.pop %v6216
        %v6255 = vrcp.pop %v6219
        %v6256 = vrcp.pop %v6222
        %v6257 = vrcp.pop %v6225
        %v6258 = vrcp.pop %v6228
        %v6259 = vrcp.pop %v6231
        %v6260 = vrcp.pop %v6234
        %v6261 = vrcp.pop %v6237
        %v6262 = vrcp.pop %v6240
        %v6263 = vrcp.pop %v6243
        %v6264 = vrcp.pop %v6246
        %v6265 = vrcp.pop %v6249
        %v6266 = vmul.f32 %v6171, %v6250
        %v6267 = vmul.f32 %v6173, %v6251
        %v6268 = vmul.f32 %v6175, %v6252
        %v6269 = vmul.f32 %v6177, %v6253
        %v6270 = vmul.f32 %v6179, %v6254
        %v6271 = vmul.f32 %v6181, %v6255
        %v6272 = vmul.f32 %v6183, %v6256
        %v6273 = vmul.f32 %v6185, %v6257
        %v6274 = vmul.f32 %v6187, %v6258
        %v6275 = vmul.f32 %v6189, %v6259
        %v6276 = vmul.f32 %v6191, %v6260
        %v6277 = vmul.f32 %v6193, %v6261
        %v6278 = vmul.f32 %v6195, %v6262
        %v6279 = vmul.f32 %v6197, %v6263
        %v6280 = vmul.f32 %v6199, %v6264
        %v6281 = vmul.f32 %v6201, %v6265
        %s6282 = scalar_lea.vmem %s283, 48 [#allocation9]
        %6283 = vst.msk [vmem:[%s6282] sm:$0xff] %vm1239, %v6266
        %6284 = vst.msk [vmem:[%s6282 + $0x8] sm:$0xff] %vm1239, %v6267
        %6285 = vst.msk [vmem:[%s6282 + $0x40] sm:$0xff] %vm1239, %v6268
        %6286 = vst.msk [vmem:[%s6282 + $0x48] sm:$0xff] %vm1239, %v6269
        %6287 = vst.msk [vmem:[%s6282 + $0x80] sm:$0xff] %vm1239, %v6270
        %6288 = vst.msk [vmem:[%s6282 + $0x88] sm:$0xff] %vm1239, %v6271
        %6289 = vst.msk [vmem:[%s6282 + $0xc0] sm:$0xff] %vm1239, %v6272
        %6290 = vst.msk [vmem:[%s6282 + $0xc8] sm:$0xff] %vm1239, %v6273
        %6291 = vst.msk [vmem:[%s6282 + $0x100] sm:$0xff] %vm1239, %v6274
        %6292 = vst.msk [vmem:[%s6282 + $0x108] sm:$0xff] %vm1239, %v6275
        %6293 = vst.msk [vmem:[%s6282 + $0x140] sm:$0xff] %vm1239, %v6276
        %6294 = vst.msk [vmem:[%s6282 + $0x148] sm:$0xff] %vm1239, %v6277
        %6295 = vst.msk [vmem:[%s6282 + $0x180] sm:$0xff] %vm1239, %v6278
        %6296 = vst.msk [vmem:[%s6282 + $0x188] sm:$0xff] %vm1239, %v6279
        %6297 = vst.msk [vmem:[%s6282 + $0x1c0] sm:$0xff] %vm1239, %v6280
        %6298 = vst.msk [vmem:[%s6282 + $0x1c8] sm:$0xff] %vm1239, %v6281
        %6299 = vrot.lane.b32.xlu0 %v510, 40
        %v6300 = vpop.permute.xlu0 %6299
        %6301 = vrot.lane.b32.xlu0 %v511, 40
        %v6302 = vpop.permute.xlu0 %6301
        %v6306 = vsel %vm1239, %v6266, 0
        %v6309 = vsel %vm1239, %v6267, 0
        %6311 = vmatprep.subr.mxu0 0.0
        %6312 = vmatpush1.msra.mxu0 %v6300
        %6313 = vmatprep.subr.mxu0 0.0
        %6314 = vmatpush1.msra.mxu0 %v6302
        %6315 = vmatprep.subr.mxu0 0.0
        %6316 = vmatpush1.msra.mxu0 0.0
        %6317 = vmatprep.subr.mxu0 0.0
        %6318 = vmatpush1.msra.mxu0 0.0
        %6319 = vmatprep.subr.mxu0 0.0
        %6320 = vmatpush1.msra.mxu0 0.0
        %6321 = vmatprep.subr.mxu0 0.0
        %6322 = vmatpush1.msra.mxu0 0.0
        %6323 = vmatprep.subr.mxu0 0.0
        %6324 = vmatpush1.msra.mxu0 0.0
        %6325 = vmatprep.subr.mxu0 0.0
        %6326 = vmatpush1.msra.mxu0 0.0
        %6327 = vmatprep.subr.mxu0 0.0
        %6328 = vmatpush1.msra.mxu0 0.0
        %6329 = vmatprep.subr.mxu0 0.0
        %6330 = vmatpush1.msra.mxu0 0.0
        %6331 = vmatprep.subr.mxu0 0.0
        %6332 = vmatpush1.msra.mxu0 0.0
        %6333 = vmatprep.subr.mxu0 0.0
        %6334 = vmatpush1.msra.mxu0 0.0
        %6335 = vmatprep.subr.mxu0 0.0
        %6336 = vmatpush1.msra.mxu0 0.0
        %6337 = vmatprep.subr.mxu0 0.0
        %6338 = vmatpush1.msra.mxu0 0.0
        %6339 = vmatprep.subr.mxu0 0.0
        %6340 = vmatpush1.msra.mxu0 0.0
        %6341 = vmatprep.subr.mxu0 0.0
        %6342 = vmatpush1.msra.mxu0 0.0
        %6343 = vmatprep.subr.mxu0 0.0
        %6344 = vmatpush1.msra.mxu0 0.0
        %6345 = vmatprep.subr.mxu0 0.0
        %6346 = vmatpush1.msra.mxu0 0.0
        %6347 = vmatprep.subr.mxu0 0.0
        %6348 = vmatpush1.msra.mxu0 0.0
        %6349 = vmatprep.subr.mxu0 0.0
        %6350 = vmatpush1.msra.mxu0 0.0
        %6351 = vmatprep.subr.mxu0 0.0
        %6352 = vmatpush1.msra.mxu0 0.0
        %6353 = vmatprep.subr.mxu0 0.0
        %6354 = vmatpush1.msra.mxu0 0.0
        %6355 = vmatprep.subr.mxu0 0.0
        %6356 = vmatpush1.msra.mxu0 0.0
        %6357 = vmatprep.subr.mxu0 0.0
        %6358 = vmatpush1.msra.mxu0 0.0
        %6359 = vmatprep.subr.mxu0 0.0
        %6360 = vmatpush1.msra.mxu0 0.0
        %6361 = vmatprep.subr.mxu0 0.0
        %6362 = vmatpush1.msra.mxu0 0.0
        %6363 = vmatprep.subr.mxu0 0.0
        %6364 = vmatpush1.msra.mxu0 0.0
        %6365 = vmatprep.subr.mxu0 0.0
        %6366 = vmatpush1.msra.mxu0 0.0
        %6367 = vmatprep.subr.mxu0 0.0
        %6368 = vmatpush1.msra.mxu0 0.0
        %6369 = vmatprep.subr.mxu0 0.0
        %6370 = vmatpush1.msra.mxu0 0.0
        %6371 = vmatprep.subr.mxu0 0.0
        %6372 = vmatpush1.msra.mxu0 0.0
        %6373 = vmatprep.subr.mxu0 0.0
        %6374 = vmatpush1.msra.mxu0 0.0
        %6375 = vmatprep.mubr.f32.mxu0 0.0
        %6376 = vmatmul.mubr.f32.gmra.mrb[0].mxu0 %v6306
        %v6377 = vpop.f32.mrb[0].mxu0
        %v6378 = vadd.f32 0.0, %v6377
        %v6379 = vpop.f32.mrb[0].mxu0
        %6380 = vmatprep.mubr.f32.mxu0 0.0
        %6381 = vmatmul.mubr.f32.gmra.mrb[0].mxu0 %v6309
        %v6382 = vpop.f32.mrb[0].mxu0
        %v6383 = vadd.f32 0.0, %v6382
        %v6384 = vpop.f32.mrb[0].mxu0
        %6385 = vdwg.mxu0
        %6386 = vrot.lane.b32.xlu0 %v512, 40
        %v6387 = vpop.permute.xlu0 %6386
        %6388 = vrot.lane.b32.xlu0 %v513, 40
        %v6389 = vpop.permute.xlu0 %6388
        %v6393 = vsel %vm1239, %v6268, 0
        %v6396 = vsel %vm1239, %v6269, 0
        %6398 = vmatprep.subr.mxu0 0.0
        %6399 = vmatpush1.msra.mxu0 %v6387
        %6400 = vmatprep.subr.mxu0 0.0
        %6401 = vmatpush1.msra.mxu0 %v6389
        %6402 = vmatprep.subr.mxu0 0.0
        %6403 = vmatpush1.msra.mxu0 0.0
        %6404 = vmatprep.subr.mxu0 0.0
        %6405 = vmatpush1.msra.mxu0 0.0
        %6406 = vmatprep.subr.mxu0 0.0
        %6407 = vmatpush1.msra.mxu0 0.0
        %6408 = vmatprep.subr.mxu0 0.0
        %6409 = vmatpush1.msra.mxu0 0.0
        %6410 = vmatprep.subr.mxu0 0.0
        %6411 = vmatpush1.msra.mxu0 0.0
        %6412 = vmatprep.subr.mxu0 0.0
        %6413 = vmatpush1.msra.mxu0 0.0
        %6414 = vmatprep.subr.mxu0 0.0
        %6415 = vmatpush1.msra.mxu0 0.0
        %6416 = vmatprep.subr.mxu0 0.0
        %6417 = vmatpush1.msra.mxu0 0.0
        %6418 = vmatprep.subr.mxu0 0.0
        %6419 = vmatpush1.msra.mxu0 0.0
        %6420 = vmatprep.subr.mxu0 0.0
        %6421 = vmatpush1.msra.mxu0 0.0
        %6422 = vmatprep.subr.mxu0 0.0
        %6423 = vmatpush1.msra.mxu0 0.0
        %6424 = vmatprep.subr.mxu0 0.0
        %6425 = vmatpush1.msra.mxu0 0.0
        %6426 = vmatprep.subr.mxu0 0.0
        %6427 = vmatpush1.msra.mxu0 0.0
        %6428 = vmatprep.subr.mxu0 0.0
        %6429 = vmatpush1.msra.mxu0 0.0
        %6430 = vmatprep.subr.mxu0 0.0
        %6431 = vmatpush1.msra.mxu0 0.0
        %6432 = vmatprep.subr.mxu0 0.0
        %6433 = vmatpush1.msra.mxu0 0.0
        %6434 = vmatprep.subr.mxu0 0.0
        %6435 = vmatpush1.msra.mxu0 0.0
        %6436 = vmatprep.subr.mxu0 0.0
        %6437 = vmatpush1.msra.mxu0 0.0
        %6438 = vmatprep.subr.mxu0 0.0
        %6439 = vmatpush1.msra.mxu0 0.0
        %6440 = vmatprep.subr.mxu0 0.0
        %6441 = vmatpush1.msra.mxu0 0.0
        %6442 = vmatprep.subr.mxu0 0.0
        %6443 = vmatpush1.msra.mxu0 0.0
        %6444 = vmatprep.subr.mxu0 0.0
        %6445 = vmatpush1.msra.mxu0 0.0
        %6446 = vmatprep.subr.mxu0 0.0
        %6447 = vmatpush1.msra.mxu0 0.0
        %6448 = vmatprep.subr.mxu0 0.0
        %6449 = vmatpush1.msra.mxu0 0.0
        %6450 = vmatprep.subr.mxu0 0.0
        %6451 = vmatpush1.msra.mxu0 0.0
        %6452 = vmatprep.subr.mxu0 0.0
        %6453 = vmatpush1.msra.mxu0 0.0
        %6454 = vmatprep.subr.mxu0 0.0
        %6455 = vmatpush1.msra.mxu0 0.0
        %6456 = vmatprep.subr.mxu0 0.0
        %6457 = vmatpush1.msra.mxu0 0.0
        %6458 = vmatprep.subr.mxu0 0.0
        %6459 = vmatpush1.msra.mxu0 0.0
        %6460 = vmatprep.subr.mxu0 0.0
        %6461 = vmatpush1.msra.mxu0 0.0
        %6462 = vmatprep.mubr.f32.mxu0 0.0
        %6463 = vmatmul.mubr.f32.gmra.mrb[0].mxu0 %v6393
        %v6464 = vpop.f32.mrb[0].mxu0
        %v6465 = vadd.f32 0.0, %v6464
        %v6466 = vpop.f32.mrb[0].mxu0
        %6467 = vmatprep.mubr.f32.mxu0 0.0
        %6468 = vmatmul.mubr.f32.gmra.mrb[0].mxu0 %v6396
        %v6469 = vpop.f32.mrb[0].mxu0
        %v6470 = vadd.f32 0.0, %v6469
        %v6471 = vpop.f32.mrb[0].mxu0
        %6472 = vdwg.mxu0
        %6473 = vrot.lane.b32.xlu0 %v514, 40
        %v6474 = vpop.permute.xlu0 %6473
        %6475 = vrot.lane.b32.xlu0 %v515, 40
        %v6476 = vpop.permute.xlu0 %6475
        %v6480 = vsel %vm1239, %v6270, 0
        %v6483 = vsel %vm1239, %v6271, 0
        %6485 = vmatprep.subr.mxu0 0.0
        %6486 = vmatpush1.msra.mxu0 %v6474
        %6487 = vmatprep.subr.mxu0 0.0
        %6488 = vmatpush1.msra.mxu0 %v6476
        %6489 = vmatprep.subr.mxu0 0.0
        %6490 = vmatpush1.msra.mxu0 0.0
        %6491 = vmatprep.subr.mxu0 0.0
        %6492 = vmatpush1.msra.mxu0 0.0
        %6493 = vmatprep.subr.mxu0 0.0
        %6494 = vmatpush1.msra.mxu0 0.0
        %6495 = vmatprep.subr.mxu0 0.0
        %6496 = vmatpush1.msra.mxu0 0.0
        %6497 = vmatprep.subr.mxu0 0.0
        %6498 = vmatpush1.msra.mxu0 0.0
        %6499 = vmatprep.subr.mxu0 0.0
        %6500 = vmatpush1.msra.mxu0 0.0
        %6501 = vmatprep.subr.mxu0 0.0
        %6502 = vmatpush1.msra.mxu0 0.0
        %6503 = vmatprep.subr.mxu0 0.0
        %6504 = vmatpush1.msra.mxu0 0.0
        %6505 = vmatprep.subr.mxu0 0.0
        %6506 = vmatpush1.msra.mxu0 0.0
        %6507 = vmatprep.subr.mxu0 0.0
        %6508 = vmatpush1.msra.mxu0 0.0
        %6509 = vmatprep.subr.mxu0 0.0
        %6510 = vmatpush1.msra.mxu0 0.0
        %6511 = vmatprep.subr.mxu0 0.0
        %6512 = vmatpush1.msra.mxu0 0.0
        %6513 = vmatprep.subr.mxu0 0.0
        %6514 = vmatpush1.msra.mxu0 0.0
        %6515 = vmatprep.subr.mxu0 0.0
        %6516 = vmatpush1.msra.mxu0 0.0
        %6517 = vmatprep.subr.mxu0 0.0
        %6518 = vmatpush1.msra.mxu0 0.0
        %6519 = vmatprep.subr.mxu0 0.0
        %6520 = vmatpush1.msra.mxu0 0.0
        %6521 = vmatprep.subr.mxu0 0.0
        %6522 = vmatpush1.msra.mxu0 0.0
        %6523 = vmatprep.subr.mxu0 0.0
        %6524 = vmatpush1.msra.mxu0 0.0
        %6525 = vmatprep.subr.mxu0 0.0
        %6526 = vmatpush1.msra.mxu0 0.0
        %6527 = vmatprep.subr.mxu0 0.0
        %6528 = vmatpush1.msra.mxu0 0.0
        %6529 = vmatprep.subr.mxu0 0.0
        %6530 = vmatpush1.msra.mxu0 0.0
        %6531 = vmatprep.subr.mxu0 0.0
        %6532 = vmatpush1.msra.mxu0 0.0
        %6533 = vmatprep.subr.mxu0 0.0
        %6534 = vmatpush1.msra.mxu0 0.0
        %6535 = vmatprep.subr.mxu0 0.0
        %6536 = vmatpush1.msra.mxu0 0.0
        %6537 = vmatprep.subr.mxu0 0.0
        %6538 = vmatpush1.msra.mxu0 0.0
        %6539 = vmatprep.subr.mxu0 0.0
        %6540 = vmatpush1.msra.mxu0 0.0
        %6541 = vmatprep.subr.mxu0 0.0
        %6542 = vmatpush1.msra.mxu0 0.0
        %6543 = vmatprep.subr.mxu0 0.0
        %6544 = vmatpush1.msra.mxu0 0.0
        %6545 = vmatprep.subr.mxu0 0.0
        %6546 = vmatpush1.msra.mxu0 0.0
        %6547 = vmatprep.subr.mxu0 0.0
        %6548 = vmatpush1.msra.mxu0 0.0
        %6549 = vmatprep.mubr.f32.mxu0 0.0
        %6550 = vmatmul.mubr.f32.gmra.mrb[0].mxu0 %v6480
        %v6551 = vpop.f32.mrb[0].mxu0
        %v6552 = vadd.f32 0.0, %v6551
        %v6553 = vpop.f32.mrb[0].mxu0
        %6554 = vmatprep.mubr.f32.mxu0 0.0
        %6555 = vmatmul.mubr.f32.gmra.mrb[0].mxu0 %v6483
        %v6556 = vpop.f32.mrb[0].mxu0
        %v6557 = vadd.f32 0.0, %v6556
        %v6558 = vpop.f32.mrb[0].mxu0
        %6559 = vdwg.mxu0
        %6560 = vrot.lane.b32.xlu0 %v516, 40
        %v6561 = vpop.permute.xlu0 %6560
        %6562 = vrot.lane.b32.xlu0 %v517, 40
        %v6563 = vpop.permute.xlu0 %6562
        %v6567 = vsel %vm1239, %v6272, 0
        %v6570 = vsel %vm1239, %v6273, 0
        %6572 = vmatprep.subr.mxu0 0.0
        %6573 = vmatpush1.msra.mxu0 %v6561
        %6574 = vmatprep.subr.mxu0 0.0
        %6575 = vmatpush1.msra.mxu0 %v6563
        %6576 = vmatprep.subr.mxu0 0.0
        %6577 = vmatpush1.msra.mxu0 0.0
        %6578 = vmatprep.subr.mxu0 0.0
        %6579 = vmatpush1.msra.mxu0 0.0
        %6580 = vmatprep.subr.mxu0 0.0
        %6581 = vmatpush1.msra.mxu0 0.0
        %6582 = vmatprep.subr.mxu0 0.0
        %6583 = vmatpush1.msra.mxu0 0.0
        %6584 = vmatprep.subr.mxu0 0.0
        %6585 = vmatpush1.msra.mxu0 0.0
        %6586 = vmatprep.subr.mxu0 0.0
        %6587 = vmatpush1.msra.mxu0 0.0
        %6588 = vmatprep.subr.mxu0 0.0
        %6589 = vmatpush1.msra.mxu0 0.0
        %6590 = vmatprep.subr.mxu0 0.0
        %6591 = vmatpush1.msra.mxu0 0.0
        %6592 = vmatprep.subr.mxu0 0.0
        %6593 = vmatpush1.msra.mxu0 0.0
        %6594 = vmatprep.subr.mxu0 0.0
        %6595 = vmatpush1.msra.mxu0 0.0
        %6596 = vmatprep.subr.mxu0 0.0
        %6597 = vmatpush1.msra.mxu0 0.0
        %6598 = vmatprep.subr.mxu0 0.0
        %6599 = vmatpush1.msra.mxu0 0.0
        %6600 = vmatprep.subr.mxu0 0.0
        %6601 = vmatpush1.msra.mxu0 0.0
        %6602 = vmatprep.subr.mxu0 0.0
        %6603 = vmatpush1.msra.mxu0 0.0
        %6604 = vmatprep.subr.mxu0 0.0
        %6605 = vmatpush1.msra.mxu0 0.0
        %6606 = vmatprep.subr.mxu0 0.0
        %6607 = vmatpush1.msra.mxu0 0.0
        %6608 = vmatprep.subr.mxu0 0.0
        %6609 = vmatpush1.msra.mxu0 0.0
        %6610 = vmatprep.subr.mxu0 0.0
        %6611 = vmatpush1.msra.mxu0 0.0
        %6612 = vmatprep.subr.mxu0 0.0
        %6613 = vmatpush1.msra.mxu0 0.0
        %6614 = vmatprep.subr.mxu0 0.0
        %6615 = vmatpush1.msra.mxu0 0.0
        %6616 = vmatprep.subr.mxu0 0.0
        %6617 = vmatpush1.msra.mxu0 0.0
        %6618 = vmatprep.subr.mxu0 0.0
        %6619 = vmatpush1.msra.mxu0 0.0
        %6620 = vmatprep.subr.mxu0 0.0
        %6621 = vmatpush1.msra.mxu0 0.0
        %6622 = vmatprep.subr.mxu0 0.0
        %6623 = vmatpush1.msra.mxu0 0.0
        %6624 = vmatprep.subr.mxu0 0.0
        %6625 = vmatpush1.msra.mxu0 0.0
        %6626 = vmatprep.subr.mxu0 0.0
        %6627 = vmatpush1.msra.mxu0 0.0
        %6628 = vmatprep.subr.mxu0 0.0
        %6629 = vmatpush1.msra.mxu0 0.0
        %6630 = vmatprep.subr.mxu0 0.0
        %6631 = vmatpush1.msra.mxu0 0.0
        %6632 = vmatprep.subr.mxu0 0.0
        %6633 = vmatpush1.msra.mxu0 0.0
        %6634 = vmatprep.subr.mxu0 0.0
        %6635 = vmatpush1.msra.mxu0 0.0
        %6636 = vmatprep.mubr.f32.mxu0 0.0
        %6637 = vmatmul.mubr.f32.gmra.mrb[0].mxu0 %v6567
        %v6638 = vpop.f32.mrb[0].mxu0
        %v6639 = vadd.f32 0.0, %v6638
        %v6640 = vpop.f32.mrb[0].mxu0
        %6641 = vmatprep.mubr.f32.mxu0 0.0
        %6642 = vmatmul.mubr.f32.gmra.mrb[0].mxu0 %v6570
        %v6643 = vpop.f32.mrb[0].mxu0
        %v6644 = vadd.f32 0.0, %v6643
        %v6645 = vpop.f32.mrb[0].mxu0
        %6646 = vdwg.mxu0
        %6647 = vrot.lane.b32.xlu0 %v518, 40
        %v6648 = vpop.permute.xlu0 %6647
        %6649 = vrot.lane.b32.xlu0 %v519, 40
        %v6650 = vpop.permute.xlu0 %6649
        %v6654 = vsel %vm1239, %v6274, 0
        %v6657 = vsel %vm1239, %v6275, 0
        %6659 = vmatprep.subr.mxu0 0.0
        %6660 = vmatpush1.msra.mxu0 %v6648
        %6661 = vmatprep.subr.mxu0 0.0
        %6662 = vmatpush1.msra.mxu0 %v6650
        %6663 = vmatprep.subr.mxu0 0.0
        %6664 = vmatpush1.msra.mxu0 0.0
        %6665 = vmatprep.subr.mxu0 0.0
        %6666 = vmatpush1.msra.mxu0 0.0
        %6667 = vmatprep.subr.mxu0 0.0
        %6668 = vmatpush1.msra.mxu0 0.0
        %6669 = vmatprep.subr.mxu0 0.0
        %6670 = vmatpush1.msra.mxu0 0.0
        %6671 = vmatprep.subr.mxu0 0.0
        %6672 = vmatpush1.msra.mxu0 0.0
        %6673 = vmatprep.subr.mxu0 0.0
        %6674 = vmatpush1.msra.mxu0 0.0
        %6675 = vmatprep.subr.mxu0 0.0
        %6676 = vmatpush1.msra.mxu0 0.0
        %6677 = vmatprep.subr.mxu0 0.0
        %6678 = vmatpush1.msra.mxu0 0.0
        %6679 = vmatprep.subr.mxu0 0.0
        %6680 = vmatpush1.msra.mxu0 0.0
        %6681 = vmatprep.subr.mxu0 0.0
        %6682 = vmatpush1.msra.mxu0 0.0
        %6683 = vmatprep.subr.mxu0 0.0
        %6684 = vmatpush1.msra.mxu0 0.0
        %6685 = vmatprep.subr.mxu0 0.0
        %6686 = vmatpush1.msra.mxu0 0.0
        %6687 = vmatprep.subr.mxu0 0.0
        %6688 = vmatpush1.msra.mxu0 0.0
        %6689 = vmatprep.subr.mxu0 0.0
        %6690 = vmatpush1.msra.mxu0 0.0
        %6691 = vmatprep.subr.mxu0 0.0
        %6692 = vmatpush1.msra.mxu0 0.0
        %6693 = vmatprep.subr.mxu0 0.0
        %6694 = vmatpush1.msra.mxu0 0.0
        %6695 = vmatprep.subr.mxu0 0.0
        %6696 = vmatpush1.msra.mxu0 0.0
        %6697 = vmatprep.subr.mxu0 0.0
        %6698 = vmatpush1.msra.mxu0 0.0
        %6699 = vmatprep.subr.mxu0 0.0
        %6700 = vmatpush1.msra.mxu0 0.0
        %6701 = vmatprep.subr.mxu0 0.0
        %6702 = vmatpush1.msra.mxu0 0.0
        %6703 = vmatprep.subr.mxu0 0.0
        %6704 = vmatpush1.msra.mxu0 0.0
        %6705 = vmatprep.subr.mxu0 0.0
        %6706 = vmatpush1.msra.mxu0 0.0
        %6707 = vmatprep.subr.mxu0 0.0
        %6708 = vmatpush1.msra.mxu0 0.0
        %6709 = vmatprep.subr.mxu0 0.0
        %6710 = vmatpush1.msra.mxu0 0.0
        %6711 = vmatprep.subr.mxu0 0.0
        %6712 = vmatpush1.msra.mxu0 0.0
        %6713 = vmatprep.subr.mxu0 0.0
        %6714 = vmatpush1.msra.mxu0 0.0
        %6715 = vmatprep.subr.mxu0 0.0
        %6716 = vmatpush1.msra.mxu0 0.0
        %6717 = vmatprep.subr.mxu0 0.0
        %6718 = vmatpush1.msra.mxu0 0.0
        %6719 = vmatprep.subr.mxu0 0.0
        %6720 = vmatpush1.msra.mxu0 0.0
        %6721 = vmatprep.subr.mxu0 0.0
        %6722 = vmatpush1.msra.mxu0 0.0
        %6723 = vmatprep.mubr.f32.mxu0 0.0
        %6724 = vmatmul.mubr.f32.gmra.mrb[0].mxu0 %v6654
        %v6725 = vpop.f32.mrb[0].mxu0
        %v6726 = vadd.f32 0.0, %v6725
        %v6727 = vpop.f32.mrb[0].mxu0
        %6728 = vmatprep.mubr.f32.mxu0 0.0
        %6729 = vmatmul.mubr.f32.gmra.mrb[0].mxu0 %v6657
        %v6730 = vpop.f32.mrb[0].mxu0
        %v6731 = vadd.f32 0.0, %v6730
        %v6732 = vpop.f32.mrb[0].mxu0
        %6733 = vdwg.mxu0
        %6734 = vrot.lane.b32.xlu0 %v520, 40
        %v6735 = vpop.permute.xlu0 %6734
        %6736 = vrot.lane.b32.xlu0 %v521, 40
        %v6737 = vpop.permute.xlu0 %6736
        %v6741 = vsel %vm1239, %v6276, 0
        %v6744 = vsel %vm1239, %v6277, 0
        %6746 = vmatprep.subr.mxu0 0.0
        %6747 = vmatpush1.msra.mxu0 %v6735
        %6748 = vmatprep.subr.mxu0 0.0
        %6749 = vmatpush1.msra.mxu0 %v6737
        %6750 = vmatprep.subr.mxu0 0.0
        %6751 = vmatpush1.msra.mxu0 0.0
        %6752 = vmatprep.subr.mxu0 0.0
        %6753 = vmatpush1.msra.mxu0 0.0
        %6754 = vmatprep.subr.mxu0 0.0
        %6755 = vmatpush1.msra.mxu0 0.0
        %6756 = vmatprep.subr.mxu0 0.0
        %6757 = vmatpush1.msra.mxu0 0.0
        %6758 = vmatprep.subr.mxu0 0.0
        %6759 = vmatpush1.msra.mxu0 0.0
        %6760 = vmatprep.subr.mxu0 0.0
        %6761 = vmatpush1.msra.mxu0 0.0
        %6762 = vmatprep.subr.mxu0 0.0
        %6763 = vmatpush1.msra.mxu0 0.0
        %6764 = vmatprep.subr.mxu0 0.0
        %6765 = vmatpush1.msra.mxu0 0.0
        %6766 = vmatprep.subr.mxu0 0.0
        %6767 = vmatpush1.msra.mxu0 0.0
        %6768 = vmatprep.subr.mxu0 0.0
        %6769 = vmatpush1.msra.mxu0 0.0
        %6770 = vmatprep.subr.mxu0 0.0
        %6771 = vmatpush1.msra.mxu0 0.0
        %6772 = vmatprep.subr.mxu0 0.0
        %6773 = vmatpush1.msra.mxu0 0.0
        %6774 = vmatprep.subr.mxu0 0.0
        %6775 = vmatpush1.msra.mxu0 0.0
        %6776 = vmatprep.subr.mxu0 0.0
        %6777 = vmatpush1.msra.mxu0 0.0
        %6778 = vmatprep.subr.mxu0 0.0
        %6779 = vmatpush1.msra.mxu0 0.0
        %6780 = vmatprep.subr.mxu0 0.0
        %6781 = vmatpush1.msra.mxu0 0.0
        %6782 = vmatprep.subr.mxu0 0.0
        %6783 = vmatpush1.msra.mxu0 0.0
        %6784 = vmatprep.subr.mxu0 0.0
        %6785 = vmatpush1.msra.mxu0 0.0
        %6786 = vmatprep.subr.mxu0 0.0
        %6787 = vmatpush1.msra.mxu0 0.0
        %6788 = vmatprep.subr.mxu0 0.0
        %6789 = vmatpush1.msra.mxu0 0.0
        %6790 = vmatprep.subr.mxu0 0.0
        %6791 = vmatpush1.msra.mxu0 0.0
        %6792 = vmatprep.subr.mxu0 0.0
        %6793 = vmatpush1.msra.mxu0 0.0
        %6794 = vmatprep.subr.mxu0 0.0
        %6795 = vmatpush1.msra.mxu0 0.0
        %6796 = vmatprep.subr.mxu0 0.0
        %6797 = vmatpush1.msra.mxu0 0.0
        %6798 = vmatprep.subr.mxu0 0.0
        %6799 = vmatpush1.msra.mxu0 0.0
        %6800 = vmatprep.subr.mxu0 0.0
        %6801 = vmatpush1.msra.mxu0 0.0
        %6802 = vmatprep.subr.mxu0 0.0
        %6803 = vmatpush1.msra.mxu0 0.0
        %6804 = vmatprep.subr.mxu0 0.0
        %6805 = vmatpush1.msra.mxu0 0.0
        %6806 = vmatprep.subr.mxu0 0.0
        %6807 = vmatpush1.msra.mxu0 0.0
        %6808 = vmatprep.subr.mxu0 0.0
        %6809 = vmatpush1.msra.mxu0 0.0
        %6810 = vmatprep.mubr.f32.mxu0 0.0
        %6811 = vmatmul.mubr.f32.gmra.mrb[0].mxu0 %v6741
        %v6812 = vpop.f32.mrb[0].mxu0
        %v6813 = vadd.f32 0.0, %v6812
        %v6814 = vpop.f32.mrb[0].mxu0
        %6815 = vmatprep.mubr.f32.mxu0 0.0
        %6816 = vmatmul.mubr.f32.gmra.mrb[0].mxu0 %v6744
        %v6817 = vpop.f32.mrb[0].mxu0
        %v6818 = vadd.f32 0.0, %v6817
        %v6819 = vpop.f32.mrb[0].mxu0
        %6820 = vdwg.mxu0
        %6821 = vrot.lane.b32.xlu0 %v522, 40
        %v6822 = vpop.permute.xlu0 %6821
        %6823 = vrot.lane.b32.xlu0 %v523, 40
        %v6824 = vpop.permute.xlu0 %6823
        %v6828 = vsel %vm1239, %v6278, 0
        %v6831 = vsel %vm1239, %v6279, 0
        %6833 = vmatprep.subr.mxu0 0.0
        %6834 = vmatpush1.msra.mxu0 %v6822
        %6835 = vmatprep.subr.mxu0 0.0
        %6836 = vmatpush1.msra.mxu0 %v6824
        %6837 = vmatprep.subr.mxu0 0.0
        %6838 = vmatpush1.msra.mxu0 0.0
        %6839 = vmatprep.subr.mxu0 0.0
        %6840 = vmatpush1.msra.mxu0 0.0
        %6841 = vmatprep.subr.mxu0 0.0
        %6842 = vmatpush1.msra.mxu0 0.0
        %6843 = vmatprep.subr.mxu0 0.0
        %6844 = vmatpush1.msra.mxu0 0.0
        %6845 = vmatprep.subr.mxu0 0.0
        %6846 = vmatpush1.msra.mxu0 0.0
        %6847 = vmatprep.subr.mxu0 0.0
        %6848 = vmatpush1.msra.mxu0 0.0
        %6849 = vmatprep.subr.mxu0 0.0
        %6850 = vmatpush1.msra.mxu0 0.0
        %6851 = vmatprep.subr.mxu0 0.0
        %6852 = vmatpush1.msra.mxu0 0.0
        %6853 = vmatprep.subr.mxu0 0.0
        %6854 = vmatpush1.msra.mxu0 0.0
        %6855 = vmatprep.subr.mxu0 0.0
        %6856 = vmatpush1.msra.mxu0 0.0
        %6857 = vmatprep.subr.mxu0 0.0
        %6858 = vmatpush1.msra.mxu0 0.0
        %6859 = vmatprep.subr.mxu0 0.0
        %6860 = vmatpush1.msra.mxu0 0.0
        %6861 = vmatprep.subr.mxu0 0.0
        %6862 = vmatpush1.msra.mxu0 0.0
        %6863 = vmatprep.subr.mxu0 0.0
        %6864 = vmatpush1.msra.mxu0 0.0
        %6865 = vmatprep.subr.mxu0 0.0
        %6866 = vmatpush1.msra.mxu0 0.0
        %6867 = vmatprep.subr.mxu0 0.0
        %6868 = vmatpush1.msra.mxu0 0.0
        %6869 = vmatprep.subr.mxu0 0.0
        %6870 = vmatpush1.msra.mxu0 0.0
        %6871 = vmatprep.subr.mxu0 0.0
        %6872 = vmatpush1.msra.mxu0 0.0
        %6873 = vmatprep.subr.mxu0 0.0
        %6874 = vmatpush1.msra.mxu0 0.0
        %6875 = vmatprep.subr.mxu0 0.0
        %6876 = vmatpush1.msra.mxu0 0.0
        %6877 = vmatprep.subr.mxu0 0.0
        %6878 = vmatpush1.msra.mxu0 0.0
        %6879 = vmatprep.subr.mxu0 0.0
        %6880 = vmatpush1.msra.mxu0 0.0
        %6881 = vmatprep.subr.mxu0 0.0
        %6882 = vmatpush1.msra.mxu0 0.0
        %6883 = vmatprep.subr.mxu0 0.0
        %6884 = vmatpush1.msra.mxu0 0.0
        %6885 = vmatprep.subr.mxu0 0.0
        %6886 = vmatpush1.msra.mxu0 0.0
        %6887 = vmatprep.subr.mxu0 0.0
        %6888 = vmatpush1.msra.mxu0 0.0
        %6889 = vmatprep.subr.mxu0 0.0
        %6890 = vmatpush1.msra.mxu0 0.0
        %6891 = vmatprep.subr.mxu0 0.0
        %6892 = vmatpush1.msra.mxu0 0.0
        %6893 = vmatprep.subr.mxu0 0.0
        %6894 = vmatpush1.msra.mxu0 0.0
        %6895 = vmatprep.subr.mxu0 0.0
        %6896 = vmatpush1.msra.mxu0 0.0
        %6897 = vmatprep.mubr.f32.mxu0 0.0
        %6898 = vmatmul.mubr.f32.gmra.mrb[0].mxu0 %v6828
        %v6899 = vpop.f32.mrb[0].mxu0
        %v6900 = vadd.f32 0.0, %v6899
        %v6901 = vpop.f32.mrb[0].mxu0
        %6902 = vmatprep.mubr.f32.mxu0 0.0
        %6903 = vmatmul.mubr.f32.gmra.mrb[0].mxu0 %v6831
        %v6904 = vpop.f32.mrb[0].mxu0
        %v6905 = vadd.f32 0.0, %v6904
        %v6906 = vpop.f32.mrb[0].mxu0
        %6907 = vdwg.mxu0
        %6908 = vrot.lane.b32.xlu0 %v524, 40
        %v6909 = vpop.permute.xlu0 %6908
        %6910 = vrot.lane.b32.xlu0 %v525, 40
        %v6911 = vpop.permute.xlu0 %6910
        %v6915 = vsel %vm1239, %v6280, 0
        %v6918 = vsel %vm1239, %v6281, 0
        %6920 = vmatprep.subr.mxu0 0.0
        %6921 = vmatpush1.msra.mxu0 %v6909
        %6922 = vmatprep.subr.mxu0 0.0
        %6923 = vmatpush1.msra.mxu0 %v6911
        %6924 = vmatprep.subr.mxu0 0.0
        %6925 = vmatpush1.msra.mxu0 0.0
        %6926 = vmatprep.subr.mxu0 0.0
        %6927 = vmatpush1.msra.mxu0 0.0
        %6928 = vmatprep.subr.mxu0 0.0
        %6929 = vmatpush1.msra.mxu0 0.0
        %6930 = vmatprep.subr.mxu0 0.0
        %6931 = vmatpush1.msra.mxu0 0.0
        %6932 = vmatprep.subr.mxu0 0.0
        %6933 = vmatpush1.msra.mxu0 0.0
        %6934 = vmatprep.subr.mxu0 0.0
        %6935 = vmatpush1.msra.mxu0 0.0
        %6936 = vmatprep.subr.mxu0 0.0
        %6937 = vmatpush1.msra.mxu0 0.0
        %6938 = vmatprep.subr.mxu0 0.0
        %6939 = vmatpush1.msra.mxu0 0.0
        %6940 = vmatprep.subr.mxu0 0.0
        %6941 = vmatpush1.msra.mxu0 0.0
        %6942 = vmatprep.subr.mxu0 0.0
        %6943 = vmatpush1.msra.mxu0 0.0
        %6944 = vmatprep.subr.mxu0 0.0
        %6945 = vmatpush1.msra.mxu0 0.0
        %6946 = vmatprep.subr.mxu0 0.0
        %6947 = vmatpush1.msra.mxu0 0.0
        %6948 = vmatprep.subr.mxu0 0.0
        %6949 = vmatpush1.msra.mxu0 0.0
        %6950 = vmatprep.subr.mxu0 0.0
        %6951 = vmatpush1.msra.mxu0 0.0
        %6952 = vmatprep.subr.mxu0 0.0
        %6953 = vmatpush1.msra.mxu0 0.0
        %6954 = vmatprep.subr.mxu0 0.0
        %6955 = vmatpush1.msra.mxu0 0.0
        %6956 = vmatprep.subr.mxu0 0.0
        %6957 = vmatpush1.msra.mxu0 0.0
        %6958 = vmatprep.subr.mxu0 0.0
        %6959 = vmatpush1.msra.mxu0 0.0
        %6960 = vmatprep.subr.mxu0 0.0
        %6961 = vmatpush1.msra.mxu0 0.0
        %6962 = vmatprep.subr.mxu0 0.0
        %6963 = vmatpush1.msra.mxu0 0.0
        %6964 = vmatprep.subr.mxu0 0.0
        %6965 = vmatpush1.msra.mxu0 0.0
        %6966 = vmatprep.subr.mxu0 0.0
        %6967 = vmatpush1.msra.mxu0 0.0
        %6968 = vmatprep.subr.mxu0 0.0
        %6969 = vmatpush1.msra.mxu0 0.0
        %6970 = vmatprep.subr.mxu0 0.0
        %6971 = vmatpush1.msra.mxu0 0.0
        %6972 = vmatprep.subr.mxu0 0.0
        %6973 = vmatpush1.msra.mxu0 0.0
        %6974 = vmatprep.subr.mxu0 0.0
        %6975 = vmatpush1.msra.mxu0 0.0
        %6976 = vmatprep.subr.mxu0 0.0
        %6977 = vmatpush1.msra.mxu0 0.0
        %6978 = vmatprep.subr.mxu0 0.0
        %6979 = vmatpush1.msra.mxu0 0.0
        %6980 = vmatprep.subr.mxu0 0.0
        %6981 = vmatpush1.msra.mxu0 0.0
        %6982 = vmatprep.subr.mxu0 0.0
        %6983 = vmatpush1.msra.mxu0 0.0
        %6984 = vmatprep.mubr.f32.mxu0 0.0
        %6985 = vmatmul.mubr.f32.gmra.mrb[0].mxu0 %v6915
        %v6986 = vpop.f32.mrb[0].mxu0
        %v6987 = vadd.f32 0.0, %v6986
        %v6988 = vpop.f32.mrb[0].mxu0
        %6989 = vmatprep.mubr.f32.mxu0 0.0
        %6990 = vmatmul.mubr.f32.gmra.mrb[0].mxu0 %v6918
        %v6991 = vpop.f32.mrb[0].mxu0
        %v6992 = vadd.f32 0.0, %v6991
        %v6993 = vpop.f32.mrb[0].mxu0
        %6994 = vdwg.mxu0
        %7011 = vrot.lane.b32.xlu0 %v3144, 8
        %v7012 = vpop.permute.xlu0 %7011
        %7013 = vrot.lane.b32.xlu0 %v3149, 8
        %v7014 = vpop.permute.xlu0 %7013
        %7015 = vrot.lane.b32.xlu0 %v3231, 8
        %v7016 = vpop.permute.xlu0 %7015
        %7017 = vrot.lane.b32.xlu0 %v3236, 8
        %v7018 = vpop.permute.xlu0 %7017
        %7019 = vrot.lane.b32.xlu0 %v3318, 8
        %v7020 = vpop.permute.xlu0 %7019
        %7021 = vrot.lane.b32.xlu0 %v3323, 8
        %v7022 = vpop.permute.xlu0 %7021
        %7023 = vrot.lane.b32.xlu0 %v3405, 8
        %v7024 = vpop.permute.xlu0 %7023
        %7025 = vrot.lane.b32.xlu0 %v3410, 8
        %v7026 = vpop.permute.xlu0 %7025
        %7027 = vrot.lane.b32.xlu0 %v3492, 8
        %v7028 = vpop.permute.xlu0 %7027
        %7029 = vrot.lane.b32.xlu0 %v3497, 8
        %v7030 = vpop.permute.xlu0 %7029
        %7031 = vrot.lane.b32.xlu0 %v3579, 8
        %v7032 = vpop.permute.xlu0 %7031
        %7033 = vrot.lane.b32.xlu0 %v3584, 8
        %v7034 = vpop.permute.xlu0 %7033
        %7035 = vrot.lane.b32.xlu0 %v3666, 8
        %v7036 = vpop.permute.xlu0 %7035
        %7037 = vrot.lane.b32.xlu0 %v3671, 8
        %v7038 = vpop.permute.xlu0 %7037
        %7039 = vrot.lane.b32.xlu0 %v3753, 8
        %v7040 = vpop.permute.xlu0 %7039
        %7041 = vrot.lane.b32.xlu0 %v3758, 8
        %v7042 = vpop.permute.xlu0 %7041
        %7075 = vrot.lane.b32.xlu0 %v4761, 16
        %v7076 = vpop.permute.xlu0 %7075
        %7077 = vrot.lane.b32.xlu0 %v4766, 16
        %v7078 = vpop.permute.xlu0 %7077
        %7079 = vrot.lane.b32.xlu0 %v4848, 16
        %v7080 = vpop.permute.xlu0 %7079
        %7081 = vrot.lane.b32.xlu0 %v4853, 16
        %v7082 = vpop.permute.xlu0 %7081
        %7083 = vrot.lane.b32.xlu0 %v4935, 16
        %v7084 = vpop.permute.xlu0 %7083
        %7085 = vrot.lane.b32.xlu0 %v4940, 16
        %v7086 = vpop.permute.xlu0 %7085
        %7087 = vrot.lane.b32.xlu0 %v5022, 16
        %v7088 = vpop.permute.xlu0 %7087
        %7089 = vrot.lane.b32.xlu0 %v5027, 16
        %v7090 = vpop.permute.xlu0 %7089
        %7091 = vrot.lane.b32.xlu0 %v5109, 16
        %v7092 = vpop.permute.xlu0 %7091
        %7093 = vrot.lane.b32.xlu0 %v5114, 16
        %v7094 = vpop.permute.xlu0 %7093
        %7095 = vrot.lane.b32.xlu0 %v5196, 16
        %v7096 = vpop.permute.xlu0 %7095
        %7097 = vrot.lane.b32.xlu0 %v5201, 16
        %v7098 = vpop.permute.xlu0 %7097
        %7099 = vrot.lane.b32.xlu0 %v5283, 16
        %v7100 = vpop.permute.xlu0 %7099
        %7101 = vrot.lane.b32.xlu0 %v5288, 16
        %v7102 = vpop.permute.xlu0 %7101
        %7103 = vrot.lane.b32.xlu0 %v5370, 16
        %v7104 = vpop.permute.xlu0 %7103
        %7105 = vrot.lane.b32.xlu0 %v5375, 16
        %v7106 = vpop.permute.xlu0 %7105
        %7139 = vrot.lane.b32.xlu0 %v6378, 24
        %v7140 = vpop.permute.xlu0 %7139
        %7141 = vrot.lane.b32.xlu0 %v6383, 24
        %v7142 = vpop.permute.xlu0 %7141
        %7143 = vrot.lane.b32.xlu0 %v6465, 24
        %v7144 = vpop.permute.xlu0 %7143
        %7145 = vrot.lane.b32.xlu0 %v6470, 24
        %v7146 = vpop.permute.xlu0 %7145
        %7147 = vrot.lane.b32.xlu0 %v6552, 24
        %v7148 = vpop.permute.xlu0 %7147
        %7149 = vrot.lane.b32.xlu0 %v6557, 24
        %v7150 = vpop.permute.xlu0 %7149
        %7151 = vrot.lane.b32.xlu0 %v6639, 24
        %v7152 = vpop.permute.xlu0 %7151
        %7153 = vrot.lane.b32.xlu0 %v6644, 24
        %v7154 = vpop.permute.xlu0 %7153
        %7155 = vrot.lane.b32.xlu0 %v6726, 24
        %v7156 = vpop.permute.xlu0 %7155
        %7157 = vrot.lane.b32.xlu0 %v6731, 24
        %v7158 = vpop.permute.xlu0 %7157
        %7159 = vrot.lane.b32.xlu0 %v6813, 24
        %v7160 = vpop.permute.xlu0 %7159
        %7161 = vrot.lane.b32.xlu0 %v6818, 24
        %v7162 = vpop.permute.xlu0 %7161
        %7163 = vrot.lane.b32.xlu0 %v6900, 24
        %v7164 = vpop.permute.xlu0 %7163
        %7165 = vrot.lane.b32.xlu0 %v6905, 24
        %v7166 = vpop.permute.xlu0 %7165
        %7167 = vrot.lane.b32.xlu0 %v6987, 24
        %v7168 = vpop.permute.xlu0 %7167
        %7169 = vrot.lane.b32.xlu0 %v6992, 24
        %v7170 = vpop.permute.xlu0 %7169
        %v7187 = vsel %vm532, %v1513, %v7012
        %v7188 = vsel %vm532, %v1518, %v7014
        %v7189 = vsel %vm532, %v1602, %v7016
        %v7190 = vsel %vm532, %v1607, %v7018
        %v7191 = vsel %vm532, %v1691, %v7020
        %v7192 = vsel %vm532, %v1696, %v7022
        %v7193 = vsel %vm532, %v1780, %v7024
        %v7194 = vsel %vm532, %v1785, %v7026
        %v7195 = vsel %vm532, %v1869, %v7028
        %v7196 = vsel %vm532, %v1874, %v7030
        %v7197 = vsel %vm532, %v1958, %v7032
        %v7198 = vsel %vm532, %v1963, %v7034
        %v7199 = vsel %vm532, %v2047, %v7036
        %v7200 = vsel %vm532, %v2052, %v7038
        %v7201 = vsel %vm532, %v2136, %v7040
        %v7202 = vsel %vm532, %v2141, %v7042
        %v7203 = vsel %vm1239, %v7187, %v7076
        %v7204 = vsel %vm1239, %v7188, %v7078
        %v7205 = vsel %vm1239, %v7189, %v7080
        %v7206 = vsel %vm1239, %v7190, %v7082
        %v7207 = vsel %vm1239, %v7191, %v7084
        %v7208 = vsel %vm1239, %v7192, %v7086
        %v7209 = vsel %vm1239, %v7193, %v7088
        %v7210 = vsel %vm1239, %v7194, %v7090
        %v7211 = vsel %vm1239, %v7195, %v7092
        %v7212 = vsel %vm1239, %v7196, %v7094
        %v7213 = vsel %vm1239, %v7197, %v7096
        %v7214 = vsel %vm1239, %v7198, %v7098
        %v7215 = vsel %vm1239, %v7199, %v7100
        %v7216 = vsel %vm1239, %v7200, %v7102
        %v7217 = vsel %vm1239, %v7201, %v7104
        %v7218 = vsel %vm1239, %v7202, %v7106
        %vm7219 = vcmask 195584
        %v7220 = vsel %vm7219, %v7203, %v7140
        %v7221 = vsel %vm7219, %v7204, %v7142
        %v7222 = vsel %vm7219, %v7205, %v7144
        %v7223 = vsel %vm7219, %v7206, %v7146
        %v7224 = vsel %vm7219, %v7207, %v7148
        %v7225 = vsel %vm7219, %v7208, %v7150
        %v7226 = vsel %vm7219, %v7209, %v7152
        %v7227 = vsel %vm7219, %v7210, %v7154
        %v7228 = vsel %vm7219, %v7211, %v7156
        %v7229 = vsel %vm7219, %v7212, %v7158
        %v7230 = vsel %vm7219, %v7213, %v7160
        %v7231 = vsel %vm7219, %v7214, %v7162
        %v7232 = vsel %vm7219, %v7215, %v7164
        %v7233 = vsel %vm7219, %v7216, %v7166
        %v7234 = vsel %vm7219, %v7217, %v7168
        %v7235 = vsel %vm7219, %v7218, %v7170
        %7236 = vst.msk [vmem:[%s276] sm:$0xff] %vm314, %v7220
        %7237 = vst.msk [vmem:[%s276 + $0x8] sm:$0xff] %vm314, %v7221
        %7238 = vst.msk [vmem:[%s276 + $0x10] sm:$0xff] %vm314, %v7222
        %7239 = vst.msk [vmem:[%s276 + $0x18] sm:$0xff] %vm314, %v7223
        %7240 = vst.msk [vmem:[%s276 + $0x20] sm:$0xff] %vm314, %v7224
        %7241 = vst.msk [vmem:[%s276 + $0x28] sm:$0xff] %vm314, %v7225
        %7242 = vst.msk [vmem:[%s276 + $0x30] sm:$0xff] %vm314, %v7226
        %7243 = vst.msk [vmem:[%s276 + $0x38] sm:$0xff] %vm314, %v7227
        %7244 = vst.msk [vmem:[%s276 + $0x40] sm:$0xff] %vm314, %v7228
        %7245 = vst.msk [vmem:[%s276 + $0x48] sm:$0xff] %vm314, %v7229
        %7246 = vst.msk [vmem:[%s276 + $0x50] sm:$0xff] %vm314, %v7230
        %7247 = vst.msk [vmem:[%s276 + $0x58] sm:$0xff] %vm314, %v7231
        %7248 = vst.msk [vmem:[%s276 + $0x60] sm:$0xff] %vm314, %v7232
        %7249 = vst.msk [vmem:[%s276 + $0x68] sm:$0xff] %vm314, %v7233
        %7250 = vst.msk [vmem:[%s276 + $0x70] sm:$0xff] %vm314, %v7234
        %7251 = vst.msk [vmem:[%s276 + $0x78] sm:$0xff] %vm314, %v7235
        %s7252 = sand.u32 %s124, 1
        %s7253 = scalar_lea.sflag [#allocation4], %s7252
        %s7254 = sand.u32 %s124, 1
        %s7255 = smul.addr %s7254, 128
        %s7256 = scalar_lea.vmem [#allocation8], %s7255
        %s7257 = sand.u32 %s150, 1
        %s7258 = scalar_lea.sflag [#allocation10], %s7257
        %s7259 = sand.u32 %s150, 1
        %s7260 = smul.addr %s7259, 512
        %s7261 = scalar_lea.vmem [#allocation9], %s7260
        // Predicated region
        $region49: #{tpu_custom_call.1} parent=35 // pred_check
          %p7262 = pneg %p134
        $region50: #{tpu_custom_call.1} parent=35 // pred_check_branch
          %7264 = sbr.rel (%p7262) target = $region52
        $region51: #{tpu_custom_call.1} parent=35 // pred_region
          %s7265 = smul.u32 8, %s27
          %s7267 = ssub.s32 2048, 2048
          %7268 = vsyncadd %s7253, %s7267
          %s7269 = smul.addr %s7265, 2
          %s7270 = smul.addr %s7269, 128
          %s7271 = scalar_lea.hbm %s4, %s7270
          %s7272 = sshll.u32 %s7256, 4
          %s7273 = int_to_ptr.vmem [resolvable:$true] %s7272
          %7278 = dma.vmem_to_hbm [thread:$0]  %s7273, 2048, %s7271, %s7253, 128, 128, 8
        $region52: #{tpu_custom_call.1} parent=35 // pred_fallthru
          _
        // Predicated region
        $region53: #{tpu_custom_call.1} parent=35 // pred_check
          %p7279 = pneg %p160
        $region54: #{tpu_custom_call.1} parent=35 // pred_check_branch
          %7281 = sbr.rel (%p7279) target = $region56
        $region55: #{tpu_custom_call.1} parent=35 // pred_region
          %s7282 = smul.u32 8, %s27
          %s7284 = ssub.s32 8192, 8192
          %7285 = vsyncadd %s7258, %s7284
          %s7286 = smul.addr %s7282, 8
          %s7287 = smul.addr %s7286, 128
          %s7288 = scalar_lea.hbm %s5, %s7287
          %s7289 = sshll.u32 %s7261, 4
          %s7290 = int_to_ptr.vmem [resolvable:$true] %s7289
          %7295 = dma.vmem_to_hbm [thread:$0]  %s7290, 8192, %s7288, %s7258, 128, 128, 8
        $region56: #{tpu_custom_call.1} parent=35 // pred_fallthru
          _
      $region36: #{tpu_custom_call.1} parent=5 // pred_fallthru
        _
      %p7296 = scmp.le.s32.totalorder 2, %s22
      // Predicated region
      $region57: #{tpu_custom_call.1} parent=5 // pred_check
        %p7297 = pneg %p7296
      $region58: #{tpu_custom_call.1} parent=5 // pred_check_branch
        %7299 = sbr.rel (%p7297) target = $region60
      $region59: #{tpu_custom_call.1} parent=5 // pred_region
        %s7300 = ssub.s32 %s22, 2
        // Predicated region
        $region61: #{tpu_custom_call.1} parent=59 // pred_check
          %p7301 = pneg %p140
        $region62: #{tpu_custom_call.1} parent=59 // pred_check_branch
          %7303 = sbr.rel (%p7301) target = $region64
        $region63: #{tpu_custom_call.1} parent=59 // pred_region
          %s7304 = sand.u32 %s125, 1
          %s7305 = scalar_lea.sflag [#allocation4], %s7304
          %s7306 = sand.u32 %s125, 1
          %s7307 = smul.addr %s7306, 128
          %s7308 = scalar_lea.vmem [#allocation8], %s7307
          %7309 = dma.done %s7305, 2048
        $region64: #{tpu_custom_call.1} parent=59 // pred_fallthru
          _
        // Predicated region
        $region65: #{tpu_custom_call.1} parent=59 // pred_check
          %p7310 = pneg %p166
        $region66: #{tpu_custom_call.1} parent=59 // pred_check_branch
          %7312 = sbr.rel (%p7310) target = $region68
        $region67: #{tpu_custom_call.1} parent=59 // pred_region
          %s7313 = sand.u32 %s151, 1
          %s7314 = scalar_lea.sflag [#allocation10], %s7313
          %s7315 = sand.u32 %s151, 1
          %s7316 = smul.addr %s7315, 512
          %s7317 = scalar_lea.vmem [#allocation9], %s7316
          %7318 = dma.done %s7314, 8192
        $region68: #{tpu_custom_call.1} parent=59 // pred_fallthru
          _
      $region60: #{tpu_custom_call.1} parent=5 // pred_fallthru
        _
    $region6: #{tpu_custom_call.1} parent=1 // loop_footer
      %s26 = sadd.s32 1, %s22
    $region7: #{tpu_custom_call.1} parent=1 // loop_footer_branch
      %21 = sbr.rel target = $region3
    $region8: #{tpu_custom_call.1} parent=1 // loop_exit
      _
    %7319 = vsyncpa [#allocation3], 1
    %s7320 = scalar_lea.sflag [#allocation3], 1
    %7321 = vsyncpa %s7320, 1
    %7322 = vsyncpa [#allocation6], 1
    %7323 = vsyncpa [#allocation4], 1
    %s7324 = scalar_lea.sflag [#allocation4], 1
    %7325 = vsyncpa %s7324, 1
    %7326 = vsyncpa [#allocation10], 1
    %s7327 = scalar_lea.sflag [#allocation10], 1
    %7328 = vsyncpa %s7327, 1

</llo_original>
